<compile_context>
chip_gen: v7x
topology: tpu7x:2x2x1
jax: 0.10.0
libtpu: 0.0.40
codegen_flags: <defaults>
</compile_context>

<pallas_src>
import functools
import math

import numpy as np
import jax
import jax.numpy as jnp
from jax import lax
from jax.experimental import pallas as pl
from jax.experimental.pallas import tpu as pltpu


# ------------------------------ in-kernel helpers ----------------------------

def _layernorm(z, g, b):
    """LayerNorm over the last dim, eps = 1e-5 (PyTorch default), all f32."""
    mu = jnp.mean(z, axis=-1, keepdims=True)
    zc = z - mu
    var = jnp.mean(zc * zc, axis=-1, keepdims=True)
    return zc * lax.rsqrt(var + 1e-5) * g + b


# ----------------------------- fused Pallas kernel ---------------------------

def _fused_kernel(ids_ref, emb_ref, pe_ref,
                  wqkv_ref, bqkv_ref, wo_ref, bo_ref, g1_ref, be1_ref,
                  w1_ref, b1_ref, w2_ref, b2_ref, g2_ref, be2_ref,
                  gf_ref, bf_ref, wp_ref, bp_ref,
                  o_ref, h_ref, *, n_heads, d_query, bt):
    """Whole ImageGenerator forward for one batch tile, one layer per grid step.

    grid = (batch_tiles, n_layers); h_ref (VMEM scratch, (Bt*L, D) f32) carries
    the activation across the layer axis.  Weights arrive with a leading
    size-1 layer block dim selected by the layer grid coordinate.
    """
    lyr = pl.program_id(1)
    H, E = n_heads, d_query
    D = H * E
    L = ids_ref.shape[1]
    M = bt * L

    # ---- layer step 0: value embedding (one-hot MXU matmul) + positional enc ----
    @pl.when(lyr == 0)
    def _():
        ids = ids_ref[...].reshape(M, 1)                       # (M, 1) int32
        V = emb_ref.shape[0]
        onehot = (lax.broadcasted_iota(jnp.int32, (M, V), 1) == ids).astype(jnp.bfloat16)
        emb = jnp.dot(onehot, emb_ref[...],
                      preferred_element_type=jnp.float32)      # (M, D); PE half zero
        h_ref[...] = emb + pe_ref[...]                         # emb half of PE is zero

    h = h_ref[...]                                             # (M, D) f32, VMEM-resident

    # ---- fused QKV projection (bf16 MXU operands, f32 accumulation) ----
    qkv = jnp.dot(h.astype(jnp.bfloat16), wqkv_ref[0],
                  preferred_element_type=jnp.float32) + bqkv_ref[0]     # (M, 3D)
    qkv_b = qkv.astype(jnp.bfloat16)

    # ---- causal softmax attention, batched over the batch tile ----
    row = lax.broadcasted_iota(jnp.int32, (L, L), 0)
    col = lax.broadcasted_iota(jnp.int32, (L, L), 1)
    causal = col <= row
    wo = wo_ref[0]                                             # (D, D) bf16
    attn = h + bo_ref[0]                                       # residual + out-proj bias
    for hh in range(H):                                        # static head loop (H small)
        qh = qkv_b[:, hh * E:(hh + 1) * E].reshape(bt, L, E)   # scale folded into wq
        kh = qkv_b[:, D + hh * E:D + (hh + 1) * E].reshape(bt, L, E)
        vh = qkv_b[:, 2 * D + hh * E:2 * D + (hh + 1) * E].reshape(bt, L, E)
        s = jnp.einsum('ble,bme->blm', qh, kh,
                       preferred_element_type=jnp.float32)     # (bt, L, L) f32
        s = jnp.where(causal, s, -1e30)
        m = jnp.max(s, axis=-1, keepdims=True)
        p = jnp.exp(s - m)
        denom = jnp.sum(p, axis=-1, keepdims=True)
        oh = jnp.einsum('blm,bme->ble', p.astype(jnp.bfloat16), vh,
                        preferred_element_type=jnp.float32)    # (bt, L, E) f32
        oh = oh * pl.reciprocal(denom, approx=True)
        # concat-free merge: fold head output straight into the output projection
        attn = attn + jnp.dot(oh.reshape(M, E).astype(jnp.bfloat16),
                              wo[hh * E:(hh + 1) * E, :],
                              preferred_element_type=jnp.float32)

    h1 = _layernorm(attn, g1_ref[0], be1_ref[0])

    # ---- FFN (w1 + ReLU + w2), intermediate stays in VMEM ----
    y = jnp.dot(h1.astype(jnp.bfloat16), w1_ref[0],
                preferred_element_type=jnp.float32) + b1_ref[0]          # (M, ffn)
    y = jnp.maximum(y, 0.0)
    y = jnp.dot(y.astype(jnp.bfloat16), w2_ref[0],
                preferred_element_type=jnp.float32) + b2_ref[0]          # (M, D)
    h2 = _layernorm(h1 + y, g2_ref[0], be2_ref[0])
    h_ref[...] = h2                                            # carry to next layer step

    # ---- last layer step: final encoder LayerNorm + (lane-dense) mixture head ----
    @pl.when(lyr == pl.num_programs(1) - 1)
    def _():
        hn = _layernorm(h2, gf_ref[...], bf_ref[...])
        out = jnp.dot(hn.astype(jnp.bfloat16), wp_ref[...],
                      preferred_element_type=jnp.float32) + bp_ref[...]  # (M, Np)
        o_ref[...] = out.reshape(bt, L, -1)


# ------------------------------ Pallas wrapper -------------------------------

def _choose_batch_tile(B, L, max_rows=2048):
    """Largest divisor of B whose flattened row count stays VMEM-friendly."""
    best = 1
    for cand in range(1, B + 1):
        if B % cand == 0 and cand * L <= max_rows:
            best = cand
    return best


def _vmem_limit_bytes(bt, L, D, ffn, vocab, n_out_pad):
    """Rough fused-kernel footprint; clamp to [24 MiB, 56 MiB] (fits v7x 64 MiB)."""
    rows = bt * L
    f4, b2 = 4, 2
    layer_w = b2 * (3 * D * D + D * D + D * ffn + ffn * D) + f4 * (3 * D + 6 * D + ffn)
    consts = (b2 * vocab * D + f4 * rows * D + b2 * D * n_out_pad
              + f4 * (2 * D + n_out_pad) + f4 * rows)
    out_blk = f4 * rows * n_out_pad
    acts = f4 * (rows * (3 * D + ffn + 4 * D) + bt * L * L + rows * n_out_pad)
    total = 2 * (layer_w + consts + out_blk) + acts + f4 * rows * D
    limit = int(1.5 * total) + (8 << 20)
    return int(max(24 << 20, min(limit, 56 << 20)))


def image_generator_forward(x_ids, params, n_heads, d_query, n_out):
    """x_ids: (B, H_img, W_img) int32 pixel values in [0, 256)."""
    B = x_ids.shape[0]
    ids = x_ids.reshape(B, -1).astype(jnp.int32)               # x.view(B, -1)
    L = ids.shape[1]
    D = n_heads * d_query

    stk = params['layers']
    NL = stk['wqkv'].shape[0]
    ffn = stk['w1'].shape[2]
    Np = params['wp'].shape[1]
    V = params['emb'].shape[0]

    bt = _choose_batch_tile(B, L)
    nbt = B // bt
    M = bt * L

    ids3 = ids[..., None]                                      # (B, L, 1)
    pe_t = jnp.tile(params['pe'][:L], (bt, 1))                 # (M, D) f32, lane-dense

    def const(a):
        return pl.BlockSpec(a.shape, lambda b, l: (0,) * a.ndim)

    def per_layer(a):
        nd0 = a.ndim - 1
        return pl.BlockSpec((1,) + a.shape[1:], lambda b, l: (l,) + (0,) * nd0)

    w_names = ('wqkv', 'bqkv', 'wo', 'bo', 'g1', 'be1',
               'w1', 'b1', 'w2', 'b2', 'g2', 'be2')

    out = pl.pallas_call(
        functools.partial(_fused_kernel, n_heads=n_heads, d_query=d_query, bt=bt),
        out_shape=jax.ShapeDtypeStruct((B, L, Np), jnp.float32),
        grid=(nbt, NL),
        in_specs=([pl.BlockSpec((bt, L, 1), lambda b, l: (b, 0, 0)),
                   const(params['emb']), const(pe_t)]
                  + [per_layer(stk[k]) for k in w_names]
                  + [const(params['gf']), const(params['bf']),
                     const(params['wp']), const(params['bp'])]),
        out_specs=pl.BlockSpec((bt, L, Np), lambda b, l: (b, 0, 0)),
        scratch_shapes=[pltpu.VMEM((M, D), jnp.float32)],
        compiler_params=pltpu.CompilerParams(
            dimension_semantics=("parallel", "arbitrary"),
            vmem_limit_bytes=_vmem_limit_bytes(bt, L, D, ffn, V, Np)),
    )(ids3, params['emb'], pe_t, *[stk[k] for k in w_names],
      params['gf'], params['bf'], params['wp'], params['bp'])

    return out[..., :n_out]                                    # (B, L, mixtures*3)


# ------------------------------ parameter init -------------------------------

def make_positional_encoding(max_len, d):
    position = np.arange(max_len, dtype=np.float32)[:, None]
    div_term = np.exp(np.arange(0, d, 2, dtype=np.float32) * (-math.log(10000.0) / d))
    pe = np.zeros((max_len, d), dtype=np.float32)
    pe[:, 0::2] = np.sin(position * div_term)
    pe[:, 1::2] = np.cos(position * div_term)
    return jnp.asarray(pe)


def init_params(key, *, d_model, seq_len, mixtures, n_layers, n_heads, d_query, vocab=256):
    Dh = d_model // 2
    D = n_heads * d_query
    assert D == d_model, "hidden size (n_heads*d_query) must equal d_model"
    ffn = n_heads * d_query * 4

    def dense(k, fi, fo):
        kw, kb = jax.random.split(k)
        w = (jax.random.normal(kw, (fi, fo), jnp.float32) / np.sqrt(fi)).astype(jnp.float32)
        b = 0.01 * jax.random.normal(kb, (fo,), jnp.float32)
        return w, b

    keys = jax.random.split(key, n_layers + 2)
    params = {
        'emb': 0.02 * jax.random.normal(keys[0], (vocab, Dh), jnp.float32),
        'pe': make_positional_encoding(seq_len, Dh),
    }
    layers = []
    for i in range(n_layers):
        lk = jax.random.split(keys[1 + i], 8)
        wq, bq = dense(lk[0], D, D)
        wk, bk = dense(lk[1], D, D)
        wv, bv = dense(lk[2], D, D)
        wo, bo = dense(lk[3], D, D)
        w1, b1 = dense(lk[4], D, ffn)
        w2, b2 = dense(lk[5], ffn, D)
        g1 = 1.0 + 0.01 * jax.random.normal(lk[6], (D,), jnp.float32)
        g2 = 1.0 + 0.01 * jax.random.normal(lk[7], (D,), jnp.float32)
        layers.append(dict(wq=wq, bq=bq, wk=wk, bk=bk, wv=wv, bv=bv, wo=wo, bo=bo,
                           w1=w1, b1=b1, w2=w2, b2=b2,
                           g1=g1, be1=jnp.zeros((D,), jnp.float32),
                           g2=g2, be2=jnp.zeros((D,), jnp.float32)))
    params['layers'] = layers
    params['gf'] = jnp.ones((D,), jnp.float32)
    params['bf'] = jnp.zeros((D,), jnp.float32)
    params['wp'], params['bp'] = dense(keys[-1], D, mixtures * 3)
    return params


def prepare_params(raw, *, n_heads, d_query):
    """Fold attn scale into Wq, fuse+stack QKV per layer, lane-pad embed/PE/head,
    cast MXU weights to bf16."""
    D = n_heads * d_query
    Dh = raw['emb'].shape[1]
    V = raw['emb'].shape[0]
    max_len = raw['pe'].shape[0]
    scale = 1.0 / math.sqrt(d_query)

    # lane-pad embedding table / PE to full width D so emb + pe is one dense add
    emb_pad = jnp.zeros((V, D), jnp.float32).at[:, :Dh].set(raw['emb'])
    pe_pad = jnp.zeros((max_len, D), jnp.float32).at[:, Dh:].set(raw['pe'])

    # lane-dense padded mixture head
    n_out = raw['wp'].shape[1]
    Np = max(128, ((n_out + 127) // 128) * 128)
    wp = jnp.zeros((D, Np), jnp.float32).at[:, :n_out].set(raw['wp'])
    bp = jnp.zeros((Np,), jnp.float32).at[:n_out].set(raw['bp'])

    def stack(fn):
        return jnp.stack([fn(lp) for lp in raw['layers']], axis=0)

    layers = {
        'wqkv': stack(lambda lp: jnp.concatenate(
            [lp['wq'] * scale, lp['wk'], lp['wv']], axis=1).astype(jnp.bfloat16)),
        'bqkv': stack(lambda lp: jnp.concatenate(
            [lp['bq'] * scale, lp['bk'], lp['bv']], axis=0).reshape(1, -1)),
        'wo': stack(lambda lp: lp['wo'].astype(jnp.bfloat16)),
        'bo': stack(lambda lp: lp['bo'].reshape(1, D)),
        'g1': stack(lambda lp: lp['g1'].reshape(1, D)),
        'be1': stack(lambda lp: lp['be1'].reshape(1, D)),
        'w1': stack(lambda lp: lp['w1'].astype(jnp.bfloat16)),
        'b1': stack(lambda lp: lp['b1'].reshape(1, -1)),
        'w2': stack(lambda lp: lp['w2'].astype(jnp.bfloat16)),
        'b2': stack(lambda lp: lp['b2'].reshape(1, D)),
        'g2': stack(lambda lp: lp['g2'].reshape(1, D)),
        'be2': stack(lambda lp: lp['be2'].reshape(1, D)),
    }

    return {
        'emb': emb_pad.astype(jnp.bfloat16),
        'pe': pe_pad,
        'gf': raw['gf'].reshape(1, D),
        'bf': raw['bf'].reshape(1, D),
        'wp': wp.astype(jnp.bfloat16),
        'bp': bp.reshape(1, Np),
        'layers': layers,
    }


# ----------------------------------- main ------------------------------------

if __name__ == "__main__":
    # Small config: 8x8 "image" -> seq_len=64, d_model=128, 2 layers, 4 heads x 32.
    B, IMG = 2, 8
    d_model, n_layers, n_heads, d_query, mixtures = 128, 2, 4, 32, 10
    seq_len = IMG * IMG

    key = jax.random.PRNGKey(0)
    kp, kx = jax.random.split(key)
    raw = init_params(kp, d_model=d_model, seq_len=seq_len, mixtures=mixtures,
                      n_layers=n_layers, n_heads=n_heads, d_query=d_query)
    params = prepare_params(raw, n_heads=n_heads, d_query=d_query)
    x = jax.random.randint(kx, (B, IMG, IMG), 0, 256, dtype=jnp.int32)

    fwd = jax.jit(functools.partial(image_generator_forward,
                                    n_heads=n_heads, d_query=d_query,
                                    n_out=mixtures * 3))
    y = fwd(x, params)
    jax.block_until_ready(y)
    assert y.shape == (B, seq_len, mixtures * 3) and y.dtype == jnp.float32
    assert bool(jnp.isfinite(y).all())
    print("KERNEL_OK")
</pallas_src>

<mosaic_0001>
module attributes {stable_mosaic.version = 11 : i64} {
  func.func @_fused_kernel(%arg0: i32, %arg1: i32, %arg2: memref<2x64x1xi32, #tpu.memory_space<vmem>>, %arg3: memref<256x128xbf16, #tpu.memory_space<vmem>>, %arg4: memref<128x128xf32, #tpu.memory_space<vmem>>, %arg5: memref<1x128x384xbf16, #tpu.memory_space<vmem>>, %arg6: memref<1x1x384xf32, #tpu.memory_space<vmem>>, %arg7: memref<1x128x128xbf16, #tpu.memory_space<vmem>>, %arg8: memref<1x1x128xf32, #tpu.memory_space<vmem>>, %arg9: memref<1x1x128xf32, #tpu.memory_space<vmem>>, %arg10: memref<1x1x128xf32, #tpu.memory_space<vmem>>, %arg11: memref<1x128x512xbf16, #tpu.memory_space<vmem>>, %arg12: memref<1x1x512xf32, #tpu.memory_space<vmem>>, %arg13: memref<1x512x128xbf16, #tpu.memory_space<vmem>>, %arg14: memref<1x1x128xf32, #tpu.memory_space<vmem>>, %arg15: memref<1x1x128xf32, #tpu.memory_space<vmem>>, %arg16: memref<1x1x128xf32, #tpu.memory_space<vmem>>, %arg17: memref<1x128xf32, #tpu.memory_space<vmem>>, %arg18: memref<1x128xf32, #tpu.memory_space<vmem>>, %arg19: memref<128x128xbf16, #tpu.memory_space<vmem>>, %arg20: memref<1x128xf32, #tpu.memory_space<vmem>>, %arg21: memref<2x64x128xf32, #tpu.memory_space<vmem>>, %arg22: memref<128x128xf32, #tpu.memory_space<vmem>>) attributes {dimension_semantics = [#tpu.dimension_semantics<parallel>, #tpu.dimension_semantics<arbitrary>], iteration_bounds = array<i64: 1, 2>, scalar_prefetch = 0 : i64, scratch_operands = 1 : i64, tpu.core_type = #tpu.core_type<tc>, window_params = [{transform_indices = @transform_0, window_bounds = array<i64: 2, 64, 1>}, {pipeline_mode = #tpu.pipeline_mode<synchronous>, transform_indices = @transform_1, window_bounds = array<i64: 256, 128>}, {pipeline_mode = #tpu.pipeline_mode<synchronous>, transform_indices = @transform_2, window_bounds = array<i64: 128, 128>}, {transform_indices = @transform_3, window_bounds = array<i64: 1, 128, 384>}, {transform_indices = @transform_4, window_bounds = array<i64: 1, 1, 384>}, {transform_indices = @transform_5, window_bounds = array<i64: 1, 128, 128>}, {transform_indices = @transform_6, window_bounds = array<i64: 1, 1, 128>}, {transform_indices = @transform_7, window_bounds = array<i64: 1, 1, 128>}, {transform_indices = @transform_8, window_bounds = array<i64: 1, 1, 128>}, {transform_indices = @transform_9, window_bounds = array<i64: 1, 128, 512>}, {transform_indices = @transform_10, window_bounds = array<i64: 1, 1, 512>}, {transform_indices = @transform_11, window_bounds = array<i64: 1, 512, 128>}, {transform_indices = @transform_12, window_bounds = array<i64: 1, 1, 128>}, {transform_indices = @transform_13, window_bounds = array<i64: 1, 1, 128>}, {transform_indices = @transform_14, window_bounds = array<i64: 1, 1, 128>}, {pipeline_mode = #tpu.pipeline_mode<synchronous>, transform_indices = @transform_15, window_bounds = array<i64: 1, 128>}, {pipeline_mode = #tpu.pipeline_mode<synchronous>, transform_indices = @transform_16, window_bounds = array<i64: 1, 128>}, {pipeline_mode = #tpu.pipeline_mode<synchronous>, transform_indices = @transform_17, window_bounds = array<i64: 128, 128>}, {pipeline_mode = #tpu.pipeline_mode<synchronous>, transform_indices = @transform_18, window_bounds = array<i64: 1, 128>}, {transform_indices = @transform_19, window_bounds = array<i64: 2, 64, 128>}]} {
    %c0_i32 = arith.constant 0 : i32
    %0 = arith.cmpi eq, %arg1, %c0_i32 : i32
    %1 = arith.extui %0 : i1 to i32
    %c0_i32_0 = arith.constant 0 : i32
    %2 = arith.cmpi ne, %1, %c0_i32_0 : i32
    scf.if %2 {
      %c0_78 = arith.constant 0 : index
      %c0_79 = arith.constant 0 : index
      %c0_80 = arith.constant 0 : index
      %205 = vector.load %arg2[%c0_78, %c0_79, %c0_80] : memref<2x64x1xi32, #tpu.memory_space<vmem>>, vector<2x64x1xi32>
      %206 = vector.shape_cast %205 : vector<2x64x1xi32> to vector<128x1xi32>
      %207 = tpu.iota {dimensions = array<i32: 1>} : vector<128x256xi32>
      %208 = vector.broadcast %206 : vector<128x1xi32> to vector<128x256xi32>
      %209 = arith.cmpi eq, %207, %208 : vector<128x256xi32>
      %210 = arith.extui %209 : vector<128x256xi1> to vector<128x256xi32>
      %211 = arith.sitofp %210 : vector<128x256xi32> to vector<128x256xf32>
      %212 = arith.truncf %211 : vector<128x256xf32> to vector<128x256xbf16>
      %c0_81 = arith.constant 0 : index
      %c0_82 = arith.constant 0 : index
      %213 = vector.load %arg3[%c0_81, %c0_82] : memref<256x128xbf16, #tpu.memory_space<vmem>>, vector<256x128xbf16>
      %cst_83 = arith.constant dense<0.000000e+00> : vector<128x128xf32>
      %214 = tpu.matmul %212, %213, %cst_83 {dimension_numbers = #tpu.dot_dimension_numbers<[1], [0], [0], [1], [0, 0, 1, 1], [], []>} : vector<128x256xbf16>, vector<256x128xbf16>, vector<128x128xf32> -> vector<128x128xf32>
      %c0_84 = arith.constant 0 : index
      %c0_85 = arith.constant 0 : index
      %215 = vector.load %arg4[%c0_84, %c0_85] : memref<128x128xf32, #tpu.memory_space<vmem>>, vector<128x128xf32>
      %216 = arith.addf %214, %215 : vector<128x128xf32>
      %c0_86 = arith.constant 0 : index
      %c0_87 = arith.constant 0 : index
      %217 = vector.load %arg22[%c0_86, %c0_87] : memref<128x128xf32, #tpu.memory_space<vmem>>, vector<128x128xf32>
      tpu.vector_store %arg22[%c0_86, %c0_87], %216 {strides = array<i32>} : memref<128x128xf32, #tpu.memory_space<vmem>>, vector<128x128xf32>,
    } else {
    }
    %c0 = arith.constant 0 : index
    %c0_1 = arith.constant 0 : index
    %3 = vector.load %arg22[%c0, %c0_1] : memref<128x128xf32, #tpu.memory_space<vmem>>, vector<128x128xf32>
    %4 = arith.truncf %3 : vector<128x128xf32> to vector<128x128xbf16>
    %c0_2 = arith.constant 0 : index
    %c0_3 = arith.constant 0 : index
    %c0_4 = arith.constant 0 : index
    %5 = vector.load %arg5[%c0_2, %c0_3, %c0_4] : memref<1x128x384xbf16, #tpu.memory_space<vmem>>, vector<1x128x384xbf16>
    %6 = vector.shape_cast %5 : vector<1x128x384xbf16> to vector<128x384xbf16>
    %cst = arith.constant dense<0.000000e+00> : vector<128x384xf32>
    %7 = tpu.matmul %4, %6, %cst {dimension_numbers = #tpu.dot_dimension_numbers<[1], [0], [0], [1], [0, 0, 1, 1], [], []>} : vector<128x128xbf16>, vector<128x384xbf16>, vector<128x384xf32> -> vector<128x384xf32>
    %c0_5 = arith.constant 0 : index
    %c0_6 = arith.constant 0 : index
    %c0_7 = arith.constant 0 : index
    %8 = vector.load %arg6[%c0_5, %c0_6, %c0_7] : memref<1x1x384xf32, #tpu.memory_space<vmem>>, vector<1x1x384xf32>
    %9 = vector.shape_cast %8 : vector<1x1x384xf32> to vector<1x384xf32>
    %10 = vector.broadcast %9 : vector<1x384xf32> to vector<128x384xf32>
    %11 = arith.addf %7, %10 : vector<128x384xf32>
    %12 = arith.truncf %11 : vector<128x384xf32> to vector<128x384xbf16>
    %13 = tpu.iota {dimensions = array<i32: 0>} : vector<64x64xi32>
    %14 = tpu.iota {dimensions = array<i32: 1>} : vector<64x64xi32>
    %15 = arith.cmpi sle, %14, %13 : vector<64x64xi32>
    %c0_8 = arith.constant 0 : index
    %c0_9 = arith.constant 0 : index
    %c0_10 = arith.constant 0 : index
    %16 = vector.load %arg7[%c0_8, %c0_9, %c0_10] : memref<1x128x128xbf16, #tpu.memory_space<vmem>>, vector<1x128x128xbf16>
    %17 = vector.shape_cast %16 : vector<1x128x128xbf16> to vector<128x128xbf16>
    %c0_11 = arith.constant 0 : index
    %c0_12 = arith.constant 0 : index
    %c0_13 = arith.constant 0 : index
    %18 = vector.load %arg8[%c0_11, %c0_12, %c0_13] : memref<1x1x128xf32, #tpu.memory_space<vmem>>, vector<1x1x128xf32>
    %19 = vector.shape_cast %18 : vector<1x1x128xf32> to vector<1x128xf32>
    %20 = vector.broadcast %19 : vector<1x128xf32> to vector<128x128xf32>
    %21 = arith.addf %3, %20 : vector<128x128xf32>
    %22 = vector.extract_strided_slice %12 {offsets = [0, 0], sizes = [128, 32], strides = [1, 1]} : vector<128x384xbf16> to vector<128x32xbf16>
    %23 = vector.shape_cast %22 : vector<128x32xbf16> to vector<2x64x32xbf16>
    %24 = vector.extract_strided_slice %12 {offsets = [0, 128], sizes = [128, 32], strides = [1, 1]} : vector<128x384xbf16> to vector<128x32xbf16>
    %25 = vector.shape_cast %24 : vector<128x32xbf16> to vector<2x64x32xbf16>
    %26 = vector.extract_strided_slice %12 {offsets = [0, 256], sizes = [128, 32], strides = [1, 1]} : vector<128x384xbf16> to vector<128x32xbf16>
    %27 = vector.shape_cast %26 : vector<128x32xbf16> to vector<2x64x32xbf16>
    "tpu.trace_start"() <{level = 10 : i32, message = "ble,bme->blm"}> : () -> ()
    %cst_14 = arith.constant dense<0.000000e+00> : vector<2x64x64xf32>
    %28 = tpu.matmul %23, %25, %cst_14 {dimension_numbers = #tpu.dot_dimension_numbers<[2], [2], [1], [1], [0, 0, 0, 1, 1, 1], [0], [0]>} : vector<2x64x32xbf16>, vector<2x64x32xbf16>, vector<2x64x64xf32> -> vector<2x64x64xf32>
    %cst_15 = arith.constant -1.000000e+30 : f32
    "tpu.trace_stop"() : () -> ()
    %29 = vector.shape_cast %15 : vector<64x64xi1> to vector<1x64x64xi1>
    %30 = vector.broadcast %29 : vector<1x64x64xi1> to vector<2x64x64xi1>
    %31 = vector.broadcast %cst_15 : f32 to vector<2x64x64xf32>
    %32 = arith.select %30, %28, %31 : vector<2x64x64xi1>, vector<2x64x64xf32>
    %cst_16 = arith.constant dense<0xFF800000> : vector<2x64xf32>
    %33 = vector.multi_reduction <maximumf>, %32, %cst_16 [2] : vector<2x64x64xf32> to vector<2x64xf32>
    %34 = vector.shape_cast %33 : vector<2x64xf32> to vector<2x64x1xf32>
    %35 = vector.broadcast %34 : vector<2x64x1xf32> to vector<2x64x64xf32>
    %36 = arith.subf %32, %35 : vector<2x64x64xf32>
    %37 = math.exp %36 : vector<2x64x64xf32>
    %cst_17 = arith.constant dense<0.000000e+00> : vector<2x64xf32>
    %38 = vector.multi_reduction <add>, %37, %cst_17 [2] : vector<2x64x64xf32> to vector<2x64xf32>
    %39 = vector.shape_cast %38 : vector<2x64xf32> to vector<2x64x1xf32>
    %40 = arith.truncf %37 : vector<2x64x64xf32> to vector<2x64x64xbf16>
    "tpu.trace_start"() <{level = 10 : i32, message = "blm,bme->ble"}> : () -> ()
    %cst_18 = arith.constant dense<0.000000e+00> : vector<2x64x32xf32>
    %41 = tpu.matmul %40, %27, %cst_18 {dimension_numbers = #tpu.dot_dimension_numbers<[2], [1], [1], [2], [0, 0, 0, 1, 1, 2], [0], [0]>} : vector<2x64x64xbf16>, vector<2x64x32xbf16>, vector<2x64x32xf32> -> vector<2x64x32xf32>
    "tpu.trace_stop"() : () -> ()
    %42 = tpu.reciprocal %39 {approx = true} : vector<2x64x1xf32> -> vector<2x64x1xf32>
    %43 = vector.broadcast %42 : vector<2x64x1xf32> to vector<2x64x32xf32>
    %44 = arith.mulf %41, %43 : vector<2x64x32xf32>
    %45 = vector.shape_cast %44 : vector<2x64x32xf32> to vector<128x32xf32>
    %46 = arith.truncf %45 : vector<128x32xf32> to vector<128x32xbf16>
    %47 = vector.extract_strided_slice %17 {offsets = [0, 0], sizes = [32, 128], strides = [1, 1]} : vector<128x128xbf16> to vector<32x128xbf16>
    %cst_19 = arith.constant dense<0.000000e+00> : vector<128x128xf32>
    %48 = tpu.matmul %46, %47, %cst_19 {dimension_numbers = #tpu.dot_dimension_numbers<[1], [0], [0], [1], [0, 0, 1, 1], [], []>} : vector<128x32xbf16>, vector<32x128xbf16>, vector<128x128xf32> -> vector<128x128xf32>
    %49 = arith.addf %21, %48 : vector<128x128xf32>
    %50 = vector.extract_strided_slice %12 {offsets = [0, 32], sizes = [128, 32], strides = [1, 1]} : vector<128x384xbf16> to vector<128x32xbf16>
    %51 = vector.shape_cast %50 : vector<128x32xbf16> to vector<2x64x32xbf16>
    %52 = vector.extract_strided_slice %12 {offsets = [0, 160], sizes = [128, 32], strides = [1, 1]} : vector<128x384xbf16> to vector<128x32xbf16>
    %53 = vector.shape_cast %52 : vector<128x32xbf16> to vector<2x64x32xbf16>
    %54 = vector.extract_strided_slice %12 {offsets = [0, 288], sizes = [128, 32], strides = [1, 1]} : vector<128x384xbf16> to vector<128x32xbf16>
    %55 = vector.shape_cast %54 : vector<128x32xbf16> to vector<2x64x32xbf16>
    "tpu.trace_start"() <{level = 10 : i32, message = "ble,bme->blm"}> : () -> ()
    %cst_20 = arith.constant dense<0.000000e+00> : vector<2x64x64xf32>
    %56 = tpu.matmul %51, %53, %cst_20 {dimension_numbers = #tpu.dot_dimension_numbers<[2], [2], [1], [1], [0, 0, 0, 1, 1, 1], [0], [0]>} : vector<2x64x32xbf16>, vector<2x64x32xbf16>, vector<2x64x64xf32> -> vector<2x64x64xf32>
    %cst_21 = arith.constant -1.000000e+30 : f32
    "tpu.trace_stop"() : () -> ()
    %57 = vector.shape_cast %15 : vector<64x64xi1> to vector<1x64x64xi1>
    %58 = vector.broadcast %57 : vector<1x64x64xi1> to vector<2x64x64xi1>
    %59 = vector.broadcast %cst_21 : f32 to vector<2x64x64xf32>
    %60 = arith.select %58, %56, %59 : vector<2x64x64xi1>, vector<2x64x64xf32>
    %cst_22 = arith.constant dense<0xFF800000> : vector<2x64xf32>
    %61 = vector.multi_reduction <maximumf>, %60, %cst_22 [2] : vector<2x64x64xf32> to vector<2x64xf32>
    %62 = vector.shape_cast %61 : vector<2x64xf32> to vector<2x64x1xf32>
    %63 = vector.broadcast %62 : vector<2x64x1xf32> to vector<2x64x64xf32>
    %64 = arith.subf %60, %63 : vector<2x64x64xf32>
    %65 = math.exp %64 : vector<2x64x64xf32>
    %cst_23 = arith.constant dense<0.000000e+00> : vector<2x64xf32>
    %66 = vector.multi_reduction <add>, %65, %cst_23 [2] : vector<2x64x64xf32> to vector<2x64xf32>
    %67 = vector.shape_cast %66 : vector<2x64xf32> to vector<2x64x1xf32>
    %68 = arith.truncf %65 : vector<2x64x64xf32> to vector<2x64x64xbf16>
    "tpu.trace_start"() <{level = 10 : i32, message = "blm,bme->ble"}> : () -> ()
    %cst_24 = arith.constant dense<0.000000e+00> : vector<2x64x32xf32>
    %69 = tpu.matmul %68, %55, %cst_24 {dimension_numbers = #tpu.dot_dimension_numbers<[2], [1], [1], [2], [0, 0, 0, 1, 1, 2], [0], [0]>} : vector<2x64x64xbf16>, vector<2x64x32xbf16>, vector<2x64x32xf32> -> vector<2x64x32xf32>
    "tpu.trace_stop"() : () -> ()
    %70 = tpu.reciprocal %67 {approx = true} : vector<2x64x1xf32> -> vector<2x64x1xf32>
    %71 = vector.broadcast %70 : vector<2x64x1xf32> to vector<2x64x32xf32>
    %72 = arith.mulf %69, %71 : vector<2x64x32xf32>
    %73 = vector.shape_cast %72 : vector<2x64x32xf32> to vector<128x32xf32>
    %74 = arith.truncf %73 : vector<128x32xf32> to vector<128x32xbf16>
    %75 = vector.extract_strided_slice %17 {offsets = [32, 0], sizes = [32, 128], strides = [1, 1]} : vector<128x128xbf16> to vector<32x128xbf16>
    %cst_25 = arith.constant dense<0.000000e+00> : vector<128x128xf32>
    %76 = tpu.matmul %74, %75, %cst_25 {dimension_numbers = #tpu.dot_dimension_numbers<[1], [0], [0], [1], [0, 0, 1, 1], [], []>} : vector<128x32xbf16>, vector<32x128xbf16>, vector<128x128xf32> -> vector<128x128xf32>
    %77 = arith.addf %49, %76 : vector<128x128xf32>
    %78 = vector.extract_strided_slice %12 {offsets = [0, 64], sizes = [128, 32], strides = [1, 1]} : vector<128x384xbf16> to vector<128x32xbf16>
    %79 = vector.shape_cast %78 : vector<128x32xbf16> to vector<2x64x32xbf16>
    %80 = vector.extract_strided_slice %12 {offsets = [0, 192], sizes = [128, 32], strides = [1, 1]} : vector<128x384xbf16> to vector<128x32xbf16>
    %81 = vector.shape_cast %80 : vector<128x32xbf16> to vector<2x64x32xbf16>
    %82 = vector.extract_strided_slice %12 {offsets = [0, 320], sizes = [128, 32], strides = [1, 1]} : vector<128x384xbf16> to vector<128x32xbf16>
    %83 = vector.shape_cast %82 : vector<128x32xbf16> to vector<2x64x32xbf16>
    "tpu.trace_start"() <{level = 10 : i32, message = "ble,bme->blm"}> : () -> ()
    %cst_26 = arith.constant dense<0.000000e+00> : vector<2x64x64xf32>
    %84 = tpu.matmul %79, %81, %cst_26 {dimension_numbers = #tpu.dot_dimension_numbers<[2], [2], [1], [1], [0, 0, 0, 1, 1, 1], [0], [0]>} : vector<2x64x32xbf16>, vector<2x64x32xbf16>, vector<2x64x64xf32> -> vector<2x64x64xf32>
    %cst_27 = arith.constant -1.000000e+30 : f32
    "tpu.trace_stop"() : () -> ()
    %85 = vector.shape_cast %15 : vector<64x64xi1> to vector<1x64x64xi1>
    %86 = vector.broadcast %85 : vector<1x64x64xi1> to vector<2x64x64xi1>
    %87 = vector.broadcast %cst_27 : f32 to vector<2x64x64xf32>
    %88 = arith.select %86, %84, %87 : vector<2x64x64xi1>, vector<2x64x64xf32>
    %cst_28 = arith.constant dense<0xFF800000> : vector<2x64xf32>
    %89 = vector.multi_reduction <maximumf>, %88, %cst_28 [2] : vector<2x64x64xf32> to vector<2x64xf32>
    %90 = vector.shape_cast %89 : vector<2x64xf32> to vector<2x64x1xf32>
    %91 = vector.broadcast %90 : vector<2x64x1xf32> to vector<2x64x64xf32>
    %92 = arith.subf %88, %91 : vector<2x64x64xf32>
    %93 = math.exp %92 : vector<2x64x64xf32>
    %cst_29 = arith.constant dense<0.000000e+00> : vector<2x64xf32>
    %94 = vector.multi_reduction <add>, %93, %cst_29 [2] : vector<2x64x64xf32> to vector<2x64xf32>
    %95 = vector.shape_cast %94 : vector<2x64xf32> to vector<2x64x1xf32>
    %96 = arith.truncf %93 : vector<2x64x64xf32> to vector<2x64x64xbf16>
    "tpu.trace_start"() <{level = 10 : i32, message = "blm,bme->ble"}> : () -> ()
    %cst_30 = arith.constant dense<0.000000e+00> : vector<2x64x32xf32>
    %97 = tpu.matmul %96, %83, %cst_30 {dimension_numbers = #tpu.dot_dimension_numbers<[2], [1], [1], [2], [0, 0, 0, 1, 1, 2], [0], [0]>} : vector<2x64x64xbf16>, vector<2x64x32xbf16>, vector<2x64x32xf32> -> vector<2x64x32xf32>
    "tpu.trace_stop"() : () -> ()
    %98 = tpu.reciprocal %95 {approx = true} : vector<2x64x1xf32> -> vector<2x64x1xf32>
    %99 = vector.broadcast %98 : vector<2x64x1xf32> to vector<2x64x32xf32>
    %100 = arith.mulf %97, %99 : vector<2x64x32xf32>
    %101 = vector.shape_cast %100 : vector<2x64x32xf32> to vector<128x32xf32>
    %102 = arith.truncf %101 : vector<128x32xf32> to vector<128x32xbf16>
    %103 = vector.extract_strided_slice %17 {offsets = [64, 0], sizes = [32, 128], strides = [1, 1]} : vector<128x128xbf16> to vector<32x128xbf16>
    %cst_31 = arith.constant dense<0.000000e+00> : vector<128x128xf32>
    %104 = tpu.matmul %102, %103, %cst_31 {dimension_numbers = #tpu.dot_dimension_numbers<[1], [0], [0], [1], [0, 0, 1, 1], [], []>} : vector<128x32xbf16>, vector<32x128xbf16>, vector<128x128xf32> -> vector<128x128xf32>
    %105 = arith.addf %77, %104 : vector<128x128xf32>
    %106 = vector.extract_strided_slice %12 {offsets = [0, 96], sizes = [128, 32], strides = [1, 1]} : vector<128x384xbf16> to vector<128x32xbf16>
    %107 = vector.shape_cast %106 : vector<128x32xbf16> to vector<2x64x32xbf16>
    %108 = vector.extract_strided_slice %12 {offsets = [0, 224], sizes = [128, 32], strides = [1, 1]} : vector<128x384xbf16> to vector<128x32xbf16>
    %109 = vector.shape_cast %108 : vector<128x32xbf16> to vector<2x64x32xbf16>
    %110 = vector.extract_strided_slice %12 {offsets = [0, 352], sizes = [128, 32], strides = [1, 1]} : vector<128x384xbf16> to vector<128x32xbf16>
    %111 = vector.shape_cast %110 : vector<128x32xbf16> to vector<2x64x32xbf16>
    "tpu.trace_start"() <{level = 10 : i32, message = "ble,bme->blm"}> : () -> ()
    %cst_32 = arith.constant dense<0.000000e+00> : vector<2x64x64xf32>
    %112 = tpu.matmul %107, %109, %cst_32 {dimension_numbers = #tpu.dot_dimension_numbers<[2], [2], [1], [1], [0, 0, 0, 1, 1, 1], [0], [0]>} : vector<2x64x32xbf16>, vector<2x64x32xbf16>, vector<2x64x64xf32> -> vector<2x64x64xf32>
    %cst_33 = arith.constant -1.000000e+30 : f32
    "tpu.trace_stop"() : () -> ()
    %113 = vector.shape_cast %15 : vector<64x64xi1> to vector<1x64x64xi1>
    %114 = vector.broadcast %113 : vector<1x64x64xi1> to vector<2x64x64xi1>
    %115 = vector.broadcast %cst_33 : f32 to vector<2x64x64xf32>
    %116 = arith.select %114, %112, %115 : vector<2x64x64xi1>, vector<2x64x64xf32>
    %cst_34 = arith.constant dense<0xFF800000> : vector<2x64xf32>
    %117 = vector.multi_reduction <maximumf>, %116, %cst_34 [2] : vector<2x64x64xf32> to vector<2x64xf32>
    %118 = vector.shape_cast %117 : vector<2x64xf32> to vector<2x64x1xf32>
    %119 = vector.broadcast %118 : vector<2x64x1xf32> to vector<2x64x64xf32>
    %120 = arith.subf %116, %119 : vector<2x64x64xf32>
    %121 = math.exp %120 : vector<2x64x64xf32>
    %cst_35 = arith.constant dense<0.000000e+00> : vector<2x64xf32>
    %122 = vector.multi_reduction <add>, %121, %cst_35 [2] : vector<2x64x64xf32> to vector<2x64xf32>
    %123 = vector.shape_cast %122 : vector<2x64xf32> to vector<2x64x1xf32>
    %124 = arith.truncf %121 : vector<2x64x64xf32> to vector<2x64x64xbf16>
    "tpu.trace_start"() <{level = 10 : i32, message = "blm,bme->ble"}> : () -> ()
    %cst_36 = arith.constant dense<0.000000e+00> : vector<2x64x32xf32>
    %125 = tpu.matmul %124, %111, %cst_36 {dimension_numbers = #tpu.dot_dimension_numbers<[2], [1], [1], [2], [0, 0, 0, 1, 1, 2], [0], [0]>} : vector<2x64x64xbf16>, vector<2x64x32xbf16>, vector<2x64x32xf32> -> vector<2x64x32xf32>
    "tpu.trace_stop"() : () -> ()
    %126 = tpu.reciprocal %123 {approx = true} : vector<2x64x1xf32> -> vector<2x64x1xf32>
    %127 = vector.broadcast %126 : vector<2x64x1xf32> to vector<2x64x32xf32>
    %128 = arith.mulf %125, %127 : vector<2x64x32xf32>
    %129 = vector.shape_cast %128 : vector<2x64x32xf32> to vector<128x32xf32>
    %130 = arith.truncf %129 : vector<128x32xf32> to vector<128x32xbf16>
    %131 = vector.extract_strided_slice %17 {offsets = [96, 0], sizes = [32, 128], strides = [1, 1]} : vector<128x128xbf16> to vector<32x128xbf16>
    %cst_37 = arith.constant dense<0.000000e+00> : vector<128x128xf32>
    %132 = tpu.matmul %130, %131, %cst_37 {dimension_numbers = #tpu.dot_dimension_numbers<[1], [0], [0], [1], [0, 0, 1, 1], [], []>} : vector<128x32xbf16>, vector<32x128xbf16>, vector<128x128xf32> -> vector<128x128xf32>
    %133 = arith.addf %105, %132 : vector<128x128xf32>
    %c0_38 = arith.constant 0 : index
    %c0_39 = arith.constant 0 : index
    %c0_40 = arith.constant 0 : index
    %134 = vector.load %arg9[%c0_38, %c0_39, %c0_40] : memref<1x1x128xf32, #tpu.memory_space<vmem>>, vector<1x1x128xf32>
    %135 = vector.shape_cast %134 : vector<1x1x128xf32> to vector<1x128xf32>
    %c0_41 = arith.constant 0 : index
    %c0_42 = arith.constant 0 : index
    %c0_43 = arith.constant 0 : index
    %136 = vector.load %arg10[%c0_41, %c0_42, %c0_43] : memref<1x1x128xf32, #tpu.memory_space<vmem>>, vector<1x1x128xf32>
    %137 = vector.shape_cast %136 : vector<1x1x128xf32> to vector<1x128xf32>
    %cst_44 = arith.constant dense<0.000000e+00> : vector<128xf32>
    %138 = vector.multi_reduction <add>, %133, %cst_44 [1] : vector<128x128xf32> to vector<128xf32>
    %139 = vector.shape_cast %138 : vector<128xf32> to vector<128x1xf32>
    %cst_45 = arith.constant 1.280000e+02 : f32
    %140 = vector.broadcast %cst_45 : f32 to vector<128x1xf32>
    %141 = arith.divf %139, %140 : vector<128x1xf32>
    %142 = vector.broadcast %141 : vector<128x1xf32> to vector<128x128xf32>
    %143 = arith.subf %133, %142 : vector<128x128xf32>
    %144 = arith.mulf %143, %143 : vector<128x128xf32>
    %cst_46 = arith.constant dense<0.000000e+00> : vector<128xf32>
    %145 = vector.multi_reduction <add>, %144, %cst_46 [1] : vector<128x128xf32> to vector<128xf32>
    %146 = vector.shape_cast %145 : vector<128xf32> to vector<128x1xf32>
    %cst_47 = arith.constant 1.280000e+02 : f32
    %147 = vector.broadcast %cst_47 : f32 to vector<128x1xf32>
    %148 = arith.divf %146, %147 : vector<128x1xf32>
    %cst_48 = arith.constant 9.99999974E-6 : f32
    %149 = vector.broadcast %cst_48 : f32 to vector<128x1xf32>
    %150 = arith.addf %148, %149 : vector<128x1xf32>
    %151 = math.rsqrt %150 : vector<128x1xf32>
    %152 = vector.broadcast %151 : vector<128x1xf32> to vector<128x128xf32>
    %153 = arith.mulf %143, %152 : vector<128x128xf32>
    %154 = vector.broadcast %135 : vector<1x128xf32> to vector<128x128xf32>
    %155 = arith.mulf %153, %154 : vector<128x128xf32>
    %156 = vector.broadcast %137 : vector<1x128xf32> to vector<128x128xf32>
    %157 = arith.addf %155, %156 : vector<128x128xf32>
    %158 = arith.truncf %157 : vector<128x128xf32> to vector<128x128xbf16>
    %c0_49 = arith.constant 0 : index
    %c0_50 = arith.constant 0 : index
    %c0_51 = arith.constant 0 : index
    %159 = vector.load %arg11[%c0_49, %c0_50, %c0_51] : memref<1x128x512xbf16, #tpu.memory_space<vmem>>, vector<1x128x512xbf16>
    %160 = vector.shape_cast %159 : vector<1x128x512xbf16> to vector<128x512xbf16>
    %cst_52 = arith.constant dense<0.000000e+00> : vector<128x512xf32>
    %161 = tpu.matmul %158, %160, %cst_52 {dimension_numbers = #tpu.dot_dimension_numbers<[1], [0], [0], [1], [0, 0, 1, 1], [], []>} : vector<128x128xbf16>, vector<128x512xbf16>, vector<128x512xf32> -> vector<128x512xf32>
    %c0_53 = arith.constant 0 : index
    %c0_54 = arith.constant 0 : index
    %c0_55 = arith.constant 0 : index
    %162 = vector.load %arg12[%c0_53, %c0_54, %c0_55] : memref<1x1x512xf32, #tpu.memory_space<vmem>>, vector<1x1x512xf32>
    %163 = vector.shape_cast %162 : vector<1x1x512xf32> to vector<1x512xf32>
    %164 = vector.broadcast %163 : vector<1x512xf32> to vector<128x512xf32>
    %165 = arith.addf %161, %164 : vector<128x512xf32>
    %cst_56 = arith.constant 0.000000e+00 : f32
    %166 = vector.broadcast %cst_56 : f32 to vector<128x512xf32>
    %167 = arith.maximumf %165, %166 : vector<128x512xf32>
    %168 = arith.truncf %167 : vector<128x512xf32> to vector<128x512xbf16>
    %c0_57 = arith.constant 0 : index
    %c0_58 = arith.constant 0 : index
    %c0_59 = arith.constant 0 : index
    %169 = vector.load %arg13[%c0_57, %c0_58, %c0_59] : memref<1x512x128xbf16, #tpu.memory_space<vmem>>, vector<1x512x128xbf16>
    %170 = vector.shape_cast %169 : vector<1x512x128xbf16> to vector<512x128xbf16>
    %cst_60 = arith.constant dense<0.000000e+00> : vector<128x128xf32>
    %171 = tpu.matmul %168, %170, %cst_60 {dimension_numbers = #tpu.dot_dimension_numbers<[1], [0], [0], [1], [0, 0, 1, 1], [], []>} : vector<128x512xbf16>, vector<512x128xbf16>, vector<128x128xf32> -> vector<128x128xf32>
    %c0_61 = arith.constant 0 : index
    %c0_62 = arith.constant 0 : index
    %c0_63 = arith.constant 0 : index
    %172 = vector.load %arg14[%c0_61, %c0_62, %c0_63] : memref<1x1x128xf32, #tpu.memory_space<vmem>>, vector<1x1x128xf32>
    %173 = vector.shape_cast %172 : vector<1x1x128xf32> to vector<1x128xf32>
    %174 = vector.broadcast %173 : vector<1x128xf32> to vector<128x128xf32>
    %175 = arith.addf %171, %174 : vector<128x128xf32>
    %176 = arith.addf %157, %175 : vector<128x128xf32>
    %c0_64 = arith.constant 0 : index
    %c0_65 = arith.constant 0 : index
    %c0_66 = arith.constant 0 : index
    %177 = vector.load %arg15[%c0_64, %c0_65, %c0_66] : memref<1x1x128xf32, #tpu.memory_space<vmem>>, vector<1x1x128xf32>
    %178 = vector.shape_cast %177 : vector<1x1x128xf32> to vector<1x128xf32>
    %c0_67 = arith.constant 0 : index
    %c0_68 = arith.constant 0 : index
    %c0_69 = arith.constant 0 : index
    %179 = vector.load %arg16[%c0_67, %c0_68, %c0_69] : memref<1x1x128xf32, #tpu.memory_space<vmem>>, vector<1x1x128xf32>
    %180 = vector.shape_cast %179 : vector<1x1x128xf32> to vector<1x128xf32>
    %cst_70 = arith.constant dense<0.000000e+00> : vector<128xf32>
    %181 = vector.multi_reduction <add>, %176, %cst_70 [1] : vector<128x128xf32> to vector<128xf32>
    %182 = vector.shape_cast %181 : vector<128xf32> to vector<128x1xf32>
    %cst_71 = arith.constant 1.280000e+02 : f32
    %183 = vector.broadcast %cst_71 : f32 to vector<128x1xf32>
    %184 = arith.divf %182, %183 : vector<128x1xf32>
    %185 = vector.broadcast %184 : vector<128x1xf32> to vector<128x128xf32>
    %186 = arith.subf %176, %185 : vector<128x128xf32>
    %187 = arith.mulf %186, %186 : vector<128x128xf32>
    %cst_72 = arith.constant dense<0.000000e+00> : vector<128xf32>
    %188 = vector.multi_reduction <add>, %187, %cst_72 [1] : vector<128x128xf32> to vector<128xf32>
    %189 = vector.shape_cast %188 : vector<128xf32> to vector<128x1xf32>
    %cst_73 = arith.constant 1.280000e+02 : f32
    %190 = vector.broadcast %cst_73 : f32 to vector<128x1xf32>
    %191 = arith.divf %189, %190 : vector<128x1xf32>
    %cst_74 = arith.constant 9.99999974E-6 : f32
    %192 = vector.broadcast %cst_74 : f32 to vector<128x1xf32>
    %193 = arith.addf %191, %192 : vector<128x1xf32>
    %194 = math.rsqrt %193 : vector<128x1xf32>
    %195 = vector.broadcast %194 : vector<128x1xf32> to vector<128x128xf32>
    %196 = arith.mulf %186, %195 : vector<128x128xf32>
    %197 = vector.broadcast %178 : vector<1x128xf32> to vector<128x128xf32>
    %198 = arith.mulf %196, %197 : vector<128x128xf32>
    %199 = vector.broadcast %180 : vector<1x128xf32> to vector<128x128xf32>
    %200 = arith.addf %198, %199 : vector<128x128xf32>
    %c0_75 = arith.constant 0 : index
    %c0_76 = arith.constant 0 : index
    %201 = vector.load %arg22[%c0_75, %c0_76] : memref<128x128xf32, #tpu.memory_space<vmem>>, vector<128x128xf32>
    tpu.vector_store %arg22[%c0_75, %c0_76], %200 {strides = array<i32>} : memref<128x128xf32, #tpu.memory_space<vmem>>, vector<128x128xf32>,
    %c1_i32 = arith.constant 1 : i32
    %202 = arith.cmpi eq, %arg1, %c1_i32 : i32
    %203 = arith.extui %202 : i1 to i32
    %c0_i32_77 = arith.constant 0 : i32
    %204 = arith.cmpi ne, %203, %c0_i32_77 : i32
    scf.if %204 {
      %c0_78 = arith.constant 0 : index
      %c0_79 = arith.constant 0 : index
      %205 = vector.load %arg17[%c0_78, %c0_79] : memref<1x128xf32, #tpu.memory_space<vmem>>, vector<1x128xf32>
      %c0_80 = arith.constant 0 : index
      %c0_81 = arith.constant 0 : index
      %206 = vector.load %arg18[%c0_80, %c0_81] : memref<1x128xf32, #tpu.memory_space<vmem>>, vector<1x128xf32>
      %cst_82 = arith.constant dense<0.000000e+00> : vector<128xf32>
      %207 = vector.multi_reduction <add>, %200, %cst_82 [1] : vector<128x128xf32> to vector<128xf32>
      %208 = vector.shape_cast %207 : vector<128xf32> to vector<128x1xf32>
      %cst_83 = arith.constant 1.280000e+02 : f32
      %209 = vector.broadcast %cst_83 : f32 to vector<128x1xf32>
      %210 = arith.divf %208, %209 : vector<128x1xf32>
      %211 = vector.broadcast %210 : vector<128x1xf32> to vector<128x128xf32>
      %212 = arith.subf %200, %211 : vector<128x128xf32>
      %213 = arith.mulf %212, %212 : vector<128x128xf32>
      %cst_84 = arith.constant dense<0.000000e+00> : vector<128xf32>
      %214 = vector.multi_reduction <add>, %213, %cst_84 [1] : vector<128x128xf32> to vector<128xf32>
      %215 = vector.shape_cast %214 : vector<128xf32> to vector<128x1xf32>
      %cst_85 = arith.constant 1.280000e+02 : f32
      %216 = vector.broadcast %cst_85 : f32 to vector<128x1xf32>
      %217 = arith.divf %215, %216 : vector<128x1xf32>
      %cst_86 = arith.constant 9.99999974E-6 : f32
      %218 = vector.broadcast %cst_86 : f32 to vector<128x1xf32>
      %219 = arith.addf %217, %218 : vector<128x1xf32>
      %220 = math.rsqrt %219 : vector<128x1xf32>
      %221 = vector.broadcast %220 : vector<128x1xf32> to vector<128x128xf32>
      %222 = arith.mulf %212, %221 : vector<128x128xf32>
      %223 = vector.broadcast %205 : vector<1x128xf32> to vector<128x128xf32>
      %224 = arith.mulf %222, %223 : vector<128x128xf32>
      %225 = vector.broadcast %206 : vector<1x128xf32> to vector<128x128xf32>
      %226 = arith.addf %224, %225 : vector<128x128xf32>
      %227 = arith.truncf %226 : vector<128x128xf32> to vector<128x128xbf16>
      %c0_87 = arith.constant 0 : index
      %c0_88 = arith.constant 0 : index
      %228 = vector.load %arg19[%c0_87, %c0_88] : memref<128x128xbf16, #tpu.memory_space<vmem>>, vector<128x128xbf16>
      %cst_89 = arith.constant dense<0.000000e+00> : vector<128x128xf32>
      %229 = tpu.matmul %227, %228, %cst_89 {dimension_numbers = #tpu.dot_dimension_numbers<[1], [0], [0], [1], [0, 0, 1, 1], [], []>} : vector<128x128xbf16>, vector<128x128xbf16>, vector<128x128xf32> -> vector<128x128xf32>
      %c0_90 = arith.constant 0 : index
      %c0_91 = arith.constant 0 : index
      %230 = vector.load %arg20[%c0_90, %c0_91] : memref<1x128xf32, #tpu.memory_space<vmem>>, vector<1x128xf32>
      %231 = vector.broadcast %230 : vector<1x128xf32> to vector<128x128xf32>
      %232 = arith.addf %229, %231 : vector<128x128xf32>
      %233 = vector.shape_cast %232 : vector<128x128xf32> to vector<2x64x128xf32>
      %c0_92 = arith.constant 0 : index
      %c0_93 = arith.constant 0 : index
      %c0_94 = arith.constant 0 : index
      %234 = vector.load %arg21[%c0_92, %c0_93, %c0_94] : memref<2x64x128xf32, #tpu.memory_space<vmem>>, vector<2x64x128xf32>
      tpu.vector_store %arg21[%c0_92, %c0_93, %c0_94], %233 {strides = array<i32>} : memref<2x64x128xf32, #tpu.memory_space<vmem>>, vector<2x64x128xf32>,
    } else {
    }
    return
  }
  func.func @transform_0(%arg0: i32, %arg1: i32) -> (i32, i32, i32) {
    %c0_i32 = arith.constant 0 : i32
    %c0_i32_0 = arith.constant 0 : i32
    %c0_i32_1 = arith.constant 0 : i32
    return %arg0, %c0_i32, %c0_i32_0 : i32, i32, i32
  }
  func.func @transform_1(%arg0: i32, %arg1: i32) -> (i32, i32) {
    %c0_i32 = arith.constant 0 : i32
    %c0_i32_0 = arith.constant 0 : i32
    %c0_i32_1 = arith.constant 0 : i32
    return %c0_i32, %c0_i32_0 : i32, i32
  }
  func.func @transform_2(%arg0: i32, %arg1: i32) -> (i32, i32) {
    %c0_i32 = arith.constant 0 : i32
    %c0_i32_0 = arith.constant 0 : i32
    %c0_i32_1 = arith.constant 0 : i32
    return %c0_i32, %c0_i32_0 : i32, i32
  }
  func.func @transform_3(%arg0: i32, %arg1: i32) -> (i32, i32, i32) {
    %c0_i32 = arith.constant 0 : i32
    %c0_i32_0 = arith.constant 0 : i32
    %c0_i32_1 = arith.constant 0 : i32
    return %arg1, %c0_i32, %c0_i32_0 : i32, i32, i32
  }
  func.func @transform_4(%arg0: i32, %arg1: i32) -> (i32, i32, i32) {
    %c0_i32 = arith.constant 0 : i32
    %c0_i32_0 = arith.constant 0 : i32
    %c0_i32_1 = arith.constant 0 : i32
    return %arg1, %c0_i32, %c0_i32_0 : i32, i32, i32
  }
  func.func @transform_5(%arg0: i32, %arg1: i32) -> (i32, i32, i32) {
    %c0_i32 = arith.constant 0 : i32
    %c0_i32_0 = arith.constant 0 : i32
    %c0_i32_1 = arith.constant 0 : i32
    return %arg1, %c0_i32, %c0_i32_0 : i32, i32, i32
  }
  func.func @transform_6(%arg0: i32, %arg1: i32) -> (i32, i32, i32) {
    %c0_i32 = arith.constant 0 : i32
    %c0_i32_0 = arith.constant 0 : i32
    %c0_i32_1 = arith.constant 0 : i32
    return %arg1, %c0_i32, %c0_i32_0 : i32, i32, i32
  }
  func.func @transform_7(%arg0: i32, %arg1: i32) -> (i32, i32, i32) {
    %c0_i32 = arith.constant 0 : i32
    %c0_i32_0 = arith.constant 0 : i32
    %c0_i32_1 = arith.constant 0 : i32
    return %arg1, %c0_i32, %c0_i32_0 : i32, i32, i32
  }
  func.func @transform_8(%arg0: i32, %arg1: i32) -> (i32, i32, i32) {
    %c0_i32 = arith.constant 0 : i32
    %c0_i32_0 = arith.constant 0 : i32
    %c0_i32_1 = arith.constant 0 : i32
    return %arg1, %c0_i32, %c0_i32_0 : i32, i32, i32
  }
  func.func @transform_9(%arg0: i32, %arg1: i32) -> (i32, i32, i32) {
    %c0_i32 = arith.constant 0 : i32
    %c0_i32_0 = arith.constant 0 : i32
    %c0_i32_1 = arith.constant 0 : i32
    return %arg1, %c0_i32, %c0_i32_0 : i32, i32, i32
  }
  func.func @transform_10(%arg0: i32, %arg1: i32) -> (i32, i32, i32) {
    %c0_i32 = arith.constant 0 : i32
    %c0_i32_0 = arith.constant 0 : i32
    %c0_i32_1 = arith.constant 0 : i32
    return %arg1, %c0_i32, %c0_i32_0 : i32, i32, i32
  }
  func.func @transform_11(%arg0: i32, %arg1: i32) -> (i32, i32, i32) {
    %c0_i32 = arith.constant 0 : i32
    %c0_i32_0 = arith.constant 0 : i32
    %c0_i32_1 = arith.constant 0 : i32
    return %arg1, %c0_i32, %c0_i32_0 : i32, i32, i32
  }
  func.func @transform_12(%arg0: i32, %arg1: i32) -> (i32, i32, i32) {
    %c0_i32 = arith.constant 0 : i32
    %c0_i32_0 = arith.constant 0 : i32
    %c0_i32_1 = arith.constant 0 : i32
    return %arg1, %c0_i32, %c0_i32_0 : i32, i32, i32
  }
  func.func @transform_13(%arg0: i32, %arg1: i32) -> (i32, i32, i32) {
    %c0_i32 = arith.constant 0 : i32
    %c0_i32_0 = arith.constant 0 : i32
    %c0_i32_1 = arith.constant 0 : i32
    return %arg1, %c0_i32, %c0_i32_0 : i32, i32, i32
  }
  func.func @transform_14(%arg0: i32, %arg1: i32) -> (i32, i32, i32) {
    %c0_i32 = arith.constant 0 : i32
    %c0_i32_0 = arith.constant 0 : i32
    %c0_i32_1 = arith.constant 0 : i32
    return %arg1, %c0_i32, %c0_i32_0 : i32, i32, i32
  }
  func.func @transform_15(%arg0: i32, %arg1: i32) -> (i32, i32) {
    %c0_i32 = arith.constant 0 : i32
    %c0_i32_0 = arith.constant 0 : i32
    %c0_i32_1 = arith.constant 0 : i32
    return %c0_i32, %c0_i32_0 : i32, i32
  }
  func.func @transform_16(%arg0: i32, %arg1: i32) -> (i32, i32) {
    %c0_i32 = arith.constant 0 : i32
    %c0_i32_0 = arith.constant 0 : i32
    %c0_i32_1 = arith.constant 0 : i32
    return %c0_i32, %c0_i32_0 : i32, i32
  }
  func.func @transform_17(%arg0: i32, %arg1: i32) -> (i32, i32) {
    %c0_i32 = arith.constant 0 : i32
    %c0_i32_0 = arith.constant 0 : i32
    %c0_i32_1 = arith.constant 0 : i32
    return %c0_i32, %c0_i32_0 : i32, i32
  }
  func.func @transform_18(%arg0: i32, %arg1: i32) -> (i32, i32) {
    %c0_i32 = arith.constant 0 : i32
    %c0_i32_0 = arith.constant 0 : i32
    %c0_i32_1 = arith.constant 0 : i32
    return %c0_i32, %c0_i32_0 : i32, i32
  }
  func.func @transform_19(%arg0: i32, %arg1: i32) -> (i32, i32, i32) {
    %c0_i32 = arith.constant 0 : i32
    %c0_i32_0 = arith.constant 0 : i32
    %c0_i32_1 = arith.constant 0 : i32
    return %arg0, %c0_i32, %c0_i32_0 : i32, i32, i32
  }
}

</mosaic_0001>

<llo_original>
// kernel: image_generator_forward.1
$region0: #{image_generator_forward.1}
  #allocation0 [shape = 'u32[]', space=smem, size = 0x4, offset = 0x4, fixed_abs, tag = 'smem constant byte address 0x4 - core index']
  #allocation1 [shape = 'u32[144,128]{1,0:T(1,128)}', space=vmem, size = 0x12000, scoped, tag = 'internal scratch']
  #allocation2 [shape = 'f32[128,128]{1,0:T(8,128)}', space=vmem, size = 0x10000, scoped, tag = 'scratch operand']
  %s0 = inlined_call_operand.vmem [shape: s32[2,64,1], index: 0, kind: input, shape index: {}]
  %s1 = inlined_call_operand.hbm [shape: bf16[256,128], index: 1, kind: input, shape index: {}]
  %s2 = inlined_call_operand.vmem [shape: f32[128,128], index: 2, kind: input, shape index: {}]
  %s3 = inlined_call_operand.vmem [shape: bf16[2,128,384], index: 3, kind: input, shape index: {}]
  %s4 = inlined_call_operand.vmem [shape: f32[2,1,384], index: 4, kind: input, shape index: {}]
  %s5 = inlined_call_operand.hbm [shape: bf16[2,128,128], index: 5, kind: input, shape index: {}]
  %s6 = inlined_call_operand.vmem [shape: f32[2,1,128], index: 6, kind: input, shape index: {}]
  %s7 = inlined_call_operand.hbm [shape: f32[2,1,128], index: 7, kind: input, shape index: {}]
  %s8 = inlined_call_operand.hbm [shape: f32[2,1,128], index: 8, kind: input, shape index: {}]
  %s9 = inlined_call_operand.hbm [shape: bf16[2,128,512], index: 9, kind: input, shape index: {}]
  %s10 = inlined_call_operand.vmem [shape: f32[2,1,512], index: 10, kind: input, shape index: {}]
  %s11 = inlined_call_operand.hbm [shape: bf16[2,512,128], index: 11, kind: input, shape index: {}]
  %s12 = inlined_call_operand.hbm [shape: f32[2,1,128], index: 12, kind: input, shape index: {}]
  %s13 = inlined_call_operand.hbm [shape: f32[2,1,128], index: 13, kind: input, shape index: {}]
  %s14 = inlined_call_operand.hbm [shape: f32[2,1,128], index: 14, kind: input, shape index: {}]
  %s15 = inlined_call_operand.hbm [shape: f32[1,128], index: 15, kind: input, shape index: {}]
  %s16 = inlined_call_operand.hbm [shape: f32[1,128], index: 16, kind: input, shape index: {}]
  %s17 = inlined_call_operand.hbm [shape: bf16[128,128], index: 17, kind: input, shape index: {}]
  %s18 = inlined_call_operand.hbm [shape: f32[1,128], index: 18, kind: input, shape index: {}]
  %s19 = inlined_call_operand.vmem [shape: f32[2,64,128], index: 19, kind: output, shape index: {}]
  %s20 = sld [smem:[#allocation0]]
  $region169: #{image_generator_forward.1} parent=0
    _
  %s22 = ssub.s32 1, %s20
  %s23 = scalar_select 0, %s22, %s20
  $region1: #{image_generator_forward.1} parent=0
    #allocation3 [shape = 'u8[65536]{0}', space=vmem, size = 0x10000, scoped, tag = 'input window, operand 1, single buffered']
    #allocation4 [shape = 's32[2]{0}', space=sflag, size = 0x8, scoped, tag = 'scoped memory for image_generator_forward.1']
    #allocation5 [shape = 'u8[65536]{0}', space=vmem, size = 0x10000, scoped, tag = 'input window, operand 5']
    #allocation6 [shape = 's32[2]{0}', space=sflag, size = 0x8, scoped, tag = 'scoped memory for image_generator_forward.1']
    #allocation7 [shape = 'u8[1024]{0}', space=vmem, size = 0x400, scoped, tag = 'input window, operand 7']
    #allocation8 [shape = 'u8[1024]{0}', space=vmem, size = 0x400, scoped, tag = 'input window, operand 8']
    #allocation9 [shape = 's32[2]{0}', space=sflag, size = 0x8, scoped, tag = 'scoped memory for image_generator_forward.1']
    #allocation10 [shape = 'u8[262144]{0}', space=vmem, size = 0x40000, scoped, tag = 'input window, operand 9']
    #allocation11 [shape = 'u8[262144]{0}', space=vmem, size = 0x40000, scoped, tag = 'input window, operand 11']
    #allocation12 [shape = 's32[2]{0}', space=sflag, size = 0x8, scoped, tag = 'scoped memory for image_generator_forward.1']
    #allocation13 [shape = 'u8[1024]{0}', space=vmem, size = 0x400, scoped, tag = 'input window, operand 12']
    #allocation14 [shape = 'u8[1024]{0}', space=vmem, size = 0x400, scoped, tag = 'input window, operand 13']
    #allocation15 [shape = 's32[2]{0}', space=sflag, size = 0x8, scoped, tag = 'scoped memory for image_generator_forward.1']
    #allocation16 [shape = 'u8[1024]{0}', space=vmem, size = 0x400, scoped, tag = 'input window, operand 14']
    #allocation17 [shape = 'u8[512]{0}', space=vmem, size = 0x400, scoped, tag = 'input window, operand 15, single buffered']
    #allocation18 [shape = 's32[1]{0}', space=sflag, size = 0x4, scoped, tag = 'scoped memory for image_generator_forward.1']
    #allocation19 [shape = 'u8[512]{0}', space=vmem, size = 0x400, scoped, tag = 'input window, operand 16, single buffered']
    #allocation20 [shape = 'u8[32768]{0}', space=vmem, size = 0x8000, scoped, tag = 'input window, operand 17, single buffered']
    #allocation21 [shape = 's32[1]{0}', space=sflag, size = 0x4, scoped, tag = 'scoped memory for image_generator_forward.1']
    #allocation22 [shape = 'u8[512]{0}', space=vmem, size = 0x400, scoped, tag = 'input window, operand 18, single buffered']
    %24 = vsyncpa [#allocation4], 0
    %25 = vsyncpa [#allocation6], 0
    %s26 = scalar_lea.sflag [#allocation6], 1
    %27 = vsyncpa %s26, 0
    %28 = vsyncpa [#allocation9], 0
    %s29 = scalar_lea.sflag [#allocation9], 1
    %30 = vsyncpa %s29, 0
    %31 = vsyncpa [#allocation12], 0
    %s32 = scalar_lea.sflag [#allocation12], 1
    %33 = vsyncpa %s32, 0
    %34 = vsyncpa [#allocation15], 0
    %s35 = scalar_lea.sflag [#allocation15], 1
    %36 = vsyncpa %s35, 0
    %37 = vsyncpa [#allocation18], 0
    %38 = vsyncpa [#allocation21], 0
    loop: start=0, step=1, limit=4
    $region2: #{image_generator_forward.1} parent=1 // loop_pre_header
      _
    $region3: #{image_generator_forward.1} parent=1 // loop_header
      %s40 = sphi 0, %s44
      %p41 = scmp.ge.s32.totalorder %s40, 4
      %s47 = sphi 0, %s59
      %s48 = sphi 0, %s55
      %s49 = sphi 0, %s47
      %s50 = sphi 0, %s48
      %s51 = sphi 0, %s49
      %s52 = sphi 0, %s50
      %s62 = sphi 0, %s64
      %s65 = sphi 0, %s62
      %s66 = sphi 0, %s65
      %s82 = sphi 0, %s66
      %s86 = sphi 0, %s86
      %s88 = sphi 0, %s86
      %s89 = sphi 0, %s88
      %s103 = sphi 0, %s89
      %s107 = sphi 0, %s107
      %s109 = sphi 0, %s107
      %s110 = sphi 0, %s109
      %s124 = sphi 0, %s110
      %s130 = sphi 0, %s132
      %s133 = sphi 0, %s130
      %s134 = sphi 0, %s133
      %s150 = sphi 0, %s134
      %s156 = sphi 0, %s158
      %s159 = sphi 0, %s156
      %s160 = sphi 0, %s159
      %s176 = sphi 0, %s160
      %s182 = sphi 0, %s184
      %s185 = sphi 0, %s182
      %s186 = sphi 0, %s185
      %s202 = sphi 0, %s186
      %s208 = sphi 0, %s210
      %s211 = sphi 0, %s208
      %s212 = sphi 0, %s211
      %s228 = sphi 0, %s212
      %s234 = sphi 0, %s236
      %s237 = sphi 0, %s234
      %s238 = sphi 0, %s237
      %s254 = sphi 0, %s238
      %s260 = sphi 0, %s262
      %s263 = sphi 0, %s260
      %s264 = sphi 0, %s263
      %s280 = sphi 0, %s264
      %s286 = sphi 0, %s288
      %s289 = sphi 0, %s286
      %s290 = sphi 0, %s289
      %s306 = sphi 0, %s290
      %s312 = sphi 0, %s314
      %s315 = sphi 0, %s312
      %s316 = sphi 0, %s315
      %s332 = sphi 0, %s316
      %s338 = sphi 0, %s340
      %s341 = sphi 0, %s338
      %s342 = sphi 0, %s341
      %s358 = sphi 0, %s342
      %s364 = sphi 0, %s366
      %s367 = sphi 0, %s364
      %s368 = sphi 0, %s367
      %s384 = sphi 0, %s368
      %s390 = sphi 0, %s392
      %s393 = sphi 0, %s390
      %s394 = sphi 0, %s393
      %s410 = sphi 0, %s394
      %s416 = sphi 0, %s418
      %s419 = sphi 0, %s416
      %s420 = sphi 0, %s419
      %s436 = sphi 0, %s420
      %s440 = sphi 0, %s440
      %s442 = sphi 0, %s440
      %s443 = sphi 0, %s442
      %s457 = sphi 0, %s443
      %s461 = sphi 0, %s461
      %s463 = sphi 0, %s461
      %s464 = sphi 0, %s463
      %s478 = sphi 0, %s464
      %s482 = sphi 0, %s482
      %s484 = sphi 0, %s482
      %s485 = sphi 0, %s484
      %s499 = sphi 0, %s485
      %s503 = sphi 0, %s503
      %s505 = sphi 0, %s503
      %s506 = sphi 0, %s505
      %s520 = sphi 0, %s506
      %s526 = sphi 0, %s528
      %s529 = sphi 0, %s526
      %s530 = sphi 0, %s529
      %s546 = sphi 0, %s530
    $region4: #{image_generator_forward.1} parent=1 // loop_header_branch
      %43 = sbr.rel (%p41) target = $region8
    $region5: #{image_generator_forward.1} parent=1 // loop_body
      %s45 = ssub.s32 %s40, 1
      %s46 = ssub.s32 %s40, 2
      %s53 = sadd.s32 1, %s48
      %p54 = scmp.ge.s32.totalorder %s53, 2
      %s55 = scalar_select %p54, 0, %s53
      %s56 = sadd.s32 1, %s47
      %s57 = scalar_select %p54, %s56, %s47
      %p58 = scmp.ge.s32.totalorder %s57, 1
      %s59 = scalar_select %p58, 0, %s57
      %s60 = ssub.s32 %s47, %s59
      %p61 = scmp.eq.s32.totalorder %s60, 0
      %s63 = sadd.s32 %s62, 1
      %s64 = scalar_select %p61, %s62, %s63
      %p67 = pneg %p61
      %p68 = scmp.eq.s32.totalorder %s40, 1
      %p69 = por %p67, %p68
      %p70 = scmp.ne.s32.totalorder %s62, %s65
      %p71 = scmp.eq.s32.totalorder %s40, 0
      %p72 = por %p70, %p71
      %p73 = scmp.ne.s32.totalorder %s62, %s65
      %p74 = scmp.eq.s32.totalorder %s45, 1
      %p75 = por %p73, %p74
      %p76 = scmp.ne.s32.totalorder %s65, %s66
      %p77 = scmp.eq.s32.totalorder %s45, 0
      %p78 = por %p76, %p77
      %p79 = scmp.ne.s32.totalorder %s65, %s66
      %p80 = scmp.eq.s32.totalorder %s46, 1
      %p81 = por %p79, %p80
      %p83 = scmp.ne.s32.totalorder %s66, %s82
      %p84 = scmp.eq.s32.totalorder %s46, 0
      %p85 = por %p83, %p84
      %s87 = sadd.s32 %s86, 1
      %p90 = scmp.eq.s32.totalorder %s40, 1
      %p91 = scmp.ne.s32.totalorder %s86, %s88
      %p92 = scmp.eq.s32.totalorder %s40, 0
      %p93 = por %p91, %p92
      %p94 = scmp.ne.s32.totalorder %s86, %s88
      %p95 = scmp.eq.s32.totalorder %s45, 1
      %p96 = por %p94, %p95
      %p97 = scmp.ne.s32.totalorder %s88, %s89
      %p98 = scmp.eq.s32.totalorder %s45, 0
      %p99 = por %p97, %p98
      %p100 = scmp.ne.s32.totalorder %s88, %s89
      %p101 = scmp.eq.s32.totalorder %s46, 1
      %p102 = por %p100, %p101
      %p104 = scmp.ne.s32.totalorder %s89, %s103
      %p105 = scmp.eq.s32.totalorder %s46, 0
      %p106 = por %p104, %p105
      %s108 = sadd.s32 %s107, 1
      %p111 = scmp.eq.s32.totalorder %s40, 1
      %p112 = scmp.ne.s32.totalorder %s107, %s109
      %p113 = scmp.eq.s32.totalorder %s40, 0
      %p114 = por %p112, %p113
      %p115 = scmp.ne.s32.totalorder %s107, %s109
      %p116 = scmp.eq.s32.totalorder %s45, 1
      %p117 = por %p115, %p116
      %p118 = scmp.ne.s32.totalorder %s109, %s110
      %p119 = scmp.eq.s32.totalorder %s45, 0
      %p120 = por %p118, %p119
      %p121 = scmp.ne.s32.totalorder %s109, %s110
      %p122 = scmp.eq.s32.totalorder %s46, 1
      %p123 = por %p121, %p122
      %p125 = scmp.ne.s32.totalorder %s110, %s124
      %p126 = scmp.eq.s32.totalorder %s46, 0
      %p127 = por %p125, %p126
      %s128 = ssub.s32 %s48, %s55
      %p129 = scmp.eq.s32.totalorder %s128, 0
      %s131 = sadd.s32 %s130, 1
      %s132 = scalar_select %p129, %s130, %s131
      %p135 = pneg %p129
      %p136 = scmp.eq.s32.totalorder %s40, 1
      %p137 = por %p135, %p136
      %p138 = scmp.ne.s32.totalorder %s130, %s133
      %p139 = scmp.eq.s32.totalorder %s40, 0
      %p140 = por %p138, %p139
      %p141 = scmp.ne.s32.totalorder %s130, %s133
      %p142 = scmp.eq.s32.totalorder %s45, 1
      %p143 = por %p141, %p142
      %p144 = scmp.ne.s32.totalorder %s133, %s134
      %p145 = scmp.eq.s32.totalorder %s45, 0
      %p146 = por %p144, %p145
      %p147 = scmp.ne.s32.totalorder %s133, %s134
      %p148 = scmp.eq.s32.totalorder %s46, 1
      %p149 = por %p147, %p148
      %p151 = scmp.ne.s32.totalorder %s134, %s150
      %p152 = scmp.eq.s32.totalorder %s46, 0
      %p153 = por %p151, %p152
      %s154 = ssub.s32 %s48, %s55
      %p155 = scmp.eq.s32.totalorder %s154, 0
      %s157 = sadd.s32 %s156, 1
      %s158 = scalar_select %p155, %s156, %s157
      %p161 = pneg %p155
      %p162 = scmp.eq.s32.totalorder %s40, 1
      %p163 = por %p161, %p162
      %p164 = scmp.ne.s32.totalorder %s156, %s159
      %p165 = scmp.eq.s32.totalorder %s40, 0
      %p166 = por %p164, %p165
      %p167 = scmp.ne.s32.totalorder %s156, %s159
      %p168 = scmp.eq.s32.totalorder %s45, 1
      %p169 = por %p167, %p168
      %p170 = scmp.ne.s32.totalorder %s159, %s160
      %p171 = scmp.eq.s32.totalorder %s45, 0
      %p172 = por %p170, %p171
      %p173 = scmp.ne.s32.totalorder %s159, %s160
      %p174 = scmp.eq.s32.totalorder %s46, 1
      %p175 = por %p173, %p174
      %p177 = scmp.ne.s32.totalorder %s160, %s176
      %p178 = scmp.eq.s32.totalorder %s46, 0
      %p179 = por %p177, %p178
      %s180 = ssub.s32 %s48, %s55
      %p181 = scmp.eq.s32.totalorder %s180, 0
      %s183 = sadd.s32 %s182, 1
      %s184 = scalar_select %p181, %s182, %s183
      %p187 = pneg %p181
      %p188 = scmp.eq.s32.totalorder %s40, 1
      %p189 = por %p187, %p188
      %p190 = scmp.ne.s32.totalorder %s182, %s185
      %p191 = scmp.eq.s32.totalorder %s40, 0
      %p192 = por %p190, %p191
      %p193 = scmp.ne.s32.totalorder %s182, %s185
      %p194 = scmp.eq.s32.totalorder %s45, 1
      %p195 = por %p193, %p194
      %p196 = scmp.ne.s32.totalorder %s185, %s186
      %p197 = scmp.eq.s32.totalorder %s45, 0
      %p198 = por %p196, %p197
      %p199 = scmp.ne.s32.totalorder %s185, %s186
      %p200 = scmp.eq.s32.totalorder %s46, 1
      %p201 = por %p199, %p200
      %p203 = scmp.ne.s32.totalorder %s186, %s202
      %p204 = scmp.eq.s32.totalorder %s46, 0
      %p205 = por %p203, %p204
      %s206 = ssub.s32 %s48, %s55
      %p207 = scmp.eq.s32.totalorder %s206, 0
      %s209 = sadd.s32 %s208, 1
      %s210 = scalar_select %p207, %s208, %s209
      %p213 = pneg %p207
      %p214 = scmp.eq.s32.totalorder %s40, 1
      %p215 = por %p213, %p214
      %p216 = scmp.ne.s32.totalorder %s208, %s211
      %p217 = scmp.eq.s32.totalorder %s40, 0
      %p218 = por %p216, %p217
      %p219 = scmp.ne.s32.totalorder %s208, %s211
      %p220 = scmp.eq.s32.totalorder %s45, 1
      %p221 = por %p219, %p220
      %p222 = scmp.ne.s32.totalorder %s211, %s212
      %p223 = scmp.eq.s32.totalorder %s45, 0
      %p224 = por %p222, %p223
      %p225 = scmp.ne.s32.totalorder %s211, %s212
      %p226 = scmp.eq.s32.totalorder %s46, 1
      %p227 = por %p225, %p226
      %p229 = scmp.ne.s32.totalorder %s212, %s228
      %p230 = scmp.eq.s32.totalorder %s46, 0
      %p231 = por %p229, %p230
      %s232 = ssub.s32 %s48, %s55
      %p233 = scmp.eq.s32.totalorder %s232, 0
      %s235 = sadd.s32 %s234, 1
      %s236 = scalar_select %p233, %s234, %s235
      %p239 = pneg %p233
      %p240 = scmp.eq.s32.totalorder %s40, 1
      %p241 = por %p239, %p240
      %p242 = scmp.ne.s32.totalorder %s234, %s237
      %p243 = scmp.eq.s32.totalorder %s40, 0
      %p244 = por %p242, %p243
      %p245 = scmp.ne.s32.totalorder %s234, %s237
      %p246 = scmp.eq.s32.totalorder %s45, 1
      %p247 = por %p245, %p246
      %p248 = scmp.ne.s32.totalorder %s237, %s238
      %p249 = scmp.eq.s32.totalorder %s45, 0
      %p250 = por %p248, %p249
      %p251 = scmp.ne.s32.totalorder %s237, %s238
      %p252 = scmp.eq.s32.totalorder %s46, 1
      %p253 = por %p251, %p252
      %p255 = scmp.ne.s32.totalorder %s238, %s254
      %p256 = scmp.eq.s32.totalorder %s46, 0
      %p257 = por %p255, %p256
      %s258 = ssub.s32 %s48, %s55
      %p259 = scmp.eq.s32.totalorder %s258, 0
      %s261 = sadd.s32 %s260, 1
      %s262 = scalar_select %p259, %s260, %s261
      %p265 = pneg %p259
      %p266 = scmp.eq.s32.totalorder %s40, 1
      %p267 = por %p265, %p266
      %p268 = scmp.ne.s32.totalorder %s260, %s263
      %p269 = scmp.eq.s32.totalorder %s40, 0
      %p270 = por %p268, %p269
      %p271 = scmp.ne.s32.totalorder %s260, %s263
      %p272 = scmp.eq.s32.totalorder %s45, 1
      %p273 = por %p271, %p272
      %p274 = scmp.ne.s32.totalorder %s263, %s264
      %p275 = scmp.eq.s32.totalorder %s45, 0
      %p276 = por %p274, %p275
      %p277 = scmp.ne.s32.totalorder %s263, %s264
      %p278 = scmp.eq.s32.totalorder %s46, 1
      %p279 = por %p277, %p278
      %p281 = scmp.ne.s32.totalorder %s264, %s280
      %p282 = scmp.eq.s32.totalorder %s46, 0
      %p283 = por %p281, %p282
      %s284 = ssub.s32 %s48, %s55
      %p285 = scmp.eq.s32.totalorder %s284, 0
      %s287 = sadd.s32 %s286, 1
      %s288 = scalar_select %p285, %s286, %s287
      %p291 = pneg %p285
      %p292 = scmp.eq.s32.totalorder %s40, 1
      %p293 = por %p291, %p292
      %p294 = scmp.ne.s32.totalorder %s286, %s289
      %p295 = scmp.eq.s32.totalorder %s40, 0
      %p296 = por %p294, %p295
      %p297 = scmp.ne.s32.totalorder %s286, %s289
      %p298 = scmp.eq.s32.totalorder %s45, 1
      %p299 = por %p297, %p298
      %p300 = scmp.ne.s32.totalorder %s289, %s290
      %p301 = scmp.eq.s32.totalorder %s45, 0
      %p302 = por %p300, %p301
      %p303 = scmp.ne.s32.totalorder %s289, %s290
      %p304 = scmp.eq.s32.totalorder %s46, 1
      %p305 = por %p303, %p304
      %p307 = scmp.ne.s32.totalorder %s290, %s306
      %p308 = scmp.eq.s32.totalorder %s46, 0
      %p309 = por %p307, %p308
      %s310 = ssub.s32 %s48, %s55
      %p311 = scmp.eq.s32.totalorder %s310, 0
      %s313 = sadd.s32 %s312, 1
      %s314 = scalar_select %p311, %s312, %s313
      %p317 = pneg %p311
      %p318 = scmp.eq.s32.totalorder %s40, 1
      %p319 = por %p317, %p318
      %p320 = scmp.ne.s32.totalorder %s312, %s315
      %p321 = scmp.eq.s32.totalorder %s40, 0
      %p322 = por %p320, %p321
      %p323 = scmp.ne.s32.totalorder %s312, %s315
      %p324 = scmp.eq.s32.totalorder %s45, 1
      %p325 = por %p323, %p324
      %p326 = scmp.ne.s32.totalorder %s315, %s316
      %p327 = scmp.eq.s32.totalorder %s45, 0
      %p328 = por %p326, %p327
      %p329 = scmp.ne.s32.totalorder %s315, %s316
      %p330 = scmp.eq.s32.totalorder %s46, 1
      %p331 = por %p329, %p330
      %p333 = scmp.ne.s32.totalorder %s316, %s332
      %p334 = scmp.eq.s32.totalorder %s46, 0
      %p335 = por %p333, %p334
      %s336 = ssub.s32 %s48, %s55
      %p337 = scmp.eq.s32.totalorder %s336, 0
      %s339 = sadd.s32 %s338, 1
      %s340 = scalar_select %p337, %s338, %s339
      %p343 = pneg %p337
      %p344 = scmp.eq.s32.totalorder %s40, 1
      %p345 = por %p343, %p344
      %p346 = scmp.ne.s32.totalorder %s338, %s341
      %p347 = scmp.eq.s32.totalorder %s40, 0
      %p348 = por %p346, %p347
      %p349 = scmp.ne.s32.totalorder %s338, %s341
      %p350 = scmp.eq.s32.totalorder %s45, 1
      %p351 = por %p349, %p350
      %p352 = scmp.ne.s32.totalorder %s341, %s342
      %p353 = scmp.eq.s32.totalorder %s45, 0
      %p354 = por %p352, %p353
      %p355 = scmp.ne.s32.totalorder %s341, %s342
      %p356 = scmp.eq.s32.totalorder %s46, 1
      %p357 = por %p355, %p356
      %p359 = scmp.ne.s32.totalorder %s342, %s358
      %p360 = scmp.eq.s32.totalorder %s46, 0
      %p361 = por %p359, %p360
      %s362 = ssub.s32 %s48, %s55
      %p363 = scmp.eq.s32.totalorder %s362, 0
      %s365 = sadd.s32 %s364, 1
      %s366 = scalar_select %p363, %s364, %s365
      %p369 = pneg %p363
      %p370 = scmp.eq.s32.totalorder %s40, 1
      %p371 = por %p369, %p370
      %p372 = scmp.ne.s32.totalorder %s364, %s367
      %p373 = scmp.eq.s32.totalorder %s40, 0
      %p374 = por %p372, %p373
      %p375 = scmp.ne.s32.totalorder %s364, %s367
      %p376 = scmp.eq.s32.totalorder %s45, 1
      %p377 = por %p375, %p376
      %p378 = scmp.ne.s32.totalorder %s367, %s368
      %p379 = scmp.eq.s32.totalorder %s45, 0
      %p380 = por %p378, %p379
      %p381 = scmp.ne.s32.totalorder %s367, %s368
      %p382 = scmp.eq.s32.totalorder %s46, 1
      %p383 = por %p381, %p382
      %p385 = scmp.ne.s32.totalorder %s368, %s384
      %p386 = scmp.eq.s32.totalorder %s46, 0
      %p387 = por %p385, %p386
      %s388 = ssub.s32 %s48, %s55
      %p389 = scmp.eq.s32.totalorder %s388, 0
      %s391 = sadd.s32 %s390, 1
      %s392 = scalar_select %p389, %s390, %s391
      %p395 = pneg %p389
      %p396 = scmp.eq.s32.totalorder %s40, 1
      %p397 = por %p395, %p396
      %p398 = scmp.ne.s32.totalorder %s390, %s393
      %p399 = scmp.eq.s32.totalorder %s40, 0
      %p400 = por %p398, %p399
      %p401 = scmp.ne.s32.totalorder %s390, %s393
      %p402 = scmp.eq.s32.totalorder %s45, 1
      %p403 = por %p401, %p402
      %p404 = scmp.ne.s32.totalorder %s393, %s394
      %p405 = scmp.eq.s32.totalorder %s45, 0
      %p406 = por %p404, %p405
      %p407 = scmp.ne.s32.totalorder %s393, %s394
      %p408 = scmp.eq.s32.totalorder %s46, 1
      %p409 = por %p407, %p408
      %p411 = scmp.ne.s32.totalorder %s394, %s410
      %p412 = scmp.eq.s32.totalorder %s46, 0
      %p413 = por %p411, %p412
      %s414 = ssub.s32 %s48, %s55
      %p415 = scmp.eq.s32.totalorder %s414, 0
      %s417 = sadd.s32 %s416, 1
      %s418 = scalar_select %p415, %s416, %s417
      %p421 = pneg %p415
      %p422 = scmp.eq.s32.totalorder %s40, 1
      %p423 = por %p421, %p422
      %p424 = scmp.ne.s32.totalorder %s416, %s419
      %p425 = scmp.eq.s32.totalorder %s40, 0
      %p426 = por %p424, %p425
      %p427 = scmp.ne.s32.totalorder %s416, %s419
      %p428 = scmp.eq.s32.totalorder %s45, 1
      %p429 = por %p427, %p428
      %p430 = scmp.ne.s32.totalorder %s419, %s420
      %p431 = scmp.eq.s32.totalorder %s45, 0
      %p432 = por %p430, %p431
      %p433 = scmp.ne.s32.totalorder %s419, %s420
      %p434 = scmp.eq.s32.totalorder %s46, 1
      %p435 = por %p433, %p434
      %p437 = scmp.ne.s32.totalorder %s420, %s436
      %p438 = scmp.eq.s32.totalorder %s46, 0
      %p439 = por %p437, %p438
      %s441 = sadd.s32 %s440, 1
      %p444 = scmp.eq.s32.totalorder %s40, 1
      %p445 = scmp.ne.s32.totalorder %s440, %s442
      %p446 = scmp.eq.s32.totalorder %s40, 0
      %p447 = por %p445, %p446
      %p448 = scmp.ne.s32.totalorder %s440, %s442
      %p449 = scmp.eq.s32.totalorder %s45, 1
      %p450 = por %p448, %p449
      %p451 = scmp.ne.s32.totalorder %s442, %s443
      %p452 = scmp.eq.s32.totalorder %s45, 0
      %p453 = por %p451, %p452
      %p454 = scmp.ne.s32.totalorder %s442, %s443
      %p455 = scmp.eq.s32.totalorder %s46, 1
      %p456 = por %p454, %p455
      %p458 = scmp.ne.s32.totalorder %s443, %s457
      %p459 = scmp.eq.s32.totalorder %s46, 0
      %p460 = por %p458, %p459
      %s462 = sadd.s32 %s461, 1
      %p465 = scmp.eq.s32.totalorder %s40, 1
      %p466 = scmp.ne.s32.totalorder %s461, %s463
      %p467 = scmp.eq.s32.totalorder %s40, 0
      %p468 = por %p466, %p467
      %p469 = scmp.ne.s32.totalorder %s461, %s463
      %p470 = scmp.eq.s32.totalorder %s45, 1
      %p471 = por %p469, %p470
      %p472 = scmp.ne.s32.totalorder %s463, %s464
      %p473 = scmp.eq.s32.totalorder %s45, 0
      %p474 = por %p472, %p473
      %p475 = scmp.ne.s32.totalorder %s463, %s464
      %p476 = scmp.eq.s32.totalorder %s46, 1
      %p477 = por %p475, %p476
      %p479 = scmp.ne.s32.totalorder %s464, %s478
      %p480 = scmp.eq.s32.totalorder %s46, 0
      %p481 = por %p479, %p480
      %s483 = sadd.s32 %s482, 1
      %p486 = scmp.eq.s32.totalorder %s40, 1
      %p487 = scmp.ne.s32.totalorder %s482, %s484
      %p488 = scmp.eq.s32.totalorder %s40, 0
      %p489 = por %p487, %p488
      %p490 = scmp.ne.s32.totalorder %s482, %s484
      %p491 = scmp.eq.s32.totalorder %s45, 1
      %p492 = por %p490, %p491
      %p493 = scmp.ne.s32.totalorder %s484, %s485
      %p494 = scmp.eq.s32.totalorder %s45, 0
      %p495 = por %p493, %p494
      %p496 = scmp.ne.s32.totalorder %s484, %s485
      %p497 = scmp.eq.s32.totalorder %s46, 1
      %p498 = por %p496, %p497
      %p500 = scmp.ne.s32.totalorder %s485, %s499
      %p501 = scmp.eq.s32.totalorder %s46, 0
      %p502 = por %p500, %p501
      %s504 = sadd.s32 %s503, 1
      %p507 = scmp.eq.s32.totalorder %s40, 1
      %p508 = scmp.ne.s32.totalorder %s503, %s505
      %p509 = scmp.eq.s32.totalorder %s40, 0
      %p510 = por %p508, %p509
      %p511 = scmp.ne.s32.totalorder %s503, %s505
      %p512 = scmp.eq.s32.totalorder %s45, 1
      %p513 = por %p511, %p512
      %p514 = scmp.ne.s32.totalorder %s505, %s506
      %p515 = scmp.eq.s32.totalorder %s45, 0
      %p516 = por %p514, %p515
      %p517 = scmp.ne.s32.totalorder %s505, %s506
      %p518 = scmp.eq.s32.totalorder %s46, 1
      %p519 = por %p517, %p518
      %p521 = scmp.ne.s32.totalorder %s506, %s520
      %p522 = scmp.eq.s32.totalorder %s46, 0
      %p523 = por %p521, %p522
      %s524 = ssub.s32 %s47, %s59
      %p525 = scmp.eq.s32.totalorder %s524, 0
      %s527 = sadd.s32 %s526, 1
      %s528 = scalar_select %p525, %s526, %s527
      %p531 = pneg %p525
      %p532 = scmp.eq.s32.totalorder %s40, 1
      %p533 = por %p531, %p532
      %p534 = scmp.ne.s32.totalorder %s526, %s529
      %p535 = scmp.eq.s32.totalorder %s40, 0
      %p536 = por %p534, %p535
      %p537 = scmp.ne.s32.totalorder %s526, %s529
      %p538 = scmp.eq.s32.totalorder %s45, 1
      %p539 = por %p537, %p538
      %p540 = scmp.ne.s32.totalorder %s529, %s530
      %p541 = scmp.eq.s32.totalorder %s45, 0
      %p542 = por %p540, %p541
      %p543 = scmp.ne.s32.totalorder %s529, %s530
      %p544 = scmp.eq.s32.totalorder %s46, 1
      %p545 = por %p543, %p544
      %p547 = scmp.ne.s32.totalorder %s530, %s546
      %p548 = scmp.eq.s32.totalorder %s46, 0
      %p549 = por %p547, %p548
      %p550 = scmp.le.s32.totalorder 1, %s40
      %p551 = scmp.lt.s32.totalorder %s40, 3
      %p552 = pnand %p550, %p551
      %p553 = pneg %p552
      // Predicated region
      $region9: #{image_generator_forward.1} parent=5 // pred_check
        _
      $region10: #{image_generator_forward.1} parent=5 // pred_check_branch
        %555 = sbr.rel (%p552) target = $region12
      $region11: #{image_generator_forward.1} parent=5 // pred_region
        %s556 = ssub.s32 %s40, 1
        // Predicated region
        $region13: #{image_generator_forward.1} parent=11 // pred_check
          %p557 = pneg %p78
        $region14: #{image_generator_forward.1} parent=11 // pred_check_branch
          %559 = sbr.rel (%p557) target = $region16
        $region15: #{image_generator_forward.1} parent=11 // pred_region
          %s560 = smul.u32 2, %s49
          %p561 = scmp.lt.s32.totalorder %s560, 1
          %s562 = scalar_select %p561, %s560, 1
          %s563 = smul.addr %s562, 8
          %s564 = smul.addr %s563, 8
          %s565 = scalar_lea.vmem %s0, %s564
          %s566 = smul.u32 2, %s49
        $region16: #{image_generator_forward.1} parent=11 // pred_fallthru
          _
        // Predicated region
        $region17: #{image_generator_forward.1} parent=11 // pred_check
          %p567 = pneg %p99
        $region18: #{image_generator_forward.1} parent=11 // pred_check_branch
          %569 = sbr.rel (%p567) target = $region20
        $region19: #{image_generator_forward.1} parent=11 // pred_region
          %s571 = ssub.s32 2048, 2048
          %572 = vsyncadd [#allocation4], %s571
          %s573 = sshll.u32 [#allocation3], 4
          %s574 = int_to_ptr.vmem [resolvable:$true] %s573
          %579 = dma.hbm_to_vmem [thread:$0]  %s1, 2048, %s574, [#allocation4], 64, 64, 4
        $region20: #{image_generator_forward.1} parent=11 // pred_fallthru
          _
        // Predicated region
        $region21: #{image_generator_forward.1} parent=11 // pred_check
          %p580 = pneg %p120
        $region22: #{image_generator_forward.1} parent=11 // pred_check_branch
          %582 = sbr.rel (%p580) target = $region24
        $region23: #{image_generator_forward.1} parent=11 // pred_region
          _
        $region24: #{image_generator_forward.1} parent=11 // pred_fallthru
          _
        // Predicated region
        $region25: #{image_generator_forward.1} parent=11 // pred_check
          %p583 = pneg %p453
        $region26: #{image_generator_forward.1} parent=11 // pred_check_branch
          %585 = sbr.rel (%p583) target = $region28
        $region27: #{image_generator_forward.1} parent=11 // pred_region
          %s587 = ssub.s32 16, 16
          %588 = vsyncadd [#allocation18], %s587
          %s590 = sshll.u32 [#allocation17], 4
          %s591 = int_to_ptr.vmem [resolvable:$true] %s590
          %593 = dma.hbm_to_vmem [thread:$0]  %s15, 16, %s591, [#allocation18]
        $region28: #{image_generator_forward.1} parent=11 // pred_fallthru
          _
        // Predicated region
        $region29: #{image_generator_forward.1} parent=11 // pred_check
          %p594 = pneg %p474
        $region30: #{image_generator_forward.1} parent=11 // pred_check_branch
          %596 = sbr.rel (%p594) target = $region32
        $region31: #{image_generator_forward.1} parent=11 // pred_region
          %s598 = ssub.s32 16, 16
          %599 = vsyncadd [#allocation18], %s598
          %s601 = sshll.u32 [#allocation19], 4
          %s602 = int_to_ptr.vmem [resolvable:$true] %s601
          %604 = dma.hbm_to_vmem [thread:$0]  %s16, 16, %s602, [#allocation18]
        $region32: #{image_generator_forward.1} parent=11 // pred_fallthru
          _
        // Predicated region
        $region33: #{image_generator_forward.1} parent=11 // pred_check
          %p605 = pneg %p495
        $region34: #{image_generator_forward.1} parent=11 // pred_check_branch
          %607 = sbr.rel (%p605) target = $region36
        $region35: #{image_generator_forward.1} parent=11 // pred_region
          %s609 = ssub.s32 1024, 1024
          %610 = vsyncadd [#allocation21], %s609
          %s611 = sshll.u32 [#allocation20], 4
          %s612 = int_to_ptr.vmem [resolvable:$true] %s611
          %617 = dma.hbm_to_vmem [thread:$0]  %s17, 1024, %s612, [#allocation21], 64, 64, 4
        $region36: #{image_generator_forward.1} parent=11 // pred_fallthru
          _
        // Predicated region
        $region37: #{image_generator_forward.1} parent=11 // pred_check
          %p618 = pneg %p516
        $region38: #{image_generator_forward.1} parent=11 // pred_check_branch
          %620 = sbr.rel (%p618) target = $region40
        $region39: #{image_generator_forward.1} parent=11 // pred_region
          %s622 = ssub.s32 16, 16
          %623 = vsyncadd [#allocation21], %s622
          %s625 = sshll.u32 [#allocation22], 4
          %s626 = int_to_ptr.vmem [resolvable:$true] %s625
          %628 = dma.hbm_to_vmem [thread:$0]  %s18, 16, %s626, [#allocation21]
        $region40: #{image_generator_forward.1} parent=11 // pred_fallthru
          _
      $region12: #{image_generator_forward.1} parent=5 // pred_fallthru
        _
      %p629 = scmp.lt.s32.totalorder %s40, 2
      // Predicated region
      $region41: #{image_generator_forward.1} parent=5 // pred_check
        %p630 = pneg %p629
      $region42: #{image_generator_forward.1} parent=5 // pred_check_branch
        %632 = sbr.rel (%p630) target = $region44
      $region43: #{image_generator_forward.1} parent=5 // pred_region
        // Predicated region
        $region45: #{image_generator_forward.1} parent=43 // pred_check
          %p633 = pneg %p140
        $region46: #{image_generator_forward.1} parent=43 // pred_check_branch
          %635 = sbr.rel (%p633) target = $region48
        $region47: #{image_generator_forward.1} parent=43 // pred_region
          %p636 = scmp.lt.s32.totalorder %s48, 1
          %s637 = scalar_select %p636, %s48, 1
          %s638 = smul.addr %s637, 48
          %s639 = smul.addr %s638, 4
          %s640 = scalar_lea.vmem %s3, %s639
        $region48: #{image_generator_forward.1} parent=43 // pred_fallthru
          _
        // Predicated region
        $region49: #{image_generator_forward.1} parent=43 // pred_check
          %p641 = pneg %p166
        $region50: #{image_generator_forward.1} parent=43 // pred_check_branch
          %643 = sbr.rel (%p641) target = $region52
        $region51: #{image_generator_forward.1} parent=43 // pred_region
          %p644 = scmp.lt.s32.totalorder %s48, 1
          %s645 = scalar_select %p644, %s48, 1
          %s646 = smul.addr %s645, 3
          %s647 = scalar_lea.vmem %s4, %s646
        $region52: #{image_generator_forward.1} parent=43 // pred_fallthru
          _
        // Predicated region
        $region53: #{image_generator_forward.1} parent=43 // pred_check
          %p648 = pneg %p192
        $region54: #{image_generator_forward.1} parent=43 // pred_check_branch
          %650 = sbr.rel (%p648) target = $region56
        $region55: #{image_generator_forward.1} parent=43 // pred_region
          %s651 = sand.u32 %s40, 1
          %s652 = scalar_lea.sflag [#allocation6], %s651
          %s653 = sand.u32 %s182, 1
          %s654 = smul.addr %s653, 64
          %s655 = scalar_lea.vmem [#allocation5], %s654
          %s657 = ssub.s32 1024, 1024
          %658 = vsyncadd %s652, %s657
          %s659 = smul.addr %s48, 16
          %s660 = smul.addr %s659, 64
          %s661 = scalar_lea.hbm %s5, %s660
          %s662 = sshll.u32 %s655, 4
          %s663 = int_to_ptr.vmem [resolvable:$true] %s662
          %668 = dma.hbm_to_vmem [thread:$0]  %s661, 1024, %s663, %s652, 64, 64, 4
        $region56: #{image_generator_forward.1} parent=43 // pred_fallthru
          _
        // Predicated region
        $region57: #{image_generator_forward.1} parent=43 // pred_check
          %p669 = pneg %p218
        $region58: #{image_generator_forward.1} parent=43 // pred_check_branch
          %671 = sbr.rel (%p669) target = $region60
        $region59: #{image_generator_forward.1} parent=43 // pred_region
          %p672 = scmp.lt.s32.totalorder %s48, 1
          %s673 = scalar_select %p672, %s48, 1
          %s674 = scalar_lea.vmem %s6, %s673
        $region60: #{image_generator_forward.1} parent=43 // pred_fallthru
          _
        // Predicated region
        $region61: #{image_generator_forward.1} parent=43 // pred_check
          %p675 = pneg %p244
        $region62: #{image_generator_forward.1} parent=43 // pred_check_branch
          %677 = sbr.rel (%p675) target = $region64
        $region63: #{image_generator_forward.1} parent=43 // pred_region
          %s678 = sand.u32 %s40, 1
          %s679 = scalar_lea.sflag [#allocation6], %s678
          %s680 = sand.u32 %s234, 1
          %s681 = scalar_lea.vmem [#allocation7], %s680
          %s683 = ssub.s32 16, 16
          %684 = vsyncadd %s679, %s683
          %s685 = smul.addr %s48, 16
          %s686 = scalar_lea.hbm %s7, %s685
          %s688 = sshll.u32 %s681, 4
          %s689 = int_to_ptr.vmem [resolvable:$true] %s688
          %691 = dma.hbm_to_vmem [thread:$0]  %s686, 16, %s689, %s679
        $region64: #{image_generator_forward.1} parent=43 // pred_fallthru
          _
        // Predicated region
        $region65: #{image_generator_forward.1} parent=43 // pred_check
          %p692 = pneg %p270
        $region66: #{image_generator_forward.1} parent=43 // pred_check_branch
          %694 = sbr.rel (%p692) target = $region68
        $region67: #{image_generator_forward.1} parent=43 // pred_region
          %s695 = sand.u32 %s40, 1
          %s696 = scalar_lea.sflag [#allocation9], %s695
          %s697 = sand.u32 %s260, 1
          %s698 = scalar_lea.vmem [#allocation8], %s697
          %s700 = ssub.s32 16, 16
          %701 = vsyncadd %s696, %s700
          %s702 = smul.addr %s48, 16
          %s703 = scalar_lea.hbm %s8, %s702
          %s705 = sshll.u32 %s698, 4
          %s706 = int_to_ptr.vmem [resolvable:$true] %s705
          %708 = dma.hbm_to_vmem [thread:$0]  %s703, 16, %s706, %s696
        $region68: #{image_generator_forward.1} parent=43 // pred_fallthru
          _
        // Predicated region
        $region69: #{image_generator_forward.1} parent=43 // pred_check
          %p709 = pneg %p296
        $region70: #{image_generator_forward.1} parent=43 // pred_check_branch
          %711 = sbr.rel (%p709) target = $region72
        $region71: #{image_generator_forward.1} parent=43 // pred_region
          %s712 = sand.u32 %s40, 1
          %s713 = scalar_lea.sflag [#allocation9], %s712
          %s714 = sand.u32 %s286, 1
          %s715 = smul.addr %s714, 256
          %s716 = scalar_lea.vmem [#allocation10], %s715
          %s718 = ssub.s32 4096, 4096
          %719 = vsyncadd %s713, %s718
          %s720 = smul.addr %s48, 64
          %s721 = smul.addr %s720, 64
          %s722 = scalar_lea.hbm %s9, %s721
          %s723 = sshll.u32 %s716, 4
          %s724 = int_to_ptr.vmem [resolvable:$true] %s723
          %729 = dma.hbm_to_vmem [thread:$0]  %s722, 4096, %s724, %s713, 256, 256, 16
        $region72: #{image_generator_forward.1} parent=43 // pred_fallthru
          _
        // Predicated region
        $region73: #{image_generator_forward.1} parent=43 // pred_check
          %p730 = pneg %p322
        $region74: #{image_generator_forward.1} parent=43 // pred_check_branch
          %732 = sbr.rel (%p730) target = $region76
        $region75: #{image_generator_forward.1} parent=43 // pred_region
          %p733 = scmp.lt.s32.totalorder %s48, 1
          %s734 = scalar_select %p733, %s48, 1
          %s735 = smul.addr %s734, 4
          %s736 = scalar_lea.vmem %s10, %s735
        $region76: #{image_generator_forward.1} parent=43 // pred_fallthru
          _
        // Predicated region
        $region77: #{image_generator_forward.1} parent=43 // pred_check
          %p737 = pneg %p348
        $region78: #{image_generator_forward.1} parent=43 // pred_check_branch
          %739 = sbr.rel (%p737) target = $region80
        $region79: #{image_generator_forward.1} parent=43 // pred_region
          %s740 = sand.u32 %s40, 1
          %s741 = scalar_lea.sflag [#allocation12], %s740
          %s742 = sand.u32 %s338, 1
          %s743 = smul.addr %s742, 256
          %s744 = scalar_lea.vmem [#allocation11], %s743
          %s746 = ssub.s32 4096, 4096
          %747 = vsyncadd %s741, %s746
          %s748 = smul.addr %s48, 64
          %s749 = smul.addr %s748, 64
          %s750 = scalar_lea.hbm %s11, %s749
          %s751 = sshll.u32 %s744, 4
          %s752 = int_to_ptr.vmem [resolvable:$true] %s751
          %757 = dma.hbm_to_vmem [thread:$0]  %s750, 4096, %s752, %s741, 64, 64, 4
        $region80: #{image_generator_forward.1} parent=43 // pred_fallthru
          _
        // Predicated region
        $region81: #{image_generator_forward.1} parent=43 // pred_check
          %p758 = pneg %p374
        $region82: #{image_generator_forward.1} parent=43 // pred_check_branch
          %760 = sbr.rel (%p758) target = $region84
        $region83: #{image_generator_forward.1} parent=43 // pred_region
          %s761 = sand.u32 %s40, 1
          %s762 = scalar_lea.sflag [#allocation12], %s761
          %s763 = sand.u32 %s364, 1
          %s764 = scalar_lea.vmem [#allocation13], %s763
          %s766 = ssub.s32 16, 16
          %767 = vsyncadd %s762, %s766
          %s768 = smul.addr %s48, 16
          %s769 = scalar_lea.hbm %s12, %s768
          %s771 = sshll.u32 %s764, 4
          %s772 = int_to_ptr.vmem [resolvable:$true] %s771
          %774 = dma.hbm_to_vmem [thread:$0]  %s769, 16, %s772, %s762
        $region84: #{image_generator_forward.1} parent=43 // pred_fallthru
          _
        // Predicated region
        $region85: #{image_generator_forward.1} parent=43 // pred_check
          %p775 = pneg %p400
        $region86: #{image_generator_forward.1} parent=43 // pred_check_branch
          %777 = sbr.rel (%p775) target = $region88
        $region87: #{image_generator_forward.1} parent=43 // pred_region
          %s778 = sand.u32 %s40, 1
          %s779 = scalar_lea.sflag [#allocation15], %s778
          %s780 = sand.u32 %s390, 1
          %s781 = scalar_lea.vmem [#allocation14], %s780
          %s783 = ssub.s32 16, 16
          %784 = vsyncadd %s779, %s783
          %s785 = smul.addr %s48, 16
          %s786 = scalar_lea.hbm %s13, %s785
          %s788 = sshll.u32 %s781, 4
          %s789 = int_to_ptr.vmem [resolvable:$true] %s788
          %791 = dma.hbm_to_vmem [thread:$0]  %s786, 16, %s789, %s779
        $region88: #{image_generator_forward.1} parent=43 // pred_fallthru
          _
        // Predicated region
        $region89: #{image_generator_forward.1} parent=43 // pred_check
          %p792 = pneg %p426
        $region90: #{image_generator_forward.1} parent=43 // pred_check_branch
          %794 = sbr.rel (%p792) target = $region92
        $region91: #{image_generator_forward.1} parent=43 // pred_region
          %s795 = sand.u32 %s40, 1
          %s796 = scalar_lea.sflag [#allocation15], %s795
          %s797 = sand.u32 %s416, 1
          %s798 = scalar_lea.vmem [#allocation16], %s797
          %s800 = ssub.s32 16, 16
          %801 = vsyncadd %s796, %s800
          %s802 = smul.addr %s48, 16
          %s803 = scalar_lea.hbm %s14, %s802
          %s805 = sshll.u32 %s798, 4
          %s806 = int_to_ptr.vmem [resolvable:$true] %s805
          %808 = dma.hbm_to_vmem [thread:$0]  %s803, 16, %s806, %s796
        $region92: #{image_generator_forward.1} parent=43 // pred_fallthru
          _
      $region44: #{image_generator_forward.1} parent=5 // pred_fallthru
        _
      %p809 = scmp.le.s32.totalorder 1, %s40
      %p810 = scmp.lt.s32.totalorder %s40, 3
      %p811 = pnand %p809, %p810
      %p812 = pneg %p811
      // Predicated region
      $region93: #{image_generator_forward.1} parent=5 // pred_check
        _
      $region94: #{image_generator_forward.1} parent=5 // pred_check_branch
        %814 = sbr.rel (%p811) target = $region96
      $region95: #{image_generator_forward.1} parent=5 // pred_region
        %s815 = ssub.s32 %s40, 1
        // Predicated region
        $region97: #{image_generator_forward.1} parent=95 // pred_check
          %p816 = pneg %p99
        $region98: #{image_generator_forward.1} parent=95 // pred_check_branch
          %818 = sbr.rel (%p816) target = $region100
        $region99: #{image_generator_forward.1} parent=95 // pred_region
          %819 = dma.done [#allocation4], 2048
        $region100: #{image_generator_forward.1} parent=95 // pred_fallthru
          _
        %s820 = sand.u32 %s45, 1
        %s821 = scalar_lea.sflag [#allocation6], %s820
        %s822 = sand.u32 %s185, 1
        %s823 = smul.addr %s822, 64
        %s824 = scalar_lea.vmem [#allocation5], %s823
        // Predicated region
        $region101: #{image_generator_forward.1} parent=95 // pred_check
          %p825 = pneg %p198
        $region102: #{image_generator_forward.1} parent=95 // pred_check_branch
          %827 = sbr.rel (%p825) target = $region104
        $region103: #{image_generator_forward.1} parent=95 // pred_region
          %828 = dma.done %s821, 1024
        $region104: #{image_generator_forward.1} parent=95 // pred_fallthru
          _
        %s829 = sand.u32 %s45, 1
        %s830 = scalar_lea.sflag [#allocation6], %s829
        %s831 = sand.u32 %s237, 1
        %s832 = scalar_lea.vmem [#allocation7], %s831
        // Predicated region
        $region105: #{image_generator_forward.1} parent=95 // pred_check
          %p833 = pneg %p250
        $region106: #{image_generator_forward.1} parent=95 // pred_check_branch
          %835 = sbr.rel (%p833) target = $region108
        $region107: #{image_generator_forward.1} parent=95 // pred_region
          %836 = dma.done %s830, 16
        $region108: #{image_generator_forward.1} parent=95 // pred_fallthru
          _
        %s837 = sand.u32 %s45, 1
        %s838 = scalar_lea.sflag [#allocation9], %s837
        %s839 = sand.u32 %s263, 1
        %s840 = scalar_lea.vmem [#allocation8], %s839
        // Predicated region
        $region109: #{image_generator_forward.1} parent=95 // pred_check
          %p841 = pneg %p276
        $region110: #{image_generator_forward.1} parent=95 // pred_check_branch
          %843 = sbr.rel (%p841) target = $region112
        $region111: #{image_generator_forward.1} parent=95 // pred_region
          %844 = dma.done %s838, 16
        $region112: #{image_generator_forward.1} parent=95 // pred_fallthru
          _
        %s845 = sand.u32 %s45, 1
        %s846 = scalar_lea.sflag [#allocation9], %s845
        %s847 = sand.u32 %s289, 1
        %s848 = smul.addr %s847, 256
        %s849 = scalar_lea.vmem [#allocation10], %s848
        // Predicated region
        $region113: #{image_generator_forward.1} parent=95 // pred_check
          %p850 = pneg %p302
        $region114: #{image_generator_forward.1} parent=95 // pred_check_branch
          %852 = sbr.rel (%p850) target = $region116
        $region115: #{image_generator_forward.1} parent=95 // pred_region
          %853 = dma.done %s846, 4096
        $region116: #{image_generator_forward.1} parent=95 // pred_fallthru
          _
        %s854 = sand.u32 %s45, 1
        %s855 = scalar_lea.sflag [#allocation12], %s854
        %s856 = sand.u32 %s341, 1
        %s857 = smul.addr %s856, 256
        %s858 = scalar_lea.vmem [#allocation11], %s857
        // Predicated region
        $region117: #{image_generator_forward.1} parent=95 // pred_check
          %p859 = pneg %p354
        $region118: #{image_generator_forward.1} parent=95 // pred_check_branch
          %861 = sbr.rel (%p859) target = $region120
        $region119: #{image_generator_forward.1} parent=95 // pred_region
          %862 = dma.done %s855, 4096
        $region120: #{image_generator_forward.1} parent=95 // pred_fallthru
          _
        %s863 = sand.u32 %s45, 1
        %s864 = scalar_lea.sflag [#allocation12], %s863
        %s865 = sand.u32 %s367, 1
        %s866 = scalar_lea.vmem [#allocation13], %s865
        // Predicated region
        $region121: #{image_generator_forward.1} parent=95 // pred_check
          %p867 = pneg %p380
        $region122: #{image_generator_forward.1} parent=95 // pred_check_branch
          %869 = sbr.rel (%p867) target = $region124
        $region123: #{image_generator_forward.1} parent=95 // pred_region
          %870 = dma.done %s864, 16
        $region124: #{image_generator_forward.1} parent=95 // pred_fallthru
          _
        %s871 = sand.u32 %s45, 1
        %s872 = scalar_lea.sflag [#allocation15], %s871
        %s873 = sand.u32 %s393, 1
        %s874 = scalar_lea.vmem [#allocation14], %s873
        // Predicated region
        $region125: #{image_generator_forward.1} parent=95 // pred_check
          %p875 = pneg %p406
        $region126: #{image_generator_forward.1} parent=95 // pred_check_branch
          %877 = sbr.rel (%p875) target = $region128
        $region127: #{image_generator_forward.1} parent=95 // pred_region
          %878 = dma.done %s872, 16
        $region128: #{image_generator_forward.1} parent=95 // pred_fallthru
          _
        %s879 = sand.u32 %s45, 1
        %s880 = scalar_lea.sflag [#allocation15], %s879
        %s881 = sand.u32 %s419, 1
        %s882 = scalar_lea.vmem [#allocation16], %s881
        // Predicated region
        $region129: #{image_generator_forward.1} parent=95 // pred_check
          %p883 = pneg %p432
        $region130: #{image_generator_forward.1} parent=95 // pred_check_branch
          %885 = sbr.rel (%p883) target = $region132
        $region131: #{image_generator_forward.1} parent=95 // pred_region
          %886 = dma.done %s880, 16
        $region132: #{image_generator_forward.1} parent=95 // pred_fallthru
          _
        // Predicated region
        $region133: #{image_generator_forward.1} parent=95 // pred_check
          %p887 = pneg %p453
        $region134: #{image_generator_forward.1} parent=95 // pred_check_branch
          %889 = sbr.rel (%p887) target = $region136
        $region135: #{image_generator_forward.1} parent=95 // pred_region
          %890 = dma.done [#allocation18], 16
        $region136: #{image_generator_forward.1} parent=95 // pred_fallthru
          _
        // Predicated region
        $region137: #{image_generator_forward.1} parent=95 // pred_check
          %p891 = pneg %p474
        $region138: #{image_generator_forward.1} parent=95 // pred_check_branch
          %893 = sbr.rel (%p891) target = $region140
        $region139: #{image_generator_forward.1} parent=95 // pred_region
          %894 = dma.done [#allocation18], 16
        $region140: #{image_generator_forward.1} parent=95 // pred_fallthru
          _
        // Predicated region
        $region141: #{image_generator_forward.1} parent=95 // pred_check
          %p895 = pneg %p495
        $region142: #{image_generator_forward.1} parent=95 // pred_check_branch
          %897 = sbr.rel (%p895) target = $region144
        $region143: #{image_generator_forward.1} parent=95 // pred_region
          %898 = dma.done [#allocation21], 1024
        $region144: #{image_generator_forward.1} parent=95 // pred_fallthru
          _
        // Predicated region
        $region145: #{image_generator_forward.1} parent=95 // pred_check
          %p899 = pneg %p516
        $region146: #{image_generator_forward.1} parent=95 // pred_check_branch
          %901 = sbr.rel (%p899) target = $region148
        $region147: #{image_generator_forward.1} parent=95 // pred_region
          %902 = dma.done [#allocation21], 16
        $region148: #{image_generator_forward.1} parent=95 // pred_fallthru
          _
        %s903 = smul.u32 2, %s49
        %p904 = scmp.lt.s32.totalorder %s903, 1
        %s905 = scalar_select %p904, %s903, 1
        %s906 = smul.addr %s905, 8
        %s907 = smul.addr %s906, 8
        %s908 = scalar_lea.vmem %s0, %s907
        %p909 = pneg %p78
        %p910 = pneg %p75
        %p911 = pneg %p99
        %p912 = pneg %p96
        %p913 = pneg %p120
        %p914 = pneg %p117
        %p915 = scmp.lt.s32.totalorder %s50, 1
        %s916 = scalar_select %p915, %s50, 1
        %s917 = smul.addr %s916, 48
        %s918 = smul.addr %s917, 4
        %s919 = scalar_lea.vmem %s3, %s918
        %p920 = pneg %p146
        %p921 = pneg %p143
        %p922 = scmp.lt.s32.totalorder %s50, 1
        %s923 = scalar_select %p922, %s50, 1
        %s924 = smul.addr %s923, 3
        %s925 = scalar_lea.vmem %s4, %s924
        %p926 = pneg %p172
        %p927 = pneg %p169
        %s928 = sand.u32 %s45, 1
        %s929 = scalar_lea.sflag [#allocation6], %s928
        %s930 = sand.u32 %s185, 1
        %s931 = smul.addr %s930, 64
        %s932 = scalar_lea.vmem [#allocation5], %s931
        %p933 = pneg %p198
        %p934 = pneg %p195
        %p935 = scmp.lt.s32.totalorder %s50, 1
        %s936 = scalar_select %p935, %s50, 1
        %s937 = scalar_lea.vmem %s6, %s936
        %p938 = pneg %p224
        %p939 = pneg %p221
        %s940 = sand.u32 %s45, 1
        %s941 = scalar_lea.sflag [#allocation6], %s940
        %s942 = sand.u32 %s237, 1
        %s943 = scalar_lea.vmem [#allocation7], %s942
        %p944 = pneg %p250
        %p945 = pneg %p247
        %s946 = sand.u32 %s45, 1
        %s947 = scalar_lea.sflag [#allocation9], %s946
        %s948 = sand.u32 %s263, 1
        %s949 = scalar_lea.vmem [#allocation8], %s948
        %p950 = pneg %p276
        %p951 = pneg %p273
        %s952 = sand.u32 %s45, 1
        %s953 = scalar_lea.sflag [#allocation9], %s952
        %s954 = sand.u32 %s289, 1
        %s955 = smul.addr %s954, 256
        %s956 = scalar_lea.vmem [#allocation10], %s955
        %p957 = pneg %p302
        %p958 = pneg %p299
        %p959 = scmp.lt.s32.totalorder %s50, 1
        %s960 = scalar_select %p959, %s50, 1
        %s961 = smul.addr %s960, 4
        %s962 = scalar_lea.vmem %s10, %s961
        %p963 = pneg %p328
        %p964 = pneg %p325
        %s965 = sand.u32 %s45, 1
        %s966 = scalar_lea.sflag [#allocation12], %s965
        %s967 = sand.u32 %s341, 1
        %s968 = smul.addr %s967, 256
        %s969 = scalar_lea.vmem [#allocation11], %s968
        %p970 = pneg %p354
        %p971 = pneg %p351
        %s972 = sand.u32 %s45, 1
        %s973 = scalar_lea.sflag [#allocation12], %s972
        %s974 = sand.u32 %s367, 1
        %s975 = scalar_lea.vmem [#allocation13], %s974
        %p976 = pneg %p380
        %p977 = pneg %p377
        %s978 = sand.u32 %s45, 1
        %s979 = scalar_lea.sflag [#allocation15], %s978
        %s980 = sand.u32 %s393, 1
        %s981 = scalar_lea.vmem [#allocation14], %s980
        %p982 = pneg %p406
        %p983 = pneg %p403
        %s984 = sand.u32 %s45, 1
        %s985 = scalar_lea.sflag [#allocation15], %s984
        %s986 = sand.u32 %s419, 1
        %s987 = scalar_lea.vmem [#allocation16], %s986
        %p988 = pneg %p432
        %p989 = pneg %p429
        %p990 = pneg %p453
        %p991 = pneg %p450
        %p992 = pneg %p474
        %p993 = pneg %p471
        %p994 = pneg %p495
        %p995 = pneg %p492
        %p996 = pneg %p516
        %p997 = pneg %p513
        %p998 = pneg %p542
        %p999 = pneg %p539
        %s1000 = smul.u32 2, %s49
        %p1001 = scmp.lt.s32.totalorder %s1000, 1
        %s1002 = scalar_select %p1001, %s1000, 1
        %s1003 = smul.addr %s1002, 8
        %s1004 = smul.addr %s1003, 8
        %s1005 = scalar_lea.vmem %s19, %s1004
        %s1006 = smul.u32 2, %s49
        %p1007 = scmp.lt.s32.totalorder %s1006, 1
        %s1008 = scalar_select %p1007, %s1006, 1
        %s1009 = smul.addr %s1008, 8
        %s1010 = smul.addr %s1009, 8
        %s1011 = scalar_lea.vmem %s0, %s1010
        %s1012 = smul.u32 2, %s49
        %p1013 = scmp.lt.s32.totalorder %s50, 1
        %s1014 = scalar_select %p1013, %s50, 1
        %s1015 = smul.addr %s1014, 48
        %s1016 = smul.addr %s1015, 4
        %s1017 = scalar_lea.vmem %s3, %s1016
        %p1018 = scmp.lt.s32.totalorder %s50, 1
        %s1019 = scalar_select %p1018, %s50, 1
        %s1020 = smul.addr %s1019, 3
        %s1021 = scalar_lea.vmem %s4, %s1020
        %p1022 = scmp.lt.s32.totalorder %s50, 1
        %s1023 = scalar_select %p1022, %s50, 1
        %s1024 = scalar_lea.vmem %s6, %s1023
        %p1025 = scmp.lt.s32.totalorder %s50, 1
        %s1026 = scalar_select %p1025, %s50, 1
        %s1027 = smul.addr %s1026, 4
        %s1028 = scalar_lea.vmem %s10, %s1027
        %s1029 = smul.u32 2, %s49
        %p1030 = scmp.lt.s32.totalorder %s1029, 1
        %s1031 = scalar_select %p1030, %s1029, 1
        %s1032 = smul.addr %s1031, 8
        %s1033 = smul.addr %s1032, 8
        %s1034 = scalar_lea.vmem %s19, %s1033
        %s1035 = smul.u32 2, %s49
        %p1037 = scmp.eq.s32.totalorder %s50, 0
        // Predicated region
        $region149: #{image_generator_forward.1} parent=95 // pred_check
          %p1038 = pneg %p1037
        $region150: #{image_generator_forward.1} parent=95 // pred_check_branch
          %1040 = sbr.rel (%p1038) target = $region152
        $region151: #{image_generator_forward.1} parent=95 // pred_region
          %v1041 = vld [vmem:[%s1011] sm:$0xff]
          %v1042 = vld [vmem:[%s1011 + $0x8] sm:$0xff]
          %v1043 = vld [vmem:[%s1011 + $0x10] sm:$0xff]
          %v1044 = vld [vmem:[%s1011 + $0x18] sm:$0xff]
          %v1045 = vld [vmem:[%s1011 + $0x20] sm:$0xff]
          %v1046 = vld [vmem:[%s1011 + $0x28] sm:$0xff]
          %v1047 = vld [vmem:[%s1011 + $0x30] sm:$0xff]
          %v1048 = vld [vmem:[%s1011 + $0x38] sm:$0xff]
          %v1049 = vld [vmem:[%s1011 + $0x40] sm:$0xff]
          %v1050 = vld [vmem:[%s1011 + $0x48] sm:$0xff]
          %v1051 = vld [vmem:[%s1011 + $0x50] sm:$0xff]
          %v1052 = vld [vmem:[%s1011 + $0x58] sm:$0xff]
          %v1053 = vld [vmem:[%s1011 + $0x60] sm:$0xff]
          %v1054 = vld [vmem:[%s1011 + $0x68] sm:$0xff]
          %v1055 = vld [vmem:[%s1011 + $0x70] sm:$0xff]
          %v1056 = vld [vmem:[%s1011 + $0x78] sm:$0xff]
          %v1057 = vlaneseq
          %v1058 = vand.u32 %v1057, 127
          %v1059 = vadd.s32 %v1058, 128
          %1060 = vset.pattern.permute.xlu0 0
          %1061 = vperm.xlu0 %1060, %v1041
          %v1062 = vpop.permute.xlu0 %1061
          %1063 = vset.pattern.permute.xlu0 0
          %1064 = vperm.xlu0 %1063, %v1042
          %v1065 = vpop.permute.xlu0 %1064
          %1066 = vset.pattern.permute.xlu0 0
          %1067 = vperm.xlu0 %1066, %v1043
          %v1068 = vpop.permute.xlu0 %1067
          %1069 = vset.pattern.permute.xlu0 0
          %1070 = vperm.xlu0 %1069, %v1044
          %v1071 = vpop.permute.xlu0 %1070
          %1072 = vset.pattern.permute.xlu0 0
          %1073 = vperm.xlu0 %1072, %v1045
          %v1074 = vpop.permute.xlu0 %1073
          %1075 = vset.pattern.permute.xlu0 0
          %1076 = vperm.xlu0 %1075, %v1046
          %v1077 = vpop.permute.xlu0 %1076
          %1078 = vset.pattern.permute.xlu0 0
          %1079 = vperm.xlu0 %1078, %v1047
          %v1080 = vpop.permute.xlu0 %1079
          %1081 = vset.pattern.permute.xlu0 0
          %1082 = vperm.xlu0 %1081, %v1048
          %v1083 = vpop.permute.xlu0 %1082
          %1084 = vset.pattern.permute.xlu0 0
          %1085 = vperm.xlu0 %1084, %v1049
          %v1086 = vpop.permute.xlu0 %1085
          %1087 = vset.pattern.permute.xlu0 0
          %1088 = vperm.xlu0 %1087, %v1050
          %v1089 = vpop.permute.xlu0 %1088
          %1090 = vset.pattern.permute.xlu0 0
          %1091 = vperm.xlu0 %1090, %v1051
          %v1092 = vpop.permute.xlu0 %1091
          %1093 = vset.pattern.permute.xlu0 0
          %1094 = vperm.xlu0 %1093, %v1052
          %v1095 = vpop.permute.xlu0 %1094
          %1096 = vset.pattern.permute.xlu0 0
          %1097 = vperm.xlu0 %1096, %v1053
          %v1098 = vpop.permute.xlu0 %1097
          %1099 = vset.pattern.permute.xlu0 0
          %1100 = vperm.xlu0 %1099, %v1054
          %v1101 = vpop.permute.xlu0 %1100
          %1102 = vset.pattern.permute.xlu0 0
          %1103 = vperm.xlu0 %1102, %v1055
          %v1104 = vpop.permute.xlu0 %1103
          %1105 = vset.pattern.permute.xlu0 0
          %1106 = vperm.xlu0 %1105, %v1056
          %v1107 = vpop.permute.xlu0 %1106
          %vm1108 = vcmp.eq.s32.totalorder %v1058, %v1062
          %vm1109 = vcmp.eq.s32.totalorder %v1059, %v1062
          %vm1110 = vcmp.eq.s32.totalorder %v1058, %v1065
          %vm1111 = vcmp.eq.s32.totalorder %v1059, %v1065
          %vm1112 = vcmp.eq.s32.totalorder %v1058, %v1068
          %vm1113 = vcmp.eq.s32.totalorder %v1059, %v1068
          %vm1114 = vcmp.eq.s32.totalorder %v1058, %v1071
          %vm1115 = vcmp.eq.s32.totalorder %v1059, %v1071
          %vm1116 = vcmp.eq.s32.totalorder %v1058, %v1074
          %vm1117 = vcmp.eq.s32.totalorder %v1059, %v1074
          %vm1118 = vcmp.eq.s32.totalorder %v1058, %v1077
          %vm1119 = vcmp.eq.s32.totalorder %v1059, %v1077
          %vm1120 = vcmp.eq.s32.totalorder %v1058, %v1080
          %vm1121 = vcmp.eq.s32.totalorder %v1059, %v1080
          %vm1122 = vcmp.eq.s32.totalorder %v1058, %v1083
          %vm1123 = vcmp.eq.s32.totalorder %v1059, %v1083
          %vm1124 = vcmp.eq.s32.totalorder %v1058, %v1086
          %vm1125 = vcmp.eq.s32.totalorder %v1059, %v1086
          %vm1126 = vcmp.eq.s32.totalorder %v1058, %v1089
          %vm1127 = vcmp.eq.s32.totalorder %v1059, %v1089
          %vm1128 = vcmp.eq.s32.totalorder %v1058, %v1092
          %vm1129 = vcmp.eq.s32.totalorder %v1059, %v1092
          %vm1130 = vcmp.eq.s32.totalorder %v1058, %v1095
          %vm1131 = vcmp.eq.s32.totalorder %v1059, %v1095
          %vm1132 = vcmp.eq.s32.totalorder %v1058, %v1098
          %vm1133 = vcmp.eq.s32.totalorder %v1059, %v1098
          %vm1134 = vcmp.eq.s32.totalorder %v1058, %v1101
          %vm1135 = vcmp.eq.s32.totalorder %v1059, %v1101
          %vm1136 = vcmp.eq.s32.totalorder %v1058, %v1104
          %vm1137 = vcmp.eq.s32.totalorder %v1059, %v1104
          %vm1138 = vcmp.eq.s32.totalorder %v1058, %v1107
          %vm1139 = vcmp.eq.s32.totalorder %v1059, %v1107
          %v1140 = vsel %vm1108, 1, 0
          %v1141 = vsel %vm1109, 1, 0
          %v1142 = vsel %vm1110, 1, 0
          %v1143 = vsel %vm1111, 1, 0
          %v1144 = vsel %vm1112, 1, 0
          %v1145 = vsel %vm1113, 1, 0
          %v1146 = vsel %vm1114, 1, 0
          %v1147 = vsel %vm1115, 1, 0
          %v1148 = vsel %vm1116, 1, 0
          %v1149 = vsel %vm1117, 1, 0
          %v1150 = vsel %vm1118, 1, 0
          %v1151 = vsel %vm1119, 1, 0
          %v1152 = vsel %vm1120, 1, 0
          %v1153 = vsel %vm1121, 1, 0
          %v1154 = vsel %vm1122, 1, 0
          %v1155 = vsel %vm1123, 1, 0
          %v1156 = vsel %vm1124, 1, 0
          %v1157 = vsel %vm1125, 1, 0
          %v1158 = vsel %vm1126, 1, 0
          %v1159 = vsel %vm1127, 1, 0
          %v1160 = vsel %vm1128, 1, 0
          %v1161 = vsel %vm1129, 1, 0
          %v1162 = vsel %vm1130, 1, 0
          %v1163 = vsel %vm1131, 1, 0
          %v1164 = vsel %vm1132, 1, 0
          %v1165 = vsel %vm1133, 1, 0
          %v1166 = vsel %vm1134, 1, 0
          %v1167 = vsel %vm1135, 1, 0
          %v1168 = vsel %vm1136, 1, 0
          %v1169 = vsel %vm1137, 1, 0
          %v1170 = vsel %vm1138, 1, 0
          %v1171 = vsel %vm1139, 1, 0
          %v1172 = vcvt.s32.f32 %v1140
          %v1173 = vcvt.s32.f32 %v1141
          %v1174 = vcvt.s32.f32 %v1142
          %v1175 = vcvt.s32.f32 %v1143
          %v1176 = vcvt.s32.f32 %v1144
          %v1177 = vcvt.s32.f32 %v1145
          %v1178 = vcvt.s32.f32 %v1146
          %v1179 = vcvt.s32.f32 %v1147
          %v1180 = vcvt.s32.f32 %v1148
          %v1181 = vcvt.s32.f32 %v1149
          %v1182 = vcvt.s32.f32 %v1150
          %v1183 = vcvt.s32.f32 %v1151
          %v1184 = vcvt.s32.f32 %v1152
          %v1185 = vcvt.s32.f32 %v1153
          %v1186 = vcvt.s32.f32 %v1154
          %v1187 = vcvt.s32.f32 %v1155
          %v1188 = vcvt.s32.f32 %v1156
          %v1189 = vcvt.s32.f32 %v1157
          %v1190 = vcvt.s32.f32 %v1158
          %v1191 = vcvt.s32.f32 %v1159
          %v1192 = vcvt.s32.f32 %v1160
          %v1193 = vcvt.s32.f32 %v1161
          %v1194 = vcvt.s32.f32 %v1162
          %v1195 = vcvt.s32.f32 %v1163
          %v1196 = vcvt.s32.f32 %v1164
          %v1197 = vcvt.s32.f32 %v1165
          %v1198 = vcvt.s32.f32 %v1166
          %v1199 = vcvt.s32.f32 %v1167
          %v1200 = vcvt.s32.f32 %v1168
          %v1201 = vcvt.s32.f32 %v1169
          %v1202 = vcvt.s32.f32 %v1170
          %v1203 = vcvt.s32.f32 %v1171
          %v1204 = vpack.c.bf16 %v1174, %v1172
          %v1205 = vpack.c.bf16 %v1175, %v1173
          %v1206 = vpack.c.bf16 %v1178, %v1176
          %v1207 = vpack.c.bf16 %v1179, %v1177
          %v1208 = vpack.c.bf16 %v1182, %v1180
          %v1209 = vpack.c.bf16 %v1183, %v1181
          %v1210 = vpack.c.bf16 %v1186, %v1184
          %v1211 = vpack.c.bf16 %v1187, %v1185
          %v1212 = vpack.c.bf16 %v1190, %v1188
          %v1213 = vpack.c.bf16 %v1191, %v1189
          %v1214 = vpack.c.bf16 %v1194, %v1192
          %v1215 = vpack.c.bf16 %v1195, %v1193
          %v1216 = vpack.c.bf16 %v1198, %v1196
          %v1217 = vpack.c.bf16 %v1199, %v1197
          %v1218 = vpack.c.bf16 %v1202, %v1200
          %v1219 = vpack.c.bf16 %v1203, %v1201
          %v1220 = vld [vmem:[#allocation3] sm:$0xf]
          %v1221 = vld [vmem:[#allocation3 + $0x4] sm:$0xf]
          %v1222 = vld [vmem:[#allocation3 + $0x8] sm:$0xf]
          %v1223 = vld [vmem:[#allocation3 + $0xc] sm:$0xf]
          %v1224 = vld [vmem:[#allocation3 + $0x10] sm:$0xf]
          %v1225 = vld [vmem:[#allocation3 + $0x14] sm:$0xf]
          %v1226 = vld [vmem:[#allocation3 + $0x18] sm:$0xf]
          %v1227 = vld [vmem:[#allocation3 + $0x1c] sm:$0xf]
          %v1228 = vld [vmem:[#allocation3 + $0x20] sm:$0xf]
          %v1229 = vld [vmem:[#allocation3 + $0x24] sm:$0xf]
          %v1230 = vld [vmem:[#allocation3 + $0x28] sm:$0xf]
          %v1231 = vld [vmem:[#allocation3 + $0x2c] sm:$0xf]
          %v1232 = vld [vmem:[#allocation3 + $0x30] sm:$0xf]
          %v1233 = vld [vmem:[#allocation3 + $0x34] sm:$0xf]
          %v1234 = vld [vmem:[#allocation3 + $0x38] sm:$0xf]
          %v1235 = vld [vmem:[#allocation3 + $0x3c] sm:$0xf]
          %v1236 = vld [vmem:[#allocation3 + $0x40] sm:$0xf]
          %v1237 = vld [vmem:[#allocation3 + $0x44] sm:$0xf]
          %v1238 = vld [vmem:[#allocation3 + $0x48] sm:$0xf]
          %v1239 = vld [vmem:[#allocation3 + $0x4c] sm:$0xf]
          %v1240 = vld [vmem:[#allocation3 + $0x50] sm:$0xf]
          %v1241 = vld [vmem:[#allocation3 + $0x54] sm:$0xf]
          %v1242 = vld [vmem:[#allocation3 + $0x58] sm:$0xf]
          %v1243 = vld [vmem:[#allocation3 + $0x5c] sm:$0xf]
          %v1244 = vld [vmem:[#allocation3 + $0x60] sm:$0xf]
          %v1245 = vld [vmem:[#allocation3 + $0x64] sm:$0xf]
          %v1246 = vld [vmem:[#allocation3 + $0x68] sm:$0xf]
          %v1247 = vld [vmem:[#allocation3 + $0x6c] sm:$0xf]
          %v1248 = vld [vmem:[#allocation3 + $0x70] sm:$0xf]
          %v1249 = vld [vmem:[#allocation3 + $0x74] sm:$0xf]
          %v1250 = vld [vmem:[#allocation3 + $0x78] sm:$0xf]
          %v1251 = vld [vmem:[#allocation3 + $0x7c] sm:$0xf]
          %v1252 = vld [vmem:[%s2] sm:$0xff]
          %v1253 = vld [vmem:[%s2 + $0x8] sm:$0xff]
          %v1254 = vld [vmem:[%s2 + $0x10] sm:$0xff]
          %v1255 = vld [vmem:[%s2 + $0x18] sm:$0xff]
          %v1256 = vld [vmem:[%s2 + $0x20] sm:$0xff]
          %v1257 = vld [vmem:[%s2 + $0x28] sm:$0xff]
          %v1258 = vld [vmem:[%s2 + $0x30] sm:$0xff]
          %v1259 = vld [vmem:[%s2 + $0x38] sm:$0xff]
          %v1260 = vld [vmem:[%s2 + $0x40] sm:$0xff]
          %v1261 = vld [vmem:[%s2 + $0x48] sm:$0xff]
          %v1262 = vld [vmem:[%s2 + $0x50] sm:$0xff]
          %v1263 = vld [vmem:[%s2 + $0x58] sm:$0xff]
          %v1264 = vld [vmem:[%s2 + $0x60] sm:$0xff]
          %v1265 = vld [vmem:[%s2 + $0x68] sm:$0xff]
          %v1266 = vld [vmem:[%s2 + $0x70] sm:$0xff]
          %v1267 = vld [vmem:[%s2 + $0x78] sm:$0xff]
          %v1300 = vunpack.c.l.b16 %v1220
          %v1301 = vunpack.c.l.b16 %v1221
          %v1302 = vunpack.c.l.b16 %v1222
          %v1303 = vunpack.c.l.b16 %v1223
          %v1304 = vunpack.c.l.b16 %v1224
          %v1305 = vunpack.c.l.b16 %v1225
          %v1306 = vunpack.c.l.b16 %v1226
          %v1307 = vunpack.c.l.b16 %v1227
          %v1308 = vunpack.c.l.b16 %v1228
          %v1309 = vunpack.c.l.b16 %v1229
          %v1310 = vunpack.c.l.b16 %v1230
          %v1311 = vunpack.c.l.b16 %v1231
          %v1312 = vunpack.c.l.b16 %v1232
          %v1313 = vunpack.c.l.b16 %v1233
          %v1314 = vunpack.c.l.b16 %v1234
          %v1315 = vunpack.c.l.b16 %v1235
          %v1316 = vunpack.c.l.b16 %v1236
          %v1317 = vunpack.c.l.b16 %v1237
          %v1318 = vunpack.c.l.b16 %v1238
          %v1319 = vunpack.c.l.b16 %v1239
          %v1320 = vunpack.c.l.b16 %v1240
          %v1321 = vunpack.c.l.b16 %v1241
          %v1322 = vunpack.c.l.b16 %v1242
          %v1323 = vunpack.c.l.b16 %v1243
          %v1324 = vunpack.c.l.b16 %v1244
          %v1325 = vunpack.c.l.b16 %v1245
          %v1326 = vunpack.c.l.b16 %v1246
          %v1327 = vunpack.c.l.b16 %v1247
          %v1328 = vunpack.c.l.b16 %v1248
          %v1329 = vunpack.c.l.b16 %v1249
          %v1330 = vunpack.c.l.b16 %v1250
          %v1331 = vunpack.c.l.b16 %v1251
          %v1332 = vpack.c.b16 %v1301, %v1300
          %v1333 = vpack.c.b16 %v1303, %v1302
          %v1334 = vpack.c.b16 %v1305, %v1304
          %v1335 = vpack.c.b16 %v1307, %v1306
          %v1336 = vpack.c.b16 %v1309, %v1308
          %v1337 = vpack.c.b16 %v1311, %v1310
          %v1338 = vpack.c.b16 %v1313, %v1312
          %v1339 = vpack.c.b16 %v1315, %v1314
          %v1340 = vpack.c.b16 %v1317, %v1316
          %v1341 = vpack.c.b16 %v1319, %v1318
          %v1342 = vpack.c.b16 %v1321, %v1320
          %v1343 = vpack.c.b16 %v1323, %v1322
          %v1344 = vpack.c.b16 %v1325, %v1324
          %v1345 = vpack.c.b16 %v1327, %v1326
          %v1346 = vpack.c.b16 %v1329, %v1328
          %v1347 = vpack.c.b16 %v1331, %v1330
          %1364 = vmatprep.subr.bf16.mxu0 0
          %1365 = vmatpush1.bf16.msra.mxu0 %v1332
          %1366 = vmatprep.subr.bf16.mxu0 0
          %1367 = vmatpush1.bf16.msra.mxu0 %v1333
          %1368 = vmatprep.subr.bf16.mxu0 0
          %1369 = vmatpush1.bf16.msra.mxu0 %v1334
          %1370 = vmatprep.subr.bf16.mxu0 0
          %1371 = vmatpush1.bf16.msra.mxu0 %v1335
          %1372 = vmatprep.subr.bf16.mxu0 0
          %1373 = vmatpush1.bf16.msra.mxu0 %v1336
          %1374 = vmatprep.subr.bf16.mxu0 0
          %1375 = vmatpush1.bf16.msra.mxu0 %v1337
          %1376 = vmatprep.subr.bf16.mxu0 0
          %1377 = vmatpush1.bf16.msra.mxu0 %v1338
          %1378 = vmatprep.subr.bf16.mxu0 0
          %1379 = vmatpush1.bf16.msra.mxu0 %v1339
          %1380 = vmatprep.subr.bf16.mxu0 0
          %1381 = vmatpush1.bf16.msra.mxu0 %v1340
          %1382 = vmatprep.subr.bf16.mxu0 0
          %1383 = vmatpush1.bf16.msra.mxu0 %v1341
          %1384 = vmatprep.subr.bf16.mxu0 0
          %1385 = vmatpush1.bf16.msra.mxu0 %v1342
          %1386 = vmatprep.subr.bf16.mxu0 0
          %1387 = vmatpush1.bf16.msra.mxu0 %v1343
          %1388 = vmatprep.subr.bf16.mxu0 0
          %1389 = vmatpush1.bf16.msra.mxu0 %v1344
          %1390 = vmatprep.subr.bf16.mxu0 0
          %1391 = vmatpush1.bf16.msra.mxu0 %v1345
          %1392 = vmatprep.subr.bf16.mxu0 0
          %1393 = vmatpush1.bf16.msra.mxu0 %v1346
          %1394 = vmatprep.subr.bf16.mxu0 0
          %1395 = vmatpush1.bf16.msra.mxu0 %v1347
          %1396 = vmatprep.mubr.bf16.mxu0 %v1205
          %1397 = vmatmul.mubr.bf16.gmra.mrb[0].mxu0 %v1204
          %v1398 = vpop.f32.mrb[0].mxu0
          %v1399 = vadd.f32 %v1252, %v1398
          %v1400 = vpop.f32.mrb[0].mxu0
          %v1401 = vpop.f32.mrb[0].mxu0
          %v1402 = vadd.f32 %v1253, %v1401
          %v1403 = vpop.f32.mrb[0].mxu0
          %1404 = vmatprep.mubr.bf16.mxu0 %v1207
          %1405 = vmatmul.mubr.bf16.gmra.mrb[0].mxu0 %v1206
          %v1406 = vpop.f32.mrb[0].mxu0
          %v1407 = vadd.f32 %v1254, %v1406
          %v1408 = vpop.f32.mrb[0].mxu0
          %v1409 = vpop.f32.mrb[0].mxu0
          %v1410 = vadd.f32 %v1255, %v1409
          %v1411 = vpop.f32.mrb[0].mxu0
          %1412 = vmatprep.mubr.bf16.mxu0 %v1209
          %1413 = vmatmul.mubr.bf16.gmra.mrb[0].mxu0 %v1208
          %v1414 = vpop.f32.mrb[0].mxu0
          %v1415 = vadd.f32 %v1256, %v1414
          %v1416 = vpop.f32.mrb[0].mxu0
          %v1417 = vpop.f32.mrb[0].mxu0
          %v1418 = vadd.f32 %v1257, %v1417
          %v1419 = vpop.f32.mrb[0].mxu0
          %1420 = vmatprep.mubr.bf16.mxu0 %v1211
          %1421 = vmatmul.mubr.bf16.gmra.mrb[0].mxu0 %v1210
          %v1422 = vpop.f32.mrb[0].mxu0
          %v1423 = vadd.f32 %v1258, %v1422
          %v1424 = vpop.f32.mrb[0].mxu0
          %v1425 = vpop.f32.mrb[0].mxu0
          %v1426 = vadd.f32 %v1259, %v1425
          %v1427 = vpop.f32.mrb[0].mxu0
          %1428 = vmatprep.mubr.bf16.mxu0 %v1213
          %1429 = vmatmul.mubr.bf16.gmra.mrb[0].mxu0 %v1212
          %v1430 = vpop.f32.mrb[0].mxu0
          %v1431 = vadd.f32 %v1260, %v1430
          %v1432 = vpop.f32.mrb[0].mxu0
          %v1433 = vpop.f32.mrb[0].mxu0
          %v1434 = vadd.f32 %v1261, %v1433
          %v1435 = vpop.f32.mrb[0].mxu0
          %1436 = vmatprep.mubr.bf16.mxu0 %v1215
          %1437 = vmatmul.mubr.bf16.gmra.mrb[0].mxu0 %v1214
          %v1438 = vpop.f32.mrb[0].mxu0
          %v1439 = vadd.f32 %v1262, %v1438
          %v1440 = vpop.f32.mrb[0].mxu0
          %v1441 = vpop.f32.mrb[0].mxu0
          %v1442 = vadd.f32 %v1263, %v1441
          %v1443 = vpop.f32.mrb[0].mxu0
          %1444 = vmatprep.mubr.bf16.mxu0 %v1217
          %1445 = vmatmul.mubr.bf16.gmra.mrb[0].mxu0 %v1216
          %v1446 = vpop.f32.mrb[0].mxu0
          %v1447 = vadd.f32 %v1264, %v1446
          %v1448 = vpop.f32.mrb[0].mxu0
          %v1449 = vpop.f32.mrb[0].mxu0
          %v1450 = vadd.f32 %v1265, %v1449
          %v1451 = vpop.f32.mrb[0].mxu0
          %1452 = vmatprep.mubr.bf16.mxu0 %v1219
          %1453 = vmatmul.mubr.bf16.gmra.mrb[0].mxu0 %v1218
          %v1454 = vpop.f32.mrb[0].mxu0
          %v1455 = vadd.f32 %v1266, %v1454
          %v1456 = vpop.f32.mrb[0].mxu0
          %v1457 = vpop.f32.mrb[0].mxu0
          %v1458 = vadd.f32 %v1267, %v1457
          %v1459 = vpop.f32.mrb[0].mxu0
          %1460 = vdwg.mxu0
          %1461 = vst [vmem:[#allocation2] sm:$0xff] %v1399
          %1462 = vst [vmem:[#allocation2 + $0x8] sm:$0xff] %v1402
          %1463 = vst [vmem:[#allocation2 + $0x10] sm:$0xff] %v1407
          %1464 = vst [vmem:[#allocation2 + $0x18] sm:$0xff] %v1410
          %1465 = vst [vmem:[#allocation2 + $0x20] sm:$0xff] %v1415
          %1466 = vst [vmem:[#allocation2 + $0x28] sm:$0xff] %v1418
          %1467 = vst [vmem:[#allocation2 + $0x30] sm:$0xff] %v1423
          %1468 = vst [vmem:[#allocation2 + $0x38] sm:$0xff] %v1426
          %1469 = vst [vmem:[#allocation2 + $0x40] sm:$0xff] %v1431
          %1470 = vst [vmem:[#allocation2 + $0x48] sm:$0xff] %v1434
          %1471 = vst [vmem:[#allocation2 + $0x50] sm:$0xff] %v1439
          %1472 = vst [vmem:[#allocation2 + $0x58] sm:$0xff] %v1442
          %1473 = vst [vmem:[#allocation2 + $0x60] sm:$0xff] %v1447
          %1474 = vst [vmem:[#allocation2 + $0x68] sm:$0xff] %v1450
          %1475 = vst [vmem:[#allocation2 + $0x70] sm:$0xff] %v1455
          %1476 = vst [vmem:[#allocation2 + $0x78] sm:$0xff] %v1458
        $region152: #{image_generator_forward.1} parent=95 // pred_fallthru
          _
        %v1477 = vld [vmem:[#allocation2] sm:$0xff]
        %v1478 = vld [vmem:[#allocation2 + $0x8] sm:$0xff]
        %v1479 = vld [vmem:[#allocation2 + $0x10] sm:$0xff]
        %v1480 = vld [vmem:[#allocation2 + $0x18] sm:$0xff]
        %v1481 = vld [vmem:[#allocation2 + $0x20] sm:$0xff]
        %v1482 = vld [vmem:[#allocation2 + $0x28] sm:$0xff]
        %v1483 = vld [vmem:[#allocation2 + $0x30] sm:$0xff]
        %v1484 = vld [vmem:[#allocation2 + $0x38] sm:$0xff]
        %v1485 = vld [vmem:[#allocation2 + $0x40] sm:$0xff]
        %v1486 = vld [vmem:[#allocation2 + $0x48] sm:$0xff]
        %v1487 = vld [vmem:[#allocation2 + $0x50] sm:$0xff]
        %v1488 = vld [vmem:[#allocation2 + $0x58] sm:$0xff]
        %v1489 = vld [vmem:[#allocation2 + $0x60] sm:$0xff]
        %v1490 = vld [vmem:[#allocation2 + $0x68] sm:$0xff]
        %v1491 = vld [vmem:[#allocation2 + $0x70] sm:$0xff]
        %v1492 = vld [vmem:[#allocation2 + $0x78] sm:$0xff]
        %v1493 = vpack.c.bf16 %v1478, %v1477
        %v1494 = vpack.c.bf16 %v1480, %v1479
        %v1495 = vpack.c.bf16 %v1482, %v1481
        %v1496 = vpack.c.bf16 %v1484, %v1483
        %v1497 = vpack.c.bf16 %v1486, %v1485
        %v1498 = vpack.c.bf16 %v1488, %v1487
        %v1499 = vpack.c.bf16 %v1490, %v1489
        %v1500 = vpack.c.bf16 %v1492, %v1491
        %v1501 = vld [vmem:[%s1017] sm:$0xff]
        %v1502 = vld [vmem:[%s1017 + $0x8] sm:$0xf]
        %v1503 = vld [vmem:[%s1017 + $0xc] sm:$0xff]
        %v1504 = vld [vmem:[%s1017 + $0x14] sm:$0xf]
        %v1505 = vld [vmem:[%s1017 + $0x18] sm:$0xff]
        %v1506 = vld [vmem:[%s1017 + $0x20] sm:$0xf]
        %v1507 = vld [vmem:[%s1017 + $0x24] sm:$0xff]
        %v1508 = vld [vmem:[%s1017 + $0x2c] sm:$0xf]
        %v1509 = vld [vmem:[%s1017 + $0x30] sm:$0xff]
        %v1510 = vld [vmem:[%s1017 + $0x38] sm:$0xf]
        %v1511 = vld [vmem:[%s1017 + $0x3c] sm:$0xff]
        %v1512 = vld [vmem:[%s1017 + $0x44] sm:$0xf]
        %v1513 = vld [vmem:[%s1017 + $0x48] sm:$0xff]
        %v1514 = vld [vmem:[%s1017 + $0x50] sm:$0xf]
        %v1515 = vld [vmem:[%s1017 + $0x54] sm:$0xff]
        %v1516 = vld [vmem:[%s1017 + $0x5c] sm:$0xf]
        %v1517 = vld [vmem:[%s1017 + $0x60] sm:$0xff]
        %v1518 = vld [vmem:[%s1017 + $0x68] sm:$0xf]
        %v1519 = vld [vmem:[%s1017 + $0x6c] sm:$0xff]
        %v1520 = vld [vmem:[%s1017 + $0x74] sm:$0xf]
        %v1521 = vld [vmem:[%s1017 + $0x78] sm:$0xff]
        %v1522 = vld [vmem:[%s1017 + $0x80] sm:$0xf]
        %v1523 = vld [vmem:[%s1017 + $0x84] sm:$0xff]
        %v1524 = vld [vmem:[%s1017 + $0x8c] sm:$0xf]
        %v1525 = vld [vmem:[%s1017 + $0x90] sm:$0xff]
        %v1526 = vld [vmem:[%s1017 + $0x98] sm:$0xf]
        %v1527 = vld [vmem:[%s1017 + $0x9c] sm:$0xff]
        %v1528 = vld [vmem:[%s1017 + $0xa4] sm:$0xf]
        %v1529 = vld [vmem:[%s1017 + $0xa8] sm:$0xff]
        %v1530 = vld [vmem:[%s1017 + $0xb0] sm:$0xf]
        %v1531 = vld [vmem:[%s1017 + $0xb4] sm:$0xff]
        %v1532 = vld [vmem:[%s1017 + $0xbc] sm:$0xf]
        %v1533 = vld [vmem:[%s1021] sm:$0x7]
        %v1535 = vlaneseq
        %v1536 = vshrl.u32 %v1535, 7
        %v1537 = vsub.s32 0, %v1536
        %v1538 = vrot.slane %v1533, %v1537
        %v1539 = vlaneseq
        %v1540 = vshrl.u32 %v1539, 7
        %v1541 = vsub.s32 1, %v1540
        %v1542 = vrot.slane %v1533, %v1541
        %v1543 = vlaneseq
        %v1544 = vshrl.u32 %v1543, 7
        %v1545 = vsub.s32 2, %v1544
        %v1546 = vrot.slane %v1533, %v1545
        %v1582 = vunpack.c.l.b16 %v1501
        %v1583 = vunpack.c.h.b16 %v1501
        %v1584 = vunpack.c.l.b16 %v1502
        %v1585 = vunpack.c.l.b16 %v1503
        %v1586 = vunpack.c.h.b16 %v1503
        %v1587 = vunpack.c.l.b16 %v1504
        %v1588 = vunpack.c.l.b16 %v1505
        %v1589 = vunpack.c.h.b16 %v1505
        %v1590 = vunpack.c.l.b16 %v1506
        %v1591 = vunpack.c.l.b16 %v1507
        %v1592 = vunpack.c.h.b16 %v1507
        %v1593 = vunpack.c.l.b16 %v1508
        %v1594 = vunpack.c.l.b16 %v1509
        %v1595 = vunpack.c.h.b16 %v1509
        %v1596 = vunpack.c.l.b16 %v1510
        %v1597 = vunpack.c.l.b16 %v1511
        %v1598 = vunpack.c.h.b16 %v1511
        %v1599 = vunpack.c.l.b16 %v1512
        %v1600 = vunpack.c.l.b16 %v1513
        %v1601 = vunpack.c.h.b16 %v1513
        %v1602 = vunpack.c.l.b16 %v1514
        %v1603 = vunpack.c.l.b16 %v1515
        %v1604 = vunpack.c.h.b16 %v1515
        %v1605 = vunpack.c.l.b16 %v1516
        %v1606 = vunpack.c.l.b16 %v1517
        %v1607 = vunpack.c.h.b16 %v1517
        %v1608 = vunpack.c.l.b16 %v1518
        %v1609 = vunpack.c.l.b16 %v1519
        %v1610 = vunpack.c.h.b16 %v1519
        %v1611 = vunpack.c.l.b16 %v1520
        %v1612 = vunpack.c.l.b16 %v1521
        %v1613 = vunpack.c.h.b16 %v1521
        %v1614 = vunpack.c.l.b16 %v1522
        %v1615 = vunpack.c.l.b16 %v1523
        %v1616 = vunpack.c.h.b16 %v1523
        %v1617 = vunpack.c.l.b16 %v1524
        %v1618 = vunpack.c.l.b16 %v1525
        %v1619 = vunpack.c.h.b16 %v1525
        %v1620 = vunpack.c.l.b16 %v1526
        %v1621 = vunpack.c.l.b16 %v1527
        %v1622 = vunpack.c.h.b16 %v1527
        %v1623 = vunpack.c.l.b16 %v1528
        %v1624 = vunpack.c.l.b16 %v1529
        %v1625 = vunpack.c.h.b16 %v1529
        %v1626 = vunpack.c.l.b16 %v1530
        %v1627 = vunpack.c.l.b16 %v1531
        %v1628 = vunpack.c.h.b16 %v1531
        %v1629 = vunpack.c.l.b16 %v1532
        %v1630 = vpack.c.b16 %v1585, %v1582
        %v1631 = vpack.c.b16 %v1586, %v1583
        %v1632 = vpack.c.b16 %v1587, %v1584
        %v1633 = vpack.c.b16 %v1591, %v1588
        %v1634 = vpack.c.b16 %v1592, %v1589
        %v1635 = vpack.c.b16 %v1593, %v1590
        %v1636 = vpack.c.b16 %v1597, %v1594
        %v1637 = vpack.c.b16 %v1598, %v1595
        %v1638 = vpack.c.b16 %v1599, %v1596
        %v1639 = vpack.c.b16 %v1603, %v1600
        %v1640 = vpack.c.b16 %v1604, %v1601
        %v1641 = vpack.c.b16 %v1605, %v1602
        %v1642 = vpack.c.b16 %v1609, %v1606
        %v1643 = vpack.c.b16 %v1610, %v1607
        %v1644 = vpack.c.b16 %v1611, %v1608
        %v1645 = vpack.c.b16 %v1615, %v1612
        %v1646 = vpack.c.b16 %v1616, %v1613
        %v1647 = vpack.c.b16 %v1617, %v1614
        %v1648 = vpack.c.b16 %v1621, %v1618
        %v1649 = vpack.c.b16 %v1622, %v1619
        %v1650 = vpack.c.b16 %v1623, %v1620
        %v1651 = vpack.c.b16 %v1627, %v1624
        %v1652 = vpack.c.b16 %v1628, %v1625
        %v1653 = vpack.c.b16 %v1629, %v1626
        %1678 = vmatprep.subr.bf16.mxu0 %v1631
        %1679 = vmatpush1.bf16.msra.mxu0 %v1630
        %1680 = vmatprep.subr.bf16.mxu0 %v1634
        %1681 = vmatpush1.bf16.msra.mxu0 %v1633
        %1682 = vmatprep.subr.bf16.mxu0 %v1637
        %1683 = vmatpush1.bf16.msra.mxu0 %v1636
        %1684 = vmatprep.subr.bf16.mxu0 %v1640
        %1685 = vmatpush1.bf16.msra.mxu0 %v1639
        %1686 = vmatprep.subr.bf16.mxu0 %v1643
        %1687 = vmatpush1.bf16.msra.mxu0 %v1642
        %1688 = vmatprep.subr.bf16.mxu0 %v1646
        %1689 = vmatpush1.bf16.msra.mxu0 %v1645
        %1690 = vmatprep.subr.bf16.mxu0 %v1649
        %1691 = vmatpush1.bf16.msra.mxu0 %v1648
        %1692 = vmatprep.subr.bf16.mxu0 %v1652
        %1693 = vmatpush1.bf16.msra.mxu0 %v1651
        %1694 = vmatprep.subr.bf16.mxu0 0
        %1695 = vmatpush1.bf16.msra.mxu0 0
        %1696 = vmatprep.subr.bf16.mxu0 0
        %1697 = vmatpush1.bf16.msra.mxu0 0
        %1698 = vmatprep.subr.bf16.mxu0 0
        %1699 = vmatpush1.bf16.msra.mxu0 0
        %1700 = vmatprep.subr.bf16.mxu0 0
        %1701 = vmatpush1.bf16.msra.mxu0 0
        %1702 = vmatprep.subr.bf16.mxu0 0
        %1703 = vmatpush1.bf16.msra.mxu0 0
        %1704 = vmatprep.subr.bf16.mxu0 0
        %1705 = vmatpush1.bf16.msra.mxu0 0
        %1706 = vmatprep.subr.bf16.mxu0 0
        %1707 = vmatpush1.bf16.msra.mxu0 0
        %1708 = vmatprep.subr.bf16.mxu0 0
        %1709 = vmatpush1.bf16.msra.mxu0 0
        %1710 = vmatprep.mubr.bf16.mxu0 0
        %1711 = vmatmul.mubr.bf16.gmra.mrb[0].mxu0 %v1493
        %v1712 = vpop.f32.mrb[0].mxu0
        %v1713 = vadd.f32 %v1538, %v1712
        %v1714 = vpop.f32.mrb[0].mxu0
        %v1715 = vadd.f32 %v1542, %v1714
        %v1716 = vpop.f32.mrb[0].mxu0
        %v1717 = vadd.f32 %v1538, %v1716
        %v1718 = vpop.f32.mrb[0].mxu0
        %v1719 = vadd.f32 %v1542, %v1718
        %1720 = vmatprep.mubr.bf16.mxu0 0
        %1721 = vmatmul.mubr.bf16.gmra.mrb[0].mxu0 %v1494
        %v1722 = vpop.f32.mrb[0].mxu0
        %v1723 = vadd.f32 %v1538, %v1722
        %v1724 = vpop.f32.mrb[0].mxu0
        %v1725 = vadd.f32 %v1542, %v1724
        %v1726 = vpop.f32.mrb[0].mxu0
        %v1727 = vadd.f32 %v1538, %v1726
        %v1728 = vpop.f32.mrb[0].mxu0
        %v1729 = vadd.f32 %v1542, %v1728
        %1730 = vmatprep.mubr.bf16.mxu0 0
        %1731 = vmatmul.mubr.bf16.gmra.mrb[0].mxu0 %v1495
        %v1732 = vpop.f32.mrb[0].mxu0
        %v1733 = vadd.f32 %v1538, %v1732
        %v1734 = vpop.f32.mrb[0].mxu0
        %v1735 = vadd.f32 %v1542, %v1734
        %v1736 = vpop.f32.mrb[0].mxu0
        %v1737 = vadd.f32 %v1538, %v1736
        %v1738 = vpop.f32.mrb[0].mxu0
        %v1739 = vadd.f32 %v1542, %v1738
        %1740 = vmatprep.mubr.bf16.mxu0 0
        %1741 = vmatmul.mubr.bf16.gmra.mrb[0].mxu0 %v1496
        %v1742 = vpop.f32.mrb[0].mxu0
        %v1743 = vadd.f32 %v1538, %v1742
        %v1744 = vpop.f32.mrb[0].mxu0
        %v1745 = vadd.f32 %v1542, %v1744
        %v1746 = vpop.f32.mrb[0].mxu0
        %v1747 = vadd.f32 %v1538, %v1746
        %v1748 = vpop.f32.mrb[0].mxu0
        %v1749 = vadd.f32 %v1542, %v1748
        %1750 = vmatprep.mubr.bf16.mxu0 0
        %1751 = vmatmul.mubr.bf16.gmra.mrb[0].mxu0 %v1497
        %v1752 = vpop.f32.mrb[0].mxu0
        %v1753 = vadd.f32 %v1538, %v1752
        %v1754 = vpop.f32.mrb[0].mxu0
        %v1755 = vadd.f32 %v1542, %v1754
        %v1756 = vpop.f32.mrb[0].mxu0
        %v1757 = vadd.f32 %v1538, %v1756
        %v1758 = vpop.f32.mrb[0].mxu0
        %v1759 = vadd.f32 %v1542, %v1758
        %1760 = vmatprep.mubr.bf16.mxu0 0
        %1761 = vmatmul.mubr.bf16.gmra.mrb[0].mxu0 %v1498
        %v1762 = vpop.f32.mrb[0].mxu0
        %v1763 = vadd.f32 %v1538, %v1762
        %v1764 = vpop.f32.mrb[0].mxu0
        %v1765 = vadd.f32 %v1542, %v1764
        %v1766 = vpop.f32.mrb[0].mxu0
        %v1767 = vadd.f32 %v1538, %v1766
        %v1768 = vpop.f32.mrb[0].mxu0
        %v1769 = vadd.f32 %v1542, %v1768
        %1770 = vmatprep.mubr.bf16.mxu0 0
        %1771 = vmatmul.mubr.bf16.gmra.mrb[0].mxu0 %v1499
        %v1772 = vpop.f32.mrb[0].mxu0
        %v1773 = vadd.f32 %v1538, %v1772
        %v1774 = vpop.f32.mrb[0].mxu0
        %v1775 = vadd.f32 %v1542, %v1774
        %v1776 = vpop.f32.mrb[0].mxu0
        %v1777 = vadd.f32 %v1538, %v1776
        %v1778 = vpop.f32.mrb[0].mxu0
        %v1779 = vadd.f32 %v1542, %v1778
        %1780 = vmatprep.mubr.bf16.mxu0 0
        %1781 = vmatmul.mubr.bf16.gmra.mrb[0].mxu0 %v1500
        %v1782 = vpop.f32.mrb[0].mxu0
        %v1783 = vadd.f32 %v1538, %v1782
        %v1784 = vpop.f32.mrb[0].mxu0
        %v1785 = vadd.f32 %v1542, %v1784
        %v1786 = vpop.f32.mrb[0].mxu0
        %v1787 = vadd.f32 %v1538, %v1786
        %v1788 = vpop.f32.mrb[0].mxu0
        %v1789 = vadd.f32 %v1542, %v1788
        %1790 = vdwg.mxu0
        %1791 = vmatprep.subr.bf16.mxu0 0
        %1792 = vmatpush1.bf16.msra.mxu0 %v1632
        %1793 = vmatprep.subr.bf16.mxu0 0
        %1794 = vmatpush1.bf16.msra.mxu0 %v1635
        %1795 = vmatprep.subr.bf16.mxu0 0
        %1796 = vmatpush1.bf16.msra.mxu0 %v1638
        %1797 = vmatprep.subr.bf16.mxu0 0
        %1798 = vmatpush1.bf16.msra.mxu0 %v1641
        %1799 = vmatprep.subr.bf16.mxu0 0
        %1800 = vmatpush1.bf16.msra.mxu0 %v1644
        %1801 = vmatprep.subr.bf16.mxu0 0
        %1802 = vmatpush1.bf16.msra.mxu0 %v1647
        %1803 = vmatprep.subr.bf16.mxu0 0
        %1804 = vmatpush1.bf16.msra.mxu0 %v1650
        %1805 = vmatprep.subr.bf16.mxu0 0
        %1806 = vmatpush1.bf16.msra.mxu0 %v1653
        %1807 = vmatprep.subr.bf16.mxu0 0
        %1808 = vmatpush1.bf16.msra.mxu0 0
        %1809 = vmatprep.subr.bf16.mxu0 0
        %1810 = vmatpush1.bf16.msra.mxu0 0
        %1811 = vmatprep.subr.bf16.mxu0 0
        %1812 = vmatpush1.bf16.msra.mxu0 0
        %1813 = vmatprep.subr.bf16.mxu0 0
        %1814 = vmatpush1.bf16.msra.mxu0 0
        %1815 = vmatprep.subr.bf16.mxu0 0
        %1816 = vmatpush1.bf16.msra.mxu0 0
        %1817 = vmatprep.subr.bf16.mxu0 0
        %1818 = vmatpush1.bf16.msra.mxu0 0
        %1819 = vmatprep.subr.bf16.mxu0 0
        %1820 = vmatpush1.bf16.msra.mxu0 0
        %1821 = vmatprep.subr.bf16.mxu0 0
        %1822 = vmatpush1.bf16.msra.mxu0 0
        %1823 = vmatprep.mubr.bf16.mxu0 0
        %1824 = vmatmul.mubr.bf16.gmra.mrb[0].mxu0 %v1493
        %v1825 = vpop.f32.mrb[0].mxu0
        %v1826 = vadd.f32 %v1546, %v1825
        %v1827 = vpop.f32.mrb[0].mxu0
        %v1828 = vpop.f32.mrb[0].mxu0
        %v1829 = vadd.f32 %v1546, %v1828
        %v1830 = vpop.f32.mrb[0].mxu0
        %1831 = vmatprep.mubr.bf16.mxu0 0
        %1832 = vmatmul.mubr.bf16.gmra.mrb[0].mxu0 %v1494
        %v1833 = vpop.f32.mrb[0].mxu0
        %v1834 = vadd.f32 %v1546, %v1833
        %v1835 = vpop.f32.mrb[0].mxu0
        %v1836 = vpop.f32.mrb[0].mxu0
        %v1837 = vadd.f32 %v1546, %v1836
        %v1838 = vpop.f32.mrb[0].mxu0
        %1839 = vmatprep.mubr.bf16.mxu0 0
        %1840 = vmatmul.mubr.bf16.gmra.mrb[0].mxu0 %v1495
        %v1841 = vpop.f32.mrb[0].mxu0
        %v1842 = vadd.f32 %v1546, %v1841
        %v1843 = vpop.f32.mrb[0].mxu0
        %v1844 = vpop.f32.mrb[0].mxu0
        %v1845 = vadd.f32 %v1546, %v1844
        %v1846 = vpop.f32.mrb[0].mxu0
        %1847 = vmatprep.mubr.bf16.mxu0 0
        %1848 = vmatmul.mubr.bf16.gmra.mrb[0].mxu0 %v1496
        %v1849 = vpop.f32.mrb[0].mxu0
        %v1850 = vadd.f32 %v1546, %v1849
        %v1851 = vpop.f32.mrb[0].mxu0
        %v1852 = vpop.f32.mrb[0].mxu0
        %v1853 = vadd.f32 %v1546, %v1852
        %v1854 = vpop.f32.mrb[0].mxu0
        %1855 = vmatprep.mubr.bf16.mxu0 0
        %1856 = vmatmul.mubr.bf16.gmra.mrb[0].mxu0 %v1497
        %v1857 = vpop.f32.mrb[0].mxu0
        %v1858 = vadd.f32 %v1546, %v1857
        %v1859 = vpop.f32.mrb[0].mxu0
        %v1860 = vpop.f32.mrb[0].mxu0
        %v1861 = vadd.f32 %v1546, %v1860
        %v1862 = vpop.f32.mrb[0].mxu0
        %1863 = vmatprep.mubr.bf16.mxu0 0
        %1864 = vmatmul.mubr.bf16.gmra.mrb[0].mxu0 %v1498
        %v1865 = vpop.f32.mrb[0].mxu0
        %v1866 = vadd.f32 %v1546, %v1865
        %v1867 = vpop.f32.mrb[0].mxu0
        %v1868 = vpop.f32.mrb[0].mxu0
        %v1869 = vadd.f32 %v1546, %v1868
        %v1870 = vpop.f32.mrb[0].mxu0
        %1871 = vmatprep.mubr.bf16.mxu0 0
        %1872 = vmatmul.mubr.bf16.gmra.mrb[0].mxu0 %v1499
        %v1873 = vpop.f32.mrb[0].mxu0
        %v1874 = vadd.f32 %v1546, %v1873
        %v1875 = vpop.f32.mrb[0].mxu0
        %v1876 = vpop.f32.mrb[0].mxu0
        %v1877 = vadd.f32 %v1546, %v1876
        %v1878 = vpop.f32.mrb[0].mxu0
        %1879 = vmatprep.mubr.bf16.mxu0 0
        %1880 = vmatmul.mubr.bf16.gmra.mrb[0].mxu0 %v1500
        %v1881 = vpop.f32.mrb[0].mxu0
        %v1882 = vadd.f32 %v1546, %v1881
        %v1883 = vpop.f32.mrb[0].mxu0
        %v1884 = vpop.f32.mrb[0].mxu0
        %v1885 = vadd.f32 %v1546, %v1884
        %v1886 = vpop.f32.mrb[0].mxu0
        %1887 = vdwg.mxu0
        %v1888 = vpack.c.bf16 %v1717, %v1713
        %v1889 = vpack.c.bf16 %v1719, %v1715
        %v1890 = vpack.c.bf16 %v1829, %v1826
        %v1891 = vpack.c.bf16 %v1727, %v1723
        %v1892 = vpack.c.bf16 %v1729, %v1725
        %v1893 = vpack.c.bf16 %v1837, %v1834
        %v1894 = vpack.c.bf16 %v1737, %v1733
        %v1895 = vpack.c.bf16 %v1739, %v1735
        %v1896 = vpack.c.bf16 %v1845, %v1842
        %v1897 = vpack.c.bf16 %v1747, %v1743
        %v1898 = vpack.c.bf16 %v1749, %v1745
        %v1899 = vpack.c.bf16 %v1853, %v1850
        %v1900 = vpack.c.bf16 %v1757, %v1753
        %v1901 = vpack.c.bf16 %v1759, %v1755
        %v1902 = vpack.c.bf16 %v1861, %v1858
        %v1903 = vpack.c.bf16 %v1767, %v1763
        %v1904 = vpack.c.bf16 %v1769, %v1765
        %v1905 = vpack.c.bf16 %v1869, %v1866
        %v1906 = vpack.c.bf16 %v1777, %v1773
        %v1907 = vpack.c.bf16 %v1779, %v1775
        %v1908 = vpack.c.bf16 %v1877, %v1874
        %v1909 = vpack.c.bf16 %v1787, %v1783
        %v1910 = vpack.c.bf16 %v1789, %v1785
        %v1911 = vpack.c.bf16 %v1885, %v1882
        %v1912 = vlaneseq
        %v1913 = vshrl.u32 %v1912, 7
        %v1914 = vadd.s32 %v1913, 8
        %v1915 = vadd.s32 %v1913, 16
        %v1916 = vadd.s32 %v1913, 24
        %v1917 = vadd.s32 %v1913, 32
        %v1918 = vadd.s32 %v1913, 40
        %v1919 = vadd.s32 %v1913, 48
        %v1920 = vadd.s32 %v1913, 56
        %v1921 = vlaneseq
        %v1922 = vand.u32 %v1921, 127
        %vm1923 = vcmp.le.s32.totalorder %v1922, %v1913
        %vm1924 = vcmp.le.s32.totalorder %v1922, %v1914
        %vm1925 = vcmp.le.s32.totalorder %v1922, %v1915
        %vm1926 = vcmp.le.s32.totalorder %v1922, %v1916
        %vm1927 = vcmp.le.s32.totalorder %v1922, %v1917
        %vm1928 = vcmp.le.s32.totalorder %v1922, %v1918
        %vm1929 = vcmp.le.s32.totalorder %v1922, %v1919
        %vm1930 = vcmp.le.s32.totalorder %v1922, %v1920
        %v1931 = vld [vmem:[%s824] sm:$0xf]
        %v1932 = vld [vmem:[%s824 + $0x4] sm:$0xf]
        %v1933 = vld [vmem:[%s824 + $0x8] sm:$0xf]
        %v1934 = vld [vmem:[%s824 + $0xc] sm:$0xf]
        %v1935 = vld [vmem:[%s824 + $0x10] sm:$0xf]
        %v1936 = vld [vmem:[%s824 + $0x14] sm:$0xf]
        %v1937 = vld [vmem:[%s824 + $0x18] sm:$0xf]
        %v1938 = vld [vmem:[%s824 + $0x1c] sm:$0xf]
        %v1939 = vld [vmem:[%s824 + $0x20] sm:$0xf]
        %v1940 = vld [vmem:[%s824 + $0x24] sm:$0xf]
        %v1941 = vld [vmem:[%s824 + $0x28] sm:$0xf]
        %v1942 = vld [vmem:[%s824 + $0x2c] sm:$0xf]
        %v1943 = vld [vmem:[%s824 + $0x30] sm:$0xf]
        %v1944 = vld [vmem:[%s824 + $0x34] sm:$0xf]
        %v1945 = vld [vmem:[%s824 + $0x38] sm:$0xf]
        %v1946 = vld [vmem:[%s824 + $0x3c] sm:$0xf]
        %v1947 = vld [vmem:[%s1024] sm:$0x1]
        %v1949 = vlaneseq
        %v1950 = vshrl.u32 %v1949, 7
        %v1951 = vsub.s32 0, %v1950
        %v1952 = vrot.slane %v1947, %v1951
        %v1954 = vadd.f32 %v1477, %v1952
        %v1955 = vadd.f32 %v1478, %v1952
        %v1956 = vadd.f32 %v1479, %v1952
        %v1957 = vadd.f32 %v1480, %v1952
        %v1958 = vadd.f32 %v1481, %v1952
        %v1959 = vadd.f32 %v1482, %v1952
        %v1960 = vadd.f32 %v1483, %v1952
        %v1961 = vadd.f32 %v1484, %v1952
        %v1962 = vadd.f32 %v1485, %v1952
        %v1963 = vadd.f32 %v1486, %v1952
        %v1964 = vadd.f32 %v1487, %v1952
        %v1965 = vadd.f32 %v1488, %v1952
        %v1966 = vadd.f32 %v1489, %v1952
        %v1967 = vadd.f32 %v1490, %v1952
        %v1968 = vadd.f32 %v1491, %v1952
        %v1969 = vadd.f32 %v1492, %v1952
        %vm1970 = vcmask 261120
        %v1972 = vsel %vm1970, %v1888, 0
        %v1975 = vsel %vm1970, %v1891, 0
        %v1978 = vsel %vm1970, %v1894, 0
        %v1981 = vsel %vm1970, %v1897, 0
        %v1984 = vsel %vm1970, %v1889, 0
        %v1987 = vsel %vm1970, %v1892, 0
        %v1990 = vsel %vm1970, %v1895, 0
        %v1993 = vsel %vm1970, %v1898, 0
        %1995 = vmatprep.subr.bf16.mxu0 0
        %1996 = vmatpush1.bf16.xpose.msra.mxu0 %v1984
        %1997 = vmatprep.subr.bf16.mxu0 0
        %1998 = vmatpush1.bf16.xpose.msra.mxu0 %v1987
        %1999 = vmatprep.subr.bf16.mxu0 0
        %2000 = vmatpush1.bf16.xpose.msra.mxu0 %v1990
        %2001 = vmatprep.subr.bf16.mxu0 0
        %2002 = vmatpush1.bf16.xpose.msra.mxu0 %v1993
        %2003 = vmatprep.subr.bf16.mxu0 0
        %2004 = vmatpush1.bf16.xpose.msra.mxu0 0
        %2005 = vmatprep.subr.bf16.mxu0 0
        %2006 = vmatpush1.bf16.xpose.msra.mxu0 0
        %2007 = vmatprep.subr.bf16.mxu0 0
        %2008 = vmatpush1.bf16.xpose.msra.mxu0 0
        %2009 = vmatprep.subr.bf16.mxu0 0
        %2010 = vmatpush1.bf16.xpose.msra.mxu0 0
        %2011 = vmatprep.subr.bf16.mxu0 0
        %2012 = vmatpush1.bf16.xpose.msra.mxu0 0
        %2013 = vmatprep.subr.bf16.mxu0 0
        %2014 = vmatpush1.bf16.xpose.msra.mxu0 0
        %2015 = vmatprep.subr.bf16.mxu0 0
        %2016 = vmatpush1.bf16.xpose.msra.mxu0 0
        %2017 = vmatprep.subr.bf16.mxu0 0
        %2018 = vmatpush1.bf16.xpose.msra.mxu0 0
        %2019 = vmatprep.subr.bf16.mxu0 0
        %2020 = vmatpush1.bf16.xpose.msra.mxu0 0
        %2021 = vmatprep.subr.bf16.mxu0 0
        %2022 = vmatpush1.bf16.xpose.msra.mxu0 0
        %2023 = vmatprep.subr.bf16.mxu0 0
        %2024 = vmatpush1.bf16.xpose.msra.mxu0 0
        %2025 = vmatprep.subr.bf16.mxu0 0
        %2026 = vmatpush1.bf16.xpose.msra.mxu0 0
        %2027 = vmatprep.mubr.bf16.mxu0 0
        %2028 = vmatmul.mubr.bf16.gmra.mrb[0].mxu0 %v1972
        %v2029 = vpop.f32.mrb[0].mxu0
        %v2030 = vadd.f32 0.0, %v2029
        %v2031 = vpop.f32.mrb[0].mxu0
        %v2032 = vpop.f32.mrb[0].mxu0
        %v2033 = vadd.f32 0.0, %v2032
        %v2034 = vpop.f32.mrb[0].mxu0
        %2035 = vmatprep.mubr.bf16.mxu0 0
        %2036 = vmatmul.mubr.bf16.gmra.mrb[0].mxu0 %v1975
        %v2037 = vpop.f32.mrb[0].mxu0
        %v2038 = vadd.f32 0.0, %v2037
        %v2039 = vpop.f32.mrb[0].mxu0
        %v2040 = vpop.f32.mrb[0].mxu0
        %v2041 = vadd.f32 0.0, %v2040
        %v2042 = vpop.f32.mrb[0].mxu0
        %2043 = vmatprep.mubr.bf16.mxu0 0
        %2044 = vmatmul.mubr.bf16.gmra.mrb[0].mxu0 %v1978
        %v2045 = vpop.f32.mrb[0].mxu0
        %v2046 = vadd.f32 0.0, %v2045
        %v2047 = vpop.f32.mrb[0].mxu0
        %v2048 = vpop.f32.mrb[0].mxu0
        %v2049 = vadd.f32 0.0, %v2048
        %v2050 = vpop.f32.mrb[0].mxu0
        %2051 = vmatprep.mubr.bf16.mxu0 0
        %2052 = vmatmul.mubr.bf16.gmra.mrb[0].mxu0 %v1981
        %v2053 = vpop.f32.mrb[0].mxu0
        %v2054 = vadd.f32 0.0, %v2053
        %v2055 = vpop.f32.mrb[0].mxu0
        %v2056 = vpop.f32.mrb[0].mxu0
        %v2057 = vadd.f32 0.0, %v2056
        %v2058 = vpop.f32.mrb[0].mxu0
        %2059 = vdwg.mxu0
        %v2061 = vsel %vm1970, %v1900, 0
        %v2064 = vsel %vm1970, %v1903, 0
        %v2067 = vsel %vm1970, %v1906, 0
        %v2070 = vsel %vm1970, %v1909, 0
        %v2073 = vsel %vm1970, %v1901, 0
        %v2076 = vsel %vm1970, %v1904, 0
        %v2079 = vsel %vm1970, %v1907, 0
        %v2082 = vsel %vm1970, %v1910, 0
        %2084 = vmatprep.subr.bf16.mxu0 0
        %2085 = vmatpush1.bf16.xpose.msra.mxu0 %v2073
        %2086 = vmatprep.subr.bf16.mxu0 0
        %2087 = vmatpush1.bf16.xpose.msra.mxu0 %v2076
        %2088 = vmatprep.subr.bf16.mxu0 0
        %2089 = vmatpush1.bf16.xpose.msra.mxu0 %v2079
        %2090 = vmatprep.subr.bf16.mxu0 0
        %2091 = vmatpush1.bf16.xpose.msra.mxu0 %v2082
        %2092 = vmatprep.subr.bf16.mxu0 0
        %2093 = vmatpush1.bf16.xpose.msra.mxu0 0
        %2094 = vmatprep.subr.bf16.mxu0 0
        %2095 = vmatpush1.bf16.xpose.msra.mxu0 0
        %2096 = vmatprep.subr.bf16.mxu0 0
        %2097 = vmatpush1.bf16.xpose.msra.mxu0 0
        %2098 = vmatprep.subr.bf16.mxu0 0
        %2099 = vmatpush1.bf16.xpose.msra.mxu0 0
        %2100 = vmatprep.subr.bf16.mxu0 0
        %2101 = vmatpush1.bf16.xpose.msra.mxu0 0
        %2102 = vmatprep.subr.bf16.mxu0 0
        %2103 = vmatpush1.bf16.xpose.msra.mxu0 0
        %2104 = vmatprep.subr.bf16.mxu0 0
        %2105 = vmatpush1.bf16.xpose.msra.mxu0 0
        %2106 = vmatprep.subr.bf16.mxu0 0
        %2107 = vmatpush1.bf16.xpose.msra.mxu0 0
        %2108 = vmatprep.subr.bf16.mxu0 0
        %2109 = vmatpush1.bf16.xpose.msra.mxu0 0
        %2110 = vmatprep.subr.bf16.mxu0 0
        %2111 = vmatpush1.bf16.xpose.msra.mxu0 0
        %2112 = vmatprep.subr.bf16.mxu0 0
        %2113 = vmatpush1.bf16.xpose.msra.mxu0 0
        %2114 = vmatprep.subr.bf16.mxu0 0
        %2115 = vmatpush1.bf16.xpose.msra.mxu0 0
        %2116 = vmatprep.mubr.bf16.mxu0 0
        %2117 = vmatmul.mubr.bf16.gmra.mrb[0].mxu0 %v2061
        %v2118 = vpop.f32.mrb[0].mxu0
        %v2119 = vadd.f32 0.0, %v2118
        %v2120 = vpop.f32.mrb[0].mxu0
        %v2121 = vpop.f32.mrb[0].mxu0
        %v2122 = vadd.f32 0.0, %v2121
        %v2123 = vpop.f32.mrb[0].mxu0
        %2124 = vmatprep.mubr.bf16.mxu0 0
        %2125 = vmatmul.mubr.bf16.gmra.mrb[0].mxu0 %v2064
        %v2126 = vpop.f32.mrb[0].mxu0
        %v2127 = vadd.f32 0.0, %v2126
        %v2128 = vpop.f32.mrb[0].mxu0
        %v2129 = vpop.f32.mrb[0].mxu0
        %v2130 = vadd.f32 0.0, %v2129
        %v2131 = vpop.f32.mrb[0].mxu0
        %2132 = vmatprep.mubr.bf16.mxu0 0
        %2133 = vmatmul.mubr.bf16.gmra.mrb[0].mxu0 %v2067
        %v2134 = vpop.f32.mrb[0].mxu0
        %v2135 = vadd.f32 0.0, %v2134
        %v2136 = vpop.f32.mrb[0].mxu0
        %v2137 = vpop.f32.mrb[0].mxu0
        %v2138 = vadd.f32 0.0, %v2137
        %v2139 = vpop.f32.mrb[0].mxu0
        %2140 = vmatprep.mubr.bf16.mxu0 0
        %2141 = vmatmul.mubr.bf16.gmra.mrb[0].mxu0 %v2070
        %v2142 = vpop.f32.mrb[0].mxu0
        %v2143 = vadd.f32 0.0, %v2142
        %v2144 = vpop.f32.mrb[0].mxu0
        %v2145 = vpop.f32.mrb[0].mxu0
        %v2146 = vadd.f32 0.0, %v2145
        %v2147 = vpop.f32.mrb[0].mxu0
        %2148 = vdwg.mxu0
        %v2149 = vsel %vm1923, 1, 0
        %v2150 = vsel %vm1924, 1, 0
        %v2151 = vsel %vm1925, 1, 0
        %v2152 = vsel %vm1926, 1, 0
        %v2153 = vsel %vm1927, 1, 0
        %v2154 = vsel %vm1928, 1, 0
        %v2155 = vsel %vm1929, 1, 0
        %v2156 = vsel %vm1930, 1, 0
        %vm2157 = vcmp.eq.s32.totalorder %v2149, 1
        %vm2158 = vcmp.eq.s32.totalorder %v2150, 1
        %vm2159 = vcmp.eq.s32.totalorder %v2151, 1
        %vm2160 = vcmp.eq.s32.totalorder %v2152, 1
        %vm2161 = vcmp.eq.s32.totalorder %v2153, 1
        %vm2162 = vcmp.eq.s32.totalorder %v2154, 1
        %vm2163 = vcmp.eq.s32.totalorder %v2155, 1
        %vm2164 = vcmp.eq.s32.totalorder %v2156, 1
        %v2165 = vsel %vm2157, %v2030, -1e+30
        %v2166 = vsel %vm2158, %v2033, -1e+30
        %v2167 = vsel %vm2159, %v2038, -1e+30
        %v2168 = vsel %vm2160, %v2041, -1e+30
        %v2169 = vsel %vm2161, %v2046, -1e+30
        %v2170 = vsel %vm2162, %v2049, -1e+30
        %v2171 = vsel %vm2163, %v2054, -1e+30
        %v2172 = vsel %vm2164, %v2057, -1e+30
        %v2173 = vsel %vm2157, %v2119, -1e+30
        %v2174 = vsel %vm2158, %v2122, -1e+30
        %v2175 = vsel %vm2159, %v2127, -1e+30
        %v2176 = vsel %vm2160, %v2130, -1e+30
        %v2177 = vsel %vm2161, %v2135, -1e+30
        %v2178 = vsel %vm2162, %v2138, -1e+30
        %v2179 = vsel %vm2163, %v2143, -1e+30
        %v2180 = vsel %vm2164, %v2146, -1e+30
        %vm2181 = vcmask 523264
        %v2182 = vsel %vm2181, %v2165, -inf
        %2183 = vmax.xlane.f32.xlu0 %v2182
        %v2184 = vpop.xlane.xlu0 %2183
        %v2185 = vsel %vm2181, %v2166, -inf
        %2186 = vmax.xlane.f32.xlu0 %v2185
        %v2187 = vpop.xlane.xlu0 %2186
        %v2188 = vsel %vm2181, %v2167, -inf
        %2189 = vmax.xlane.f32.xlu0 %v2188
        %v2190 = vpop.xlane.xlu0 %2189
        %v2191 = vsel %vm2181, %v2168, -inf
        %2192 = vmax.xlane.f32.xlu0 %v2191
        %v2193 = vpop.xlane.xlu0 %2192
        %v2194 = vsel %vm2181, %v2169, -inf
        %2195 = vmax.xlane.f32.xlu0 %v2194
        %v2196 = vpop.xlane.xlu0 %2195
        %v2197 = vsel %vm2181, %v2170, -inf
        %2198 = vmax.xlane.f32.xlu0 %v2197
        %v2199 = vpop.xlane.xlu0 %2198
        %v2200 = vsel %vm2181, %v2171, -inf
        %2201 = vmax.xlane.f32.xlu0 %v2200
        %v2202 = vpop.xlane.xlu0 %2201
        %v2203 = vsel %vm2181, %v2172, -inf
        %2204 = vmax.xlane.f32.xlu0 %v2203
        %v2205 = vpop.xlane.xlu0 %2204
        %v2206 = vsel %vm2181, %v2173, -inf
        %2207 = vmax.xlane.f32.xlu0 %v2206
        %v2208 = vpop.xlane.xlu0 %2207
        %v2209 = vsel %vm2181, %v2174, -inf
        %2210 = vmax.xlane.f32.xlu0 %v2209
        %v2211 = vpop.xlane.xlu0 %2210
        %v2212 = vsel %vm2181, %v2175, -inf
        %2213 = vmax.xlane.f32.xlu0 %v2212
        %v2214 = vpop.xlane.xlu0 %2213
        %v2215 = vsel %vm2181, %v2176, -inf
        %2216 = vmax.xlane.f32.xlu0 %v2215
        %v2217 = vpop.xlane.xlu0 %2216
        %v2218 = vsel %vm2181, %v2177, -inf
        %2219 = vmax.xlane.f32.xlu0 %v2218
        %v2220 = vpop.xlane.xlu0 %2219
        %v2221 = vsel %vm2181, %v2178, -inf
        %2222 = vmax.xlane.f32.xlu0 %v2221
        %v2223 = vpop.xlane.xlu0 %2222
        %v2224 = vsel %vm2181, %v2179, -inf
        %2225 = vmax.xlane.f32.xlu0 %v2224
        %v2226 = vpop.xlane.xlu0 %2225
        %v2227 = vsel %vm2181, %v2180, -inf
        %2228 = vmax.xlane.f32.xlu0 %v2227
        %v2229 = vpop.xlane.xlu0 %2228
        %v2230 = vsub.f32 %v2165, %v2184
        %v2231 = vsub.f32 %v2166, %v2187
        %v2232 = vsub.f32 %v2167, %v2190
        %v2233 = vsub.f32 %v2168, %v2193
        %v2234 = vsub.f32 %v2169, %v2196
        %v2235 = vsub.f32 %v2170, %v2199
        %v2236 = vsub.f32 %v2171, %v2202
        %v2237 = vsub.f32 %v2172, %v2205
        %v2238 = vsub.f32 %v2173, %v2208
        %v2239 = vsub.f32 %v2174, %v2211
        %v2240 = vsub.f32 %v2175, %v2214
        %v2241 = vsub.f32 %v2176, %v2217
        %v2242 = vsub.f32 %v2177, %v2220
        %v2243 = vsub.f32 %v2178, %v2223
        %v2244 = vsub.f32 %v2179, %v2226
        %v2245 = vsub.f32 %v2180, %v2229
        %v2246 = vmul.f32 %v2230, 1.442695
        %v2247 = vpow.pop %v2246
        %v2248 = vmul.f32 %v2231, 1.442695
        %v2249 = vpow.pop %v2248
        %v2250 = vmul.f32 %v2232, 1.442695
        %v2251 = vpow.pop %v2250
        %v2252 = vmul.f32 %v2233, 1.442695
        %v2253 = vpow.pop %v2252
        %v2254 = vmul.f32 %v2234, 1.442695
        %v2255 = vpow.pop %v2254
        %v2256 = vmul.f32 %v2235, 1.442695
        %v2257 = vpow.pop %v2256
        %v2258 = vmul.f32 %v2236, 1.442695
        %v2259 = vpow.pop %v2258
        %v2260 = vmul.f32 %v2237, 1.442695
        %v2261 = vpow.pop %v2260
        %v2262 = vmul.f32 %v2238, 1.442695
        %v2263 = vpow.pop %v2262
        %v2264 = vmul.f32 %v2239, 1.442695
        %v2265 = vpow.pop %v2264
        %v2266 = vmul.f32 %v2240, 1.442695
        %v2267 = vpow.pop %v2266
        %v2268 = vmul.f32 %v2241, 1.442695
        %v2269 = vpow.pop %v2268
        %v2270 = vmul.f32 %v2242, 1.442695
        %v2271 = vpow.pop %v2270
        %v2272 = vmul.f32 %v2243, 1.442695
        %v2273 = vpow.pop %v2272
        %v2274 = vmul.f32 %v2244, 1.442695
        %v2275 = vpow.pop %v2274
        %v2276 = vmul.f32 %v2245, 1.442695
        %v2277 = vpow.pop %v2276
        %v2278 = vsel %vm2181, %v2247, 0.0
        %2279 = vadd.xlane.f32.xlu0 %v2278
        %v2280 = vpop.xlane.xlu0 %2279
        %v2281 = vsel %vm2181, %v2249, 0.0
        %2282 = vadd.xlane.f32.xlu0 %v2281
        %v2283 = vpop.xlane.xlu0 %2282
        %v2284 = vsel %vm2181, %v2251, 0.0
        %2285 = vadd.xlane.f32.xlu0 %v2284
        %v2286 = vpop.xlane.xlu0 %2285
        %v2287 = vsel %vm2181, %v2253, 0.0
        %2288 = vadd.xlane.f32.xlu0 %v2287
        %v2289 = vpop.xlane.xlu0 %2288
        %v2290 = vsel %vm2181, %v2255, 0.0
        %2291 = vadd.xlane.f32.xlu0 %v2290
        %v2292 = vpop.xlane.xlu0 %2291
        %v2293 = vsel %vm2181, %v2257, 0.0
        %2294 = vadd.xlane.f32.xlu0 %v2293
        %v2295 = vpop.xlane.xlu0 %2294
        %v2296 = vsel %vm2181, %v2259, 0.0
        %2297 = vadd.xlane.f32.xlu0 %v2296
        %v2298 = vpop.xlane.xlu0 %2297
        %v2299 = vsel %vm2181, %v2261, 0.0
        %2300 = vadd.xlane.f32.xlu0 %v2299
        %v2301 = vpop.xlane.xlu0 %2300
        %v2302 = vsel %vm2181, %v2263, 0.0
        %2303 = vadd.xlane.f32.xlu0 %v2302
        %v2304 = vpop.xlane.xlu0 %2303
        %v2305 = vsel %vm2181, %v2265, 0.0
        %2306 = vadd.xlane.f32.xlu0 %v2305
        %v2307 = vpop.xlane.xlu0 %2306
        %v2308 = vsel %vm2181, %v2267, 0.0
        %2309 = vadd.xlane.f32.xlu0 %v2308
        %v2310 = vpop.xlane.xlu0 %2309
        %v2311 = vsel %vm2181, %v2269, 0.0
        %2312 = vadd.xlane.f32.xlu0 %v2311
        %v2313 = vpop.xlane.xlu0 %2312
        %v2314 = vsel %vm2181, %v2271, 0.0
        %2315 = vadd.xlane.f32.xlu0 %v2314
        %v2316 = vpop.xlane.xlu0 %2315
        %v2317 = vsel %vm2181, %v2273, 0.0
        %2318 = vadd.xlane.f32.xlu0 %v2317
        %v2319 = vpop.xlane.xlu0 %2318
        %v2320 = vsel %vm2181, %v2275, 0.0
        %2321 = vadd.xlane.f32.xlu0 %v2320
        %v2322 = vpop.xlane.xlu0 %2321
        %v2323 = vsel %vm2181, %v2277, 0.0
        %2324 = vadd.xlane.f32.xlu0 %v2323
        %v2325 = vpop.xlane.xlu0 %2324
        %v2326 = vpack.c.bf16 %v2249, %v2247
        %v2327 = vpack.c.bf16 %v2253, %v2251
        %v2328 = vpack.c.bf16 %v2257, %v2255
        %v2329 = vpack.c.bf16 %v2261, %v2259
        %v2330 = vpack.c.bf16 %v2265, %v2263
        %v2331 = vpack.c.bf16 %v2269, %v2267
        %v2332 = vpack.c.bf16 %v2273, %v2271
        %v2333 = vpack.c.bf16 %v2277, %v2275
        %v2335 = vsel %vm2181, %v2326, 0
        %v2338 = vsel %vm2181, %v2327, 0
        %v2341 = vsel %vm2181, %v2328, 0
        %v2344 = vsel %vm2181, %v2329, 0
        %2346 = vmatprep.subr.bf16.mxu0 0
        %2347 = vmatpush1.bf16.msra.mxu0 %v1890
        %2348 = vmatprep.subr.bf16.mxu0 0
        %2349 = vmatpush1.bf16.msra.mxu0 %v1893
        %2350 = vmatprep.subr.bf16.mxu0 0
        %2351 = vmatpush1.bf16.msra.mxu0 %v1896
        %2352 = vmatprep.subr.bf16.mxu0 0
        %2353 = vmatpush1.bf16.msra.mxu0 %v1899
        %2354 = vmatprep.subr.bf16.mxu0 0
        %2355 = vmatpush1.bf16.msra.mxu0 0
        %2356 = vmatprep.subr.bf16.mxu0 0
        %2357 = vmatpush1.bf16.msra.mxu0 0
        %2358 = vmatprep.subr.bf16.mxu0 0
        %2359 = vmatpush1.bf16.msra.mxu0 0
        %2360 = vmatprep.subr.bf16.mxu0 0
        %2361 = vmatpush1.bf16.msra.mxu0 0
        %2362 = vmatprep.subr.bf16.mxu0 0
        %2363 = vmatpush1.bf16.msra.mxu0 0
        %2364 = vmatprep.subr.bf16.mxu0 0
        %2365 = vmatpush1.bf16.msra.mxu0 0
        %2366 = vmatprep.subr.bf16.mxu0 0
        %2367 = vmatpush1.bf16.msra.mxu0 0
        %2368 = vmatprep.subr.bf16.mxu0 0
        %2369 = vmatpush1.bf16.msra.mxu0 0
        %2370 = vmatprep.subr.bf16.mxu0 0
        %2371 = vmatpush1.bf16.msra.mxu0 0
        %2372 = vmatprep.subr.bf16.mxu0 0
        %2373 = vmatpush1.bf16.msra.mxu0 0
        %2374 = vmatprep.subr.bf16.mxu0 0
        %2375 = vmatpush1.bf16.msra.mxu0 0
        %2376 = vmatprep.subr.bf16.mxu0 0
        %2377 = vmatpush1.bf16.msra.mxu0 0
        %2378 = vmatprep.mubr.bf16.mxu0 0
        %2379 = vmatmul.mubr.bf16.gmra.mrb[0].mxu0 %v2335
        %v2380 = vpop.f32.mrb[0].mxu0
        %v2381 = vadd.f32 0.0, %v2380
        %v2382 = vpop.f32.mrb[0].mxu0
        %v2383 = vpop.f32.mrb[0].mxu0
        %v2384 = vadd.f32 0.0, %v2383
        %v2385 = vpop.f32.mrb[0].mxu0
        %2386 = vmatprep.mubr.bf16.mxu0 0
        %2387 = vmatmul.mubr.bf16.gmra.mrb[0].mxu0 %v2338
        %v2388 = vpop.f32.mrb[0].mxu0
        %v2389 = vadd.f32 0.0, %v2388
        %v2390 = vpop.f32.mrb[0].mxu0
        %v2391 = vpop.f32.mrb[0].mxu0
        %v2392 = vadd.f32 0.0, %v2391
        %v2393 = vpop.f32.mrb[0].mxu0
        %2394 = vmatprep.mubr.bf16.mxu0 0
        %2395 = vmatmul.mubr.bf16.gmra.mrb[0].mxu0 %v2341
        %v2396 = vpop.f32.mrb[0].mxu0
        %v2397 = vadd.f32 0.0, %v2396
        %v2398 = vpop.f32.mrb[0].mxu0
        %v2399 = vpop.f32.mrb[0].mxu0
        %v2400 = vadd.f32 0.0, %v2399
        %v2401 = vpop.f32.mrb[0].mxu0
        %2402 = vmatprep.mubr.bf16.mxu0 0
        %2403 = vmatmul.mubr.bf16.gmra.mrb[0].mxu0 %v2344
        %v2404 = vpop.f32.mrb[0].mxu0
        %v2405 = vadd.f32 0.0, %v2404
        %v2406 = vpop.f32.mrb[0].mxu0
        %v2407 = vpop.f32.mrb[0].mxu0
        %v2408 = vadd.f32 0.0, %v2407
        %v2409 = vpop.f32.mrb[0].mxu0
        %2410 = vdwg.mxu0
        %v2412 = vsel %vm2181, %v2330, 0
        %v2415 = vsel %vm2181, %v2331, 0
        %v2418 = vsel %vm2181, %v2332, 0
        %v2421 = vsel %vm2181, %v2333, 0
        %2423 = vmatprep.subr.bf16.mxu0 0
        %2424 = vmatpush1.bf16.msra.mxu0 %v1902
        %2425 = vmatprep.subr.bf16.mxu0 0
        %2426 = vmatpush1.bf16.msra.mxu0 %v1905
        %2427 = vmatprep.subr.bf16.mxu0 0
        %2428 = vmatpush1.bf16.msra.mxu0 %v1908
        %2429 = vmatprep.subr.bf16.mxu0 0
        %2430 = vmatpush1.bf16.msra.mxu0 %v1911
        %2431 = vmatprep.subr.bf16.mxu0 0
        %2432 = vmatpush1.bf16.msra.mxu0 0
        %2433 = vmatprep.subr.bf16.mxu0 0
        %2434 = vmatpush1.bf16.msra.mxu0 0
        %2435 = vmatprep.subr.bf16.mxu0 0
        %2436 = vmatpush1.bf16.msra.mxu0 0
        %2437 = vmatprep.subr.bf16.mxu0 0
        %2438 = vmatpush1.bf16.msra.mxu0 0
        %2439 = vmatprep.subr.bf16.mxu0 0
        %2440 = vmatpush1.bf16.msra.mxu0 0
        %2441 = vmatprep.subr.bf16.mxu0 0
        %2442 = vmatpush1.bf16.msra.mxu0 0
        %2443 = vmatprep.subr.bf16.mxu0 0
        %2444 = vmatpush1.bf16.msra.mxu0 0
        %2445 = vmatprep.subr.bf16.mxu0 0
        %2446 = vmatpush1.bf16.msra.mxu0 0
        %2447 = vmatprep.subr.bf16.mxu0 0
        %2448 = vmatpush1.bf16.msra.mxu0 0
        %2449 = vmatprep.subr.bf16.mxu0 0
        %2450 = vmatpush1.bf16.msra.mxu0 0
        %2451 = vmatprep.subr.bf16.mxu0 0
        %2452 = vmatpush1.bf16.msra.mxu0 0
        %2453 = vmatprep.subr.bf16.mxu0 0
        %2454 = vmatpush1.bf16.msra.mxu0 0
        %2455 = vmatprep.mubr.bf16.mxu0 0
        %2456 = vmatmul.mubr.bf16.gmra.mrb[0].mxu0 %v2412
        %v2457 = vpop.f32.mrb[0].mxu0
        %v2458 = vadd.f32 0.0, %v2457
        %v2459 = vpop.f32.mrb[0].mxu0
        %v2460 = vpop.f32.mrb[0].mxu0
        %v2461 = vadd.f32 0.0, %v2460
        %v2462 = vpop.f32.mrb[0].mxu0
        %2463 = vmatprep.mubr.bf16.mxu0 0
        %2464 = vmatmul.mubr.bf16.gmra.mrb[0].mxu0 %v2415
        %v2465 = vpop.f32.mrb[0].mxu0
        %v2466 = vadd.f32 0.0, %v2465
        %v2467 = vpop.f32.mrb[0].mxu0
        %v2468 = vpop.f32.mrb[0].mxu0
        %v2469 = vadd.f32 0.0, %v2468
        %v2470 = vpop.f32.mrb[0].mxu0
        %2471 = vmatprep.mubr.bf16.mxu0 0
        %2472 = vmatmul.mubr.bf16.gmra.mrb[0].mxu0 %v2418
        %v2473 = vpop.f32.mrb[0].mxu0
        %v2474 = vadd.f32 0.0, %v2473
        %v2475 = vpop.f32.mrb[0].mxu0
        %v2476 = vpop.f32.mrb[0].mxu0
        %v2477 = vadd.f32 0.0, %v2476
        %v2478 = vpop.f32.mrb[0].mxu0
        %2479 = vmatprep.mubr.bf16.mxu0 0
        %2480 = vmatmul.mubr.bf16.gmra.mrb[0].mxu0 %v2421
        %v2481 = vpop.f32.mrb[0].mxu0
        %v2482 = vadd.f32 0.0, %v2481
        %v2483 = vpop.f32.mrb[0].mxu0
        %v2484 = vpop.f32.mrb[0].mxu0
        %v2485 = vadd.f32 0.0, %v2484
        %v2486 = vpop.f32.mrb[0].mxu0
        %2487 = vdwg.mxu0
        %v2488 = vrcp.pop %v2280
        %v2489 = vrcp.pop %v2283
        %v2490 = vrcp.pop %v2286
        %v2491 = vrcp.pop %v2289
        %v2492 = vrcp.pop %v2292
        %v2493 = vrcp.pop %v2295
        %v2494 = vrcp.pop %v2298
        %v2495 = vrcp.pop %v2301
        %v2496 = vrcp.pop %v2304
        %v2497 = vrcp.pop %v2307
        %v2498 = vrcp.pop %v2310
        %v2499 = vrcp.pop %v2313
        %v2500 = vrcp.pop %v2316
        %v2501 = vrcp.pop %v2319
        %v2502 = vrcp.pop %v2322
        %v2503 = vrcp.pop %v2325
        %v2504 = vmul.f32 %v2381, %v2488
        %v2505 = vmul.f32 %v2384, %v2489
        %v2506 = vmul.f32 %v2389, %v2490
        %v2507 = vmul.f32 %v2392, %v2491
        %v2508 = vmul.f32 %v2397, %v2492
        %v2509 = vmul.f32 %v2400, %v2493
        %v2510 = vmul.f32 %v2405, %v2494
        %v2511 = vmul.f32 %v2408, %v2495
        %v2512 = vmul.f32 %v2458, %v2496
        %v2513 = vmul.f32 %v2461, %v2497
        %v2514 = vmul.f32 %v2466, %v2498
        %v2515 = vmul.f32 %v2469, %v2499
        %v2516 = vmul.f32 %v2474, %v2500
        %v2517 = vmul.f32 %v2477, %v2501
        %v2518 = vmul.f32 %v2482, %v2502
        %v2519 = vmul.f32 %v2485, %v2503
        %v2520 = vpack.c.bf16 %v2505, %v2504
        %v2521 = vpack.c.bf16 %v2507, %v2506
        %v2522 = vpack.c.bf16 %v2509, %v2508
        %v2523 = vpack.c.bf16 %v2511, %v2510
        %v2524 = vpack.c.bf16 %v2513, %v2512
        %v2525 = vpack.c.bf16 %v2515, %v2514
        %v2526 = vpack.c.bf16 %v2517, %v2516
        %v2527 = vpack.c.bf16 %v2519, %v2518
        %v2532 = vunpack.c.l.b16 %v1931
        %v2533 = vunpack.c.l.b16 %v1932
        %v2534 = vunpack.c.l.b16 %v1933
        %v2535 = vunpack.c.l.b16 %v1934
        %v2536 = vpack.c.b16 %v2533, %v2532
        %v2537 = vpack.c.b16 %v2535, %v2534
        %v2541 = vsel %vm1970, %v2520, 0
        %v2544 = vsel %vm1970, %v2521, 0
        %v2547 = vsel %vm1970, %v2522, 0
        %v2550 = vsel %vm1970, %v2523, 0
        %v2553 = vsel %vm1970, %v2524, 0
        %v2556 = vsel %vm1970, %v2525, 0
        %v2559 = vsel %vm1970, %v2526, 0
        %v2562 = vsel %vm1970, %v2527, 0
        %2564 = vmatprep.subr.bf16.mxu0 0
        %2565 = vmatpush1.bf16.msra.mxu0 %v2536
        %2566 = vmatprep.subr.bf16.mxu0 0
        %2567 = vmatpush1.bf16.msra.mxu0 %v2537
        %2568 = vmatprep.subr.bf16.mxu0 0
        %2569 = vmatpush1.bf16.msra.mxu0 0
        %2570 = vmatprep.subr.bf16.mxu0 0
        %2571 = vmatpush1.bf16.msra.mxu0 0
        %2572 = vmatprep.subr.bf16.mxu0 0
        %2573 = vmatpush1.bf16.msra.mxu0 0
        %2574 = vmatprep.subr.bf16.mxu0 0
        %2575 = vmatpush1.bf16.msra.mxu0 0
        %2576 = vmatprep.subr.bf16.mxu0 0
        %2577 = vmatpush1.bf16.msra.mxu0 0
        %2578 = vmatprep.subr.bf16.mxu0 0
        %2579 = vmatpush1.bf16.msra.mxu0 0
        %2580 = vmatprep.subr.bf16.mxu0 0
        %2581 = vmatpush1.bf16.msra.mxu0 0
        %2582 = vmatprep.subr.bf16.mxu0 0
        %2583 = vmatpush1.bf16.msra.mxu0 0
        %2584 = vmatprep.subr.bf16.mxu0 0
        %2585 = vmatpush1.bf16.msra.mxu0 0
        %2586 = vmatprep.subr.bf16.mxu0 0
        %2587 = vmatpush1.bf16.msra.mxu0 0
        %2588 = vmatprep.subr.bf16.mxu0 0
        %2589 = vmatpush1.bf16.msra.mxu0 0
        %2590 = vmatprep.subr.bf16.mxu0 0
        %2591 = vmatpush1.bf16.msra.mxu0 0
        %2592 = vmatprep.subr.bf16.mxu0 0
        %2593 = vmatpush1.bf16.msra.mxu0 0
        %2594 = vmatprep.subr.bf16.mxu0 0
        %2595 = vmatpush1.bf16.msra.mxu0 0
        %2596 = vmatprep.mubr.bf16.mxu0 0
        %2597 = vmatmul.mubr.bf16.gmra.mrb[0].mxu0 %v2541
        %v2598 = vpop.f32.mrb[0].mxu0
        %v2599 = vadd.f32 0.0, %v2598
        %v2600 = vpop.f32.mrb[0].mxu0
        %v2601 = vpop.f32.mrb[0].mxu0
        %v2602 = vadd.f32 0.0, %v2601
        %v2603 = vpop.f32.mrb[0].mxu0
        %2604 = vmatprep.mubr.bf16.mxu0 0
        %2605 = vmatmul.mubr.bf16.gmra.mrb[0].mxu0 %v2544
        %v2606 = vpop.f32.mrb[0].mxu0
        %v2607 = vadd.f32 0.0, %v2606
        %v2608 = vpop.f32.mrb[0].mxu0
        %v2609 = vpop.f32.mrb[0].mxu0
        %v2610 = vadd.f32 0.0, %v2609
        %v2611 = vpop.f32.mrb[0].mxu0
        %2612 = vmatprep.mubr.bf16.mxu0 0
        %2613 = vmatmul.mubr.bf16.gmra.mrb[0].mxu0 %v2547
        %v2614 = vpop.f32.mrb[0].mxu0
        %v2615 = vadd.f32 0.0, %v2614
        %v2616 = vpop.f32.mrb[0].mxu0
        %v2617 = vpop.f32.mrb[0].mxu0
        %v2618 = vadd.f32 0.0, %v2617
        %v2619 = vpop.f32.mrb[0].mxu0
        %2620 = vmatprep.mubr.bf16.mxu0 0
        %2621 = vmatmul.mubr.bf16.gmra.mrb[0].mxu0 %v2550
        %v2622 = vpop.f32.mrb[0].mxu0
        %v2623 = vadd.f32 0.0, %v2622
        %v2624 = vpop.f32.mrb[0].mxu0
        %v2625 = vpop.f32.mrb[0].mxu0
        %v2626 = vadd.f32 0.0, %v2625
        %v2627 = vpop.f32.mrb[0].mxu0
        %2628 = vmatprep.mubr.bf16.mxu0 0
        %2629 = vmatmul.mubr.bf16.gmra.mrb[0].mxu0 %v2553
        %v2630 = vpop.f32.mrb[0].mxu0
        %v2631 = vadd.f32 0.0, %v2630
        %v2632 = vpop.f32.mrb[0].mxu0
        %v2633 = vpop.f32.mrb[0].mxu0
        %v2634 = vadd.f32 0.0, %v2633
        %v2635 = vpop.f32.mrb[0].mxu0
        %2636 = vmatprep.mubr.bf16.mxu0 0
        %2637 = vmatmul.mubr.bf16.gmra.mrb[0].mxu0 %v2556
        %v2638 = vpop.f32.mrb[0].mxu0
        %v2639 = vadd.f32 0.0, %v2638
        %v2640 = vpop.f32.mrb[0].mxu0
        %v2641 = vpop.f32.mrb[0].mxu0
        %v2642 = vadd.f32 0.0, %v2641
        %v2643 = vpop.f32.mrb[0].mxu0
        %2644 = vmatprep.mubr.bf16.mxu0 0
        %2645 = vmatmul.mubr.bf16.gmra.mrb[0].mxu0 %v2559
        %v2646 = vpop.f32.mrb[0].mxu0
        %v2647 = vadd.f32 0.0, %v2646
        %v2648 = vpop.f32.mrb[0].mxu0
        %v2649 = vpop.f32.mrb[0].mxu0
        %v2650 = vadd.f32 0.0, %v2649
        %v2651 = vpop.f32.mrb[0].mxu0
        %2652 = vmatprep.mubr.bf16.mxu0 0
        %2653 = vmatmul.mubr.bf16.gmra.mrb[0].mxu0 %v2562
        %v2654 = vpop.f32.mrb[0].mxu0
        %v2655 = vadd.f32 0.0, %v2654
        %v2656 = vpop.f32.mrb[0].mxu0
        %v2657 = vpop.f32.mrb[0].mxu0
        %v2658 = vadd.f32 0.0, %v2657
        %v2659 = vpop.f32.mrb[0].mxu0
        %2660 = vdwg.mxu0
        %v2661 = vadd.f32 %v1954, %v2599
        %v2662 = vadd.f32 %v1955, %v2602
        %v2663 = vadd.f32 %v1956, %v2607
        %v2664 = vadd.f32 %v1957, %v2610
        %v2665 = vadd.f32 %v1958, %v2615
        %v2666 = vadd.f32 %v1959, %v2618
        %v2667 = vadd.f32 %v1960, %v2623
        %v2668 = vadd.f32 %v1961, %v2626
        %v2669 = vadd.f32 %v1962, %v2631
        %v2670 = vadd.f32 %v1963, %v2634
        %v2671 = vadd.f32 %v1964, %v2639
        %v2672 = vadd.f32 %v1965, %v2642
        %v2673 = vadd.f32 %v1966, %v2647
        %v2674 = vadd.f32 %v1967, %v2650
        %v2675 = vadd.f32 %v1968, %v2655
        %v2676 = vadd.f32 %v1969, %v2658
        %2681 = vrot.lane.b32.xlu0 %v1888, 96
        %v2682 = vpop.permute.xlu0 %2681
        %2683 = vrot.lane.b32.xlu0 %v1891, 96
        %v2684 = vpop.permute.xlu0 %2683
        %2685 = vrot.lane.b32.xlu0 %v1894, 96
        %v2686 = vpop.permute.xlu0 %2685
        %2687 = vrot.lane.b32.xlu0 %v1897, 96
        %v2688 = vpop.permute.xlu0 %2687
        %2693 = vrot.lane.b32.xlu0 %v1889, 96
        %v2694 = vpop.permute.xlu0 %2693
        %2695 = vrot.lane.b32.xlu0 %v1892, 96
        %v2696 = vpop.permute.xlu0 %2695
        %2697 = vrot.lane.b32.xlu0 %v1895, 96
        %v2698 = vpop.permute.xlu0 %2697
        %2699 = vrot.lane.b32.xlu0 %v1898, 96
        %v2700 = vpop.permute.xlu0 %2699
        %v2702 = vsel %vm1970, %v2682, 0
        %v2705 = vsel %vm1970, %v2684, 0
        %v2708 = vsel %vm1970, %v2686, 0
        %v2711 = vsel %vm1970, %v2688, 0
        %v2714 = vsel %vm1970, %v2694, 0
        %v2717 = vsel %vm1970, %v2696, 0
        %v2720 = vsel %vm1970, %v2698, 0
        %v2723 = vsel %vm1970, %v2700, 0
        %2725 = vmatprep.subr.bf16.mxu0 0
        %2726 = vmatpush1.bf16.xpose.msra.mxu0 %v2714
        %2727 = vmatprep.subr.bf16.mxu0 0
        %2728 = vmatpush1.bf16.xpose.msra.mxu0 %v2717
        %2729 = vmatprep.subr.bf16.mxu0 0
        %2730 = vmatpush1.bf16.xpose.msra.mxu0 %v2720
        %2731 = vmatprep.subr.bf16.mxu0 0
        %2732 = vmatpush1.bf16.xpose.msra.mxu0 %v2723
        %2733 = vmatprep.subr.bf16.mxu0 0
        %2734 = vmatpush1.bf16.xpose.msra.mxu0 0
        %2735 = vmatprep.subr.bf16.mxu0 0
        %2736 = vmatpush1.bf16.xpose.msra.mxu0 0
        %2737 = vmatprep.subr.bf16.mxu0 0
        %2738 = vmatpush1.bf16.xpose.msra.mxu0 0
        %2739 = vmatprep.subr.bf16.mxu0 0
        %2740 = vmatpush1.bf16.xpose.msra.mxu0 0
        %2741 = vmatprep.subr.bf16.mxu0 0
        %2742 = vmatpush1.bf16.xpose.msra.mxu0 0
        %2743 = vmatprep.subr.bf16.mxu0 0
        %2744 = vmatpush1.bf16.xpose.msra.mxu0 0
        %2745 = vmatprep.subr.bf16.mxu0 0
        %2746 = vmatpush1.bf16.xpose.msra.mxu0 0
        %2747 = vmatprep.subr.bf16.mxu0 0
        %2748 = vmatpush1.bf16.xpose.msra.mxu0 0
        %2749 = vmatprep.subr.bf16.mxu0 0
        %2750 = vmatpush1.bf16.xpose.msra.mxu0 0
        %2751 = vmatprep.subr.bf16.mxu0 0
        %2752 = vmatpush1.bf16.xpose.msra.mxu0 0
        %2753 = vmatprep.subr.bf16.mxu0 0
        %2754 = vmatpush1.bf16.xpose.msra.mxu0 0
        %2755 = vmatprep.subr.bf16.mxu0 0
        %2756 = vmatpush1.bf16.xpose.msra.mxu0 0
        %2757 = vmatprep.mubr.bf16.mxu0 0
        %2758 = vmatmul.mubr.bf16.gmra.mrb[0].mxu0 %v2702
        %v2759 = vpop.f32.mrb[0].mxu0
        %v2760 = vadd.f32 0.0, %v2759
        %v2761 = vpop.f32.mrb[0].mxu0
        %v2762 = vpop.f32.mrb[0].mxu0
        %v2763 = vadd.f32 0.0, %v2762
        %v2764 = vpop.f32.mrb[0].mxu0
        %2765 = vmatprep.mubr.bf16.mxu0 0
        %2766 = vmatmul.mubr.bf16.gmra.mrb[0].mxu0 %v2705
        %v2767 = vpop.f32.mrb[0].mxu0
        %v2768 = vadd.f32 0.0, %v2767
        %v2769 = vpop.f32.mrb[0].mxu0
        %v2770 = vpop.f32.mrb[0].mxu0
        %v2771 = vadd.f32 0.0, %v2770
        %v2772 = vpop.f32.mrb[0].mxu0
        %2773 = vmatprep.mubr.bf16.mxu0 0
        %2774 = vmatmul.mubr.bf16.gmra.mrb[0].mxu0 %v2708
        %v2775 = vpop.f32.mrb[0].mxu0
        %v2776 = vadd.f32 0.0, %v2775
        %v2777 = vpop.f32.mrb[0].mxu0
        %v2778 = vpop.f32.mrb[0].mxu0
        %v2779 = vadd.f32 0.0, %v2778
        %v2780 = vpop.f32.mrb[0].mxu0
        %2781 = vmatprep.mubr.bf16.mxu0 0
        %2782 = vmatmul.mubr.bf16.gmra.mrb[0].mxu0 %v2711
        %v2783 = vpop.f32.mrb[0].mxu0
        %v2784 = vadd.f32 0.0, %v2783
        %v2785 = vpop.f32.mrb[0].mxu0
        %v2786 = vpop.f32.mrb[0].mxu0
        %v2787 = vadd.f32 0.0, %v2786
        %v2788 = vpop.f32.mrb[0].mxu0
        %2789 = vdwg.mxu0
        %2794 = vrot.lane.b32.xlu0 %v1900, 96
        %v2795 = vpop.permute.xlu0 %2794
        %2796 = vrot.lane.b32.xlu0 %v1903, 96
        %v2797 = vpop.permute.xlu0 %2796
        %2798 = vrot.lane.b32.xlu0 %v1906, 96
        %v2799 = vpop.permute.xlu0 %2798
        %2800 = vrot.lane.b32.xlu0 %v1909, 96
        %v2801 = vpop.permute.xlu0 %2800
        %2806 = vrot.lane.b32.xlu0 %v1901, 96
        %v2807 = vpop.permute.xlu0 %2806
        %2808 = vrot.lane.b32.xlu0 %v1904, 96
        %v2809 = vpop.permute.xlu0 %2808
        %2810 = vrot.lane.b32.xlu0 %v1907, 96
        %v2811 = vpop.permute.xlu0 %2810
        %2812 = vrot.lane.b32.xlu0 %v1910, 96
        %v2813 = vpop.permute.xlu0 %2812
        %v2815 = vsel %vm1970, %v2795, 0
        %v2818 = vsel %vm1970, %v2797, 0
        %v2821 = vsel %vm1970, %v2799, 0
        %v2824 = vsel %vm1970, %v2801, 0
        %v2827 = vsel %vm1970, %v2807, 0
        %v2830 = vsel %vm1970, %v2809, 0
        %v2833 = vsel %vm1970, %v2811, 0
        %v2836 = vsel %vm1970, %v2813, 0
        %2838 = vmatprep.subr.bf16.mxu0 0
        %2839 = vmatpush1.bf16.xpose.msra.mxu0 %v2827
        %2840 = vmatprep.subr.bf16.mxu0 0
        %2841 = vmatpush1.bf16.xpose.msra.mxu0 %v2830
        %2842 = vmatprep.subr.bf16.mxu0 0
        %2843 = vmatpush1.bf16.xpose.msra.mxu0 %v2833
        %2844 = vmatprep.subr.bf16.mxu0 0
        %2845 = vmatpush1.bf16.xpose.msra.mxu0 %v2836
        %2846 = vmatprep.subr.bf16.mxu0 0
        %2847 = vmatpush1.bf16.xpose.msra.mxu0 0
        %2848 = vmatprep.subr.bf16.mxu0 0
        %2849 = vmatpush1.bf16.xpose.msra.mxu0 0
        %2850 = vmatprep.subr.bf16.mxu0 0
        %2851 = vmatpush1.bf16.xpose.msra.mxu0 0
        %2852 = vmatprep.subr.bf16.mxu0 0
        %2853 = vmatpush1.bf16.xpose.msra.mxu0 0
        %2854 = vmatprep.subr.bf16.mxu0 0
        %2855 = vmatpush1.bf16.xpose.msra.mxu0 0
        %2856 = vmatprep.subr.bf16.mxu0 0
        %2857 = vmatpush1.bf16.xpose.msra.mxu0 0
        %2858 = vmatprep.subr.bf16.mxu0 0
        %2859 = vmatpush1.bf16.xpose.msra.mxu0 0
        %2860 = vmatprep.subr.bf16.mxu0 0
        %2861 = vmatpush1.bf16.xpose.msra.mxu0 0
        %2862 = vmatprep.subr.bf16.mxu0 0
        %2863 = vmatpush1.bf16.xpose.msra.mxu0 0
        %2864 = vmatprep.subr.bf16.mxu0 0
        %2865 = vmatpush1.bf16.xpose.msra.mxu0 0
        %2866 = vmatprep.subr.bf16.mxu0 0
        %2867 = vmatpush1.bf16.xpose.msra.mxu0 0
        %2868 = vmatprep.subr.bf16.mxu0 0
        %2869 = vmatpush1.bf16.xpose.msra.mxu0 0
        %2870 = vmatprep.mubr.bf16.mxu0 0
        %2871 = vmatmul.mubr.bf16.gmra.mrb[0].mxu0 %v2815
        %v2872 = vpop.f32.mrb[0].mxu0
        %v2873 = vadd.f32 0.0, %v2872
        %v2874 = vpop.f32.mrb[0].mxu0
        %v2875 = vpop.f32.mrb[0].mxu0
        %v2876 = vadd.f32 0.0, %v2875
        %v2877 = vpop.f32.mrb[0].mxu0
        %2878 = vmatprep.mubr.bf16.mxu0 0
        %2879 = vmatmul.mubr.bf16.gmra.mrb[0].mxu0 %v2818
        %v2880 = vpop.f32.mrb[0].mxu0
        %v2881 = vadd.f32 0.0, %v2880
        %v2882 = vpop.f32.mrb[0].mxu0
        %v2883 = vpop.f32.mrb[0].mxu0
        %v2884 = vadd.f32 0.0, %v2883
        %v2885 = vpop.f32.mrb[0].mxu0
        %2886 = vmatprep.mubr.bf16.mxu0 0
        %2887 = vmatmul.mubr.bf16.gmra.mrb[0].mxu0 %v2821
        %v2888 = vpop.f32.mrb[0].mxu0
        %v2889 = vadd.f32 0.0, %v2888
        %v2890 = vpop.f32.mrb[0].mxu0
        %v2891 = vpop.f32.mrb[0].mxu0
        %v2892 = vadd.f32 0.0, %v2891
        %v2893 = vpop.f32.mrb[0].mxu0
        %2894 = vmatprep.mubr.bf16.mxu0 0
        %2895 = vmatmul.mubr.bf16.gmra.mrb[0].mxu0 %v2824
        %v2896 = vpop.f32.mrb[0].mxu0
        %v2897 = vadd.f32 0.0, %v2896
        %v2898 = vpop.f32.mrb[0].mxu0
        %v2899 = vpop.f32.mrb[0].mxu0
        %v2900 = vadd.f32 0.0, %v2899
        %v2901 = vpop.f32.mrb[0].mxu0
        %2902 = vdwg.mxu0
        %v2903 = vsel %vm2157, %v2760, -1e+30
        %v2904 = vsel %vm2158, %v2763, -1e+30
        %v2905 = vsel %vm2159, %v2768, -1e+30
        %v2906 = vsel %vm2160, %v2771, -1e+30
        %v2907 = vsel %vm2161, %v2776, -1e+30
        %v2908 = vsel %vm2162, %v2779, -1e+30
        %v2909 = vsel %vm2163, %v2784, -1e+30
        %v2910 = vsel %vm2164, %v2787, -1e+30
        %v2911 = vsel %vm2157, %v2873, -1e+30
        %v2912 = vsel %vm2158, %v2876, -1e+30
        %v2913 = vsel %vm2159, %v2881, -1e+30
        %v2914 = vsel %vm2160, %v2884, -1e+30
        %v2915 = vsel %vm2161, %v2889, -1e+30
        %v2916 = vsel %vm2162, %v2892, -1e+30
        %v2917 = vsel %vm2163, %v2897, -1e+30
        %v2918 = vsel %vm2164, %v2900, -1e+30
        %v2919 = vsel %vm2181, %v2903, -inf
        %2920 = vmax.xlane.f32.xlu0 %v2919
        %v2921 = vpop.xlane.xlu0 %2920
        %v2922 = vsel %vm2181, %v2904, -inf
        %2923 = vmax.xlane.f32.xlu0 %v2922
        %v2924 = vpop.xlane.xlu0 %2923
        %v2925 = vsel %vm2181, %v2905, -inf
        %2926 = vmax.xlane.f32.xlu0 %v2925
        %v2927 = vpop.xlane.xlu0 %2926
        %v2928 = vsel %vm2181, %v2906, -inf
        %2929 = vmax.xlane.f32.xlu0 %v2928
        %v2930 = vpop.xlane.xlu0 %2929
        %v2931 = vsel %vm2181, %v2907, -inf
        %2932 = vmax.xlane.f32.xlu0 %v2931
        %v2933 = vpop.xlane.xlu0 %2932
        %v2934 = vsel %vm2181, %v2908, -inf
        %2935 = vmax.xlane.f32.xlu0 %v2934
        %v2936 = vpop.xlane.xlu0 %2935
        %v2937 = vsel %vm2181, %v2909, -inf
        %2938 = vmax.xlane.f32.xlu0 %v2937
        %v2939 = vpop.xlane.xlu0 %2938
        %v2940 = vsel %vm2181, %v2910, -inf
        %2941 = vmax.xlane.f32.xlu0 %v2940
        %v2942 = vpop.xlane.xlu0 %2941
        %v2943 = vsel %vm2181, %v2911, -inf
        %2944 = vmax.xlane.f32.xlu0 %v2943
        %v2945 = vpop.xlane.xlu0 %2944
        %v2946 = vsel %vm2181, %v2912, -inf
        %2947 = vmax.xlane.f32.xlu0 %v2946
        %v2948 = vpop.xlane.xlu0 %2947
        %v2949 = vsel %vm2181, %v2913, -inf
        %2950 = vmax.xlane.f32.xlu0 %v2949
        %v2951 = vpop.xlane.xlu0 %2950
        %v2952 = vsel %vm2181, %v2914, -inf
        %2953 = vmax.xlane.f32.xlu0 %v2952
        %v2954 = vpop.xlane.xlu0 %2953
        %v2955 = vsel %vm2181, %v2915, -inf
        %2956 = vmax.xlane.f32.xlu0 %v2955
        %v2957 = vpop.xlane.xlu0 %2956
        %v2958 = vsel %vm2181, %v2916, -inf
        %2959 = vmax.xlane.f32.xlu0 %v2958
        %v2960 = vpop.xlane.xlu0 %2959
        %v2961 = vsel %vm2181, %v2917, -inf
        %2962 = vmax.xlane.f32.xlu0 %v2961
        %v2963 = vpop.xlane.xlu0 %2962
        %v2964 = vsel %vm2181, %v2918, -inf
        %2965 = vmax.xlane.f32.xlu0 %v2964
        %v2966 = vpop.xlane.xlu0 %2965
        %v2967 = vsub.f32 %v2903, %v2921
        %v2968 = vsub.f32 %v2904, %v2924
        %v2969 = vsub.f32 %v2905, %v2927
        %v2970 = vsub.f32 %v2906, %v2930
        %v2971 = vsub.f32 %v2907, %v2933
        %v2972 = vsub.f32 %v2908, %v2936
        %v2973 = vsub.f32 %v2909, %v2939
        %v2974 = vsub.f32 %v2910, %v2942
        %v2975 = vsub.f32 %v2911, %v2945
        %v2976 = vsub.f32 %v2912, %v2948
        %v2977 = vsub.f32 %v2913, %v2951
        %v2978 = vsub.f32 %v2914, %v2954
        %v2979 = vsub.f32 %v2915, %v2957
        %v2980 = vsub.f32 %v2916, %v2960
        %v2981 = vsub.f32 %v2917, %v2963
        %v2982 = vsub.f32 %v2918, %v2966
        %v2983 = vmul.f32 %v2967, 1.442695
        %v2984 = vpow.pop %v2983
        %v2985 = vmul.f32 %v2968, 1.442695
        %v2986 = vpow.pop %v2985
        %v2987 = vmul.f32 %v2969, 1.442695
        %v2988 = vpow.pop %v2987
        %v2989 = vmul.f32 %v2970, 1.442695
        %v2990 = vpow.pop %v2989
        %v2991 = vmul.f32 %v2971, 1.442695
        %v2992 = vpow.pop %v2991
        %v2993 = vmul.f32 %v2972, 1.442695
        %v2994 = vpow.pop %v2993
        %v2995 = vmul.f32 %v2973, 1.442695
        %v2996 = vpow.pop %v2995
        %v2997 = vmul.f32 %v2974, 1.442695
        %v2998 = vpow.pop %v2997
        %v2999 = vmul.f32 %v2975, 1.442695
        %v3000 = vpow.pop %v2999
        %v3001 = vmul.f32 %v2976, 1.442695
        %v3002 = vpow.pop %v3001
        %v3003 = vmul.f32 %v2977, 1.442695
        %v3004 = vpow.pop %v3003
        %v3005 = vmul.f32 %v2978, 1.442695
        %v3006 = vpow.pop %v3005
        %v3007 = vmul.f32 %v2979, 1.442695
        %v3008 = vpow.pop %v3007
        %v3009 = vmul.f32 %v2980, 1.442695
        %v3010 = vpow.pop %v3009
        %v3011 = vmul.f32 %v2981, 1.442695
        %v3012 = vpow.pop %v3011
        %v3013 = vmul.f32 %v2982, 1.442695
        %v3014 = vpow.pop %v3013
        %v3015 = vsel %vm2181, %v2984, 0.0
        %3016 = vadd.xlane.f32.xlu0 %v3015
        %v3017 = vpop.xlane.xlu0 %3016
        %v3018 = vsel %vm2181, %v2986, 0.0
        %3019 = vadd.xlane.f32.xlu0 %v3018
        %v3020 = vpop.xlane.xlu0 %3019
        %v3021 = vsel %vm2181, %v2988, 0.0
        %3022 = vadd.xlane.f32.xlu0 %v3021
        %v3023 = vpop.xlane.xlu0 %3022
        %v3024 = vsel %vm2181, %v2990, 0.0
        %3025 = vadd.xlane.f32.xlu0 %v3024
        %v3026 = vpop.xlane.xlu0 %3025
        %v3027 = vsel %vm2181, %v2992, 0.0
        %3028 = vadd.xlane.f32.xlu0 %v3027
        %v3029 = vpop.xlane.xlu0 %3028
        %v3030 = vsel %vm2181, %v2994, 0.0
        %3031 = vadd.xlane.f32.xlu0 %v3030
        %v3032 = vpop.xlane.xlu0 %3031
        %v3033 = vsel %vm2181, %v2996, 0.0
        %3034 = vadd.xlane.f32.xlu0 %v3033
        %v3035 = vpop.xlane.xlu0 %3034
        %v3036 = vsel %vm2181, %v2998, 0.0
        %3037 = vadd.xlane.f32.xlu0 %v3036
        %v3038 = vpop.xlane.xlu0 %3037
        %v3039 = vsel %vm2181, %v3000, 0.0
        %3040 = vadd.xlane.f32.xlu0 %v3039
        %v3041 = vpop.xlane.xlu0 %3040
        %v3042 = vsel %vm2181, %v3002, 0.0
        %3043 = vadd.xlane.f32.xlu0 %v3042
        %v3044 = vpop.xlane.xlu0 %3043
        %v3045 = vsel %vm2181, %v3004, 0.0
        %3046 = vadd.xlane.f32.xlu0 %v3045
        %v3047 = vpop.xlane.xlu0 %3046
        %v3048 = vsel %vm2181, %v3006, 0.0
        %3049 = vadd.xlane.f32.xlu0 %v3048
        %v3050 = vpop.xlane.xlu0 %3049
        %v3051 = vsel %vm2181, %v3008, 0.0
        %3052 = vadd.xlane.f32.xlu0 %v3051
        %v3053 = vpop.xlane.xlu0 %3052
        %v3054 = vsel %vm2181, %v3010, 0.0
        %3055 = vadd.xlane.f32.xlu0 %v3054
        %v3056 = vpop.xlane.xlu0 %3055
        %v3057 = vsel %vm2181, %v3012, 0.0
        %3058 = vadd.xlane.f32.xlu0 %v3057
        %v3059 = vpop.xlane.xlu0 %3058
        %v3060 = vsel %vm2181, %v3014, 0.0
        %3061 = vadd.xlane.f32.xlu0 %v3060
        %v3062 = vpop.xlane.xlu0 %3061
        %v3063 = vpack.c.bf16 %v2986, %v2984
        %v3064 = vpack.c.bf16 %v2990, %v2988
        %v3065 = vpack.c.bf16 %v2994, %v2992
        %v3066 = vpack.c.bf16 %v2998, %v2996
        %v3067 = vpack.c.bf16 %v3002, %v3000
        %v3068 = vpack.c.bf16 %v3006, %v3004
        %v3069 = vpack.c.bf16 %v3010, %v3008
        %v3070 = vpack.c.bf16 %v3014, %v3012
        %3075 = vrot.lane.b32.xlu0 %v1890, 96
        %v3076 = vpop.permute.xlu0 %3075
        %3077 = vrot.lane.b32.xlu0 %v1893, 96
        %v3078 = vpop.permute.xlu0 %3077
        %3079 = vrot.lane.b32.xlu0 %v1896, 96
        %v3080 = vpop.permute.xlu0 %3079
        %3081 = vrot.lane.b32.xlu0 %v1899, 96
        %v3082 = vpop.permute.xlu0 %3081
        %v3088 = vsel %vm2181, %v3063, 0
        %v3091 = vsel %vm2181, %v3064, 0
        %v3094 = vsel %vm2181, %v3065, 0
        %v3097 = vsel %vm2181, %v3066, 0
        %3099 = vmatprep.subr.bf16.mxu0 0
        %3100 = vmatpush1.bf16.msra.mxu0 %v3076
        %3101 = vmatprep.subr.bf16.mxu0 0
        %3102 = vmatpush1.bf16.msra.mxu0 %v3078
        %3103 = vmatprep.subr.bf16.mxu0 0
        %3104 = vmatpush1.bf16.msra.mxu0 %v3080
        %3105 = vmatprep.subr.bf16.mxu0 0
        %3106 = vmatpush1.bf16.msra.mxu0 %v3082
        %3107 = vmatprep.subr.bf16.mxu0 0
        %3108 = vmatpush1.bf16.msra.mxu0 0
        %3109 = vmatprep.subr.bf16.mxu0 0
        %3110 = vmatpush1.bf16.msra.mxu0 0
        %3111 = vmatprep.subr.bf16.mxu0 0
        %3112 = vmatpush1.bf16.msra.mxu0 0
        %3113 = vmatprep.subr.bf16.mxu0 0
        %3114 = vmatpush1.bf16.msra.mxu0 0
        %3115 = vmatprep.subr.bf16.mxu0 0
        %3116 = vmatpush1.bf16.msra.mxu0 0
        %3117 = vmatprep.subr.bf16.mxu0 0
        %3118 = vmatpush1.bf16.msra.mxu0 0
        %3119 = vmatprep.subr.bf16.mxu0 0
        %3120 = vmatpush1.bf16.msra.mxu0 0
        %3121 = vmatprep.subr.bf16.mxu0 0
        %3122 = vmatpush1.bf16.msra.mxu0 0
        %3123 = vmatprep.subr.bf16.mxu0 0
        %3124 = vmatpush1.bf16.msra.mxu0 0
        %3125 = vmatprep.subr.bf16.mxu0 0
        %3126 = vmatpush1.bf16.msra.mxu0 0
        %3127 = vmatprep.subr.bf16.mxu0 0
        %3128 = vmatpush1.bf16.msra.mxu0 0
        %3129 = vmatprep.subr.bf16.mxu0 0
        %3130 = vmatpush1.bf16.msra.mxu0 0
        %3131 = vmatprep.mubr.bf16.mxu0 0
        %3132 = vmatmul.mubr.bf16.gmra.mrb[0].mxu0 %v3088
        %v3133 = vpop.f32.mrb[0].mxu0
        %v3134 = vadd.f32 0.0, %v3133
        %v3135 = vpop.f32.mrb[0].mxu0
        %v3136 = vpop.f32.mrb[0].mxu0
        %v3137 = vadd.f32 0.0, %v3136
        %v3138 = vpop.f32.mrb[0].mxu0
        %3139 = vmatprep.mubr.bf16.mxu0 0
        %3140 = vmatmul.mubr.bf16.gmra.mrb[0].mxu0 %v3091
        %v3141 = vpop.f32.mrb[0].mxu0
        %v3142 = vadd.f32 0.0, %v3141
        %v3143 = vpop.f32.mrb[0].mxu0
        %v3144 = vpop.f32.mrb[0].mxu0
        %v3145 = vadd.f32 0.0, %v3144
        %v3146 = vpop.f32.mrb[0].mxu0
        %3147 = vmatprep.mubr.bf16.mxu0 0
        %3148 = vmatmul.mubr.bf16.gmra.mrb[0].mxu0 %v3094
        %v3149 = vpop.f32.mrb[0].mxu0
        %v3150 = vadd.f32 0.0, %v3149
        %v3151 = vpop.f32.mrb[0].mxu0
        %v3152 = vpop.f32.mrb[0].mxu0
        %v3153 = vadd.f32 0.0, %v3152
        %v3154 = vpop.f32.mrb[0].mxu0
        %3155 = vmatprep.mubr.bf16.mxu0 0
        %3156 = vmatmul.mubr.bf16.gmra.mrb[0].mxu0 %v3097
        %v3157 = vpop.f32.mrb[0].mxu0
        %v3158 = vadd.f32 0.0, %v3157
        %v3159 = vpop.f32.mrb[0].mxu0
        %v3160 = vpop.f32.mrb[0].mxu0
        %v3161 = vadd.f32 0.0, %v3160
        %v3162 = vpop.f32.mrb[0].mxu0
        %3163 = vdwg.mxu0
        %3168 = vrot.lane.b32.xlu0 %v1902, 96
        %v3169 = vpop.permute.xlu0 %3168
        %3170 = vrot.lane.b32.xlu0 %v1905, 96
        %v3171 = vpop.permute.xlu0 %3170
        %3172 = vrot.lane.b32.xlu0 %v1908, 96
        %v3173 = vpop.permute.xlu0 %3172
        %3174 = vrot.lane.b32.xlu0 %v1911, 96
        %v3175 = vpop.permute.xlu0 %3174
        %v3181 = vsel %vm2181, %v3067, 0
        %v3184 = vsel %vm2181, %v3068, 0
        %v3187 = vsel %vm2181, %v3069, 0
        %v3190 = vsel %vm2181, %v3070, 0
        %3192 = vmatprep.subr.bf16.mxu0 0
        %3193 = vmatpush1.bf16.msra.mxu0 %v3169
        %3194 = vmatprep.subr.bf16.mxu0 0
        %3195 = vmatpush1.bf16.msra.mxu0 %v3171
        %3196 = vmatprep.subr.bf16.mxu0 0
        %3197 = vmatpush1.bf16.msra.mxu0 %v3173
        %3198 = vmatprep.subr.bf16.mxu0 0
        %3199 = vmatpush1.bf16.msra.mxu0 %v3175
        %3200 = vmatprep.subr.bf16.mxu0 0
        %3201 = vmatpush1.bf16.msra.mxu0 0
        %3202 = vmatprep.subr.bf16.mxu0 0
        %3203 = vmatpush1.bf16.msra.mxu0 0
        %3204 = vmatprep.subr.bf16.mxu0 0
        %3205 = vmatpush1.bf16.msra.mxu0 0
        %3206 = vmatprep.subr.bf16.mxu0 0
        %3207 = vmatpush1.bf16.msra.mxu0 0
        %3208 = vmatprep.subr.bf16.mxu0 0
        %3209 = vmatpush1.bf16.msra.mxu0 0
        %3210 = vmatprep.subr.bf16.mxu0 0
        %3211 = vmatpush1.bf16.msra.mxu0 0
        %3212 = vmatprep.subr.bf16.mxu0 0
        %3213 = vmatpush1.bf16.msra.mxu0 0
        %3214 = vmatprep.subr.bf16.mxu0 0
        %3215 = vmatpush1.bf16.msra.mxu0 0
        %3216 = vmatprep.subr.bf16.mxu0 0
        %3217 = vmatpush1.bf16.msra.mxu0 0
        %3218 = vmatprep.subr.bf16.mxu0 0
        %3219 = vmatpush1.bf16.msra.mxu0 0
        %3220 = vmatprep.subr.bf16.mxu0 0
        %3221 = vmatpush1.bf16.msra.mxu0 0
        %3222 = vmatprep.subr.bf16.mxu0 0
        %3223 = vmatpush1.bf16.msra.mxu0 0
        %3224 = vmatprep.mubr.bf16.mxu0 0
        %3225 = vmatmul.mubr.bf16.gmra.mrb[0].mxu0 %v3181
        %v3226 = vpop.f32.mrb[0].mxu0
        %v3227 = vadd.f32 0.0, %v3226
        %v3228 = vpop.f32.mrb[0].mxu0
        %v3229 = vpop.f32.mrb[0].mxu0
        %v3230 = vadd.f32 0.0, %v3229
        %v3231 = vpop.f32.mrb[0].mxu0
        %3232 = vmatprep.mubr.bf16.mxu0 0
        %3233 = vmatmul.mubr.bf16.gmra.mrb[0].mxu0 %v3184
        %v3234 = vpop.f32.mrb[0].mxu0
        %v3235 = vadd.f32 0.0, %v3234
        %v3236 = vpop.f32.mrb[0].mxu0
        %v3237 = vpop.f32.mrb[0].mxu0
        %v3238 = vadd.f32 0.0, %v3237
        %v3239 = vpop.f32.mrb[0].mxu0
        %3240 = vmatprep.mubr.bf16.mxu0 0
        %3241 = vmatmul.mubr.bf16.gmra.mrb[0].mxu0 %v3187
        %v3242 = vpop.f32.mrb[0].mxu0
        %v3243 = vadd.f32 0.0, %v3242
        %v3244 = vpop.f32.mrb[0].mxu0
        %v3245 = vpop.f32.mrb[0].mxu0
        %v3246 = vadd.f32 0.0, %v3245
        %v3247 = vpop.f32.mrb[0].mxu0
        %3248 = vmatprep.mubr.bf16.mxu0 0
        %3249 = vmatmul.mubr.bf16.gmra.mrb[0].mxu0 %v3190
        %v3250 = vpop.f32.mrb[0].mxu0
        %v3251 = vadd.f32 0.0, %v3250
        %v3252 = vpop.f32.mrb[0].mxu0
        %v3253 = vpop.f32.mrb[0].mxu0
        %v3254 = vadd.f32 0.0, %v3253
        %v3255 = vpop.f32.mrb[0].mxu0
        %3256 = vdwg.mxu0
        %v3257 = vrcp.pop %v3017
        %v3258 = vrcp.pop %v3020
        %v3259 = vrcp.pop %v3023
        %v3260 = vrcp.pop %v3026
        %v3261 = vrcp.pop %v3029
        %v3262 = vrcp.pop %v3032
        %v3263 = vrcp.pop %v3035
        %v3264 = vrcp.pop %v3038
        %v3265 = vrcp.pop %v3041
        %v3266 = vrcp.pop %v3044
        %v3267 = vrcp.pop %v3047
        %v3268 = vrcp.pop %v3050
        %v3269 = vrcp.pop %v3053
        %v3270 = vrcp.pop %v3056
        %v3271 = vrcp.pop %v3059
        %v3272 = vrcp.pop %v3062
        %v3273 = vmul.f32 %v3134, %v3257
        %v3274 = vmul.f32 %v3137, %v3258
        %v3275 = vmul.f32 %v3142, %v3259
        %v3276 = vmul.f32 %v3145, %v3260
        %v3277 = vmul.f32 %v3150, %v3261
        %v3278 = vmul.f32 %v3153, %v3262
        %v3279 = vmul.f32 %v3158, %v3263
        %v3280 = vmul.f32 %v3161, %v3264
        %v3281 = vmul.f32 %v3227, %v3265
        %v3282 = vmul.f32 %v3230, %v3266
        %v3283 = vmul.f32 %v3235, %v3267
        %v3284 = vmul.f32 %v3238, %v3268
        %v3285 = vmul.f32 %v3243, %v3269
        %v3286 = vmul.f32 %v3246, %v3270
        %v3287 = vmul.f32 %v3251, %v3271
        %v3288 = vmul.f32 %v3254, %v3272
        %v3289 = vpack.c.bf16 %v3274, %v3273
        %v3290 = vpack.c.bf16 %v3276, %v3275
        %v3291 = vpack.c.bf16 %v3278, %v3277
        %v3292 = vpack.c.bf16 %v3280, %v3279
        %v3293 = vpack.c.bf16 %v3282, %v3281
        %v3294 = vpack.c.bf16 %v3284, %v3283
        %v3295 = vpack.c.bf16 %v3286, %v3285
        %v3296 = vpack.c.bf16 %v3288, %v3287
        %v3301 = vunpack.c.l.b16 %v1935
        %v3302 = vunpack.c.l.b16 %v1936
        %v3303 = vunpack.c.l.b16 %v1937
        %v3304 = vunpack.c.l.b16 %v1938
        %v3305 = vpack.c.b16 %v3302, %v3301
        %v3306 = vpack.c.b16 %v3304, %v3303
        %v3310 = vsel %vm1970, %v3289, 0
        %v3313 = vsel %vm1970, %v3290, 0
        %v3316 = vsel %vm1970, %v3291, 0
        %v3319 = vsel %vm1970, %v3292, 0
        %v3322 = vsel %vm1970, %v3293, 0
        %v3325 = vsel %vm1970, %v3294, 0
        %v3328 = vsel %vm1970, %v3295, 0
        %v3331 = vsel %vm1970, %v3296, 0
        %3333 = vmatprep.subr.bf16.mxu0 0
        %3334 = vmatpush1.bf16.msra.mxu0 %v3305
        %3335 = vmatprep.subr.bf16.mxu0 0
        %3336 = vmatpush1.bf16.msra.mxu0 %v3306
        %3337 = vmatprep.subr.bf16.mxu0 0
        %3338 = vmatpush1.bf16.msra.mxu0 0
        %3339 = vmatprep.subr.bf16.mxu0 0
        %3340 = vmatpush1.bf16.msra.mxu0 0
        %3341 = vmatprep.subr.bf16.mxu0 0
        %3342 = vmatpush1.bf16.msra.mxu0 0
        %3343 = vmatprep.subr.bf16.mxu0 0
        %3344 = vmatpush1.bf16.msra.mxu0 0
        %3345 = vmatprep.subr.bf16.mxu0 0
        %3346 = vmatpush1.bf16.msra.mxu0 0
        %3347 = vmatprep.subr.bf16.mxu0 0
        %3348 = vmatpush1.bf16.msra.mxu0 0
        %3349 = vmatprep.subr.bf16.mxu0 0
        %3350 = vmatpush1.bf16.msra.mxu0 0
        %3351 = vmatprep.subr.bf16.mxu0 0
        %3352 = vmatpush1.bf16.msra.mxu0 0
        %3353 = vmatprep.subr.bf16.mxu0 0
        %3354 = vmatpush1.bf16.msra.mxu0 0
        %3355 = vmatprep.subr.bf16.mxu0 0
        %3356 = vmatpush1.bf16.msra.mxu0 0
        %3357 = vmatprep.subr.bf16.mxu0 0
        %3358 = vmatpush1.bf16.msra.mxu0 0
        %3359 = vmatprep.subr.bf16.mxu0 0
        %3360 = vmatpush1.bf16.msra.mxu0 0
        %3361 = vmatprep.subr.bf16.mxu0 0
        %3362 = vmatpush1.bf16.msra.mxu0 0
        %3363 = vmatprep.subr.bf16.mxu0 0
        %3364 = vmatpush1.bf16.msra.mxu0 0
        %3365 = vmatprep.mubr.bf16.mxu0 0
        %3366 = vmatmul.mubr.bf16.gmra.mrb[0].mxu0 %v3310
        %v3367 = vpop.f32.mrb[0].mxu0
        %v3368 = vadd.f32 0.0, %v3367
        %v3369 = vpop.f32.mrb[0].mxu0
        %v3370 = vpop.f32.mrb[0].mxu0
        %v3371 = vadd.f32 0.0, %v3370
        %v3372 = vpop.f32.mrb[0].mxu0
        %3373 = vmatprep.mubr.bf16.mxu0 0
        %3374 = vmatmul.mubr.bf16.gmra.mrb[0].mxu0 %v3313
        %v3375 = vpop.f32.mrb[0].mxu0
        %v3376 = vadd.f32 0.0, %v3375
        %v3377 = vpop.f32.mrb[0].mxu0
        %v3378 = vpop.f32.mrb[0].mxu0
        %v3379 = vadd.f32 0.0, %v3378
        %v3380 = vpop.f32.mrb[0].mxu0
        %3381 = vmatprep.mubr.bf16.mxu0 0
        %3382 = vmatmul.mubr.bf16.gmra.mrb[0].mxu0 %v3316
        %v3383 = vpop.f32.mrb[0].mxu0
        %v3384 = vadd.f32 0.0, %v3383
        %v3385 = vpop.f32.mrb[0].mxu0
        %v3386 = vpop.f32.mrb[0].mxu0
        %v3387 = vadd.f32 0.0, %v3386
        %v3388 = vpop.f32.mrb[0].mxu0
        %3389 = vmatprep.mubr.bf16.mxu0 0
        %3390 = vmatmul.mubr.bf16.gmra.mrb[0].mxu0 %v3319
        %v3391 = vpop.f32.mrb[0].mxu0
        %v3392 = vadd.f32 0.0, %v3391
        %v3393 = vpop.f32.mrb[0].mxu0
        %v3394 = vpop.f32.mrb[0].mxu0
        %v3395 = vadd.f32 0.0, %v3394
        %v3396 = vpop.f32.mrb[0].mxu0
        %3397 = vmatprep.mubr.bf16.mxu0 0
        %3398 = vmatmul.mubr.bf16.gmra.mrb[0].mxu0 %v3322
        %v3399 = vpop.f32.mrb[0].mxu0
        %v3400 = vadd.f32 0.0, %v3399
        %v3401 = vpop.f32.mrb[0].mxu0
        %v3402 = vpop.f32.mrb[0].mxu0
        %v3403 = vadd.f32 0.0, %v3402
        %v3404 = vpop.f32.mrb[0].mxu0
        %3405 = vmatprep.mubr.bf16.mxu0 0
        %3406 = vmatmul.mubr.bf16.gmra.mrb[0].mxu0 %v3325
        %v3407 = vpop.f32.mrb[0].mxu0
        %v3408 = vadd.f32 0.0, %v3407
        %v3409 = vpop.f32.mrb[0].mxu0
        %v3410 = vpop.f32.mrb[0].mxu0
        %v3411 = vadd.f32 0.0, %v3410
        %v3412 = vpop.f32.mrb[0].mxu0
        %3413 = vmatprep.mubr.bf16.mxu0 0
        %3414 = vmatmul.mubr.bf16.gmra.mrb[0].mxu0 %v3328
        %v3415 = vpop.f32.mrb[0].mxu0
        %v3416 = vadd.f32 0.0, %v3415
        %v3417 = vpop.f32.mrb[0].mxu0
        %v3418 = vpop.f32.mrb[0].mxu0
        %v3419 = vadd.f32 0.0, %v3418
        %v3420 = vpop.f32.mrb[0].mxu0
        %3421 = vmatprep.mubr.bf16.mxu0 0
        %3422 = vmatmul.mubr.bf16.gmra.mrb[0].mxu0 %v3331
        %v3423 = vpop.f32.mrb[0].mxu0
        %v3424 = vadd.f32 0.0, %v3423
        %v3425 = vpop.f32.mrb[0].mxu0
        %v3426 = vpop.f32.mrb[0].mxu0
        %v3427 = vadd.f32 0.0, %v3426
        %v3428 = vpop.f32.mrb[0].mxu0
        %3429 = vdwg.mxu0
        %v3430 = vadd.f32 %v2661, %v3368
        %v3431 = vadd.f32 %v2662, %v3371
        %v3432 = vadd.f32 %v2663, %v3376
        %v3433 = vadd.f32 %v2664, %v3379
        %v3434 = vadd.f32 %v2665, %v3384
        %v3435 = vadd.f32 %v2666, %v3387
        %v3436 = vadd.f32 %v2667, %v3392
        %v3437 = vadd.f32 %v2668, %v3395
        %v3438 = vadd.f32 %v2669, %v3400
        %v3439 = vadd.f32 %v2670, %v3403
        %v3440 = vadd.f32 %v2671, %v3408
        %v3441 = vadd.f32 %v2672, %v3411
        %v3442 = vadd.f32 %v2673, %v3416
        %v3443 = vadd.f32 %v2674, %v3419
        %v3444 = vadd.f32 %v2675, %v3424
        %v3445 = vadd.f32 %v2676, %v3427
        %3446 = vrot.lane.b32.xlu0 %v1888, 64
        %v3447 = vpop.permute.xlu0 %3446
        %3448 = vrot.lane.b32.xlu0 %v1891, 64
        %v3449 = vpop.permute.xlu0 %3448
        %3450 = vrot.lane.b32.xlu0 %v1894, 64
        %v3451 = vpop.permute.xlu0 %3450
        %3452 = vrot.lane.b32.xlu0 %v1897, 64
        %v3453 = vpop.permute.xlu0 %3452
        %3454 = vrot.lane.b32.xlu0 %v1889, 64
        %v3455 = vpop.permute.xlu0 %3454
        %3456 = vrot.lane.b32.xlu0 %v1892, 64
        %v3457 = vpop.permute.xlu0 %3456
        %3458 = vrot.lane.b32.xlu0 %v1895, 64
        %v3459 = vpop.permute.xlu0 %3458
        %3460 = vrot.lane.b32.xlu0 %v1898, 64
        %v3461 = vpop.permute.xlu0 %3460
        %v3463 = vsel %vm1970, %v3447, 0
        %v3466 = vsel %vm1970, %v3449, 0
        %v3469 = vsel %vm1970, %v3451, 0
        %v3472 = vsel %vm1970, %v3453, 0
        %v3475 = vsel %vm1970, %v3455, 0
        %v3478 = vsel %vm1970, %v3457, 0
        %v3481 = vsel %vm1970, %v3459, 0
        %v3484 = vsel %vm1970, %v3461, 0
        %3486 = vmatprep.subr.bf16.mxu0 0
        %3487 = vmatpush1.bf16.xpose.msra.mxu0 %v3475
        %3488 = vmatprep.subr.bf16.mxu0 0
        %3489 = vmatpush1.bf16.xpose.msra.mxu0 %v3478
        %3490 = vmatprep.subr.bf16.mxu0 0
        %3491 = vmatpush1.bf16.xpose.msra.mxu0 %v3481
        %3492 = vmatprep.subr.bf16.mxu0 0
        %3493 = vmatpush1.bf16.xpose.msra.mxu0 %v3484
        %3494 = vmatprep.subr.bf16.mxu0 0
        %3495 = vmatpush1.bf16.xpose.msra.mxu0 0
        %3496 = vmatprep.subr.bf16.mxu0 0
        %3497 = vmatpush1.bf16.xpose.msra.mxu0 0
        %3498 = vmatprep.subr.bf16.mxu0 0
        %3499 = vmatpush1.bf16.xpose.msra.mxu0 0
        %3500 = vmatprep.subr.bf16.mxu0 0
        %3501 = vmatpush1.bf16.xpose.msra.mxu0 0
        %3502 = vmatprep.subr.bf16.mxu0 0
        %3503 = vmatpush1.bf16.xpose.msra.mxu0 0
        %3504 = vmatprep.subr.bf16.mxu0 0
        %3505 = vmatpush1.bf16.xpose.msra.mxu0 0
        %3506 = vmatprep.subr.bf16.mxu0 0
        %3507 = vmatpush1.bf16.xpose.msra.mxu0 0
        %3508 = vmatprep.subr.bf16.mxu0 0
        %3509 = vmatpush1.bf16.xpose.msra.mxu0 0
        %3510 = vmatprep.subr.bf16.mxu0 0
        %3511 = vmatpush1.bf16.xpose.msra.mxu0 0
        %3512 = vmatprep.subr.bf16.mxu0 0
        %3513 = vmatpush1.bf16.xpose.msra.mxu0 0
        %3514 = vmatprep.subr.bf16.mxu0 0
        %3515 = vmatpush1.bf16.xpose.msra.mxu0 0
        %3516 = vmatprep.subr.bf16.mxu0 0
        %3517 = vmatpush1.bf16.xpose.msra.mxu0 0
        %3518 = vmatprep.mubr.bf16.mxu0 0
        %3519 = vmatmul.mubr.bf16.gmra.mrb[0].mxu0 %v3463
        %v3520 = vpop.f32.mrb[0].mxu0
        %v3521 = vadd.f32 0.0, %v3520
        %v3522 = vpop.f32.mrb[0].mxu0
        %v3523 = vpop.f32.mrb[0].mxu0
        %v3524 = vadd.f32 0.0, %v3523
        %v3525 = vpop.f32.mrb[0].mxu0
        %3526 = vmatprep.mubr.bf16.mxu0 0
        %3527 = vmatmul.mubr.bf16.gmra.mrb[0].mxu0 %v3466
        %v3528 = vpop.f32.mrb[0].mxu0
        %v3529 = vadd.f32 0.0, %v3528
        %v3530 = vpop.f32.mrb[0].mxu0
        %v3531 = vpop.f32.mrb[0].mxu0
        %v3532 = vadd.f32 0.0, %v3531
        %v3533 = vpop.f32.mrb[0].mxu0
        %3534 = vmatprep.mubr.bf16.mxu0 0
        %3535 = vmatmul.mubr.bf16.gmra.mrb[0].mxu0 %v3469
        %v3536 = vpop.f32.mrb[0].mxu0
        %v3537 = vadd.f32 0.0, %v3536
        %v3538 = vpop.f32.mrb[0].mxu0
        %v3539 = vpop.f32.mrb[0].mxu0
        %v3540 = vadd.f32 0.0, %v3539
        %v3541 = vpop.f32.mrb[0].mxu0
        %3542 = vmatprep.mubr.bf16.mxu0 0
        %3543 = vmatmul.mubr.bf16.gmra.mrb[0].mxu0 %v3472
        %v3544 = vpop.f32.mrb[0].mxu0
        %v3545 = vadd.f32 0.0, %v3544
        %v3546 = vpop.f32.mrb[0].mxu0
        %v3547 = vpop.f32.mrb[0].mxu0
        %v3548 = vadd.f32 0.0, %v3547
        %v3549 = vpop.f32.mrb[0].mxu0
        %3550 = vdwg.mxu0
        %3551 = vrot.lane.b32.xlu0 %v1900, 64
        %v3552 = vpop.permute.xlu0 %3551
        %3553 = vrot.lane.b32.xlu0 %v1903, 64
        %v3554 = vpop.permute.xlu0 %3553
        %3555 = vrot.lane.b32.xlu0 %v1906, 64
        %v3556 = vpop.permute.xlu0 %3555
        %3557 = vrot.lane.b32.xlu0 %v1909, 64
        %v3558 = vpop.permute.xlu0 %3557
        %3559 = vrot.lane.b32.xlu0 %v1901, 64
        %v3560 = vpop.permute.xlu0 %3559
        %3561 = vrot.lane.b32.xlu0 %v1904, 64
        %v3562 = vpop.permute.xlu0 %3561
        %3563 = vrot.lane.b32.xlu0 %v1907, 64
        %v3564 = vpop.permute.xlu0 %3563
        %3565 = vrot.lane.b32.xlu0 %v1910, 64
        %v3566 = vpop.permute.xlu0 %3565
        %v3568 = vsel %vm1970, %v3552, 0
        %v3571 = vsel %vm1970, %v3554, 0
        %v3574 = vsel %vm1970, %v3556, 0
        %v3577 = vsel %vm1970, %v3558, 0
        %v3580 = vsel %vm1970, %v3560, 0
        %v3583 = vsel %vm1970, %v3562, 0
        %v3586 = vsel %vm1970, %v3564, 0
        %v3589 = vsel %vm1970, %v3566, 0
        %3591 = vmatprep.subr.bf16.mxu0 0
        %3592 = vmatpush1.bf16.xpose.msra.mxu0 %v3580
        %3593 = vmatprep.subr.bf16.mxu0 0
        %3594 = vmatpush1.bf16.xpose.msra.mxu0 %v3583
        %3595 = vmatprep.subr.bf16.mxu0 0
        %3596 = vmatpush1.bf16.xpose.msra.mxu0 %v3586
        %3597 = vmatprep.subr.bf16.mxu0 0
        %3598 = vmatpush1.bf16.xpose.msra.mxu0 %v3589
        %3599 = vmatprep.subr.bf16.mxu0 0
        %3600 = vmatpush1.bf16.xpose.msra.mxu0 0
        %3601 = vmatprep.subr.bf16.mxu0 0
        %3602 = vmatpush1.bf16.xpose.msra.mxu0 0
        %3603 = vmatprep.subr.bf16.mxu0 0
        %3604 = vmatpush1.bf16.xpose.msra.mxu0 0
        %3605 = vmatprep.subr.bf16.mxu0 0
        %3606 = vmatpush1.bf16.xpose.msra.mxu0 0
        %3607 = vmatprep.subr.bf16.mxu0 0
        %3608 = vmatpush1.bf16.xpose.msra.mxu0 0
        %3609 = vmatprep.subr.bf16.mxu0 0
        %3610 = vmatpush1.bf16.xpose.msra.mxu0 0
        %3611 = vmatprep.subr.bf16.mxu0 0
        %3612 = vmatpush1.bf16.xpose.msra.mxu0 0
        %3613 = vmatprep.subr.bf16.mxu0 0
        %3614 = vmatpush1.bf16.xpose.msra.mxu0 0
        %3615 = vmatprep.subr.bf16.mxu0 0
        %3616 = vmatpush1.bf16.xpose.msra.mxu0 0
        %3617 = vmatprep.subr.bf16.mxu0 0
        %3618 = vmatpush1.bf16.xpose.msra.mxu0 0
        %3619 = vmatprep.subr.bf16.mxu0 0
        %3620 = vmatpush1.bf16.xpose.msra.mxu0 0
        %3621 = vmatprep.subr.bf16.mxu0 0
        %3622 = vmatpush1.bf16.xpose.msra.mxu0 0
        %3623 = vmatprep.mubr.bf16.mxu0 0
        %3624 = vmatmul.mubr.bf16.gmra.mrb[0].mxu0 %v3568
        %v3625 = vpop.f32.mrb[0].mxu0
        %v3626 = vadd.f32 0.0, %v3625
        %v3627 = vpop.f32.mrb[0].mxu0
        %v3628 = vpop.f32.mrb[0].mxu0
        %v3629 = vadd.f32 0.0, %v3628
        %v3630 = vpop.f32.mrb[0].mxu0
        %3631 = vmatprep.mubr.bf16.mxu0 0
        %3632 = vmatmul.mubr.bf16.gmra.mrb[0].mxu0 %v3571
        %v3633 = vpop.f32.mrb[0].mxu0
        %v3634 = vadd.f32 0.0, %v3633
        %v3635 = vpop.f32.mrb[0].mxu0
        %v3636 = vpop.f32.mrb[0].mxu0
        %v3637 = vadd.f32 0.0, %v3636
        %v3638 = vpop.f32.mrb[0].mxu0
        %3639 = vmatprep.mubr.bf16.mxu0 0
        %3640 = vmatmul.mubr.bf16.gmra.mrb[0].mxu0 %v3574
        %v3641 = vpop.f32.mrb[0].mxu0
        %v3642 = vadd.f32 0.0, %v3641
        %v3643 = vpop.f32.mrb[0].mxu0
        %v3644 = vpop.f32.mrb[0].mxu0
        %v3645 = vadd.f32 0.0, %v3644
        %v3646 = vpop.f32.mrb[0].mxu0
        %3647 = vmatprep.mubr.bf16.mxu0 0
        %3648 = vmatmul.mubr.bf16.gmra.mrb[0].mxu0 %v3577
        %v3649 = vpop.f32.mrb[0].mxu0
        %v3650 = vadd.f32 0.0, %v3649
        %v3651 = vpop.f32.mrb[0].mxu0
        %v3652 = vpop.f32.mrb[0].mxu0
        %v3653 = vadd.f32 0.0, %v3652
        %v3654 = vpop.f32.mrb[0].mxu0
        %3655 = vdwg.mxu0
        %v3656 = vsel %vm2157, %v3521, -1e+30
        %v3657 = vsel %vm2158, %v3524, -1e+30
        %v3658 = vsel %vm2159, %v3529, -1e+30
        %v3659 = vsel %vm2160, %v3532, -1e+30
        %v3660 = vsel %vm2161, %v3537, -1e+30
        %v3661 = vsel %vm2162, %v3540, -1e+30
        %v3662 = vsel %vm2163, %v3545, -1e+30
        %v3663 = vsel %vm2164, %v3548, -1e+30
        %v3664 = vsel %vm2157, %v3626, -1e+30
        %v3665 = vsel %vm2158, %v3629, -1e+30
        %v3666 = vsel %vm2159, %v3634, -1e+30
        %v3667 = vsel %vm2160, %v3637, -1e+30
        %v3668 = vsel %vm2161, %v3642, -1e+30
        %v3669 = vsel %vm2162, %v3645, -1e+30
        %v3670 = vsel %vm2163, %v3650, -1e+30
        %v3671 = vsel %vm2164, %v3653, -1e+30
        %v3672 = vsel %vm2181, %v3656, -inf
        %3673 = vmax.xlane.f32.xlu0 %v3672
        %v3674 = vpop.xlane.xlu0 %3673
        %v3675 = vsel %vm2181, %v3657, -inf
        %3676 = vmax.xlane.f32.xlu0 %v3675
        %v3677 = vpop.xlane.xlu0 %3676
        %v3678 = vsel %vm2181, %v3658, -inf
        %3679 = vmax.xlane.f32.xlu0 %v3678
        %v3680 = vpop.xlane.xlu0 %3679
        %v3681 = vsel %vm2181, %v3659, -inf
        %3682 = vmax.xlane.f32.xlu0 %v3681
        %v3683 = vpop.xlane.xlu0 %3682
        %v3684 = vsel %vm2181, %v3660, -inf
        %3685 = vmax.xlane.f32.xlu0 %v3684
        %v3686 = vpop.xlane.xlu0 %3685
        %v3687 = vsel %vm2181, %v3661, -inf
        %3688 = vmax.xlane.f32.xlu0 %v3687
        %v3689 = vpop.xlane.xlu0 %3688
        %v3690 = vsel %vm2181, %v3662, -inf
        %3691 = vmax.xlane.f32.xlu0 %v3690
        %v3692 = vpop.xlane.xlu0 %3691
        %v3693 = vsel %vm2181, %v3663, -inf
        %3694 = vmax.xlane.f32.xlu0 %v3693
        %v3695 = vpop.xlane.xlu0 %3694
        %v3696 = vsel %vm2181, %v3664, -inf
        %3697 = vmax.xlane.f32.xlu0 %v3696
        %v3698 = vpop.xlane.xlu0 %3697
        %v3699 = vsel %vm2181, %v3665, -inf
        %3700 = vmax.xlane.f32.xlu0 %v3699
        %v3701 = vpop.xlane.xlu0 %3700
        %v3702 = vsel %vm2181, %v3666, -inf
        %3703 = vmax.xlane.f32.xlu0 %v3702
        %v3704 = vpop.xlane.xlu0 %3703
        %v3705 = vsel %vm2181, %v3667, -inf
        %3706 = vmax.xlane.f32.xlu0 %v3705
        %v3707 = vpop.xlane.xlu0 %3706
        %v3708 = vsel %vm2181, %v3668, -inf
        %3709 = vmax.xlane.f32.xlu0 %v3708
        %v3710 = vpop.xlane.xlu0 %3709
        %v3711 = vsel %vm2181, %v3669, -inf
        %3712 = vmax.xlane.f32.xlu0 %v3711
        %v3713 = vpop.xlane.xlu0 %3712
        %v3714 = vsel %vm2181, %v3670, -inf
        %3715 = vmax.xlane.f32.xlu0 %v3714
        %v3716 = vpop.xlane.xlu0 %3715
        %v3717 = vsel %vm2181, %v3671, -inf
        %3718 = vmax.xlane.f32.xlu0 %v3717
        %v3719 = vpop.xlane.xlu0 %3718
        %v3720 = vsub.f32 %v3656, %v3674
        %v3721 = vsub.f32 %v3657, %v3677
        %v3722 = vsub.f32 %v3658, %v3680
        %v3723 = vsub.f32 %v3659, %v3683
        %v3724 = vsub.f32 %v3660, %v3686
        %v3725 = vsub.f32 %v3661, %v3689
        %v3726 = vsub.f32 %v3662, %v3692
        %v3727 = vsub.f32 %v3663, %v3695
        %v3728 = vsub.f32 %v3664, %v3698
        %v3729 = vsub.f32 %v3665, %v3701
        %v3730 = vsub.f32 %v3666, %v3704
        %v3731 = vsub.f32 %v3667, %v3707
        %v3732 = vsub.f32 %v3668, %v3710
        %v3733 = vsub.f32 %v3669, %v3713
        %v3734 = vsub.f32 %v3670, %v3716
        %v3735 = vsub.f32 %v3671, %v3719
        %v3736 = vmul.f32 %v3720, 1.442695
        %v3737 = vpow.pop %v3736
        %v3738 = vmul.f32 %v3721, 1.442695
        %v3739 = vpow.pop %v3738
        %v3740 = vmul.f32 %v3722, 1.442695
        %v3741 = vpow.pop %v3740
        %v3742 = vmul.f32 %v3723, 1.442695
        %v3743 = vpow.pop %v3742
        %v3744 = vmul.f32 %v3724, 1.442695
        %v3745 = vpow.pop %v3744
        %v3746 = vmul.f32 %v3725, 1.442695
        %v3747 = vpow.pop %v3746
        %v3748 = vmul.f32 %v3726, 1.442695
        %v3749 = vpow.pop %v3748
        %v3750 = vmul.f32 %v3727, 1.442695
        %v3751 = vpow.pop %v3750
        %v3752 = vmul.f32 %v3728, 1.442695
        %v3753 = vpow.pop %v3752
        %v3754 = vmul.f32 %v3729, 1.442695
        %v3755 = vpow.pop %v3754
        %v3756 = vmul.f32 %v3730, 1.442695
        %v3757 = vpow.pop %v3756
        %v3758 = vmul.f32 %v3731, 1.442695
        %v3759 = vpow.pop %v3758
        %v3760 = vmul.f32 %v3732, 1.442695
        %v3761 = vpow.pop %v3760
        %v3762 = vmul.f32 %v3733, 1.442695
        %v3763 = vpow.pop %v3762
        %v3764 = vmul.f32 %v3734, 1.442695
        %v3765 = vpow.pop %v3764
        %v3766 = vmul.f32 %v3735, 1.442695
        %v3767 = vpow.pop %v3766
        %v3768 = vsel %vm2181, %v3737, 0.0
        %3769 = vadd.xlane.f32.xlu0 %v3768
        %v3770 = vpop.xlane.xlu0 %3769
        %v3771 = vsel %vm2181, %v3739, 0.0
        %3772 = vadd.xlane.f32.xlu0 %v3771
        %v3773 = vpop.xlane.xlu0 %3772
        %v3774 = vsel %vm2181, %v3741, 0.0
        %3775 = vadd.xlane.f32.xlu0 %v3774
        %v3776 = vpop.xlane.xlu0 %3775
        %v3777 = vsel %vm2181, %v3743, 0.0
        %3778 = vadd.xlane.f32.xlu0 %v3777
        %v3779 = vpop.xlane.xlu0 %3778
        %v3780 = vsel %vm2181, %v3745, 0.0
        %3781 = vadd.xlane.f32.xlu0 %v3780
        %v3782 = vpop.xlane.xlu0 %3781
        %v3783 = vsel %vm2181, %v3747, 0.0
        %3784 = vadd.xlane.f32.xlu0 %v3783
        %v3785 = vpop.xlane.xlu0 %3784
        %v3786 = vsel %vm2181, %v3749, 0.0
        %3787 = vadd.xlane.f32.xlu0 %v3786
        %v3788 = vpop.xlane.xlu0 %3787
        %v3789 = vsel %vm2181, %v3751, 0.0
        %3790 = vadd.xlane.f32.xlu0 %v3789
        %v3791 = vpop.xlane.xlu0 %3790
        %v3792 = vsel %vm2181, %v3753, 0.0
        %3793 = vadd.xlane.f32.xlu0 %v3792
        %v3794 = vpop.xlane.xlu0 %3793
        %v3795 = vsel %vm2181, %v3755, 0.0
        %3796 = vadd.xlane.f32.xlu0 %v3795
        %v3797 = vpop.xlane.xlu0 %3796
        %v3798 = vsel %vm2181, %v3757, 0.0
        %3799 = vadd.xlane.f32.xlu0 %v3798
        %v3800 = vpop.xlane.xlu0 %3799
        %v3801 = vsel %vm2181, %v3759, 0.0
        %3802 = vadd.xlane.f32.xlu0 %v3801
        %v3803 = vpop.xlane.xlu0 %3802
        %v3804 = vsel %vm2181, %v3761, 0.0
        %3805 = vadd.xlane.f32.xlu0 %v3804
        %v3806 = vpop.xlane.xlu0 %3805
        %v3807 = vsel %vm2181, %v3763, 0.0
        %3808 = vadd.xlane.f32.xlu0 %v3807
        %v3809 = vpop.xlane.xlu0 %3808
        %v3810 = vsel %vm2181, %v3765, 0.0
        %3811 = vadd.xlane.f32.xlu0 %v3810
        %v3812 = vpop.xlane.xlu0 %3811
        %v3813 = vsel %vm2181, %v3767, 0.0
        %3814 = vadd.xlane.f32.xlu0 %v3813
        %v3815 = vpop.xlane.xlu0 %3814
        %v3816 = vpack.c.bf16 %v3739, %v3737
        %v3817 = vpack.c.bf16 %v3743, %v3741
        %v3818 = vpack.c.bf16 %v3747, %v3745
        %v3819 = vpack.c.bf16 %v3751, %v3749
        %v3820 = vpack.c.bf16 %v3755, %v3753
        %v3821 = vpack.c.bf16 %v3759, %v3757
        %v3822 = vpack.c.bf16 %v3763, %v3761
        %v3823 = vpack.c.bf16 %v3767, %v3765
        %3824 = vrot.lane.b32.xlu0 %v1890, 64
        %v3825 = vpop.permute.xlu0 %3824
        %3826 = vrot.lane.b32.xlu0 %v1893, 64
        %v3827 = vpop.permute.xlu0 %3826
        %3828 = vrot.lane.b32.xlu0 %v1896, 64
        %v3829 = vpop.permute.xlu0 %3828
        %3830 = vrot.lane.b32.xlu0 %v1899, 64
        %v3831 = vpop.permute.xlu0 %3830
        %v3837 = vsel %vm2181, %v3816, 0
        %v3840 = vsel %vm2181, %v3817, 0
        %v3843 = vsel %vm2181, %v3818, 0
        %v3846 = vsel %vm2181, %v3819, 0
        %3848 = vmatprep.subr.bf16.mxu0 0
        %3849 = vmatpush1.bf16.msra.mxu0 %v3825
        %3850 = vmatprep.subr.bf16.mxu0 0
        %3851 = vmatpush1.bf16.msra.mxu0 %v3827
        %3852 = vmatprep.subr.bf16.mxu0 0
        %3853 = vmatpush1.bf16.msra.mxu0 %v3829
        %3854 = vmatprep.subr.bf16.mxu0 0
        %3855 = vmatpush1.bf16.msra.mxu0 %v3831
        %3856 = vmatprep.subr.bf16.mxu0 0
        %3857 = vmatpush1.bf16.msra.mxu0 0
        %3858 = vmatprep.subr.bf16.mxu0 0
        %3859 = vmatpush1.bf16.msra.mxu0 0
        %3860 = vmatprep.subr.bf16.mxu0 0
        %3861 = vmatpush1.bf16.msra.mxu0 0
        %3862 = vmatprep.subr.bf16.mxu0 0
        %3863 = vmatpush1.bf16.msra.mxu0 0
        %3864 = vmatprep.subr.bf16.mxu0 0
        %3865 = vmatpush1.bf16.msra.mxu0 0
        %3866 = vmatprep.subr.bf16.mxu0 0
        %3867 = vmatpush1.bf16.msra.mxu0 0
        %3868 = vmatprep.subr.bf16.mxu0 0
        %3869 = vmatpush1.bf16.msra.mxu0 0
        %3870 = vmatprep.subr.bf16.mxu0 0
        %3871 = vmatpush1.bf16.msra.mxu0 0
        %3872 = vmatprep.subr.bf16.mxu0 0
        %3873 = vmatpush1.bf16.msra.mxu0 0
        %3874 = vmatprep.subr.bf16.mxu0 0
        %3875 = vmatpush1.bf16.msra.mxu0 0
        %3876 = vmatprep.subr.bf16.mxu0 0
        %3877 = vmatpush1.bf16.msra.mxu0 0
        %3878 = vmatprep.subr.bf16.mxu0 0
        %3879 = vmatpush1.bf16.msra.mxu0 0
        %3880 = vmatprep.mubr.bf16.mxu0 0
        %3881 = vmatmul.mubr.bf16.gmra.mrb[0].mxu0 %v3837
        %v3882 = vpop.f32.mrb[0].mxu0
        %v3883 = vadd.f32 0.0, %v3882
        %v3884 = vpop.f32.mrb[0].mxu0
        %v3885 = vpop.f32.mrb[0].mxu0
        %v3886 = vadd.f32 0.0, %v3885
        %v3887 = vpop.f32.mrb[0].mxu0
        %3888 = vmatprep.mubr.bf16.mxu0 0
        %3889 = vmatmul.mubr.bf16.gmra.mrb[0].mxu0 %v3840
        %v3890 = vpop.f32.mrb[0].mxu0
        %v3891 = vadd.f32 0.0, %v3890
        %v3892 = vpop.f32.mrb[0].mxu0
        %v3893 = vpop.f32.mrb[0].mxu0
        %v3894 = vadd.f32 0.0, %v3893
        %v3895 = vpop.f32.mrb[0].mxu0
        %3896 = vmatprep.mubr.bf16.mxu0 0
        %3897 = vmatmul.mubr.bf16.gmra.mrb[0].mxu0 %v3843
        %v3898 = vpop.f32.mrb[0].mxu0
        %v3899 = vadd.f32 0.0, %v3898
        %v3900 = vpop.f32.mrb[0].mxu0
        %v3901 = vpop.f32.mrb[0].mxu0
        %v3902 = vadd.f32 0.0, %v3901
        %v3903 = vpop.f32.mrb[0].mxu0
        %3904 = vmatprep.mubr.bf16.mxu0 0
        %3905 = vmatmul.mubr.bf16.gmra.mrb[0].mxu0 %v3846
        %v3906 = vpop.f32.mrb[0].mxu0
        %v3907 = vadd.f32 0.0, %v3906
        %v3908 = vpop.f32.mrb[0].mxu0
        %v3909 = vpop.f32.mrb[0].mxu0
        %v3910 = vadd.f32 0.0, %v3909
        %v3911 = vpop.f32.mrb[0].mxu0
        %3912 = vdwg.mxu0
        %3913 = vrot.lane.b32.xlu0 %v1902, 64
        %v3914 = vpop.permute.xlu0 %3913
        %3915 = vrot.lane.b32.xlu0 %v1905, 64
        %v3916 = vpop.permute.xlu0 %3915
        %3917 = vrot.lane.b32.xlu0 %v1908, 64
        %v3918 = vpop.permute.xlu0 %3917
        %3919 = vrot.lane.b32.xlu0 %v1911, 64
        %v3920 = vpop.permute.xlu0 %3919
        %v3926 = vsel %vm2181, %v3820, 0
        %v3929 = vsel %vm2181, %v3821, 0
        %v3932 = vsel %vm2181, %v3822, 0
        %v3935 = vsel %vm2181, %v3823, 0
        %3937 = vmatprep.subr.bf16.mxu0 0
        %3938 = vmatpush1.bf16.msra.mxu0 %v3914
        %3939 = vmatprep.subr.bf16.mxu0 0
        %3940 = vmatpush1.bf16.msra.mxu0 %v3916
        %3941 = vmatprep.subr.bf16.mxu0 0
        %3942 = vmatpush1.bf16.msra.mxu0 %v3918
        %3943 = vmatprep.subr.bf16.mxu0 0
        %3944 = vmatpush1.bf16.msra.mxu0 %v3920
        %3945 = vmatprep.subr.bf16.mxu0 0
        %3946 = vmatpush1.bf16.msra.mxu0 0
        %3947 = vmatprep.subr.bf16.mxu0 0
        %3948 = vmatpush1.bf16.msra.mxu0 0
        %3949 = vmatprep.subr.bf16.mxu0 0
        %3950 = vmatpush1.bf16.msra.mxu0 0
        %3951 = vmatprep.subr.bf16.mxu0 0
        %3952 = vmatpush1.bf16.msra.mxu0 0
        %3953 = vmatprep.subr.bf16.mxu0 0
        %3954 = vmatpush1.bf16.msra.mxu0 0
        %3955 = vmatprep.subr.bf16.mxu0 0
        %3956 = vmatpush1.bf16.msra.mxu0 0
        %3957 = vmatprep.subr.bf16.mxu0 0
        %3958 = vmatpush1.bf16.msra.mxu0 0
        %3959 = vmatprep.subr.bf16.mxu0 0
        %3960 = vmatpush1.bf16.msra.mxu0 0
        %3961 = vmatprep.subr.bf16.mxu0 0
        %3962 = vmatpush1.bf16.msra.mxu0 0
        %3963 = vmatprep.subr.bf16.mxu0 0
        %3964 = vmatpush1.bf16.msra.mxu0 0
        %3965 = vmatprep.subr.bf16.mxu0 0
        %3966 = vmatpush1.bf16.msra.mxu0 0
        %3967 = vmatprep.subr.bf16.mxu0 0
        %3968 = vmatpush1.bf16.msra.mxu0 0
        %3969 = vmatprep.mubr.bf16.mxu0 0
        %3970 = vmatmul.mubr.bf16.gmra.mrb[0].mxu0 %v3926
        %v3971 = vpop.f32.mrb[0].mxu0
        %v3972 = vadd.f32 0.0, %v3971
        %v3973 = vpop.f32.mrb[0].mxu0
        %v3974 = vpop.f32.mrb[0].mxu0
        %v3975 = vadd.f32 0.0, %v3974
        %v3976 = vpop.f32.mrb[0].mxu0
        %3977 = vmatprep.mubr.bf16.mxu0 0
        %3978 = vmatmul.mubr.bf16.gmra.mrb[0].mxu0 %v3929
        %v3979 = vpop.f32.mrb[0].mxu0
        %v3980 = vadd.f32 0.0, %v3979
        %v3981 = vpop.f32.mrb[0].mxu0
        %v3982 = vpop.f32.mrb[0].mxu0
        %v3983 = vadd.f32 0.0, %v3982
        %v3984 = vpop.f32.mrb[0].mxu0
        %3985 = vmatprep.mubr.bf16.mxu0 0
        %3986 = vmatmul.mubr.bf16.gmra.mrb[0].mxu0 %v3932
        %v3987 = vpop.f32.mrb[0].mxu0
        %v3988 = vadd.f32 0.0, %v3987
        %v3989 = vpop.f32.mrb[0].mxu0
        %v3990 = vpop.f32.mrb[0].mxu0
        %v3991 = vadd.f32 0.0, %v3990
        %v3992 = vpop.f32.mrb[0].mxu0
        %3993 = vmatprep.mubr.bf16.mxu0 0
        %3994 = vmatmul.mubr.bf16.gmra.mrb[0].mxu0 %v3935
        %v3995 = vpop.f32.mrb[0].mxu0
        %v3996 = vadd.f32 0.0, %v3995
        %v3997 = vpop.f32.mrb[0].mxu0
        %v3998 = vpop.f32.mrb[0].mxu0
        %v3999 = vadd.f32 0.0, %v3998
        %v4000 = vpop.f32.mrb[0].mxu0
        %4001 = vdwg.mxu0
        %v4002 = vrcp.pop %v3770
        %v4003 = vrcp.pop %v3773
        %v4004 = vrcp.pop %v3776
        %v4005 = vrcp.pop %v3779
        %v4006 = vrcp.pop %v3782
        %v4007 = vrcp.pop %v3785
        %v4008 = vrcp.pop %v3788
        %v4009 = vrcp.pop %v3791
        %v4010 = vrcp.pop %v3794
        %v4011 = vrcp.pop %v3797
        %v4012 = vrcp.pop %v3800
        %v4013 = vrcp.pop %v3803
        %v4014 = vrcp.pop %v3806
        %v4015 = vrcp.pop %v3809
        %v4016 = vrcp.pop %v3812
        %v4017 = vrcp.pop %v3815
        %v4018 = vmul.f32 %v3883, %v4002
        %v4019 = vmul.f32 %v3886, %v4003
        %v4020 = vmul.f32 %v3891, %v4004
        %v4021 = vmul.f32 %v3894, %v4005
        %v4022 = vmul.f32 %v3899, %v4006
        %v4023 = vmul.f32 %v3902, %v4007
        %v4024 = vmul.f32 %v3907, %v4008
        %v4025 = vmul.f32 %v3910, %v4009
        %v4026 = vmul.f32 %v3972, %v4010
        %v4027 = vmul.f32 %v3975, %v4011
        %v4028 = vmul.f32 %v3980, %v4012
        %v4029 = vmul.f32 %v3983, %v4013
        %v4030 = vmul.f32 %v3988, %v4014
        %v4031 = vmul.f32 %v3991, %v4015
        %v4032 = vmul.f32 %v3996, %v4016
        %v4033 = vmul.f32 %v3999, %v4017
        %v4034 = vpack.c.bf16 %v4019, %v4018
        %v4035 = vpack.c.bf16 %v4021, %v4020
        %v4036 = vpack.c.bf16 %v4023, %v4022
        %v4037 = vpack.c.bf16 %v4025, %v4024
        %v4038 = vpack.c.bf16 %v4027, %v4026
        %v4039 = vpack.c.bf16 %v4029, %v4028
        %v4040 = vpack.c.bf16 %v4031, %v4030
        %v4041 = vpack.c.bf16 %v4033, %v4032
        %v4046 = vunpack.c.l.b16 %v1939
        %v4047 = vunpack.c.l.b16 %v1940
        %v4048 = vunpack.c.l.b16 %v1941
        %v4049 = vunpack.c.l.b16 %v1942
        %v4050 = vpack.c.b16 %v4047, %v4046
        %v4051 = vpack.c.b16 %v4049, %v4048
        %v4055 = vsel %vm1970, %v4034, 0
        %v4058 = vsel %vm1970, %v4035, 0
        %v4061 = vsel %vm1970, %v4036, 0
        %v4064 = vsel %vm1970, %v4037, 0
        %v4067 = vsel %vm1970, %v4038, 0
        %v4070 = vsel %vm1970, %v4039, 0
        %v4073 = vsel %vm1970, %v4040, 0
        %v4076 = vsel %vm1970, %v4041, 0
        %4078 = vmatprep.subr.bf16.mxu0 0
        %4079 = vmatpush1.bf16.msra.mxu0 %v4050
        %4080 = vmatprep.subr.bf16.mxu0 0
        %4081 = vmatpush1.bf16.msra.mxu0 %v4051
        %4082 = vmatprep.subr.bf16.mxu0 0
        %4083 = vmatpush1.bf16.msra.mxu0 0
        %4084 = vmatprep.subr.bf16.mxu0 0
        %4085 = vmatpush1.bf16.msra.mxu0 0
        %4086 = vmatprep.subr.bf16.mxu0 0
        %4087 = vmatpush1.bf16.msra.mxu0 0
        %4088 = vmatprep.subr.bf16.mxu0 0
        %4089 = vmatpush1.bf16.msra.mxu0 0
        %4090 = vmatprep.subr.bf16.mxu0 0
        %4091 = vmatpush1.bf16.msra.mxu0 0
        %4092 = vmatprep.subr.bf16.mxu0 0
        %4093 = vmatpush1.bf16.msra.mxu0 0
        %4094 = vmatprep.subr.bf16.mxu0 0
        %4095 = vmatpush1.bf16.msra.mxu0 0
        %4096 = vmatprep.subr.bf16.mxu0 0
        %4097 = vmatpush1.bf16.msra.mxu0 0
        %4098 = vmatprep.subr.bf16.mxu0 0
        %4099 = vmatpush1.bf16.msra.mxu0 0
        %4100 = vmatprep.subr.bf16.mxu0 0
        %4101 = vmatpush1.bf16.msra.mxu0 0
        %4102 = vmatprep.subr.bf16.mxu0 0
        %4103 = vmatpush1.bf16.msra.mxu0 0
        %4104 = vmatprep.subr.bf16.mxu0 0
        %4105 = vmatpush1.bf16.msra.mxu0 0
        %4106 = vmatprep.subr.bf16.mxu0 0
        %4107 = vmatpush1.bf16.msra.mxu0 0
        %4108 = vmatprep.subr.bf16.mxu0 0
        %4109 = vmatpush1.bf16.msra.mxu0 0
        %4110 = vmatprep.mubr.bf16.mxu0 0
        %4111 = vmatmul.mubr.bf16.gmra.mrb[0].mxu0 %v4055
        %v4112 = vpop.f32.mrb[0].mxu0
        %v4113 = vadd.f32 0.0, %v4112
        %v4114 = vpop.f32.mrb[0].mxu0
        %v4115 = vpop.f32.mrb[0].mxu0
        %v4116 = vadd.f32 0.0, %v4115
        %v4117 = vpop.f32.mrb[0].mxu0
        %4118 = vmatprep.mubr.bf16.mxu0 0
        %4119 = vmatmul.mubr.bf16.gmra.mrb[0].mxu0 %v4058
        %v4120 = vpop.f32.mrb[0].mxu0
        %v4121 = vadd.f32 0.0, %v4120
        %v4122 = vpop.f32.mrb[0].mxu0
        %v4123 = vpop.f32.mrb[0].mxu0
        %v4124 = vadd.f32 0.0, %v4123
        %v4125 = vpop.f32.mrb[0].mxu0
        %4126 = vmatprep.mubr.bf16.mxu0 0
        %4127 = vmatmul.mubr.bf16.gmra.mrb[0].mxu0 %v4061
        %v4128 = vpop.f32.mrb[0].mxu0
        %v4129 = vadd.f32 0.0, %v4128
        %v4130 = vpop.f32.mrb[0].mxu0
        %v4131 = vpop.f32.mrb[0].mxu0
        %v4132 = vadd.f32 0.0, %v4131
        %v4133 = vpop.f32.mrb[0].mxu0
        %4134 = vmatprep.mubr.bf16.mxu0 0
        %4135 = vmatmul.mubr.bf16.gmra.mrb[0].mxu0 %v4064
        %v4136 = vpop.f32.mrb[0].mxu0
        %v4137 = vadd.f32 0.0, %v4136
        %v4138 = vpop.f32.mrb[0].mxu0
        %v4139 = vpop.f32.mrb[0].mxu0
        %v4140 = vadd.f32 0.0, %v4139
        %v4141 = vpop.f32.mrb[0].mxu0
        %4142 = vmatprep.mubr.bf16.mxu0 0
        %4143 = vmatmul.mubr.bf16.gmra.mrb[0].mxu0 %v4067
        %v4144 = vpop.f32.mrb[0].mxu0
        %v4145 = vadd.f32 0.0, %v4144
        %v4146 = vpop.f32.mrb[0].mxu0
        %v4147 = vpop.f32.mrb[0].mxu0
        %v4148 = vadd.f32 0.0, %v4147
        %v4149 = vpop.f32.mrb[0].mxu0
        %4150 = vmatprep.mubr.bf16.mxu0 0
        %4151 = vmatmul.mubr.bf16.gmra.mrb[0].mxu0 %v4070
        %v4152 = vpop.f32.mrb[0].mxu0
        %v4153 = vadd.f32 0.0, %v4152
        %v4154 = vpop.f32.mrb[0].mxu0
        %v4155 = vpop.f32.mrb[0].mxu0
        %v4156 = vadd.f32 0.0, %v4155
        %v4157 = vpop.f32.mrb[0].mxu0
        %4158 = vmatprep.mubr.bf16.mxu0 0
        %4159 = vmatmul.mubr.bf16.gmra.mrb[0].mxu0 %v4073
        %v4160 = vpop.f32.mrb[0].mxu0
        %v4161 = vadd.f32 0.0, %v4160
        %v4162 = vpop.f32.mrb[0].mxu0
        %v4163 = vpop.f32.mrb[0].mxu0
        %v4164 = vadd.f32 0.0, %v4163
        %v4165 = vpop.f32.mrb[0].mxu0
        %4166 = vmatprep.mubr.bf16.mxu0 0
        %4167 = vmatmul.mubr.bf16.gmra.mrb[0].mxu0 %v4076
        %v4168 = vpop.f32.mrb[0].mxu0
        %v4169 = vadd.f32 0.0, %v4168
        %v4170 = vpop.f32.mrb[0].mxu0
        %v4171 = vpop.f32.mrb[0].mxu0
        %v4172 = vadd.f32 0.0, %v4171
        %v4173 = vpop.f32.mrb[0].mxu0
        %4174 = vdwg.mxu0
        %v4175 = vadd.f32 %v3430, %v4113
        %v4176 = vadd.f32 %v3431, %v4116
        %v4177 = vadd.f32 %v3432, %v4121
        %v4178 = vadd.f32 %v3433, %v4124
        %v4179 = vadd.f32 %v3434, %v4129
        %v4180 = vadd.f32 %v3435, %v4132
        %v4181 = vadd.f32 %v3436, %v4137
        %v4182 = vadd.f32 %v3437, %v4140
        %v4183 = vadd.f32 %v3438, %v4145
        %v4184 = vadd.f32 %v3439, %v4148
        %v4185 = vadd.f32 %v3440, %v4153
        %v4186 = vadd.f32 %v3441, %v4156
        %v4187 = vadd.f32 %v3442, %v4161
        %v4188 = vadd.f32 %v3443, %v4164
        %v4189 = vadd.f32 %v3444, %v4169
        %v4190 = vadd.f32 %v3445, %v4172
        %4191 = vrot.lane.b32.xlu0 %v1888, 32
        %v4192 = vpop.permute.xlu0 %4191
        %4193 = vrot.lane.b32.xlu0 %v1891, 32
        %v4194 = vpop.permute.xlu0 %4193
        %4195 = vrot.lane.b32.xlu0 %v1894, 32
        %v4196 = vpop.permute.xlu0 %4195
        %4197 = vrot.lane.b32.xlu0 %v1897, 32
        %v4198 = vpop.permute.xlu0 %4197
        %4199 = vrot.lane.b32.xlu0 %v1889, 32
        %v4200 = vpop.permute.xlu0 %4199
        %4201 = vrot.lane.b32.xlu0 %v1892, 32
        %v4202 = vpop.permute.xlu0 %4201
        %4203 = vrot.lane.b32.xlu0 %v1895, 32
        %v4204 = vpop.permute.xlu0 %4203
        %4205 = vrot.lane.b32.xlu0 %v1898, 32
        %v4206 = vpop.permute.xlu0 %4205
        %v4208 = vsel %vm1970, %v4192, 0
        %v4211 = vsel %vm1970, %v4194, 0
        %v4214 = vsel %vm1970, %v4196, 0
        %v4217 = vsel %vm1970, %v4198, 0
        %v4220 = vsel %vm1970, %v4200, 0
        %v4223 = vsel %vm1970, %v4202, 0
        %v4226 = vsel %vm1970, %v4204, 0
        %v4229 = vsel %vm1970, %v4206, 0
        %4231 = vmatprep.subr.bf16.mxu0 0
        %4232 = vmatpush1.bf16.xpose.msra.mxu0 %v4220
        %4233 = vmatprep.subr.bf16.mxu0 0
        %4234 = vmatpush1.bf16.xpose.msra.mxu0 %v4223
        %4235 = vmatprep.subr.bf16.mxu0 0
        %4236 = vmatpush1.bf16.xpose.msra.mxu0 %v4226
        %4237 = vmatprep.subr.bf16.mxu0 0
        %4238 = vmatpush1.bf16.xpose.msra.mxu0 %v4229
        %4239 = vmatprep.subr.bf16.mxu0 0
        %4240 = vmatpush1.bf16.xpose.msra.mxu0 0
        %4241 = vmatprep.subr.bf16.mxu0 0
        %4242 = vmatpush1.bf16.xpose.msra.mxu0 0
        %4243 = vmatprep.subr.bf16.mxu0 0
        %4244 = vmatpush1.bf16.xpose.msra.mxu0 0
        %4245 = vmatprep.subr.bf16.mxu0 0
        %4246 = vmatpush1.bf16.xpose.msra.mxu0 0
        %4247 = vmatprep.subr.bf16.mxu0 0
        %4248 = vmatpush1.bf16.xpose.msra.mxu0 0
        %4249 = vmatprep.subr.bf16.mxu0 0
        %4250 = vmatpush1.bf16.xpose.msra.mxu0 0
        %4251 = vmatprep.subr.bf16.mxu0 0
        %4252 = vmatpush1.bf16.xpose.msra.mxu0 0
        %4253 = vmatprep.subr.bf16.mxu0 0
        %4254 = vmatpush1.bf16.xpose.msra.mxu0 0
        %4255 = vmatprep.subr.bf16.mxu0 0
        %4256 = vmatpush1.bf16.xpose.msra.mxu0 0
        %4257 = vmatprep.subr.bf16.mxu0 0
        %4258 = vmatpush1.bf16.xpose.msra.mxu0 0
        %4259 = vmatprep.subr.bf16.mxu0 0
        %4260 = vmatpush1.bf16.xpose.msra.mxu0 0
        %4261 = vmatprep.subr.bf16.mxu0 0
        %4262 = vmatpush1.bf16.xpose.msra.mxu0 0
        %4263 = vmatprep.mubr.bf16.mxu0 0
        %4264 = vmatmul.mubr.bf16.gmra.mrb[0].mxu0 %v4208
        %v4265 = vpop.f32.mrb[0].mxu0
        %v4266 = vadd.f32 0.0, %v4265
        %v4267 = vpop.f32.mrb[0].mxu0
        %v4268 = vpop.f32.mrb[0].mxu0
        %v4269 = vadd.f32 0.0, %v4268
        %v4270 = vpop.f32.mrb[0].mxu0
        %4271 = vmatprep.mubr.bf16.mxu0 0
        %4272 = vmatmul.mubr.bf16.gmra.mrb[0].mxu0 %v4211
        %v4273 = vpop.f32.mrb[0].mxu0
        %v4274 = vadd.f32 0.0, %v4273
        %v4275 = vpop.f32.mrb[0].mxu0
        %v4276 = vpop.f32.mrb[0].mxu0
        %v4277 = vadd.f32 0.0, %v4276
        %v4278 = vpop.f32.mrb[0].mxu0
        %4279 = vmatprep.mubr.bf16.mxu0 0
        %4280 = vmatmul.mubr.bf16.gmra.mrb[0].mxu0 %v4214
        %v4281 = vpop.f32.mrb[0].mxu0
        %v4282 = vadd.f32 0.0, %v4281
        %v4283 = vpop.f32.mrb[0].mxu0
        %v4284 = vpop.f32.mrb[0].mxu0
        %v4285 = vadd.f32 0.0, %v4284
        %v4286 = vpop.f32.mrb[0].mxu0
        %4287 = vmatprep.mubr.bf16.mxu0 0
        %4288 = vmatmul.mubr.bf16.gmra.mrb[0].mxu0 %v4217
        %v4289 = vpop.f32.mrb[0].mxu0
        %v4290 = vadd.f32 0.0, %v4289
        %v4291 = vpop.f32.mrb[0].mxu0
        %v4292 = vpop.f32.mrb[0].mxu0
        %v4293 = vadd.f32 0.0, %v4292
        %v4294 = vpop.f32.mrb[0].mxu0
        %4295 = vdwg.mxu0
        %4296 = vrot.lane.b32.xlu0 %v1900, 32
        %v4297 = vpop.permute.xlu0 %4296
        %4298 = vrot.lane.b32.xlu0 %v1903, 32
        %v4299 = vpop.permute.xlu0 %4298
        %4300 = vrot.lane.b32.xlu0 %v1906, 32
        %v4301 = vpop.permute.xlu0 %4300
        %4302 = vrot.lane.b32.xlu0 %v1909, 32
        %v4303 = vpop.permute.xlu0 %4302
        %4304 = vrot.lane.b32.xlu0 %v1901, 32
        %v4305 = vpop.permute.xlu0 %4304
        %4306 = vrot.lane.b32.xlu0 %v1904, 32
        %v4307 = vpop.permute.xlu0 %4306
        %4308 = vrot.lane.b32.xlu0 %v1907, 32
        %v4309 = vpop.permute.xlu0 %4308
        %4310 = vrot.lane.b32.xlu0 %v1910, 32
        %v4311 = vpop.permute.xlu0 %4310
        %v4313 = vsel %vm1970, %v4297, 0
        %v4316 = vsel %vm1970, %v4299, 0
        %v4319 = vsel %vm1970, %v4301, 0
        %v4322 = vsel %vm1970, %v4303, 0
        %v4325 = vsel %vm1970, %v4305, 0
        %v4328 = vsel %vm1970, %v4307, 0
        %v4331 = vsel %vm1970, %v4309, 0
        %v4334 = vsel %vm1970, %v4311, 0
        %4336 = vmatprep.subr.bf16.mxu0 0
        %4337 = vmatpush1.bf16.xpose.msra.mxu0 %v4325
        %4338 = vmatprep.subr.bf16.mxu0 0
        %4339 = vmatpush1.bf16.xpose.msra.mxu0 %v4328
        %4340 = vmatprep.subr.bf16.mxu0 0
        %4341 = vmatpush1.bf16.xpose.msra.mxu0 %v4331
        %4342 = vmatprep.subr.bf16.mxu0 0
        %4343 = vmatpush1.bf16.xpose.msra.mxu0 %v4334
        %4344 = vmatprep.subr.bf16.mxu0 0
        %4345 = vmatpush1.bf16.xpose.msra.mxu0 0
        %4346 = vmatprep.subr.bf16.mxu0 0
        %4347 = vmatpush1.bf16.xpose.msra.mxu0 0
        %4348 = vmatprep.subr.bf16.mxu0 0
        %4349 = vmatpush1.bf16.xpose.msra.mxu0 0
        %4350 = vmatprep.subr.bf16.mxu0 0
        %4351 = vmatpush1.bf16.xpose.msra.mxu0 0
        %4352 = vmatprep.subr.bf16.mxu0 0
        %4353 = vmatpush1.bf16.xpose.msra.mxu0 0
        %4354 = vmatprep.subr.bf16.mxu0 0
        %4355 = vmatpush1.bf16.xpose.msra.mxu0 0
        %4356 = vmatprep.subr.bf16.mxu0 0
        %4357 = vmatpush1.bf16.xpose.msra.mxu0 0
        %4358 = vmatprep.subr.bf16.mxu0 0
        %4359 = vmatpush1.bf16.xpose.msra.mxu0 0
        %4360 = vmatprep.subr.bf16.mxu0 0
        %4361 = vmatpush1.bf16.xpose.msra.mxu0 0
        %4362 = vmatprep.subr.bf16.mxu0 0
        %4363 = vmatpush1.bf16.xpose.msra.mxu0 0
        %4364 = vmatprep.subr.bf16.mxu0 0
        %4365 = vmatpush1.bf16.xpose.msra.mxu0 0
        %4366 = vmatprep.subr.bf16.mxu0 0
        %4367 = vmatpush1.bf16.xpose.msra.mxu0 0
        %4368 = vmatprep.mubr.bf16.mxu0 0
        %4369 = vmatmul.mubr.bf16.gmra.mrb[0].mxu0 %v4313
        %v4370 = vpop.f32.mrb[0].mxu0
        %v4371 = vadd.f32 0.0, %v4370
        %v4372 = vpop.f32.mrb[0].mxu0
        %v4373 = vpop.f32.mrb[0].mxu0
        %v4374 = vadd.f32 0.0, %v4373
        %v4375 = vpop.f32.mrb[0].mxu0
        %4376 = vmatprep.mubr.bf16.mxu0 0
        %4377 = vmatmul.mubr.bf16.gmra.mrb[0].mxu0 %v4316
        %v4378 = vpop.f32.mrb[0].mxu0
        %v4379 = vadd.f32 0.0, %v4378
        %v4380 = vpop.f32.mrb[0].mxu0
        %v4381 = vpop.f32.mrb[0].mxu0
        %v4382 = vadd.f32 0.0, %v4381
        %v4383 = vpop.f32.mrb[0].mxu0
        %4384 = vmatprep.mubr.bf16.mxu0 0
        %4385 = vmatmul.mubr.bf16.gmra.mrb[0].mxu0 %v4319
        %v4386 = vpop.f32.mrb[0].mxu0
        %v4387 = vadd.f32 0.0, %v4386
        %v4388 = vpop.f32.mrb[0].mxu0
        %v4389 = vpop.f32.mrb[0].mxu0
        %v4390 = vadd.f32 0.0, %v4389
        %v4391 = vpop.f32.mrb[0].mxu0
        %4392 = vmatprep.mubr.bf16.mxu0 0
        %4393 = vmatmul.mubr.bf16.gmra.mrb[0].mxu0 %v4322
        %v4394 = vpop.f32.mrb[0].mxu0
        %v4395 = vadd.f32 0.0, %v4394
        %v4396 = vpop.f32.mrb[0].mxu0
        %v4397 = vpop.f32.mrb[0].mxu0
        %v4398 = vadd.f32 0.0, %v4397
        %v4399 = vpop.f32.mrb[0].mxu0
        %4400 = vdwg.mxu0
        %v4401 = vsel %vm2157, %v4266, -1e+30
        %v4402 = vsel %vm2158, %v4269, -1e+30
        %v4403 = vsel %vm2159, %v4274, -1e+30
        %v4404 = vsel %vm2160, %v4277, -1e+30
        %v4405 = vsel %vm2161, %v4282, -1e+30
        %v4406 = vsel %vm2162, %v4285, -1e+30
        %v4407 = vsel %vm2163, %v4290, -1e+30
        %v4408 = vsel %vm2164, %v4293, -1e+30
        %v4409 = vsel %vm2157, %v4371, -1e+30
        %v4410 = vsel %vm2158, %v4374, -1e+30
        %v4411 = vsel %vm2159, %v4379, -1e+30
        %v4412 = vsel %vm2160, %v4382, -1e+30
        %v4413 = vsel %vm2161, %v4387, -1e+30
        %v4414 = vsel %vm2162, %v4390, -1e+30
        %v4415 = vsel %vm2163, %v4395, -1e+30
        %v4416 = vsel %vm2164, %v4398, -1e+30
        %v4417 = vsel %vm2181, %v4401, -inf
        %4418 = vmax.xlane.f32.xlu0 %v4417
        %v4419 = vpop.xlane.xlu0 %4418
        %v4420 = vsel %vm2181, %v4402, -inf
        %4421 = vmax.xlane.f32.xlu0 %v4420
        %v4422 = vpop.xlane.xlu0 %4421
        %v4423 = vsel %vm2181, %v4403, -inf
        %4424 = vmax.xlane.f32.xlu0 %v4423
        %v4425 = vpop.xlane.xlu0 %4424
        %v4426 = vsel %vm2181, %v4404, -inf
        %4427 = vmax.xlane.f32.xlu0 %v4426
        %v4428 = vpop.xlane.xlu0 %4427
        %v4429 = vsel %vm2181, %v4405, -inf
        %4430 = vmax.xlane.f32.xlu0 %v4429
        %v4431 = vpop.xlane.xlu0 %4430
        %v4432 = vsel %vm2181, %v4406, -inf
        %4433 = vmax.xlane.f32.xlu0 %v4432
        %v4434 = vpop.xlane.xlu0 %4433
        %v4435 = vsel %vm2181, %v4407, -inf
        %4436 = vmax.xlane.f32.xlu0 %v4435
        %v4437 = vpop.xlane.xlu0 %4436
        %v4438 = vsel %vm2181, %v4408, -inf
        %4439 = vmax.xlane.f32.xlu0 %v4438
        %v4440 = vpop.xlane.xlu0 %4439
        %v4441 = vsel %vm2181, %v4409, -inf
        %4442 = vmax.xlane.f32.xlu0 %v4441
        %v4443 = vpop.xlane.xlu0 %4442
        %v4444 = vsel %vm2181, %v4410, -inf
        %4445 = vmax.xlane.f32.xlu0 %v4444
        %v4446 = vpop.xlane.xlu0 %4445
        %v4447 = vsel %vm2181, %v4411, -inf
        %4448 = vmax.xlane.f32.xlu0 %v4447
        %v4449 = vpop.xlane.xlu0 %4448
        %v4450 = vsel %vm2181, %v4412, -inf
        %4451 = vmax.xlane.f32.xlu0 %v4450
        %v4452 = vpop.xlane.xlu0 %4451
        %v4453 = vsel %vm2181, %v4413, -inf
        %4454 = vmax.xlane.f32.xlu0 %v4453
        %v4455 = vpop.xlane.xlu0 %4454
        %v4456 = vsel %vm2181, %v4414, -inf
        %4457 = vmax.xlane.f32.xlu0 %v4456
        %v4458 = vpop.xlane.xlu0 %4457
        %v4459 = vsel %vm2181, %v4415, -inf
        %4460 = vmax.xlane.f32.xlu0 %v4459
        %v4461 = vpop.xlane.xlu0 %4460
        %v4462 = vsel %vm2181, %v4416, -inf
        %4463 = vmax.xlane.f32.xlu0 %v4462
        %v4464 = vpop.xlane.xlu0 %4463
        %v4465 = vsub.f32 %v4401, %v4419
        %v4466 = vsub.f32 %v4402, %v4422
        %v4467 = vsub.f32 %v4403, %v4425
        %v4468 = vsub.f32 %v4404, %v4428
        %v4469 = vsub.f32 %v4405, %v4431
        %v4470 = vsub.f32 %v4406, %v4434
        %v4471 = vsub.f32 %v4407, %v4437
        %v4472 = vsub.f32 %v4408, %v4440
        %v4473 = vsub.f32 %v4409, %v4443
        %v4474 = vsub.f32 %v4410, %v4446
        %v4475 = vsub.f32 %v4411, %v4449
        %v4476 = vsub.f32 %v4412, %v4452
        %v4477 = vsub.f32 %v4413, %v4455
        %v4478 = vsub.f32 %v4414, %v4458
        %v4479 = vsub.f32 %v4415, %v4461
        %v4480 = vsub.f32 %v4416, %v4464
        %v4481 = vmul.f32 %v4465, 1.442695
        %v4482 = vpow.pop %v4481
        %v4483 = vmul.f32 %v4466, 1.442695
        %v4484 = vpow.pop %v4483
        %v4485 = vmul.f32 %v4467, 1.442695
        %v4486 = vpow.pop %v4485
        %v4487 = vmul.f32 %v4468, 1.442695
        %v4488 = vpow.pop %v4487
        %v4489 = vmul.f32 %v4469, 1.442695
        %v4490 = vpow.pop %v4489
        %v4491 = vmul.f32 %v4470, 1.442695
        %v4492 = vpow.pop %v4491
        %v4493 = vmul.f32 %v4471, 1.442695
        %v4494 = vpow.pop %v4493
        %v4495 = vmul.f32 %v4472, 1.442695
        %v4496 = vpow.pop %v4495
        %v4497 = vmul.f32 %v4473, 1.442695
        %v4498 = vpow.pop %v4497
        %v4499 = vmul.f32 %v4474, 1.442695
        %v4500 = vpow.pop %v4499
        %v4501 = vmul.f32 %v4475, 1.442695
        %v4502 = vpow.pop %v4501
        %v4503 = vmul.f32 %v4476, 1.442695
        %v4504 = vpow.pop %v4503
        %v4505 = vmul.f32 %v4477, 1.442695
        %v4506 = vpow.pop %v4505
        %v4507 = vmul.f32 %v4478, 1.442695
        %v4508 = vpow.pop %v4507
        %v4509 = vmul.f32 %v4479, 1.442695
        %v4510 = vpow.pop %v4509
        %v4511 = vmul.f32 %v4480, 1.442695
        %v4512 = vpow.pop %v4511
        %v4513 = vsel %vm2181, %v4482, 0.0
        %4514 = vadd.xlane.f32.xlu0 %v4513
        %v4515 = vpop.xlane.xlu0 %4514
        %v4516 = vsel %vm2181, %v4484, 0.0
        %4517 = vadd.xlane.f32.xlu0 %v4516
        %v4518 = vpop.xlane.xlu0 %4517
        %v4519 = vsel %vm2181, %v4486, 0.0
        %4520 = vadd.xlane.f32.xlu0 %v4519
        %v4521 = vpop.xlane.xlu0 %4520
        %v4522 = vsel %vm2181, %v4488, 0.0
        %4523 = vadd.xlane.f32.xlu0 %v4522
        %v4524 = vpop.xlane.xlu0 %4523
        %v4525 = vsel %vm2181, %v4490, 0.0
        %4526 = vadd.xlane.f32.xlu0 %v4525
        %v4527 = vpop.xlane.xlu0 %4526
        %v4528 = vsel %vm2181, %v4492, 0.0
        %4529 = vadd.xlane.f32.xlu0 %v4528
        %v4530 = vpop.xlane.xlu0 %4529
        %v4531 = vsel %vm2181, %v4494, 0.0
        %4532 = vadd.xlane.f32.xlu0 %v4531
        %v4533 = vpop.xlane.xlu0 %4532
        %v4534 = vsel %vm2181, %v4496, 0.0
        %4535 = vadd.xlane.f32.xlu0 %v4534
        %v4536 = vpop.xlane.xlu0 %4535
        %v4537 = vsel %vm2181, %v4498, 0.0
        %4538 = vadd.xlane.f32.xlu0 %v4537
        %v4539 = vpop.xlane.xlu0 %4538
        %v4540 = vsel %vm2181, %v4500, 0.0
        %4541 = vadd.xlane.f32.xlu0 %v4540
        %v4542 = vpop.xlane.xlu0 %4541
        %v4543 = vsel %vm2181, %v4502, 0.0
        %4544 = vadd.xlane.f32.xlu0 %v4543
        %v4545 = vpop.xlane.xlu0 %4544
        %v4546 = vsel %vm2181, %v4504, 0.0
        %4547 = vadd.xlane.f32.xlu0 %v4546
        %v4548 = vpop.xlane.xlu0 %4547
        %v4549 = vsel %vm2181, %v4506, 0.0
        %4550 = vadd.xlane.f32.xlu0 %v4549
        %v4551 = vpop.xlane.xlu0 %4550
        %v4552 = vsel %vm2181, %v4508, 0.0
        %4553 = vadd.xlane.f32.xlu0 %v4552
        %v4554 = vpop.xlane.xlu0 %4553
        %v4555 = vsel %vm2181, %v4510, 0.0
        %4556 = vadd.xlane.f32.xlu0 %v4555
        %v4557 = vpop.xlane.xlu0 %4556
        %v4558 = vsel %vm2181, %v4512, 0.0
        %4559 = vadd.xlane.f32.xlu0 %v4558
        %v4560 = vpop.xlane.xlu0 %4559
        %v4561 = vpack.c.bf16 %v4484, %v4482
        %v4562 = vpack.c.bf16 %v4488, %v4486
        %v4563 = vpack.c.bf16 %v4492, %v4490
        %v4564 = vpack.c.bf16 %v4496, %v4494
        %v4565 = vpack.c.bf16 %v4500, %v4498
        %v4566 = vpack.c.bf16 %v4504, %v4502
        %v4567 = vpack.c.bf16 %v4508, %v4506
        %v4568 = vpack.c.bf16 %v4512, %v4510
        %4569 = vrot.lane.b32.xlu0 %v1890, 32
        %v4570 = vpop.permute.xlu0 %4569
        %4571 = vrot.lane.b32.xlu0 %v1893, 32
        %v4572 = vpop.permute.xlu0 %4571
        %4573 = vrot.lane.b32.xlu0 %v1896, 32
        %v4574 = vpop.permute.xlu0 %4573
        %4575 = vrot.lane.b32.xlu0 %v1899, 32
        %v4576 = vpop.permute.xlu0 %4575
        %v4582 = vsel %vm2181, %v4561, 0
        %v4585 = vsel %vm2181, %v4562, 0
        %v4588 = vsel %vm2181, %v4563, 0
        %v4591 = vsel %vm2181, %v4564, 0
        %4593 = vmatprep.subr.bf16.mxu0 0
        %4594 = vmatpush1.bf16.msra.mxu0 %v4570
        %4595 = vmatprep.subr.bf16.mxu0 0
        %4596 = vmatpush1.bf16.msra.mxu0 %v4572
        %4597 = vmatprep.subr.bf16.mxu0 0
        %4598 = vmatpush1.bf16.msra.mxu0 %v4574
        %4599 = vmatprep.subr.bf16.mxu0 0
        %4600 = vmatpush1.bf16.msra.mxu0 %v4576
        %4601 = vmatprep.subr.bf16.mxu0 0
        %4602 = vmatpush1.bf16.msra.mxu0 0
        %4603 = vmatprep.subr.bf16.mxu0 0
        %4604 = vmatpush1.bf16.msra.mxu0 0
        %4605 = vmatprep.subr.bf16.mxu0 0
        %4606 = vmatpush1.bf16.msra.mxu0 0
        %4607 = vmatprep.subr.bf16.mxu0 0
        %4608 = vmatpush1.bf16.msra.mxu0 0
        %4609 = vmatprep.subr.bf16.mxu0 0
        %4610 = vmatpush1.bf16.msra.mxu0 0
        %4611 = vmatprep.subr.bf16.mxu0 0
        %4612 = vmatpush1.bf16.msra.mxu0 0
        %4613 = vmatprep.subr.bf16.mxu0 0
        %4614 = vmatpush1.bf16.msra.mxu0 0
        %4615 = vmatprep.subr.bf16.mxu0 0
        %4616 = vmatpush1.bf16.msra.mxu0 0
        %4617 = vmatprep.subr.bf16.mxu0 0
        %4618 = vmatpush1.bf16.msra.mxu0 0
        %4619 = vmatprep.subr.bf16.mxu0 0
        %4620 = vmatpush1.bf16.msra.mxu0 0
        %4621 = vmatprep.subr.bf16.mxu0 0
        %4622 = vmatpush1.bf16.msra.mxu0 0
        %4623 = vmatprep.subr.bf16.mxu0 0
        %4624 = vmatpush1.bf16.msra.mxu0 0
        %4625 = vmatprep.mubr.bf16.mxu0 0
        %4626 = vmatmul.mubr.bf16.gmra.mrb[0].mxu0 %v4582
        %v4627 = vpop.f32.mrb[0].mxu0
        %v4628 = vadd.f32 0.0, %v4627
        %v4629 = vpop.f32.mrb[0].mxu0
        %v4630 = vpop.f32.mrb[0].mxu0
        %v4631 = vadd.f32 0.0, %v4630
        %v4632 = vpop.f32.mrb[0].mxu0
        %4633 = vmatprep.mubr.bf16.mxu0 0
        %4634 = vmatmul.mubr.bf16.gmra.mrb[0].mxu0 %v4585
        %v4635 = vpop.f32.mrb[0].mxu0
        %v4636 = vadd.f32 0.0, %v4635
        %v4637 = vpop.f32.mrb[0].mxu0
        %v4638 = vpop.f32.mrb[0].mxu0
        %v4639 = vadd.f32 0.0, %v4638
        %v4640 = vpop.f32.mrb[0].mxu0
        %4641 = vmatprep.mubr.bf16.mxu0 0
        %4642 = vmatmul.mubr.bf16.gmra.mrb[0].mxu0 %v4588
        %v4643 = vpop.f32.mrb[0].mxu0
        %v4644 = vadd.f32 0.0, %v4643
        %v4645 = vpop.f32.mrb[0].mxu0
        %v4646 = vpop.f32.mrb[0].mxu0
        %v4647 = vadd.f32 0.0, %v4646
        %v4648 = vpop.f32.mrb[0].mxu0
        %4649 = vmatprep.mubr.bf16.mxu0 0
        %4650 = vmatmul.mubr.bf16.gmra.mrb[0].mxu0 %v4591
        %v4651 = vpop.f32.mrb[0].mxu0
        %v4652 = vadd.f32 0.0, %v4651
        %v4653 = vpop.f32.mrb[0].mxu0
        %v4654 = vpop.f32.mrb[0].mxu0
        %v4655 = vadd.f32 0.0, %v4654
        %v4656 = vpop.f32.mrb[0].mxu0
        %4657 = vdwg.mxu0
        %4658 = vrot.lane.b32.xlu0 %v1902, 32
        %v4659 = vpop.permute.xlu0 %4658
        %4660 = vrot.lane.b32.xlu0 %v1905, 32
        %v4661 = vpop.permute.xlu0 %4660
        %4662 = vrot.lane.b32.xlu0 %v1908, 32
        %v4663 = vpop.permute.xlu0 %4662
        %4664 = vrot.lane.b32.xlu0 %v1911, 32
        %v4665 = vpop.permute.xlu0 %4664
        %v4671 = vsel %vm2181, %v4565, 0
        %v4674 = vsel %vm2181, %v4566, 0
        %v4677 = vsel %vm2181, %v4567, 0
        %v4680 = vsel %vm2181, %v4568, 0
        %4682 = vmatprep.subr.bf16.mxu0 0
        %4683 = vmatpush1.bf16.msra.mxu0 %v4659
        %4684 = vmatprep.subr.bf16.mxu0 0
        %4685 = vmatpush1.bf16.msra.mxu0 %v4661
        %4686 = vmatprep.subr.bf16.mxu0 0
        %4687 = vmatpush1.bf16.msra.mxu0 %v4663
        %4688 = vmatprep.subr.bf16.mxu0 0
        %4689 = vmatpush1.bf16.msra.mxu0 %v4665
        %4690 = vmatprep.subr.bf16.mxu0 0
        %4691 = vmatpush1.bf16.msra.mxu0 0
        %4692 = vmatprep.subr.bf16.mxu0 0
        %4693 = vmatpush1.bf16.msra.mxu0 0
        %4694 = vmatprep.subr.bf16.mxu0 0
        %4695 = vmatpush1.bf16.msra.mxu0 0
        %4696 = vmatprep.subr.bf16.mxu0 0
        %4697 = vmatpush1.bf16.msra.mxu0 0
        %4698 = vmatprep.subr.bf16.mxu0 0
        %4699 = vmatpush1.bf16.msra.mxu0 0
        %4700 = vmatprep.subr.bf16.mxu0 0
        %4701 = vmatpush1.bf16.msra.mxu0 0
        %4702 = vmatprep.subr.bf16.mxu0 0
        %4703 = vmatpush1.bf16.msra.mxu0 0
        %4704 = vmatprep.subr.bf16.mxu0 0
        %4705 = vmatpush1.bf16.msra.mxu0 0
        %4706 = vmatprep.subr.bf16.mxu0 0
        %4707 = vmatpush1.bf16.msra.mxu0 0
        %4708 = vmatprep.subr.bf16.mxu0 0
        %4709 = vmatpush1.bf16.msra.mxu0 0
        %4710 = vmatprep.subr.bf16.mxu0 0
        %4711 = vmatpush1.bf16.msra.mxu0 0
        %4712 = vmatprep.subr.bf16.mxu0 0
        %4713 = vmatpush1.bf16.msra.mxu0 0
        %4714 = vmatprep.mubr.bf16.mxu0 0
        %4715 = vmatmul.mubr.bf16.gmra.mrb[0].mxu0 %v4671
        %v4716 = vpop.f32.mrb[0].mxu0
        %v4717 = vadd.f32 0.0, %v4716
        %v4718 = vpop.f32.mrb[0].mxu0
        %v4719 = vpop.f32.mrb[0].mxu0
        %v4720 = vadd.f32 0.0, %v4719
        %v4721 = vpop.f32.mrb[0].mxu0
        %4722 = vmatprep.mubr.bf16.mxu0 0
        %4723 = vmatmul.mubr.bf16.gmra.mrb[0].mxu0 %v4674
        %v4724 = vpop.f32.mrb[0].mxu0
        %v4725 = vadd.f32 0.0, %v4724
        %v4726 = vpop.f32.mrb[0].mxu0
        %v4727 = vpop.f32.mrb[0].mxu0
        %v4728 = vadd.f32 0.0, %v4727
        %v4729 = vpop.f32.mrb[0].mxu0
        %4730 = vmatprep.mubr.bf16.mxu0 0
        %4731 = vmatmul.mubr.bf16.gmra.mrb[0].mxu0 %v4677
        %v4732 = vpop.f32.mrb[0].mxu0
        %v4733 = vadd.f32 0.0, %v4732
        %v4734 = vpop.f32.mrb[0].mxu0
        %v4735 = vpop.f32.mrb[0].mxu0
        %v4736 = vadd.f32 0.0, %v4735
        %v4737 = vpop.f32.mrb[0].mxu0
        %4738 = vmatprep.mubr.bf16.mxu0 0
        %4739 = vmatmul.mubr.bf16.gmra.mrb[0].mxu0 %v4680
        %v4740 = vpop.f32.mrb[0].mxu0
        %v4741 = vadd.f32 0.0, %v4740
        %v4742 = vpop.f32.mrb[0].mxu0
        %v4743 = vpop.f32.mrb[0].mxu0
        %v4744 = vadd.f32 0.0, %v4743
        %v4745 = vpop.f32.mrb[0].mxu0
        %4746 = vdwg.mxu0
        %v4747 = vrcp.pop %v4515
        %v4748 = vrcp.pop %v4518
        %v4749 = vrcp.pop %v4521
        %v4750 = vrcp.pop %v4524
        %v4751 = vrcp.pop %v4527
        %v4752 = vrcp.pop %v4530
        %v4753 = vrcp.pop %v4533
        %v4754 = vrcp.pop %v4536
        %v4755 = vrcp.pop %v4539
        %v4756 = vrcp.pop %v4542
        %v4757 = vrcp.pop %v4545
        %v4758 = vrcp.pop %v4548
        %v4759 = vrcp.pop %v4551
        %v4760 = vrcp.pop %v4554
        %v4761 = vrcp.pop %v4557
        %v4762 = vrcp.pop %v4560
        %v4763 = vmul.f32 %v4628, %v4747
        %v4764 = vmul.f32 %v4631, %v4748
        %v4765 = vmul.f32 %v4636, %v4749
        %v4766 = vmul.f32 %v4639, %v4750
        %v4767 = vmul.f32 %v4644, %v4751
        %v4768 = vmul.f32 %v4647, %v4752
        %v4769 = vmul.f32 %v4652, %v4753
        %v4770 = vmul.f32 %v4655, %v4754
        %v4771 = vmul.f32 %v4717, %v4755
        %v4772 = vmul.f32 %v4720, %v4756
        %v4773 = vmul.f32 %v4725, %v4757
        %v4774 = vmul.f32 %v4728, %v4758
        %v4775 = vmul.f32 %v4733, %v4759
        %v4776 = vmul.f32 %v4736, %v4760
        %v4777 = vmul.f32 %v4741, %v4761
        %v4778 = vmul.f32 %v4744, %v4762
        %v4779 = vpack.c.bf16 %v4764, %v4763
        %v4780 = vpack.c.bf16 %v4766, %v4765
        %v4781 = vpack.c.bf16 %v4768, %v4767
        %v4782 = vpack.c.bf16 %v4770, %v4769
        %v4783 = vpack.c.bf16 %v4772, %v4771
        %v4784 = vpack.c.bf16 %v4774, %v4773
        %v4785 = vpack.c.bf16 %v4776, %v4775
        %v4786 = vpack.c.bf16 %v4778, %v4777
        %v4791 = vunpack.c.l.b16 %v1943
        %v4792 = vunpack.c.l.b16 %v1944
        %v4793 = vunpack.c.l.b16 %v1945
        %v4794 = vunpack.c.l.b16 %v1946
        %v4795 = vpack.c.b16 %v4792, %v4791
        %v4796 = vpack.c.b16 %v4794, %v4793
        %v4800 = vsel %vm1970, %v4779, 0
        %v4803 = vsel %vm1970, %v4780, 0
        %v4806 = vsel %vm1970, %v4781, 0
        %v4809 = vsel %vm1970, %v4782, 0
        %v4812 = vsel %vm1970, %v4783, 0
        %v4815 = vsel %vm1970, %v4784, 0
        %v4818 = vsel %vm1970, %v4785, 0
        %v4821 = vsel %vm1970, %v4786, 0
        %4823 = vmatprep.subr.bf16.mxu0 0
        %4824 = vmatpush1.bf16.msra.mxu0 %v4795
        %4825 = vmatprep.subr.bf16.mxu0 0
        %4826 = vmatpush1.bf16.msra.mxu0 %v4796
        %4827 = vmatprep.subr.bf16.mxu0 0
        %4828 = vmatpush1.bf16.msra.mxu0 0
        %4829 = vmatprep.subr.bf16.mxu0 0
        %4830 = vmatpush1.bf16.msra.mxu0 0
        %4831 = vmatprep.subr.bf16.mxu0 0
        %4832 = vmatpush1.bf16.msra.mxu0 0
        %4833 = vmatprep.subr.bf16.mxu0 0
        %4834 = vmatpush1.bf16.msra.mxu0 0
        %4835 = vmatprep.subr.bf16.mxu0 0
        %4836 = vmatpush1.bf16.msra.mxu0 0
        %4837 = vmatprep.subr.bf16.mxu0 0
        %4838 = vmatpush1.bf16.msra.mxu0 0
        %4839 = vmatprep.subr.bf16.mxu0 0
        %4840 = vmatpush1.bf16.msra.mxu0 0
        %4841 = vmatprep.subr.bf16.mxu0 0
        %4842 = vmatpush1.bf16.msra.mxu0 0
        %4843 = vmatprep.subr.bf16.mxu0 0
        %4844 = vmatpush1.bf16.msra.mxu0 0
        %4845 = vmatprep.subr.bf16.mxu0 0
        %4846 = vmatpush1.bf16.msra.mxu0 0
        %4847 = vmatprep.subr.bf16.mxu0 0
        %4848 = vmatpush1.bf16.msra.mxu0 0
        %4849 = vmatprep.subr.bf16.mxu0 0
        %4850 = vmatpush1.bf16.msra.mxu0 0
        %4851 = vmatprep.subr.bf16.mxu0 0
        %4852 = vmatpush1.bf16.msra.mxu0 0
        %4853 = vmatprep.subr.bf16.mxu0 0
        %4854 = vmatpush1.bf16.msra.mxu0 0
        %4855 = vmatprep.mubr.bf16.mxu0 0
        %4856 = vmatmul.mubr.bf16.gmra.mrb[0].mxu0 %v4800
        %v4857 = vpop.f32.mrb[0].mxu0
        %v4858 = vadd.f32 0.0, %v4857
        %v4859 = vpop.f32.mrb[0].mxu0
        %v4860 = vpop.f32.mrb[0].mxu0
        %v4861 = vadd.f32 0.0, %v4860
        %v4862 = vpop.f32.mrb[0].mxu0
        %4863 = vmatprep.mubr.bf16.mxu0 0
        %4864 = vmatmul.mubr.bf16.gmra.mrb[0].mxu0 %v4803
        %v4865 = vpop.f32.mrb[0].mxu0
        %v4866 = vadd.f32 0.0, %v4865
        %v4867 = vpop.f32.mrb[0].mxu0
        %v4868 = vpop.f32.mrb[0].mxu0
        %v4869 = vadd.f32 0.0, %v4868
        %v4870 = vpop.f32.mrb[0].mxu0
        %4871 = vmatprep.mubr.bf16.mxu0 0
        %4872 = vmatmul.mubr.bf16.gmra.mrb[0].mxu0 %v4806
        %v4873 = vpop.f32.mrb[0].mxu0
        %v4874 = vadd.f32 0.0, %v4873
        %v4875 = vpop.f32.mrb[0].mxu0
        %v4876 = vpop.f32.mrb[0].mxu0
        %v4877 = vadd.f32 0.0, %v4876
        %v4878 = vpop.f32.mrb[0].mxu0
        %4879 = vmatprep.mubr.bf16.mxu0 0
        %4880 = vmatmul.mubr.bf16.gmra.mrb[0].mxu0 %v4809
        %v4881 = vpop.f32.mrb[0].mxu0
        %v4882 = vadd.f32 0.0, %v4881
        %v4883 = vpop.f32.mrb[0].mxu0
        %v4884 = vpop.f32.mrb[0].mxu0
        %v4885 = vadd.f32 0.0, %v4884
        %v4886 = vpop.f32.mrb[0].mxu0
        %4887 = vmatprep.mubr.bf16.mxu0 0
        %4888 = vmatmul.mubr.bf16.gmra.mrb[0].mxu0 %v4812
        %v4889 = vpop.f32.mrb[0].mxu0
        %v4890 = vadd.f32 0.0, %v4889
        %v4891 = vpop.f32.mrb[0].mxu0
        %v4892 = vpop.f32.mrb[0].mxu0
        %v4893 = vadd.f32 0.0, %v4892
        %v4894 = vpop.f32.mrb[0].mxu0
        %4895 = vmatprep.mubr.bf16.mxu0 0
        %4896 = vmatmul.mubr.bf16.gmra.mrb[0].mxu0 %v4815
        %v4897 = vpop.f32.mrb[0].mxu0
        %v4898 = vadd.f32 0.0, %v4897
        %v4899 = vpop.f32.mrb[0].mxu0
        %v4900 = vpop.f32.mrb[0].mxu0
        %v4901 = vadd.f32 0.0, %v4900
        %v4902 = vpop.f32.mrb[0].mxu0
        %4903 = vmatprep.mubr.bf16.mxu0 0
        %4904 = vmatmul.mubr.bf16.gmra.mrb[0].mxu0 %v4818
        %v4905 = vpop.f32.mrb[0].mxu0
        %v4906 = vadd.f32 0.0, %v4905
        %v4907 = vpop.f32.mrb[0].mxu0
        %v4908 = vpop.f32.mrb[0].mxu0
        %v4909 = vadd.f32 0.0, %v4908
        %v4910 = vpop.f32.mrb[0].mxu0
        %4911 = vmatprep.mubr.bf16.mxu0 0
        %4912 = vmatmul.mubr.bf16.gmra.mrb[0].mxu0 %v4821
        %v4913 = vpop.f32.mrb[0].mxu0
        %v4914 = vadd.f32 0.0, %v4913
        %v4915 = vpop.f32.mrb[0].mxu0
        %v4916 = vpop.f32.mrb[0].mxu0
        %v4917 = vadd.f32 0.0, %v4916
        %v4918 = vpop.f32.mrb[0].mxu0
        %4919 = vdwg.mxu0
        %v4920 = vadd.f32 %v4175, %v4858
        %v4921 = vadd.f32 %v4176, %v4861
        %v4922 = vadd.f32 %v4177, %v4866
        %v4923 = vadd.f32 %v4178, %v4869
        %v4924 = vadd.f32 %v4179, %v4874
        %v4925 = vadd.f32 %v4180, %v4877
        %v4926 = vadd.f32 %v4181, %v4882
        %v4927 = vadd.f32 %v4182, %v4885
        %v4928 = vadd.f32 %v4183, %v4890
        %v4929 = vadd.f32 %v4184, %v4893
        %v4930 = vadd.f32 %v4185, %v4898
        %v4931 = vadd.f32 %v4186, %v4901
        %v4932 = vadd.f32 %v4187, %v4906
        %v4933 = vadd.f32 %v4188, %v4909
        %v4934 = vadd.f32 %v4189, %v4914
        %v4935 = vadd.f32 %v4190, %v4917
        %v4936 = vld [vmem:[%s832] sm:$0x1]
        %v4937 = vld [vmem:[%s840] sm:$0x1]
        %4938 = vadd.xlane.f32.xlu0 %v4920
        %v4939 = vpop.xlane.xlu0 %4938
        %4940 = vadd.xlane.f32.xlu0 %v4921
        %v4941 = vpop.xlane.xlu0 %4940
        %4942 = vadd.xlane.f32.xlu0 %v4922
        %v4943 = vpop.xlane.xlu0 %4942
        %4944 = vadd.xlane.f32.xlu0 %v4923
        %v4945 = vpop.xlane.xlu0 %4944
        %4946 = vadd.xlane.f32.xlu0 %v4924
        %v4947 = vpop.xlane.xlu0 %4946
        %4948 = vadd.xlane.f32.xlu0 %v4925
        %v4949 = vpop.xlane.xlu0 %4948
        %4950 = vadd.xlane.f32.xlu0 %v4926
        %v4951 = vpop.xlane.xlu0 %4950
        %4952 = vadd.xlane.f32.xlu0 %v4927
        %v4953 = vpop.xlane.xlu0 %4952
        %4954 = vadd.xlane.f32.xlu0 %v4928
        %v4955 = vpop.xlane.xlu0 %4954
        %4956 = vadd.xlane.f32.xlu0 %v4929
        %v4957 = vpop.xlane.xlu0 %4956
        %4958 = vadd.xlane.f32.xlu0 %v4930
        %v4959 = vpop.xlane.xlu0 %4958
        %4960 = vadd.xlane.f32.xlu0 %v4931
        %v4961 = vpop.xlane.xlu0 %4960
        %4962 = vadd.xlane.f32.xlu0 %v4932
        %v4963 = vpop.xlane.xlu0 %4962
        %4964 = vadd.xlane.f32.xlu0 %v4933
        %v4965 = vpop.xlane.xlu0 %4964
        %4966 = vadd.xlane.f32.xlu0 %v4934
        %v4967 = vpop.xlane.xlu0 %4966
        %4968 = vadd.xlane.f32.xlu0 %v4935
        %v4969 = vpop.xlane.xlu0 %4968
        %v4970 = vrcp.pop 128.0
        %v4971 = vmul.f32 %v4939, %v4970
        %v4972 = vmul.f32 %v4941, %v4970
        %v4973 = vmul.f32 %v4943, %v4970
        %v4974 = vmul.f32 %v4945, %v4970
        %v4975 = vmul.f32 %v4947, %v4970
        %v4976 = vmul.f32 %v4949, %v4970
        %v4977 = vmul.f32 %v4951, %v4970
        %v4978 = vmul.f32 %v4953, %v4970
        %v4979 = vmul.f32 %v4955, %v4970
        %v4980 = vmul.f32 %v4957, %v4970
        %v4981 = vmul.f32 %v4959, %v4970
        %v4982 = vmul.f32 %v4961, %v4970
        %v4983 = vmul.f32 %v4963, %v4970
        %v4984 = vmul.f32 %v4965, %v4970
        %v4985 = vmul.f32 %v4967, %v4970
        %v4986 = vmul.f32 %v4969, %v4970
        %v4987 = vsub.f32 %v4920, %v4971
        %v4988 = vsub.f32 %v4921, %v4972
        %v4989 = vsub.f32 %v4922, %v4973
        %v4990 = vsub.f32 %v4923, %v4974
        %v4991 = vsub.f32 %v4924, %v4975
        %v4992 = vsub.f32 %v4925, %v4976
        %v4993 = vsub.f32 %v4926, %v4977
        %v4994 = vsub.f32 %v4927, %v4978
        %v4995 = vsub.f32 %v4928, %v4979
        %v4996 = vsub.f32 %v4929, %v4980
        %v4997 = vsub.f32 %v4930, %v4981
        %v4998 = vsub.f32 %v4931, %v4982
        %v4999 = vsub.f32 %v4932, %v4983
        %v5000 = vsub.f32 %v4933, %v4984
        %v5001 = vsub.f32 %v4934, %v4985
        %v5002 = vsub.f32 %v4935, %v4986
        %v5003 = vmul.f32 %v4987, %v4987
        %v5004 = vmul.f32 %v4988, %v4988
        %v5005 = vmul.f32 %v4989, %v4989
        %v5006 = vmul.f32 %v4990, %v4990
        %v5007 = vmul.f32 %v4991, %v4991
        %v5008 = vmul.f32 %v4992, %v4992
        %v5009 = vmul.f32 %v4993, %v4993
        %v5010 = vmul.f32 %v4994, %v4994
        %v5011 = vmul.f32 %v4995, %v4995
        %v5012 = vmul.f32 %v4996, %v4996
        %v5013 = vmul.f32 %v4997, %v4997
        %v5014 = vmul.f32 %v4998, %v4998
        %v5015 = vmul.f32 %v4999, %v4999
        %v5016 = vmul.f32 %v5000, %v5000
        %v5017 = vmul.f32 %v5001, %v5001
        %v5018 = vmul.f32 %v5002, %v5002
        %5019 = vadd.xlane.f32.xlu0 %v5003
        %v5020 = vpop.xlane.xlu0 %5019
        %5021 = vadd.xlane.f32.xlu0 %v5004
        %v5022 = vpop.xlane.xlu0 %5021
        %5023 = vadd.xlane.f32.xlu0 %v5005
        %v5024 = vpop.xlane.xlu0 %5023
        %5025 = vadd.xlane.f32.xlu0 %v5006
        %v5026 = vpop.xlane.xlu0 %5025
        %5027 = vadd.xlane.f32.xlu0 %v5007
        %v5028 = vpop.xlane.xlu0 %5027
        %5029 = vadd.xlane.f32.xlu0 %v5008
        %v5030 = vpop.xlane.xlu0 %5029
        %5031 = vadd.xlane.f32.xlu0 %v5009
        %v5032 = vpop.xlane.xlu0 %5031
        %5033 = vadd.xlane.f32.xlu0 %v5010
        %v5034 = vpop.xlane.xlu0 %5033
        %5035 = vadd.xlane.f32.xlu0 %v5011
        %v5036 = vpop.xlane.xlu0 %5035
        %5037 = vadd.xlane.f32.xlu0 %v5012
        %v5038 = vpop.xlane.xlu0 %5037
        %5039 = vadd.xlane.f32.xlu0 %v5013
        %v5040 = vpop.xlane.xlu0 %5039
        %5041 = vadd.xlane.f32.xlu0 %v5014
        %v5042 = vpop.xlane.xlu0 %5041
        %5043 = vadd.xlane.f32.xlu0 %v5015
        %v5044 = vpop.xlane.xlu0 %5043
        %5045 = vadd.xlane.f32.xlu0 %v5016
        %v5046 = vpop.xlane.xlu0 %5045
        %5047 = vadd.xlane.f32.xlu0 %v5017
        %v5048 = vpop.xlane.xlu0 %5047
        %5049 = vadd.xlane.f32.xlu0 %v5018
        %v5050 = vpop.xlane.xlu0 %5049
        %v5051 = vmul.f32 %v5020, %v4970
        %v5052 = vmul.f32 %v5022, %v4970
        %v5053 = vmul.f32 %v5024, %v4970
        %v5054 = vmul.f32 %v5026, %v4970
        %v5055 = vmul.f32 %v5028, %v4970
        %v5056 = vmul.f32 %v5030, %v4970
        %v5057 = vmul.f32 %v5032, %v4970
        %v5058 = vmul.f32 %v5034, %v4970
        %v5059 = vmul.f32 %v5036, %v4970
        %v5060 = vmul.f32 %v5038, %v4970
        %v5061 = vmul.f32 %v5040, %v4970
        %v5062 = vmul.f32 %v5042, %v4970
        %v5063 = vmul.f32 %v5044, %v4970
        %v5064 = vmul.f32 %v5046, %v4970
        %v5065 = vmul.f32 %v5048, %v4970
        %v5066 = vmul.f32 %v5050, %v4970
        %v5067 = vadd.f32 %v5051, 1e-05
        %v5068 = vadd.f32 %v5052, 1e-05
        %v5069 = vadd.f32 %v5053, 1e-05
        %v5070 = vadd.f32 %v5054, 1e-05
        %v5071 = vadd.f32 %v5055, 1e-05
        %v5072 = vadd.f32 %v5056, 1e-05
        %v5073 = vadd.f32 %v5057, 1e-05
        %v5074 = vadd.f32 %v5058, 1e-05
        %v5075 = vadd.f32 %v5059, 1e-05
        %v5076 = vadd.f32 %v5060, 1e-05
        %v5077 = vadd.f32 %v5061, 1e-05
        %v5078 = vadd.f32 %v5062, 1e-05
        %v5079 = vadd.f32 %v5063, 1e-05
        %v5080 = vadd.f32 %v5064, 1e-05
        %v5081 = vadd.f32 %v5065, 1e-05
        %v5082 = vadd.f32 %v5066, 1e-05
        %v5083 = vrsqrt.pop %v5067
        %v5084 = vrsqrt.pop %v5068
        %v5085 = vrsqrt.pop %v5069
        %v5086 = vrsqrt.pop %v5070
        %v5087 = vrsqrt.pop %v5071
        %v5088 = vrsqrt.pop %v5072
        %v5089 = vrsqrt.pop %v5073
        %v5090 = vrsqrt.pop %v5074
        %v5091 = vrsqrt.pop %v5075
        %v5092 = vrsqrt.pop %v5076
        %v5093 = vrsqrt.pop %v5077
        %v5094 = vrsqrt.pop %v5078
        %v5095 = vrsqrt.pop %v5079
        %v5096 = vrsqrt.pop %v5080
        %v5097 = vrsqrt.pop %v5081
        %v5098 = vrsqrt.pop %v5082
        %v5099 = vmul.f32 %v4987, %v5083
        %v5100 = vmul.f32 %v4988, %v5084
        %v5101 = vmul.f32 %v4989, %v5085
        %v5102 = vmul.f32 %v4990, %v5086
        %v5103 = vmul.f32 %v4991, %v5087
        %v5104 = vmul.f32 %v4992, %v5088
        %v5105 = vmul.f32 %v4993, %v5089
        %v5106 = vmul.f32 %v4994, %v5090
        %v5107 = vmul.f32 %v4995, %v5091
        %v5108 = vmul.f32 %v4996, %v5092
        %v5109 = vmul.f32 %v4997, %v5093
        %v5110 = vmul.f32 %v4998, %v5094
        %v5111 = vmul.f32 %v4999, %v5095
        %v5112 = vmul.f32 %v5000, %v5096
        %v5113 = vmul.f32 %v5001, %v5097
        %v5114 = vmul.f32 %v5002, %v5098
        %v5116 = vlaneseq
        %v5117 = vshrl.u32 %v5116, 7
        %v5118 = vsub.s32 0, %v5117
        %v5119 = vrot.slane %v4936, %v5118
        %v5121 = vmul.f32 %v5099, %v5119
        %v5122 = vmul.f32 %v5100, %v5119
        %v5123 = vmul.f32 %v5101, %v5119
        %v5124 = vmul.f32 %v5102, %v5119
        %v5125 = vmul.f32 %v5103, %v5119
        %v5126 = vmul.f32 %v5104, %v5119
        %v5127 = vmul.f32 %v5105, %v5119
        %v5128 = vmul.f32 %v5106, %v5119
        %v5129 = vmul.f32 %v5107, %v5119
        %v5130 = vmul.f32 %v5108, %v5119
        %v5131 = vmul.f32 %v5109, %v5119
        %v5132 = vmul.f32 %v5110, %v5119
        %v5133 = vmul.f32 %v5111, %v5119
        %v5134 = vmul.f32 %v5112, %v5119
        %v5135 = vmul.f32 %v5113, %v5119
        %v5136 = vmul.f32 %v5114, %v5119
        %v5138 = vlaneseq
        %v5139 = vshrl.u32 %v5138, 7
        %v5140 = vsub.s32 0, %v5139
        %v5141 = vrot.slane %v4937, %v5140
        %v5143 = vadd.f32 %v5121, %v5141
        %v5144 = vadd.f32 %v5122, %v5141
        %v5145 = vadd.f32 %v5123, %v5141
        %v5146 = vadd.f32 %v5124, %v5141
        %v5147 = vadd.f32 %v5125, %v5141
        %v5148 = vadd.f32 %v5126, %v5141
        %v5149 = vadd.f32 %v5127, %v5141
        %v5150 = vadd.f32 %v5128, %v5141
        %v5151 = vadd.f32 %v5129, %v5141
        %v5152 = vadd.f32 %v5130, %v5141
        %v5153 = vadd.f32 %v5131, %v5141
        %v5154 = vadd.f32 %v5132, %v5141
        %v5155 = vadd.f32 %v5133, %v5141
        %v5156 = vadd.f32 %v5134, %v5141
        %v5157 = vadd.f32 %v5135, %v5141
        %v5158 = vadd.f32 %v5136, %v5141
        %v5159 = vpack.c.bf16 %v5144, %v5143
        %v5160 = vpack.c.bf16 %v5146, %v5145
        %v5161 = vpack.c.bf16 %v5148, %v5147
        %v5162 = vpack.c.bf16 %v5150, %v5149
        %v5163 = vpack.c.bf16 %v5152, %v5151
        %v5164 = vpack.c.bf16 %v5154, %v5153
        %v5165 = vpack.c.bf16 %v5156, %v5155
        %v5166 = vpack.c.bf16 %v5158, %v5157
        %v5167 = vld [vmem:[%s849] sm:$0xff]
        %v5168 = vld [vmem:[%s849 + $0x8] sm:$0xff]
        %v5169 = vld [vmem:[%s849 + $0x10] sm:$0xff]
        %v5170 = vld [vmem:[%s849 + $0x18] sm:$0xff]
        %v5171 = vld [vmem:[%s849 + $0x20] sm:$0xff]
        %v5172 = vld [vmem:[%s849 + $0x28] sm:$0xff]
        %v5173 = vld [vmem:[%s849 + $0x30] sm:$0xff]
        %v5174 = vld [vmem:[%s849 + $0x38] sm:$0xff]
        %v5175 = vld [vmem:[%s849 + $0x40] sm:$0xff]
        %v5176 = vld [vmem:[%s849 + $0x48] sm:$0xff]
        %v5177 = vld [vmem:[%s849 + $0x50] sm:$0xff]
        %v5178 = vld [vmem:[%s849 + $0x58] sm:$0xff]
        %v5179 = vld [vmem:[%s849 + $0x60] sm:$0xff]
        %v5180 = vld [vmem:[%s849 + $0x68] sm:$0xff]
        %v5181 = vld [vmem:[%s849 + $0x70] sm:$0xff]
        %v5182 = vld [vmem:[%s849 + $0x78] sm:$0xff]
        %v5183 = vld [vmem:[%s849 + $0x80] sm:$0xff]
        %v5184 = vld [vmem:[%s849 + $0x88] sm:$0xff]
        %v5185 = vld [vmem:[%s849 + $0x90] sm:$0xff]
        %v5186 = vld [vmem:[%s849 + $0x98] sm:$0xff]
        %v5187 = vld [vmem:[%s849 + $0xa0] sm:$0xff]
        %v5188 = vld [vmem:[%s849 + $0xa8] sm:$0xff]
        %v5189 = vld [vmem:[%s849 + $0xb0] sm:$0xff]
        %v5190 = vld [vmem:[%s849 + $0xb8] sm:$0xff]
        %v5191 = vld [vmem:[%s849 + $0xc0] sm:$0xff]
        %v5192 = vld [vmem:[%s849 + $0xc8] sm:$0xff]
        %v5193 = vld [vmem:[%s849 + $0xd0] sm:$0xff]
        %v5194 = vld [vmem:[%s849 + $0xd8] sm:$0xff]
        %v5195 = vld [vmem:[%s849 + $0xe0] sm:$0xff]
        %v5196 = vld [vmem:[%s849 + $0xe8] sm:$0xff]
        %v5197 = vld [vmem:[%s849 + $0xf0] sm:$0xff]
        %v5198 = vld [vmem:[%s849 + $0xf8] sm:$0xff]
        %v5199 = vld [vmem:[%s1028] sm:$0xf]
        %v5201 = vlaneseq
        %v5202 = vshrl.u32 %v5201, 7
        %v5203 = vsub.s32 0, %v5202
        %v5204 = vrot.slane %v5199, %v5203
        %v5205 = vlaneseq
        %v5206 = vshrl.u32 %v5205, 7
        %v5207 = vsub.s32 1, %v5206
        %v5208 = vrot.slane %v5199, %v5207
        %v5209 = vlaneseq
        %v5210 = vshrl.u32 %v5209, 7
        %v5211 = vsub.s32 2, %v5210
        %v5212 = vrot.slane %v5199, %v5211
        %v5213 = vlaneseq
        %v5214 = vshrl.u32 %v5213, 7
        %v5215 = vsub.s32 3, %v5214
        %v5216 = vrot.slane %v5199, %v5215
        %v5253 = vunpack.c.l.b16 %v5167
        %v5254 = vunpack.c.h.b16 %v5167
        %v5255 = vunpack.c.l.b16 %v5168
        %v5256 = vunpack.c.h.b16 %v5168
        %v5257 = vunpack.c.l.b16 %v5169
        %v5258 = vunpack.c.h.b16 %v5169
        %v5259 = vunpack.c.l.b16 %v5170
        %v5260 = vunpack.c.h.b16 %v5170
        %v5261 = vunpack.c.l.b16 %v5171
        %v5262 = vunpack.c.h.b16 %v5171
        %v5263 = vunpack.c.l.b16 %v5172
        %v5264 = vunpack.c.h.b16 %v5172
        %v5265 = vunpack.c.l.b16 %v5173
        %v5266 = vunpack.c.h.b16 %v5173
        %v5267 = vunpack.c.l.b16 %v5174
        %v5268 = vunpack.c.h.b16 %v5174
        %v5269 = vunpack.c.l.b16 %v5175
        %v5270 = vunpack.c.h.b16 %v5175
        %v5271 = vunpack.c.l.b16 %v5176
        %v5272 = vunpack.c.h.b16 %v5176
        %v5273 = vunpack.c.l.b16 %v5177
        %v5274 = vunpack.c.h.b16 %v5177
        %v5275 = vunpack.c.l.b16 %v5178
        %v5276 = vunpack.c.h.b16 %v5178
        %v5277 = vunpack.c.l.b16 %v5179
        %v5278 = vunpack.c.h.b16 %v5179
        %v5279 = vunpack.c.l.b16 %v5180
        %v5280 = vunpack.c.h.b16 %v5180
        %v5281 = vunpack.c.l.b16 %v5181
        %v5282 = vunpack.c.h.b16 %v5181
        %v5283 = vunpack.c.l.b16 %v5182
        %v5284 = vunpack.c.h.b16 %v5182
        %v5285 = vunpack.c.l.b16 %v5183
        %v5286 = vunpack.c.h.b16 %v5183
        %v5287 = vunpack.c.l.b16 %v5184
        %v5288 = vunpack.c.h.b16 %v5184
        %v5289 = vunpack.c.l.b16 %v5185
        %v5290 = vunpack.c.h.b16 %v5185
        %v5291 = vunpack.c.l.b16 %v5186
        %v5292 = vunpack.c.h.b16 %v5186
        %v5293 = vunpack.c.l.b16 %v5187
        %v5294 = vunpack.c.h.b16 %v5187
        %v5295 = vunpack.c.l.b16 %v5188
        %v5296 = vunpack.c.h.b16 %v5188
        %v5297 = vunpack.c.l.b16 %v5189
        %v5298 = vunpack.c.h.b16 %v5189
        %v5299 = vunpack.c.l.b16 %v5190
        %v5300 = vunpack.c.h.b16 %v5190
        %v5301 = vunpack.c.l.b16 %v5191
        %v5302 = vunpack.c.h.b16 %v5191
        %v5303 = vunpack.c.l.b16 %v5192
        %v5304 = vunpack.c.h.b16 %v5192
        %v5305 = vunpack.c.l.b16 %v5193
        %v5306 = vunpack.c.h.b16 %v5193
        %v5307 = vunpack.c.l.b16 %v5194
        %v5308 = vunpack.c.h.b16 %v5194
        %v5309 = vunpack.c.l.b16 %v5195
        %v5310 = vunpack.c.h.b16 %v5195
        %v5311 = vunpack.c.l.b16 %v5196
        %v5312 = vunpack.c.h.b16 %v5196
        %v5313 = vunpack.c.l.b16 %v5197
        %v5314 = vunpack.c.h.b16 %v5197
        %v5315 = vunpack.c.l.b16 %v5198
        %v5316 = vunpack.c.h.b16 %v5198
        %v5317 = vpack.c.b16 %v5257, %v5253
        %v5318 = vpack.c.b16 %v5258, %v5254
        %v5319 = vpack.c.b16 %v5259, %v5255
        %v5320 = vpack.c.b16 %v5260, %v5256
        %v5321 = vpack.c.b16 %v5265, %v5261
        %v5322 = vpack.c.b16 %v5266, %v5262
        %v5323 = vpack.c.b16 %v5267, %v5263
        %v5324 = vpack.c.b16 %v5268, %v5264
        %v5325 = vpack.c.b16 %v5273, %v5269
        %v5326 = vpack.c.b16 %v5274, %v5270
        %v5327 = vpack.c.b16 %v5275, %v5271
        %v5328 = vpack.c.b16 %v5276, %v5272
        %v5329 = vpack.c.b16 %v5281, %v5277
        %v5330 = vpack.c.b16 %v5282, %v5278
        %v5331 = vpack.c.b16 %v5283, %v5279
        %v5332 = vpack.c.b16 %v5284, %v5280
        %v5333 = vpack.c.b16 %v5289, %v5285
        %v5334 = vpack.c.b16 %v5290, %v5286
        %v5335 = vpack.c.b16 %v5291, %v5287
        %v5336 = vpack.c.b16 %v5292, %v5288
        %v5337 = vpack.c.b16 %v5297, %v5293
        %v5338 = vpack.c.b16 %v5298, %v5294
        %v5339 = vpack.c.b16 %v5299, %v5295
        %v5340 = vpack.c.b16 %v5300, %v5296
        %v5341 = vpack.c.b16 %v5305, %v5301
        %v5342 = vpack.c.b16 %v5306, %v5302
        %v5343 = vpack.c.b16 %v5307, %v5303
        %v5344 = vpack.c.b16 %v5308, %v5304
        %v5345 = vpack.c.b16 %v5313, %v5309
        %v5346 = vpack.c.b16 %v5314, %v5310
        %v5347 = vpack.c.b16 %v5315, %v5311
        %v5348 = vpack.c.b16 %v5316, %v5312
        %5381 = vmatprep.subr.bf16.mxu0 %v5318
        %5382 = vmatpush1.bf16.msra.mxu0 %v5317
        %5383 = vmatprep.subr.bf16.mxu0 %v5322
        %5384 = vmatpush1.bf16.msra.mxu0 %v5321
        %5385 = vmatprep.subr.bf16.mxu0 %v5326
        %5386 = vmatpush1.bf16.msra.mxu0 %v5325
        %5387 = vmatprep.subr.bf16.mxu0 %v5330
        %5388 = vmatpush1.bf16.msra.mxu0 %v5329
        %5389 = vmatprep.subr.bf16.mxu0 %v5334
        %5390 = vmatpush1.bf16.msra.mxu0 %v5333
        %5391 = vmatprep.subr.bf16.mxu0 %v5338
        %5392 = vmatpush1.bf16.msra.mxu0 %v5337
        %5393 = vmatprep.subr.bf16.mxu0 %v5342
        %5394 = vmatpush1.bf16.msra.mxu0 %v5341
        %5395 = vmatprep.subr.bf16.mxu0 %v5346
        %5396 = vmatpush1.bf16.msra.mxu0 %v5345
        %5397 = vmatprep.subr.bf16.mxu0 0
        %5398 = vmatpush1.bf16.msra.mxu0 0
        %5399 = vmatprep.subr.bf16.mxu0 0
        %5400 = vmatpush1.bf16.msra.mxu0 0
        %5401 = vmatprep.subr.bf16.mxu0 0
        %5402 = vmatpush1.bf16.msra.mxu0 0
        %5403 = vmatprep.subr.bf16.mxu0 0
        %5404 = vmatpush1.bf16.msra.mxu0 0
        %5405 = vmatprep.subr.bf16.mxu0 0
        %5406 = vmatpush1.bf16.msra.mxu0 0
        %5407 = vmatprep.subr.bf16.mxu0 0
        %5408 = vmatpush1.bf16.msra.mxu0 0
        %5409 = vmatprep.subr.bf16.mxu0 0
        %5410 = vmatpush1.bf16.msra.mxu0 0
        %5411 = vmatprep.subr.bf16.mxu0 0
        %5412 = vmatpush1.bf16.msra.mxu0 0
        %5413 = vmatprep.mubr.bf16.mxu0 0
        %5414 = vmatmul.mubr.bf16.gmra.mrb[0].mxu0 %v5159
        %v5415 = vpop.f32.mrb[0].mxu0
        %v5416 = vadd.f32 %v5204, %v5415
        %v5417 = vpop.f32.mrb[0].mxu0
        %v5418 = vadd.f32 %v5208, %v5417
        %v5419 = vpop.f32.mrb[0].mxu0
        %v5420 = vadd.f32 %v5204, %v5419
        %v5421 = vpop.f32.mrb[0].mxu0
        %v5422 = vadd.f32 %v5208, %v5421
        %5423 = vmatprep.mubr.bf16.mxu0 0
        %5424 = vmatmul.mubr.bf16.gmra.mrb[0].mxu0 %v5160
        %v5425 = vpop.f32.mrb[0].mxu0
        %v5426 = vadd.f32 %v5204, %v5425
        %v5427 = vpop.f32.mrb[0].mxu0
        %v5428 = vadd.f32 %v5208, %v5427
        %v5429 = vpop.f32.mrb[0].mxu0
        %v5430 = vadd.f32 %v5204, %v5429
        %v5431 = vpop.f32.mrb[0].mxu0
        %v5432 = vadd.f32 %v5208, %v5431
        %5433 = vmatprep.mubr.bf16.mxu0 0
        %5434 = vmatmul.mubr.bf16.gmra.mrb[0].mxu0 %v5161
        %v5435 = vpop.f32.mrb[0].mxu0
        %v5436 = vadd.f32 %v5204, %v5435
        %v5437 = vpop.f32.mrb[0].mxu0
        %v5438 = vadd.f32 %v5208, %v5437
        %v5439 = vpop.f32.mrb[0].mxu0
        %v5440 = vadd.f32 %v5204, %v5439
        %v5441 = vpop.f32.mrb[0].mxu0
        %v5442 = vadd.f32 %v5208, %v5441
        %5443 = vmatprep.mubr.bf16.mxu0 0
        %5444 = vmatmul.mubr.bf16.gmra.mrb[0].mxu0 %v5162
        %v5445 = vpop.f32.mrb[0].mxu0
        %v5446 = vadd.f32 %v5204, %v5445
        %v5447 = vpop.f32.mrb[0].mxu0
        %v5448 = vadd.f32 %v5208, %v5447
        %v5449 = vpop.f32.mrb[0].mxu0
        %v5450 = vadd.f32 %v5204, %v5449
        %v5451 = vpop.f32.mrb[0].mxu0
        %v5452 = vadd.f32 %v5208, %v5451
        %5453 = vmatprep.mubr.bf16.mxu0 0
        %5454 = vmatmul.mubr.bf16.gmra.mrb[0].mxu0 %v5163
        %v5455 = vpop.f32.mrb[0].mxu0
        %v5456 = vadd.f32 %v5204, %v5455
        %v5457 = vpop.f32.mrb[0].mxu0
        %v5458 = vadd.f32 %v5208, %v5457
        %v5459 = vpop.f32.mrb[0].mxu0
        %v5460 = vadd.f32 %v5204, %v5459
        %v5461 = vpop.f32.mrb[0].mxu0
        %v5462 = vadd.f32 %v5208, %v5461
        %5463 = vmatprep.mubr.bf16.mxu0 0
        %5464 = vmatmul.mubr.bf16.gmra.mrb[0].mxu0 %v5164
        %v5465 = vpop.f32.mrb[0].mxu0
        %v5466 = vadd.f32 %v5204, %v5465
        %v5467 = vpop.f32.mrb[0].mxu0
        %v5468 = vadd.f32 %v5208, %v5467
        %v5469 = vpop.f32.mrb[0].mxu0
        %v5470 = vadd.f32 %v5204, %v5469
        %v5471 = vpop.f32.mrb[0].mxu0
        %v5472 = vadd.f32 %v5208, %v5471
        %5473 = vmatprep.mubr.bf16.mxu0 0
        %5474 = vmatmul.mubr.bf16.gmra.mrb[0].mxu0 %v5165
        %v5475 = vpop.f32.mrb[0].mxu0
        %v5476 = vadd.f32 %v5204, %v5475
        %v5477 = vpop.f32.mrb[0].mxu0
        %v5478 = vadd.f32 %v5208, %v5477
        %v5479 = vpop.f32.mrb[0].mxu0
        %v5480 = vadd.f32 %v5204, %v5479
        %v5481 = vpop.f32.mrb[0].mxu0
        %v5482 = vadd.f32 %v5208, %v5481
        %5483 = vmatprep.mubr.bf16.mxu0 0
        %5484 = vmatmul.mubr.bf16.gmra.mrb[0].mxu0 %v5166
        %v5485 = vpop.f32.mrb[0].mxu0
        %v5486 = vadd.f32 %v5204, %v5485
        %v5487 = vpop.f32.mrb[0].mxu0
        %v5488 = vadd.f32 %v5208, %v5487
        %v5489 = vpop.f32.mrb[0].mxu0
        %v5490 = vadd.f32 %v5204, %v5489
        %v5491 = vpop.f32.mrb[0].mxu0
        %v5492 = vadd.f32 %v5208, %v5491
        %5493 = vdwg.mxu0
        %5494 = vmatprep.subr.bf16.mxu0 %v5320
        %5495 = vmatpush1.bf16.msra.mxu0 %v5319
        %5496 = vmatprep.subr.bf16.mxu0 %v5324
        %5497 = vmatpush1.bf16.msra.mxu0 %v5323
        %5498 = vmatprep.subr.bf16.mxu0 %v5328
        %5499 = vmatpush1.bf16.msra.mxu0 %v5327
        %5500 = vmatprep.subr.bf16.mxu0 %v5332
        %5501 = vmatpush1.bf16.msra.mxu0 %v5331
        %5502 = vmatprep.subr.bf16.mxu0 %v5336
        %5503 = vmatpush1.bf16.msra.mxu0 %v5335
        %5504 = vmatprep.subr.bf16.mxu0 %v5340
        %5505 = vmatpush1.bf16.msra.mxu0 %v5339
        %5506 = vmatprep.subr.bf16.mxu0 %v5344
        %5507 = vmatpush1.bf16.msra.mxu0 %v5343
        %5508 = vmatprep.subr.bf16.mxu0 %v5348
        %5509 = vmatpush1.bf16.msra.mxu0 %v5347
        %5510 = vmatprep.subr.bf16.mxu0 0
        %5511 = vmatpush1.bf16.msra.mxu0 0
        %5512 = vmatprep.subr.bf16.mxu0 0
        %5513 = vmatpush1.bf16.msra.mxu0 0
        %5514 = vmatprep.subr.bf16.mxu0 0
        %5515 = vmatpush1.bf16.msra.mxu0 0
        %5516 = vmatprep.subr.bf16.mxu0 0
        %5517 = vmatpush1.bf16.msra.mxu0 0
        %5518 = vmatprep.subr.bf16.mxu0 0
        %5519 = vmatpush1.bf16.msra.mxu0 0
        %5520 = vmatprep.subr.bf16.mxu0 0
        %5521 = vmatpush1.bf16.msra.mxu0 0
        %5522 = vmatprep.subr.bf16.mxu0 0
        %5523 = vmatpush1.bf16.msra.mxu0 0
        %5524 = vmatprep.subr.bf16.mxu0 0
        %5525 = vmatpush1.bf16.msra.mxu0 0
        %5526 = vmatprep.mubr.bf16.mxu0 0
        %5527 = vmatmul.mubr.bf16.gmra.mrb[0].mxu0 %v5159
        %v5528 = vpop.f32.mrb[0].mxu0
        %v5529 = vadd.f32 %v5212, %v5528
        %v5530 = vpop.f32.mrb[0].mxu0
        %v5531 = vadd.f32 %v5216, %v5530
        %v5532 = vpop.f32.mrb[0].mxu0
        %v5533 = vadd.f32 %v5212, %v5532
        %v5534 = vpop.f32.mrb[0].mxu0
        %v5535 = vadd.f32 %v5216, %v5534
        %5536 = vmatprep.mubr.bf16.mxu0 0
        %5537 = vmatmul.mubr.bf16.gmra.mrb[0].mxu0 %v5160
        %v5538 = vpop.f32.mrb[0].mxu0
        %v5539 = vadd.f32 %v5212, %v5538
        %v5540 = vpop.f32.mrb[0].mxu0
        %v5541 = vadd.f32 %v5216, %v5540
        %v5542 = vpop.f32.mrb[0].mxu0
        %v5543 = vadd.f32 %v5212, %v5542
        %v5544 = vpop.f32.mrb[0].mxu0
        %v5545 = vadd.f32 %v5216, %v5544
        %5546 = vmatprep.mubr.bf16.mxu0 0
        %5547 = vmatmul.mubr.bf16.gmra.mrb[0].mxu0 %v5161
        %v5548 = vpop.f32.mrb[0].mxu0
        %v5549 = vadd.f32 %v5212, %v5548
        %v5550 = vpop.f32.mrb[0].mxu0
        %v5551 = vadd.f32 %v5216, %v5550
        %v5552 = vpop.f32.mrb[0].mxu0
        %v5553 = vadd.f32 %v5212, %v5552
        %v5554 = vpop.f32.mrb[0].mxu0
        %v5555 = vadd.f32 %v5216, %v5554
        %5556 = vmatprep.mubr.bf16.mxu0 0
        %5557 = vmatmul.mubr.bf16.gmra.mrb[0].mxu0 %v5162
        %v5558 = vpop.f32.mrb[0].mxu0
        %v5559 = vadd.f32 %v5212, %v5558
        %v5560 = vpop.f32.mrb[0].mxu0
        %v5561 = vadd.f32 %v5216, %v5560
        %v5562 = vpop.f32.mrb[0].mxu0
        %v5563 = vadd.f32 %v5212, %v5562
        %v5564 = vpop.f32.mrb[0].mxu0
        %v5565 = vadd.f32 %v5216, %v5564
        %5566 = vmatprep.mubr.bf16.mxu0 0
        %5567 = vmatmul.mubr.bf16.gmra.mrb[0].mxu0 %v5163
        %v5568 = vpop.f32.mrb[0].mxu0
        %v5569 = vadd.f32 %v5212, %v5568
        %v5570 = vpop.f32.mrb[0].mxu0
        %v5571 = vadd.f32 %v5216, %v5570
        %v5572 = vpop.f32.mrb[0].mxu0
        %v5573 = vadd.f32 %v5212, %v5572
        %v5574 = vpop.f32.mrb[0].mxu0
        %v5575 = vadd.f32 %v5216, %v5574
        %5576 = vmatprep.mubr.bf16.mxu0 0
        %5577 = vmatmul.mubr.bf16.gmra.mrb[0].mxu0 %v5164
        %v5578 = vpop.f32.mrb[0].mxu0
        %v5579 = vadd.f32 %v5212, %v5578
        %v5580 = vpop.f32.mrb[0].mxu0
        %v5581 = vadd.f32 %v5216, %v5580
        %v5582 = vpop.f32.mrb[0].mxu0
        %v5583 = vadd.f32 %v5212, %v5582
        %v5584 = vpop.f32.mrb[0].mxu0
        %v5585 = vadd.f32 %v5216, %v5584
        %5586 = vmatprep.mubr.bf16.mxu0 0
        %5587 = vmatmul.mubr.bf16.gmra.mrb[0].mxu0 %v5165
        %v5588 = vpop.f32.mrb[0].mxu0
        %v5589 = vadd.f32 %v5212, %v5588
        %v5590 = vpop.f32.mrb[0].mxu0
        %v5591 = vadd.f32 %v5216, %v5590
        %v5592 = vpop.f32.mrb[0].mxu0
        %v5593 = vadd.f32 %v5212, %v5592
        %v5594 = vpop.f32.mrb[0].mxu0
        %v5595 = vadd.f32 %v5216, %v5594
        %5596 = vmatprep.mubr.bf16.mxu0 0
        %5597 = vmatmul.mubr.bf16.gmra.mrb[0].mxu0 %v5166
        %v5598 = vpop.f32.mrb[0].mxu0
        %v5599 = vadd.f32 %v5212, %v5598
        %v5600 = vpop.f32.mrb[0].mxu0
        %v5601 = vadd.f32 %v5216, %v5600
        %v5602 = vpop.f32.mrb[0].mxu0
        %v5603 = vadd.f32 %v5212, %v5602
        %v5604 = vpop.f32.mrb[0].mxu0
        %v5605 = vadd.f32 %v5216, %v5604
        %5606 = vdwg.mxu0
        %v5607 = vmax.f32 %v5416, 0.0
        %v5608 = vmax.f32 %v5418, 0.0
        %v5609 = vmax.f32 %v5529, 0.0
        %v5610 = vmax.f32 %v5531, 0.0
        %v5611 = vmax.f32 %v5420, 0.0
        %v5612 = vmax.f32 %v5422, 0.0
        %v5613 = vmax.f32 %v5533, 0.0
        %v5614 = vmax.f32 %v5535, 0.0
        %v5615 = vmax.f32 %v5426, 0.0
        %v5616 = vmax.f32 %v5428, 0.0
        %v5617 = vmax.f32 %v5539, 0.0
        %v5618 = vmax.f32 %v5541, 0.0
        %v5619 = vmax.f32 %v5430, 0.0
        %v5620 = vmax.f32 %v5432, 0.0
        %v5621 = vmax.f32 %v5543, 0.0
        %v5622 = vmax.f32 %v5545, 0.0
        %v5623 = vmax.f32 %v5436, 0.0
        %v5624 = vmax.f32 %v5438, 0.0
        %v5625 = vmax.f32 %v5549, 0.0
        %v5626 = vmax.f32 %v5551, 0.0
        %v5627 = vmax.f32 %v5440, 0.0
        %v5628 = vmax.f32 %v5442, 0.0
        %v5629 = vmax.f32 %v5553, 0.0
        %v5630 = vmax.f32 %v5555, 0.0
        %v5631 = vmax.f32 %v5446, 0.0
        %v5632 = vmax.f32 %v5448, 0.0
        %v5633 = vmax.f32 %v5559, 0.0
        %v5634 = vmax.f32 %v5561, 0.0
        %v5635 = vmax.f32 %v5450, 0.0
        %v5636 = vmax.f32 %v5452, 0.0
        %v5637 = vmax.f32 %v5563, 0.0
        %v5638 = vmax.f32 %v5565, 0.0
        %v5639 = vmax.f32 %v5456, 0.0
        %v5640 = vmax.f32 %v5458, 0.0
        %v5641 = vmax.f32 %v5569, 0.0
        %v5642 = vmax.f32 %v5571, 0.0
        %v5643 = vmax.f32 %v5460, 0.0
        %v5644 = vmax.f32 %v5462, 0.0
        %v5645 = vmax.f32 %v5573, 0.0
        %v5646 = vmax.f32 %v5575, 0.0
        %v5647 = vmax.f32 %v5466, 0.0
        %v5648 = vmax.f32 %v5468, 0.0
        %v5649 = vmax.f32 %v5579, 0.0
        %v5650 = vmax.f32 %v5581, 0.0
        %v5651 = vmax.f32 %v5470, 0.0
        %v5652 = vmax.f32 %v5472, 0.0
        %v5653 = vmax.f32 %v5583, 0.0
        %v5654 = vmax.f32 %v5585, 0.0
        %v5655 = vmax.f32 %v5476, 0.0
        %v5656 = vmax.f32 %v5478, 0.0
        %v5657 = vmax.f32 %v5589, 0.0
        %v5658 = vmax.f32 %v5591, 0.0
        %v5659 = vmax.f32 %v5480, 0.0
        %v5660 = vmax.f32 %v5482, 0.0
        %v5661 = vmax.f32 %v5593, 0.0
        %v5662 = vmax.f32 %v5595, 0.0
        %v5663 = vmax.f32 %v5486, 0.0
        %v5664 = vmax.f32 %v5488, 0.0
        %v5665 = vmax.f32 %v5599, 0.0
        %v5666 = vmax.f32 %v5601, 0.0
        %v5667 = vmax.f32 %v5490, 0.0
        %v5668 = vmax.f32 %v5492, 0.0
        %v5669 = vmax.f32 %v5603, 0.0
        %v5670 = vmax.f32 %v5605, 0.0
        %v5671 = vpack.c.bf16 %v5611, %v5607
        %v5672 = vpack.c.bf16 %v5612, %v5608
        %v5673 = vpack.c.bf16 %v5613, %v5609
        %v5674 = vpack.c.bf16 %v5614, %v5610
        %v5675 = vpack.c.bf16 %v5619, %v5615
        %v5676 = vpack.c.bf16 %v5620, %v5616
        %v5677 = vpack.c.bf16 %v5621, %v5617
        %v5678 = vpack.c.bf16 %v5622, %v5618
        %v5679 = vpack.c.bf16 %v5627, %v5623
        %v5680 = vpack.c.bf16 %v5628, %v5624
        %v5681 = vpack.c.bf16 %v5629, %v5625
        %v5682 = vpack.c.bf16 %v5630, %v5626
        %v5683 = vpack.c.bf16 %v5635, %v5631
        %v5684 = vpack.c.bf16 %v5636, %v5632
        %v5685 = vpack.c.bf16 %v5637, %v5633
        %v5686 = vpack.c.bf16 %v5638, %v5634
        %v5687 = vpack.c.bf16 %v5643, %v5639
        %v5688 = vpack.c.bf16 %v5644, %v5640
        %v5689 = vpack.c.bf16 %v5645, %v5641
        %v5690 = vpack.c.bf16 %v5646, %v5642
        %v5691 = vpack.c.bf16 %v5651, %v5647
        %v5692 = vpack.c.bf16 %v5652, %v5648
        %v5693 = vpack.c.bf16 %v5653, %v5649
        %v5694 = vpack.c.bf16 %v5654, %v5650
        %v5695 = vpack.c.bf16 %v5659, %v5655
        %v5696 = vpack.c.bf16 %v5660, %v5656
        %v5697 = vpack.c.bf16 %v5661, %v5657
        %v5698 = vpack.c.bf16 %v5662, %v5658
        %v5699 = vpack.c.bf16 %v5667, %v5663
        %v5700 = vpack.c.bf16 %v5668, %v5664
        %v5701 = vpack.c.bf16 %v5669, %v5665
        %v5702 = vpack.c.bf16 %v5670, %v5666
        %v5703 = vld [vmem:[%s858] sm:$0xf]
        %v5704 = vld [vmem:[%s858 + $0x4] sm:$0xf]
        %v5705 = vld [vmem:[%s858 + $0x8] sm:$0xf]
        %v5706 = vld [vmem:[%s858 + $0xc] sm:$0xf]
        %v5707 = vld [vmem:[%s858 + $0x10] sm:$0xf]
        %v5708 = vld [vmem:[%s858 + $0x14] sm:$0xf]
        %v5709 = vld [vmem:[%s858 + $0x18] sm:$0xf]
        %v5710 = vld [vmem:[%s858 + $0x1c] sm:$0xf]
        %v5711 = vld [vmem:[%s858 + $0x20] sm:$0xf]
        %v5712 = vld [vmem:[%s858 + $0x24] sm:$0xf]
        %v5713 = vld [vmem:[%s858 + $0x28] sm:$0xf]
        %v5714 = vld [vmem:[%s858 + $0x2c] sm:$0xf]
        %v5715 = vld [vmem:[%s858 + $0x30] sm:$0xf]
        %v5716 = vld [vmem:[%s858 + $0x34] sm:$0xf]
        %v5717 = vld [vmem:[%s858 + $0x38] sm:$0xf]
        %v5718 = vld [vmem:[%s858 + $0x3c] sm:$0xf]
        %v5719 = vld [vmem:[%s858 + $0x40] sm:$0xf]
        %v5720 = vld [vmem:[%s858 + $0x44] sm:$0xf]
        %v5721 = vld [vmem:[%s858 + $0x48] sm:$0xf]
        %v5722 = vld [vmem:[%s858 + $0x4c] sm:$0xf]
        %v5723 = vld [vmem:[%s858 + $0x50] sm:$0xf]
        %v5724 = vld [vmem:[%s858 + $0x54] sm:$0xf]
        %v5725 = vld [vmem:[%s858 + $0x58] sm:$0xf]
        %v5726 = vld [vmem:[%s858 + $0x5c] sm:$0xf]
        %v5727 = vld [vmem:[%s858 + $0x60] sm:$0xf]
        %v5728 = vld [vmem:[%s858 + $0x64] sm:$0xf]
        %v5729 = vld [vmem:[%s858 + $0x68] sm:$0xf]
        %v5730 = vld [vmem:[%s858 + $0x6c] sm:$0xf]
        %v5731 = vld [vmem:[%s858 + $0x70] sm:$0xf]
        %v5732 = vld [vmem:[%s858 + $0x74] sm:$0xf]
        %v5733 = vld [vmem:[%s858 + $0x78] sm:$0xf]
        %v5734 = vld [vmem:[%s858 + $0x7c] sm:$0xf]
        %v5735 = vld [vmem:[%s858 + $0x80] sm:$0xf]
        %v5736 = vld [vmem:[%s858 + $0x84] sm:$0xf]
        %v5737 = vld [vmem:[%s858 + $0x88] sm:$0xf]
        %v5738 = vld [vmem:[%s858 + $0x8c] sm:$0xf]
        %v5739 = vld [vmem:[%s858 + $0x90] sm:$0xf]
        %v5740 = vld [vmem:[%s858 + $0x94] sm:$0xf]
        %v5741 = vld [vmem:[%s858 + $0x98] sm:$0xf]
        %v5742 = vld [vmem:[%s858 + $0x9c] sm:$0xf]
        %v5743 = vld [vmem:[%s858 + $0xa0] sm:$0xf]
        %v5744 = vld [vmem:[%s858 + $0xa4] sm:$0xf]
        %v5745 = vld [vmem:[%s858 + $0xa8] sm:$0xf]
        %v5746 = vld [vmem:[%s858 + $0xac] sm:$0xf]
        %v5747 = vld [vmem:[%s858 + $0xb0] sm:$0xf]
        %v5748 = vld [vmem:[%s858 + $0xb4] sm:$0xf]
        %v5749 = vld [vmem:[%s858 + $0xb8] sm:$0xf]
        %v5750 = vld [vmem:[%s858 + $0xbc] sm:$0xf]
        %v5751 = vld [vmem:[%s858 + $0xc0] sm:$0xf]
        %v5752 = vld [vmem:[%s858 + $0xc4] sm:$0xf]
        %v5753 = vld [vmem:[%s858 + $0xc8] sm:$0xf]
        %v5754 = vld [vmem:[%s858 + $0xcc] sm:$0xf]
        %v5755 = vld [vmem:[%s858 + $0xd0] sm:$0xf]
        %v5756 = vld [vmem:[%s858 + $0xd4] sm:$0xf]
        %v5757 = vld [vmem:[%s858 + $0xd8] sm:$0xf]
        %v5758 = vld [vmem:[%s858 + $0xdc] sm:$0xf]
        %v5759 = vld [vmem:[%s858 + $0xe0] sm:$0xf]
        %v5760 = vld [vmem:[%s858 + $0xe4] sm:$0xf]
        %v5761 = vld [vmem:[%s858 + $0xe8] sm:$0xf]
        %v5762 = vld [vmem:[%s858 + $0xec] sm:$0xf]
        %v5763 = vld [vmem:[%s858 + $0xf0] sm:$0xf]
        %v5764 = vld [vmem:[%s858 + $0xf4] sm:$0xf]
        %v5765 = vld [vmem:[%s858 + $0xf8] sm:$0xf]
        %v5766 = vld [vmem:[%s858 + $0xfc] sm:$0xf]
        %v5767 = vld [vmem:[%s866] sm:$0x1]
        %v5769 = vlaneseq
        %v5770 = vshrl.u32 %v5769, 7
        %v5771 = vsub.s32 0, %v5770
        %v5772 = vrot.slane %v5767, %v5771
        %v5838 = vunpack.c.l.b16 %v5703
        %v5839 = vunpack.c.l.b16 %v5704
        %v5840 = vunpack.c.l.b16 %v5705
        %v5841 = vunpack.c.l.b16 %v5706
        %v5842 = vunpack.c.l.b16 %v5707
        %v5843 = vunpack.c.l.b16 %v5708
        %v5844 = vunpack.c.l.b16 %v5709
        %v5845 = vunpack.c.l.b16 %v5710
        %v5846 = vunpack.c.l.b16 %v5711
        %v5847 = vunpack.c.l.b16 %v5712
        %v5848 = vunpack.c.l.b16 %v5713
        %v5849 = vunpack.c.l.b16 %v5714
        %v5850 = vunpack.c.l.b16 %v5715
        %v5851 = vunpack.c.l.b16 %v5716
        %v5852 = vunpack.c.l.b16 %v5717
        %v5853 = vunpack.c.l.b16 %v5718
        %v5854 = vunpack.c.l.b16 %v5719
        %v5855 = vunpack.c.l.b16 %v5720
        %v5856 = vunpack.c.l.b16 %v5721
        %v5857 = vunpack.c.l.b16 %v5722
        %v5858 = vunpack.c.l.b16 %v5723
        %v5859 = vunpack.c.l.b16 %v5724
        %v5860 = vunpack.c.l.b16 %v5725
        %v5861 = vunpack.c.l.b16 %v5726
        %v5862 = vunpack.c.l.b16 %v5727
        %v5863 = vunpack.c.l.b16 %v5728
        %v5864 = vunpack.c.l.b16 %v5729
        %v5865 = vunpack.c.l.b16 %v5730
        %v5866 = vunpack.c.l.b16 %v5731
        %v5867 = vunpack.c.l.b16 %v5732
        %v5868 = vunpack.c.l.b16 %v5733
        %v5869 = vunpack.c.l.b16 %v5734
        %v5870 = vunpack.c.l.b16 %v5735
        %v5871 = vunpack.c.l.b16 %v5736
        %v5872 = vunpack.c.l.b16 %v5737
        %v5873 = vunpack.c.l.b16 %v5738
        %v5874 = vunpack.c.l.b16 %v5739
        %v5875 = vunpack.c.l.b16 %v5740
        %v5876 = vunpack.c.l.b16 %v5741
        %v5877 = vunpack.c.l.b16 %v5742
        %v5878 = vunpack.c.l.b16 %v5743
        %v5879 = vunpack.c.l.b16 %v5744
        %v5880 = vunpack.c.l.b16 %v5745
        %v5881 = vunpack.c.l.b16 %v5746
        %v5882 = vunpack.c.l.b16 %v5747
        %v5883 = vunpack.c.l.b16 %v5748
        %v5884 = vunpack.c.l.b16 %v5749
        %v5885 = vunpack.c.l.b16 %v5750
        %v5886 = vunpack.c.l.b16 %v5751
        %v5887 = vunpack.c.l.b16 %v5752
        %v5888 = vunpack.c.l.b16 %v5753
        %v5889 = vunpack.c.l.b16 %v5754
        %v5890 = vunpack.c.l.b16 %v5755
        %v5891 = vunpack.c.l.b16 %v5756
        %v5892 = vunpack.c.l.b16 %v5757
        %v5893 = vunpack.c.l.b16 %v5758
        %v5894 = vunpack.c.l.b16 %v5759
        %v5895 = vunpack.c.l.b16 %v5760
        %v5896 = vunpack.c.l.b16 %v5761
        %v5897 = vunpack.c.l.b16 %v5762
        %v5898 = vunpack.c.l.b16 %v5763
        %v5899 = vunpack.c.l.b16 %v5764
        %v5900 = vunpack.c.l.b16 %v5765
        %v5901 = vunpack.c.l.b16 %v5766
        %v5902 = vpack.c.b16 %v5839, %v5838
        %v5903 = vpack.c.b16 %v5841, %v5840
        %v5904 = vpack.c.b16 %v5843, %v5842
        %v5905 = vpack.c.b16 %v5845, %v5844
        %v5906 = vpack.c.b16 %v5847, %v5846
        %v5907 = vpack.c.b16 %v5849, %v5848
        %v5908 = vpack.c.b16 %v5851, %v5850
        %v5909 = vpack.c.b16 %v5853, %v5852
        %v5910 = vpack.c.b16 %v5855, %v5854
        %v5911 = vpack.c.b16 %v5857, %v5856
        %v5912 = vpack.c.b16 %v5859, %v5858
        %v5913 = vpack.c.b16 %v5861, %v5860
        %v5914 = vpack.c.b16 %v5863, %v5862
        %v5915 = vpack.c.b16 %v5865, %v5864
        %v5916 = vpack.c.b16 %v5867, %v5866
        %v5917 = vpack.c.b16 %v5869, %v5868
        %v5918 = vpack.c.b16 %v5871, %v5870
        %v5919 = vpack.c.b16 %v5873, %v5872
        %v5920 = vpack.c.b16 %v5875, %v5874
        %v5921 = vpack.c.b16 %v5877, %v5876
        %v5922 = vpack.c.b16 %v5879, %v5878
        %v5923 = vpack.c.b16 %v5881, %v5880
        %v5924 = vpack.c.b16 %v5883, %v5882
        %v5925 = vpack.c.b16 %v5885, %v5884
        %v5926 = vpack.c.b16 %v5887, %v5886
        %v5927 = vpack.c.b16 %v5889, %v5888
        %v5928 = vpack.c.b16 %v5891, %v5890
        %v5929 = vpack.c.b16 %v5893, %v5892
        %v5930 = vpack.c.b16 %v5895, %v5894
        %v5931 = vpack.c.b16 %v5897, %v5896
        %v5932 = vpack.c.b16 %v5899, %v5898
        %v5933 = vpack.c.b16 %v5901, %v5900
        %5966 = vmatprep.subr.bf16.mxu0 0
        %5967 = vmatpush1.bf16.msra.mxu0 %v5902
        %5968 = vmatprep.subr.bf16.mxu0 0
        %5969 = vmatpush1.bf16.msra.mxu0 %v5903
        %5970 = vmatprep.subr.bf16.mxu0 0
        %5971 = vmatpush1.bf16.msra.mxu0 %v5904
        %5972 = vmatprep.subr.bf16.mxu0 0
        %5973 = vmatpush1.bf16.msra.mxu0 %v5905
        %5974 = vmatprep.subr.bf16.mxu0 0
        %5975 = vmatpush1.bf16.msra.mxu0 %v5906
        %5976 = vmatprep.subr.bf16.mxu0 0
        %5977 = vmatpush1.bf16.msra.mxu0 %v5907
        %5978 = vmatprep.subr.bf16.mxu0 0
        %5979 = vmatpush1.bf16.msra.mxu0 %v5908
        %5980 = vmatprep.subr.bf16.mxu0 0
        %5981 = vmatpush1.bf16.msra.mxu0 %v5909
        %5982 = vmatprep.subr.bf16.mxu0 0
        %5983 = vmatpush1.bf16.msra.mxu0 %v5910
        %5984 = vmatprep.subr.bf16.mxu0 0
        %5985 = vmatpush1.bf16.msra.mxu0 %v5911
        %5986 = vmatprep.subr.bf16.mxu0 0
        %5987 = vmatpush1.bf16.msra.mxu0 %v5912
        %5988 = vmatprep.subr.bf16.mxu0 0
        %5989 = vmatpush1.bf16.msra.mxu0 %v5913
        %5990 = vmatprep.subr.bf16.mxu0 0
        %5991 = vmatpush1.bf16.msra.mxu0 %v5914
        %5992 = vmatprep.subr.bf16.mxu0 0
        %5993 = vmatpush1.bf16.msra.mxu0 %v5915
        %5994 = vmatprep.subr.bf16.mxu0 0
        %5995 = vmatpush1.bf16.msra.mxu0 %v5916
        %5996 = vmatprep.subr.bf16.mxu0 0
        %5997 = vmatpush1.bf16.msra.mxu0 %v5917
        %5998 = vmatprep.mubr.bf16.mxu0 %v5672
        %5999 = vmatmul.mubr.bf16.gmra.mrb[0].mxu0 %v5671
        %v6000 = vpop.f32.mrb[0].mxu0
        %v6001 = vadd.f32 %v5772, %v6000
        %v6002 = vpop.f32.mrb[0].mxu0
        %v6003 = vpop.f32.mrb[0].mxu0
        %v6004 = vadd.f32 %v5772, %v6003
        %v6005 = vpop.f32.mrb[0].mxu0
        %6006 = vmatprep.mubr.bf16.mxu0 %v5676
        %6007 = vmatmul.mubr.bf16.gmra.mrb[0].mxu0 %v5675
        %v6008 = vpop.f32.mrb[0].mxu0
        %v6009 = vadd.f32 %v5772, %v6008
        %v6010 = vpop.f32.mrb[0].mxu0
        %v6011 = vpop.f32.mrb[0].mxu0
        %v6012 = vadd.f32 %v5772, %v6011
        %v6013 = vpop.f32.mrb[0].mxu0
        %6014 = vmatprep.mubr.bf16.mxu0 %v5680
        %6015 = vmatmul.mubr.bf16.gmra.mrb[0].mxu0 %v5679
        %v6016 = vpop.f32.mrb[0].mxu0
        %v6017 = vadd.f32 %v5772, %v6016
        %v6018 = vpop.f32.mrb[0].mxu0
        %v6019 = vpop.f32.mrb[0].mxu0
        %v6020 = vadd.f32 %v5772, %v6019
        %v6021 = vpop.f32.mrb[0].mxu0
        %6022 = vmatprep.mubr.bf16.mxu0 %v5684
        %6023 = vmatmul.mubr.bf16.gmra.mrb[0].mxu0 %v5683
        %v6024 = vpop.f32.mrb[0].mxu0
        %v6025 = vadd.f32 %v5772, %v6024
        %v6026 = vpop.f32.mrb[0].mxu0
        %v6027 = vpop.f32.mrb[0].mxu0
        %v6028 = vadd.f32 %v5772, %v6027
        %v6029 = vpop.f32.mrb[0].mxu0
        %6030 = vmatprep.mubr.bf16.mxu0 %v5688
        %6031 = vmatmul.mubr.bf16.gmra.mrb[0].mxu0 %v5687
        %v6032 = vpop.f32.mrb[0].mxu0
        %v6033 = vadd.f32 %v5772, %v6032
        %v6034 = vpop.f32.mrb[0].mxu0
        %v6035 = vpop.f32.mrb[0].mxu0
        %v6036 = vadd.f32 %v5772, %v6035
        %v6037 = vpop.f32.mrb[0].mxu0
        %6038 = vmatprep.mubr.bf16.mxu0 %v5692
        %6039 = vmatmul.mubr.bf16.gmra.mrb[0].mxu0 %v5691
        %v6040 = vpop.f32.mrb[0].mxu0
        %v6041 = vadd.f32 %v5772, %v6040
        %v6042 = vpop.f32.mrb[0].mxu0
        %v6043 = vpop.f32.mrb[0].mxu0
        %v6044 = vadd.f32 %v5772, %v6043
        %v6045 = vpop.f32.mrb[0].mxu0
        %6046 = vmatprep.mubr.bf16.mxu0 %v5696
        %6047 = vmatmul.mubr.bf16.gmra.mrb[0].mxu0 %v5695
        %v6048 = vpop.f32.mrb[0].mxu0
        %v6049 = vadd.f32 %v5772, %v6048
        %v6050 = vpop.f32.mrb[0].mxu0
        %v6051 = vpop.f32.mrb[0].mxu0
        %v6052 = vadd.f32 %v5772, %v6051
        %v6053 = vpop.f32.mrb[0].mxu0
        %6054 = vmatprep.mubr.bf16.mxu0 %v5700
        %6055 = vmatmul.mubr.bf16.gmra.mrb[0].mxu0 %v5699
        %v6056 = vpop.f32.mrb[0].mxu0
        %v6057 = vadd.f32 %v5772, %v6056
        %v6058 = vpop.f32.mrb[0].mxu0
        %v6059 = vpop.f32.mrb[0].mxu0
        %v6060 = vadd.f32 %v5772, %v6059
        %v6061 = vpop.f32.mrb[0].mxu0
        %6062 = vdwg.mxu0
        %6063 = vmatprep.subr.bf16.mxu0 0
        %6064 = vmatpush1.bf16.msra.mxu0 %v5918
        %6065 = vmatprep.subr.bf16.mxu0 0
        %6066 = vmatpush1.bf16.msra.mxu0 %v5919
        %6067 = vmatprep.subr.bf16.mxu0 0
        %6068 = vmatpush1.bf16.msra.mxu0 %v5920
        %6069 = vmatprep.subr.bf16.mxu0 0
        %6070 = vmatpush1.bf16.msra.mxu0 %v5921
        %6071 = vmatprep.subr.bf16.mxu0 0
        %6072 = vmatpush1.bf16.msra.mxu0 %v5922
        %6073 = vmatprep.subr.bf16.mxu0 0
        %6074 = vmatpush1.bf16.msra.mxu0 %v5923
        %6075 = vmatprep.subr.bf16.mxu0 0
        %6076 = vmatpush1.bf16.msra.mxu0 %v5924
        %6077 = vmatprep.subr.bf16.mxu0 0
        %6078 = vmatpush1.bf16.msra.mxu0 %v5925
        %6079 = vmatprep.subr.bf16.mxu0 0
        %6080 = vmatpush1.bf16.msra.mxu0 %v5926
        %6081 = vmatprep.subr.bf16.mxu0 0
        %6082 = vmatpush1.bf16.msra.mxu0 %v5927
        %6083 = vmatprep.subr.bf16.mxu0 0
        %6084 = vmatpush1.bf16.msra.mxu0 %v5928
        %6085 = vmatprep.subr.bf16.mxu0 0
        %6086 = vmatpush1.bf16.msra.mxu0 %v5929
        %6087 = vmatprep.subr.bf16.mxu0 0
        %6088 = vmatpush1.bf16.msra.mxu0 %v5930
        %6089 = vmatprep.subr.bf16.mxu0 0
        %6090 = vmatpush1.bf16.msra.mxu0 %v5931
        %6091 = vmatprep.subr.bf16.mxu0 0
        %6092 = vmatpush1.bf16.msra.mxu0 %v5932
        %6093 = vmatprep.subr.bf16.mxu0 0
        %6094 = vmatpush1.bf16.msra.mxu0 %v5933
        %6095 = vmatprep.mubr.bf16.mxu0 %v5674
        %6096 = vmatmul.mubr.bf16.gmra.mrb[0].mxu0 %v5673
        %v6097 = vpop.f32.mrb[0].mxu0
        %v6098 = vadd.f32 %v6001, %v6097
        %v6099 = vpop.f32.mrb[0].mxu0
        %v6100 = vpop.f32.mrb[0].mxu0
        %v6101 = vadd.f32 %v6004, %v6100
        %v6102 = vpop.f32.mrb[0].mxu0
        %6103 = vmatprep.mubr.bf16.mxu0 %v5678
        %6104 = vmatmul.mubr.bf16.gmra.mrb[0].mxu0 %v5677
        %v6105 = vpop.f32.mrb[0].mxu0
        %v6106 = vadd.f32 %v6009, %v6105
        %v6107 = vpop.f32.mrb[0].mxu0
        %v6108 = vpop.f32.mrb[0].mxu0
        %v6109 = vadd.f32 %v6012, %v6108
        %v6110 = vpop.f32.mrb[0].mxu0
        %6111 = vmatprep.mubr.bf16.mxu0 %v5682
        %6112 = vmatmul.mubr.bf16.gmra.mrb[0].mxu0 %v5681
        %v6113 = vpop.f32.mrb[0].mxu0
        %v6114 = vadd.f32 %v6017, %v6113
        %v6115 = vpop.f32.mrb[0].mxu0
        %v6116 = vpop.f32.mrb[0].mxu0
        %v6117 = vadd.f32 %v6020, %v6116
        %v6118 = vpop.f32.mrb[0].mxu0
        %6119 = vmatprep.mubr.bf16.mxu0 %v5686
        %6120 = vmatmul.mubr.bf16.gmra.mrb[0].mxu0 %v5685
        %v6121 = vpop.f32.mrb[0].mxu0
        %v6122 = vadd.f32 %v6025, %v6121
        %v6123 = vpop.f32.mrb[0].mxu0
        %v6124 = vpop.f32.mrb[0].mxu0
        %v6125 = vadd.f32 %v6028, %v6124
        %v6126 = vpop.f32.mrb[0].mxu0
        %6127 = vmatprep.mubr.bf16.mxu0 %v5690
        %6128 = vmatmul.mubr.bf16.gmra.mrb[0].mxu0 %v5689
        %v6129 = vpop.f32.mrb[0].mxu0
        %v6130 = vadd.f32 %v6033, %v6129
        %v6131 = vpop.f32.mrb[0].mxu0
        %v6132 = vpop.f32.mrb[0].mxu0
        %v6133 = vadd.f32 %v6036, %v6132
        %v6134 = vpop.f32.mrb[0].mxu0
        %6135 = vmatprep.mubr.bf16.mxu0 %v5694
        %6136 = vmatmul.mubr.bf16.gmra.mrb[0].mxu0 %v5693
        %v6137 = vpop.f32.mrb[0].mxu0
        %v6138 = vadd.f32 %v6041, %v6137
        %v6139 = vpop.f32.mrb[0].mxu0
        %v6140 = vpop.f32.mrb[0].mxu0
        %v6141 = vadd.f32 %v6044, %v6140
        %v6142 = vpop.f32.mrb[0].mxu0
        %6143 = vmatprep.mubr.bf16.mxu0 %v5698
        %6144 = vmatmul.mubr.bf16.gmra.mrb[0].mxu0 %v5697
        %v6145 = vpop.f32.mrb[0].mxu0
        %v6146 = vadd.f32 %v6049, %v6145
        %v6147 = vpop.f32.mrb[0].mxu0
        %v6148 = vpop.f32.mrb[0].mxu0
        %v6149 = vadd.f32 %v6052, %v6148
        %v6150 = vpop.f32.mrb[0].mxu0
        %6151 = vmatprep.mubr.bf16.mxu0 %v5702
        %6152 = vmatmul.mubr.bf16.gmra.mrb[0].mxu0 %v5701
        %v6153 = vpop.f32.mrb[0].mxu0
        %v6154 = vadd.f32 %v6057, %v6153
        %v6155 = vpop.f32.mrb[0].mxu0
        %v6156 = vpop.f32.mrb[0].mxu0
        %v6157 = vadd.f32 %v6060, %v6156
        %v6158 = vpop.f32.mrb[0].mxu0
        %6159 = vdwg.mxu0
        %v6160 = vadd.f32 %v5143, %v6098
        %v6161 = vadd.f32 %v5144, %v6101
        %v6162 = vadd.f32 %v5145, %v6106
        %v6163 = vadd.f32 %v5146, %v6109
        %v6164 = vadd.f32 %v5147, %v6114
        %v6165 = vadd.f32 %v5148, %v6117
        %v6166 = vadd.f32 %v5149, %v6122
        %v6167 = vadd.f32 %v5150, %v6125
        %v6168 = vadd.f32 %v5151, %v6130
        %v6169 = vadd.f32 %v5152, %v6133
        %v6170 = vadd.f32 %v5153, %v6138
        %v6171 = vadd.f32 %v5154, %v6141
        %v6172 = vadd.f32 %v5155, %v6146
        %v6173 = vadd.f32 %v5156, %v6149
        %v6174 = vadd.f32 %v5157, %v6154
        %v6175 = vadd.f32 %v5158, %v6157
        %v6176 = vld [vmem:[%s874] sm:$0x1]
        %v6177 = vld [vmem:[%s882] sm:$0x1]
        %6178 = vadd.xlane.f32.xlu0 %v6160
        %v6179 = vpop.xlane.xlu0 %6178
        %6180 = vadd.xlane.f32.xlu0 %v6161
        %v6181 = vpop.xlane.xlu0 %6180
        %6182 = vadd.xlane.f32.xlu0 %v6162
        %v6183 = vpop.xlane.xlu0 %6182
        %6184 = vadd.xlane.f32.xlu0 %v6163
        %v6185 = vpop.xlane.xlu0 %6184
        %6186 = vadd.xlane.f32.xlu0 %v6164
        %v6187 = vpop.xlane.xlu0 %6186
        %6188 = vadd.xlane.f32.xlu0 %v6165
        %v6189 = vpop.xlane.xlu0 %6188
        %6190 = vadd.xlane.f32.xlu0 %v6166
        %v6191 = vpop.xlane.xlu0 %6190
        %6192 = vadd.xlane.f32.xlu0 %v6167
        %v6193 = vpop.xlane.xlu0 %6192
        %6194 = vadd.xlane.f32.xlu0 %v6168
        %v6195 = vpop.xlane.xlu0 %6194
        %6196 = vadd.xlane.f32.xlu0 %v6169
        %v6197 = vpop.xlane.xlu0 %6196
        %6198 = vadd.xlane.f32.xlu0 %v6170
        %v6199 = vpop.xlane.xlu0 %6198
        %6200 = vadd.xlane.f32.xlu0 %v6171
        %v6201 = vpop.xlane.xlu0 %6200
        %6202 = vadd.xlane.f32.xlu0 %v6172
        %v6203 = vpop.xlane.xlu0 %6202
        %6204 = vadd.xlane.f32.xlu0 %v6173
        %v6205 = vpop.xlane.xlu0 %6204
        %6206 = vadd.xlane.f32.xlu0 %v6174
        %v6207 = vpop.xlane.xlu0 %6206
        %6208 = vadd.xlane.f32.xlu0 %v6175
        %v6209 = vpop.xlane.xlu0 %6208
        %v6210 = vmul.f32 %v6179, %v4970
        %v6211 = vmul.f32 %v6181, %v4970
        %v6212 = vmul.f32 %v6183, %v4970
        %v6213 = vmul.f32 %v6185, %v4970
        %v6214 = vmul.f32 %v6187, %v4970
        %v6215 = vmul.f32 %v6189, %v4970
        %v6216 = vmul.f32 %v6191, %v4970
        %v6217 = vmul.f32 %v6193, %v4970
        %v6218 = vmul.f32 %v6195, %v4970
        %v6219 = vmul.f32 %v6197, %v4970
        %v6220 = vmul.f32 %v6199, %v4970
        %v6221 = vmul.f32 %v6201, %v4970
        %v6222 = vmul.f32 %v6203, %v4970
        %v6223 = vmul.f32 %v6205, %v4970
        %v6224 = vmul.f32 %v6207, %v4970
        %v6225 = vmul.f32 %v6209, %v4970
        %v6226 = vsub.f32 %v6160, %v6210
        %v6227 = vsub.f32 %v6161, %v6211
        %v6228 = vsub.f32 %v6162, %v6212
        %v6229 = vsub.f32 %v6163, %v6213
        %v6230 = vsub.f32 %v6164, %v6214
        %v6231 = vsub.f32 %v6165, %v6215
        %v6232 = vsub.f32 %v6166, %v6216
        %v6233 = vsub.f32 %v6167, %v6217
        %v6234 = vsub.f32 %v6168, %v6218
        %v6235 = vsub.f32 %v6169, %v6219
        %v6236 = vsub.f32 %v6170, %v6220
        %v6237 = vsub.f32 %v6171, %v6221
        %v6238 = vsub.f32 %v6172, %v6222
        %v6239 = vsub.f32 %v6173, %v6223
        %v6240 = vsub.f32 %v6174, %v6224
        %v6241 = vsub.f32 %v6175, %v6225
        %v6242 = vmul.f32 %v6226, %v6226
        %v6243 = vmul.f32 %v6227, %v6227
        %v6244 = vmul.f32 %v6228, %v6228
        %v6245 = vmul.f32 %v6229, %v6229
        %v6246 = vmul.f32 %v6230, %v6230
        %v6247 = vmul.f32 %v6231, %v6231
        %v6248 = vmul.f32 %v6232, %v6232
        %v6249 = vmul.f32 %v6233, %v6233
        %v6250 = vmul.f32 %v6234, %v6234
        %v6251 = vmul.f32 %v6235, %v6235
        %v6252 = vmul.f32 %v6236, %v6236
        %v6253 = vmul.f32 %v6237, %v6237
        %v6254 = vmul.f32 %v6238, %v6238
        %v6255 = vmul.f32 %v6239, %v6239
        %v6256 = vmul.f32 %v6240, %v6240
        %v6257 = vmul.f32 %v6241, %v6241
        %6258 = vadd.xlane.f32.xlu0 %v6242
        %v6259 = vpop.xlane.xlu0 %6258
        %6260 = vadd.xlane.f32.xlu0 %v6243
        %v6261 = vpop.xlane.xlu0 %6260
        %6262 = vadd.xlane.f32.xlu0 %v6244
        %v6263 = vpop.xlane.xlu0 %6262
        %6264 = vadd.xlane.f32.xlu0 %v6245
        %v6265 = vpop.xlane.xlu0 %6264
        %6266 = vadd.xlane.f32.xlu0 %v6246
        %v6267 = vpop.xlane.xlu0 %6266
        %6268 = vadd.xlane.f32.xlu0 %v6247
        %v6269 = vpop.xlane.xlu0 %6268
        %6270 = vadd.xlane.f32.xlu0 %v6248
        %v6271 = vpop.xlane.xlu0 %6270
        %6272 = vadd.xlane.f32.xlu0 %v6249
        %v6273 = vpop.xlane.xlu0 %6272
        %6274 = vadd.xlane.f32.xlu0 %v6250
        %v6275 = vpop.xlane.xlu0 %6274
        %6276 = vadd.xlane.f32.xlu0 %v6251
        %v6277 = vpop.xlane.xlu0 %6276
        %6278 = vadd.xlane.f32.xlu0 %v6252
        %v6279 = vpop.xlane.xlu0 %6278
        %6280 = vadd.xlane.f32.xlu0 %v6253
        %v6281 = vpop.xlane.xlu0 %6280
        %6282 = vadd.xlane.f32.xlu0 %v6254
        %v6283 = vpop.xlane.xlu0 %6282
        %6284 = vadd.xlane.f32.xlu0 %v6255
        %v6285 = vpop.xlane.xlu0 %6284
        %6286 = vadd.xlane.f32.xlu0 %v6256
        %v6287 = vpop.xlane.xlu0 %6286
        %6288 = vadd.xlane.f32.xlu0 %v6257
        %v6289 = vpop.xlane.xlu0 %6288
        %v6290 = vmul.f32 %v6259, %v4970
        %v6291 = vmul.f32 %v6261, %v4970
        %v6292 = vmul.f32 %v6263, %v4970
        %v6293 = vmul.f32 %v6265, %v4970
        %v6294 = vmul.f32 %v6267, %v4970
        %v6295 = vmul.f32 %v6269, %v4970
        %v6296 = vmul.f32 %v6271, %v4970
        %v6297 = vmul.f32 %v6273, %v4970
        %v6298 = vmul.f32 %v6275, %v4970
        %v6299 = vmul.f32 %v6277, %v4970
        %v6300 = vmul.f32 %v6279, %v4970
        %v6301 = vmul.f32 %v6281, %v4970
        %v6302 = vmul.f32 %v6283, %v4970
        %v6303 = vmul.f32 %v6285, %v4970
        %v6304 = vmul.f32 %v6287, %v4970
        %v6305 = vmul.f32 %v6289, %v4970
        %v6306 = vadd.f32 %v6290, 1e-05
        %v6307 = vadd.f32 %v6291, 1e-05
        %v6308 = vadd.f32 %v6292, 1e-05
        %v6309 = vadd.f32 %v6293, 1e-05
        %v6310 = vadd.f32 %v6294, 1e-05
        %v6311 = vadd.f32 %v6295, 1e-05
        %v6312 = vadd.f32 %v6296, 1e-05
        %v6313 = vadd.f32 %v6297, 1e-05
        %v6314 = vadd.f32 %v6298, 1e-05
        %v6315 = vadd.f32 %v6299, 1e-05
        %v6316 = vadd.f32 %v6300, 1e-05
        %v6317 = vadd.f32 %v6301, 1e-05
        %v6318 = vadd.f32 %v6302, 1e-05
        %v6319 = vadd.f32 %v6303, 1e-05
        %v6320 = vadd.f32 %v6304, 1e-05
        %v6321 = vadd.f32 %v6305, 1e-05
        %v6322 = vrsqrt.pop %v6306
        %v6323 = vrsqrt.pop %v6307
        %v6324 = vrsqrt.pop %v6308
        %v6325 = vrsqrt.pop %v6309
        %v6326 = vrsqrt.pop %v6310
        %v6327 = vrsqrt.pop %v6311
        %v6328 = vrsqrt.pop %v6312
        %v6329 = vrsqrt.pop %v6313
        %v6330 = vrsqrt.pop %v6314
        %v6331 = vrsqrt.pop %v6315
        %v6332 = vrsqrt.pop %v6316
        %v6333 = vrsqrt.pop %v6317
        %v6334 = vrsqrt.pop %v6318
        %v6335 = vrsqrt.pop %v6319
        %v6336 = vrsqrt.pop %v6320
        %v6337 = vrsqrt.pop %v6321
        %v6338 = vmul.f32 %v6226, %v6322
        %v6339 = vmul.f32 %v6227, %v6323
        %v6340 = vmul.f32 %v6228, %v6324
        %v6341 = vmul.f32 %v6229, %v6325
        %v6342 = vmul.f32 %v6230, %v6326
        %v6343 = vmul.f32 %v6231, %v6327
        %v6344 = vmul.f32 %v6232, %v6328
        %v6345 = vmul.f32 %v6233, %v6329
        %v6346 = vmul.f32 %v6234, %v6330
        %v6347 = vmul.f32 %v6235, %v6331
        %v6348 = vmul.f32 %v6236, %v6332
        %v6349 = vmul.f32 %v6237, %v6333
        %v6350 = vmul.f32 %v6238, %v6334
        %v6351 = vmul.f32 %v6239, %v6335
        %v6352 = vmul.f32 %v6240, %v6336
        %v6353 = vmul.f32 %v6241, %v6337
        %v6355 = vlaneseq
        %v6356 = vshrl.u32 %v6355, 7
        %v6357 = vsub.s32 0, %v6356
        %v6358 = vrot.slane %v6176, %v6357
        %v6360 = vmul.f32 %v6338, %v6358
        %v6361 = vmul.f32 %v6339, %v6358
        %v6362 = vmul.f32 %v6340, %v6358
        %v6363 = vmul.f32 %v6341, %v6358
        %v6364 = vmul.f32 %v6342, %v6358
        %v6365 = vmul.f32 %v6343, %v6358
        %v6366 = vmul.f32 %v6344, %v6358
        %v6367 = vmul.f32 %v6345, %v6358
        %v6368 = vmul.f32 %v6346, %v6358
        %v6369 = vmul.f32 %v6347, %v6358
        %v6370 = vmul.f32 %v6348, %v6358
        %v6371 = vmul.f32 %v6349, %v6358
        %v6372 = vmul.f32 %v6350, %v6358
        %v6373 = vmul.f32 %v6351, %v6358
        %v6374 = vmul.f32 %v6352, %v6358
        %v6375 = vmul.f32 %v6353, %v6358
        %v6377 = vlaneseq
        %v6378 = vshrl.u32 %v6377, 7
        %v6379 = vsub.s32 0, %v6378
        %v6380 = vrot.slane %v6177, %v6379
        %v6382 = vadd.f32 %v6360, %v6380
        %v6383 = vadd.f32 %v6361, %v6380
        %v6384 = vadd.f32 %v6362, %v6380
        %v6385 = vadd.f32 %v6363, %v6380
        %v6386 = vadd.f32 %v6364, %v6380
        %v6387 = vadd.f32 %v6365, %v6380
        %v6388 = vadd.f32 %v6366, %v6380
        %v6389 = vadd.f32 %v6367, %v6380
        %v6390 = vadd.f32 %v6368, %v6380
        %v6391 = vadd.f32 %v6369, %v6380
        %v6392 = vadd.f32 %v6370, %v6380
        %v6393 = vadd.f32 %v6371, %v6380
        %v6394 = vadd.f32 %v6372, %v6380
        %v6395 = vadd.f32 %v6373, %v6380
        %v6396 = vadd.f32 %v6374, %v6380
        %v6397 = vadd.f32 %v6375, %v6380
        %6398 = vst [vmem:[#allocation2] sm:$0xff] %v6382
        %6399 = vst [vmem:[#allocation2 + $0x8] sm:$0xff] %v6383
        %6400 = vst [vmem:[#allocation2 + $0x10] sm:$0xff] %v6384
        %6401 = vst [vmem:[#allocation2 + $0x18] sm:$0xff] %v6385
        %6402 = vst [vmem:[#allocation2 + $0x20] sm:$0xff] %v6386
        %6403 = vst [vmem:[#allocation2 + $0x28] sm:$0xff] %v6387
        %6404 = vst [vmem:[#allocation2 + $0x30] sm:$0xff] %v6388
        %6405 = vst [vmem:[#allocation2 + $0x38] sm:$0xff] %v6389
        %6406 = vst [vmem:[#allocation2 + $0x40] sm:$0xff] %v6390
        %6407 = vst [vmem:[#allocation2 + $0x48] sm:$0xff] %v6391
        %6408 = vst [vmem:[#allocation2 + $0x50] sm:$0xff] %v6392
        %6409 = vst [vmem:[#allocation2 + $0x58] sm:$0xff] %v6393
        %6410 = vst [vmem:[#allocation2 + $0x60] sm:$0xff] %v6394
        %6411 = vst [vmem:[#allocation2 + $0x68] sm:$0xff] %v6395
        %6412 = vst [vmem:[#allocation2 + $0x70] sm:$0xff] %v6396
        %6413 = vst [vmem:[#allocation2 + $0x78] sm:$0xff] %v6397
        %p6414 = scmp.eq.s32.totalorder %s50, 1
        // Predicated region
        $region153: #{image_generator_forward.1} parent=95 // pred_check
          %p6415 = pneg %p6414
        $region154: #{image_generator_forward.1} parent=95 // pred_check_branch
          %6417 = sbr.rel (%p6415) target = $region156
        $region155: #{image_generator_forward.1} parent=95 // pred_region
          %v6418 = vld [vmem:[#allocation17] sm:$0x1]
          %v6419 = vld [vmem:[#allocation19] sm:$0x1]
          %6420 = vadd.xlane.f32.xlu0 %v6382
          %v6421 = vpop.xlane.xlu0 %6420
          %6422 = vadd.xlane.f32.xlu0 %v6383
          %v6423 = vpop.xlane.xlu0 %6422
          %6424 = vadd.xlane.f32.xlu0 %v6384
          %v6425 = vpop.xlane.xlu0 %6424
          %6426 = vadd.xlane.f32.xlu0 %v6385
          %v6427 = vpop.xlane.xlu0 %6426
          %6428 = vadd.xlane.f32.xlu0 %v6386
          %v6429 = vpop.xlane.xlu0 %6428
          %6430 = vadd.xlane.f32.xlu0 %v6387
          %v6431 = vpop.xlane.xlu0 %6430
          %6432 = vadd.xlane.f32.xlu0 %v6388
          %v6433 = vpop.xlane.xlu0 %6432
          %6434 = vadd.xlane.f32.xlu0 %v6389
          %v6435 = vpop.xlane.xlu0 %6434
          %6436 = vadd.xlane.f32.xlu0 %v6390
          %v6437 = vpop.xlane.xlu0 %6436
          %6438 = vadd.xlane.f32.xlu0 %v6391
          %v6439 = vpop.xlane.xlu0 %6438
          %6440 = vadd.xlane.f32.xlu0 %v6392
          %v6441 = vpop.xlane.xlu0 %6440
          %6442 = vadd.xlane.f32.xlu0 %v6393
          %v6443 = vpop.xlane.xlu0 %6442
          %6444 = vadd.xlane.f32.xlu0 %v6394
          %v6445 = vpop.xlane.xlu0 %6444
          %6446 = vadd.xlane.f32.xlu0 %v6395
          %v6447 = vpop.xlane.xlu0 %6446
          %6448 = vadd.xlane.f32.xlu0 %v6396
          %v6449 = vpop.xlane.xlu0 %6448
          %6450 = vadd.xlane.f32.xlu0 %v6397
          %v6451 = vpop.xlane.xlu0 %6450
          %v6452 = vmul.f32 %v6421, %v4970
          %v6453 = vmul.f32 %v6423, %v4970
          %v6454 = vmul.f32 %v6425, %v4970
          %v6455 = vmul.f32 %v6427, %v4970
          %v6456 = vmul.f32 %v6429, %v4970
          %v6457 = vmul.f32 %v6431, %v4970
          %v6458 = vmul.f32 %v6433, %v4970
          %v6459 = vmul.f32 %v6435, %v4970
          %v6460 = vmul.f32 %v6437, %v4970
          %v6461 = vmul.f32 %v6439, %v4970
          %v6462 = vmul.f32 %v6441, %v4970
          %v6463 = vmul.f32 %v6443, %v4970
          %v6464 = vmul.f32 %v6445, %v4970
          %v6465 = vmul.f32 %v6447, %v4970
          %v6466 = vmul.f32 %v6449, %v4970
          %v6467 = vmul.f32 %v6451, %v4970
          %v6468 = vsub.f32 %v6382, %v6452
          %v6469 = vsub.f32 %v6383, %v6453
          %v6470 = vsub.f32 %v6384, %v6454
          %v6471 = vsub.f32 %v6385, %v6455
          %v6472 = vsub.f32 %v6386, %v6456
          %v6473 = vsub.f32 %v6387, %v6457
          %v6474 = vsub.f32 %v6388, %v6458
          %v6475 = vsub.f32 %v6389, %v6459
          %v6476 = vsub.f32 %v6390, %v6460
          %v6477 = vsub.f32 %v6391, %v6461
          %v6478 = vsub.f32 %v6392, %v6462
          %v6479 = vsub.f32 %v6393, %v6463
          %v6480 = vsub.f32 %v6394, %v6464
          %v6481 = vsub.f32 %v6395, %v6465
          %v6482 = vsub.f32 %v6396, %v6466
          %v6483 = vsub.f32 %v6397, %v6467
          %v6484 = vmul.f32 %v6468, %v6468
          %v6485 = vmul.f32 %v6469, %v6469
          %v6486 = vmul.f32 %v6470, %v6470
          %v6487 = vmul.f32 %v6471, %v6471
          %v6488 = vmul.f32 %v6472, %v6472
          %v6489 = vmul.f32 %v6473, %v6473
          %v6490 = vmul.f32 %v6474, %v6474
          %v6491 = vmul.f32 %v6475, %v6475
          %v6492 = vmul.f32 %v6476, %v6476
          %v6493 = vmul.f32 %v6477, %v6477
          %v6494 = vmul.f32 %v6478, %v6478
          %v6495 = vmul.f32 %v6479, %v6479
          %v6496 = vmul.f32 %v6480, %v6480
          %v6497 = vmul.f32 %v6481, %v6481
          %v6498 = vmul.f32 %v6482, %v6482
          %v6499 = vmul.f32 %v6483, %v6483
          %6500 = vadd.xlane.f32.xlu0 %v6484
          %v6501 = vpop.xlane.xlu0 %6500
          %6502 = vadd.xlane.f32.xlu0 %v6485
          %v6503 = vpop.xlane.xlu0 %6502
          %6504 = vadd.xlane.f32.xlu0 %v6486
          %v6505 = vpop.xlane.xlu0 %6504
          %6506 = vadd.xlane.f32.xlu0 %v6487
          %v6507 = vpop.xlane.xlu0 %6506
          %6508 = vadd.xlane.f32.xlu0 %v6488
          %v6509 = vpop.xlane.xlu0 %6508
          %6510 = vadd.xlane.f32.xlu0 %v6489
          %v6511 = vpop.xlane.xlu0 %6510
          %6512 = vadd.xlane.f32.xlu0 %v6490
          %v6513 = vpop.xlane.xlu0 %6512
          %6514 = vadd.xlane.f32.xlu0 %v6491
          %v6515 = vpop.xlane.xlu0 %6514
          %6516 = vadd.xlane.f32.xlu0 %v6492
          %v6517 = vpop.xlane.xlu0 %6516
          %6518 = vadd.xlane.f32.xlu0 %v6493
          %v6519 = vpop.xlane.xlu0 %6518
          %6520 = vadd.xlane.f32.xlu0 %v6494
          %v6521 = vpop.xlane.xlu0 %6520
          %6522 = vadd.xlane.f32.xlu0 %v6495
          %v6523 = vpop.xlane.xlu0 %6522
          %6524 = vadd.xlane.f32.xlu0 %v6496
          %v6525 = vpop.xlane.xlu0 %6524
          %6526 = vadd.xlane.f32.xlu0 %v6497
          %v6527 = vpop.xlane.xlu0 %6526
          %6528 = vadd.xlane.f32.xlu0 %v6498
          %v6529 = vpop.xlane.xlu0 %6528
          %6530 = vadd.xlane.f32.xlu0 %v6499
          %v6531 = vpop.xlane.xlu0 %6530
          %v6532 = vmul.f32 %v6501, %v4970
          %v6533 = vmul.f32 %v6503, %v4970
          %v6534 = vmul.f32 %v6505, %v4970
          %v6535 = vmul.f32 %v6507, %v4970
          %v6536 = vmul.f32 %v6509, %v4970
          %v6537 = vmul.f32 %v6511, %v4970
          %v6538 = vmul.f32 %v6513, %v4970
          %v6539 = vmul.f32 %v6515, %v4970
          %v6540 = vmul.f32 %v6517, %v4970
          %v6541 = vmul.f32 %v6519, %v4970
          %v6542 = vmul.f32 %v6521, %v4970
          %v6543 = vmul.f32 %v6523, %v4970
          %v6544 = vmul.f32 %v6525, %v4970
          %v6545 = vmul.f32 %v6527, %v4970
          %v6546 = vmul.f32 %v6529, %v4970
          %v6547 = vmul.f32 %v6531, %v4970
          %v6548 = vadd.f32 %v6532, 1e-05
          %v6549 = vadd.f32 %v6533, 1e-05
          %v6550 = vadd.f32 %v6534, 1e-05
          %v6551 = vadd.f32 %v6535, 1e-05
          %v6552 = vadd.f32 %v6536, 1e-05
          %v6553 = vadd.f32 %v6537, 1e-05
          %v6554 = vadd.f32 %v6538, 1e-05
          %v6555 = vadd.f32 %v6539, 1e-05
          %v6556 = vadd.f32 %v6540, 1e-05
          %v6557 = vadd.f32 %v6541, 1e-05
          %v6558 = vadd.f32 %v6542, 1e-05
          %v6559 = vadd.f32 %v6543, 1e-05
          %v6560 = vadd.f32 %v6544, 1e-05
          %v6561 = vadd.f32 %v6545, 1e-05
          %v6562 = vadd.f32 %v6546, 1e-05
          %v6563 = vadd.f32 %v6547, 1e-05
          %v6564 = vrsqrt.pop %v6548
          %v6565 = vrsqrt.pop %v6549
          %v6566 = vrsqrt.pop %v6550
          %v6567 = vrsqrt.pop %v6551
          %v6568 = vrsqrt.pop %v6552
          %v6569 = vrsqrt.pop %v6553
          %v6570 = vrsqrt.pop %v6554
          %v6571 = vrsqrt.pop %v6555
          %v6572 = vrsqrt.pop %v6556
          %v6573 = vrsqrt.pop %v6557
          %v6574 = vrsqrt.pop %v6558
          %v6575 = vrsqrt.pop %v6559
          %v6576 = vrsqrt.pop %v6560
          %v6577 = vrsqrt.pop %v6561
          %v6578 = vrsqrt.pop %v6562
          %v6579 = vrsqrt.pop %v6563
          %v6580 = vmul.f32 %v6468, %v6564
          %v6581 = vmul.f32 %v6469, %v6565
          %v6582 = vmul.f32 %v6470, %v6566
          %v6583 = vmul.f32 %v6471, %v6567
          %v6584 = vmul.f32 %v6472, %v6568
          %v6585 = vmul.f32 %v6473, %v6569
          %v6586 = vmul.f32 %v6474, %v6570
          %v6587 = vmul.f32 %v6475, %v6571
          %v6588 = vmul.f32 %v6476, %v6572
          %v6589 = vmul.f32 %v6477, %v6573
          %v6590 = vmul.f32 %v6478, %v6574
          %v6591 = vmul.f32 %v6479, %v6575
          %v6592 = vmul.f32 %v6480, %v6576
          %v6593 = vmul.f32 %v6481, %v6577
          %v6594 = vmul.f32 %v6482, %v6578
          %v6595 = vmul.f32 %v6483, %v6579
          %v6597 = vlaneseq
          %v6598 = vshrl.u32 %v6597, 7
          %v6599 = vsub.s32 0, %v6598
          %v6600 = vrot.slane %v6418, %v6599
          %v6602 = vmul.f32 %v6580, %v6600
          %v6603 = vmul.f32 %v6581, %v6600
          %v6604 = vmul.f32 %v6582, %v6600
          %v6605 = vmul.f32 %v6583, %v6600
          %v6606 = vmul.f32 %v6584, %v6600
          %v6607 = vmul.f32 %v6585, %v6600
          %v6608 = vmul.f32 %v6586, %v6600
          %v6609 = vmul.f32 %v6587, %v6600
          %v6610 = vmul.f32 %v6588, %v6600
          %v6611 = vmul.f32 %v6589, %v6600
          %v6612 = vmul.f32 %v6590, %v6600
          %v6613 = vmul.f32 %v6591, %v6600
          %v6614 = vmul.f32 %v6592, %v6600
          %v6615 = vmul.f32 %v6593, %v6600
          %v6616 = vmul.f32 %v6594, %v6600
          %v6617 = vmul.f32 %v6595, %v6600
          %v6619 = vlaneseq
          %v6620 = vshrl.u32 %v6619, 7
          %v6621 = vsub.s32 0, %v6620
          %v6622 = vrot.slane %v6419, %v6621
          %v6624 = vadd.f32 %v6602, %v6622
          %v6625 = vadd.f32 %v6603, %v6622
          %v6626 = vadd.f32 %v6604, %v6622
          %v6627 = vadd.f32 %v6605, %v6622
          %v6628 = vadd.f32 %v6606, %v6622
          %v6629 = vadd.f32 %v6607, %v6622
          %v6630 = vadd.f32 %v6608, %v6622
          %v6631 = vadd.f32 %v6609, %v6622
          %v6632 = vadd.f32 %v6610, %v6622
          %v6633 = vadd.f32 %v6611, %v6622
          %v6634 = vadd.f32 %v6612, %v6622
          %v6635 = vadd.f32 %v6613, %v6622
          %v6636 = vadd.f32 %v6614, %v6622
          %v6637 = vadd.f32 %v6615, %v6622
          %v6638 = vadd.f32 %v6616, %v6622
          %v6639 = vadd.f32 %v6617, %v6622
          %v6640 = vpack.c.bf16 %v6625, %v6624
          %v6641 = vpack.c.bf16 %v6627, %v6626
          %v6642 = vpack.c.bf16 %v6629, %v6628
          %v6643 = vpack.c.bf16 %v6631, %v6630
          %v6644 = vpack.c.bf16 %v6633, %v6632
          %v6645 = vpack.c.bf16 %v6635, %v6634
          %v6646 = vpack.c.bf16 %v6637, %v6636
          %v6647 = vpack.c.bf16 %v6639, %v6638
          %v6648 = vld [vmem:[#allocation20] sm:$0xf]
          %v6649 = vld [vmem:[#allocation20 + $0x4] sm:$0xf]
          %v6650 = vld [vmem:[#allocation20 + $0x8] sm:$0xf]
          %v6651 = vld [vmem:[#allocation20 + $0xc] sm:$0xf]
          %v6652 = vld [vmem:[#allocation20 + $0x10] sm:$0xf]
          %v6653 = vld [vmem:[#allocation20 + $0x14] sm:$0xf]
          %v6654 = vld [vmem:[#allocation20 + $0x18] sm:$0xf]
          %v6655 = vld [vmem:[#allocation20 + $0x1c] sm:$0xf]
          %v6656 = vld [vmem:[#allocation20 + $0x20] sm:$0xf]
          %v6657 = vld [vmem:[#allocation20 + $0x24] sm:$0xf]
          %v6658 = vld [vmem:[#allocation20 + $0x28] sm:$0xf]
          %v6659 = vld [vmem:[#allocation20 + $0x2c] sm:$0xf]
          %v6660 = vld [vmem:[#allocation20 + $0x30] sm:$0xf]
          %v6661 = vld [vmem:[#allocation20 + $0x34] sm:$0xf]
          %v6662 = vld [vmem:[#allocation20 + $0x38] sm:$0xf]
          %v6663 = vld [vmem:[#allocation20 + $0x3c] sm:$0xf]
          %v6664 = vld [vmem:[#allocation22] sm:$0x1]
          %v6666 = vlaneseq
          %v6667 = vshrl.u32 %v6666, 7
          %v6668 = vsub.s32 0, %v6667
          %v6669 = vrot.slane %v6664, %v6668
          %v6687 = vunpack.c.l.b16 %v6648
          %v6688 = vunpack.c.l.b16 %v6649
          %v6689 = vunpack.c.l.b16 %v6650
          %v6690 = vunpack.c.l.b16 %v6651
          %v6691 = vunpack.c.l.b16 %v6652
          %v6692 = vunpack.c.l.b16 %v6653
          %v6693 = vunpack.c.l.b16 %v6654
          %v6694 = vunpack.c.l.b16 %v6655
          %v6695 = vunpack.c.l.b16 %v6656
          %v6696 = vunpack.c.l.b16 %v6657
          %v6697 = vunpack.c.l.b16 %v6658
          %v6698 = vunpack.c.l.b16 %v6659
          %v6699 = vunpack.c.l.b16 %v6660
          %v6700 = vunpack.c.l.b16 %v6661
          %v6701 = vunpack.c.l.b16 %v6662
          %v6702 = vunpack.c.l.b16 %v6663
          %v6703 = vpack.c.b16 %v6688, %v6687
          %v6704 = vpack.c.b16 %v6690, %v6689
          %v6705 = vpack.c.b16 %v6692, %v6691
          %v6706 = vpack.c.b16 %v6694, %v6693
          %v6707 = vpack.c.b16 %v6696, %v6695
          %v6708 = vpack.c.b16 %v6698, %v6697
          %v6709 = vpack.c.b16 %v6700, %v6699
          %v6710 = vpack.c.b16 %v6702, %v6701
          %6719 = vmatprep.subr.bf16.mxu0 0
          %6720 = vmatpush1.bf16.msra.mxu0 %v6703
          %6721 = vmatprep.subr.bf16.mxu0 0
          %6722 = vmatpush1.bf16.msra.mxu0 %v6704
          %6723 = vmatprep.subr.bf16.mxu0 0
          %6724 = vmatpush1.bf16.msra.mxu0 %v6705
          %6725 = vmatprep.subr.bf16.mxu0 0
          %6726 = vmatpush1.bf16.msra.mxu0 %v6706
          %6727 = vmatprep.subr.bf16.mxu0 0
          %6728 = vmatpush1.bf16.msra.mxu0 %v6707
          %6729 = vmatprep.subr.bf16.mxu0 0
          %6730 = vmatpush1.bf16.msra.mxu0 %v6708
          %6731 = vmatprep.subr.bf16.mxu0 0
          %6732 = vmatpush1.bf16.msra.mxu0 %v6709
          %6733 = vmatprep.subr.bf16.mxu0 0
          %6734 = vmatpush1.bf16.msra.mxu0 %v6710
          %6735 = vmatprep.subr.bf16.mxu0 0
          %6736 = vmatpush1.bf16.msra.mxu0 0
          %6737 = vmatprep.subr.bf16.mxu0 0
          %6738 = vmatpush1.bf16.msra.mxu0 0
          %6739 = vmatprep.subr.bf16.mxu0 0
          %6740 = vmatpush1.bf16.msra.mxu0 0
          %6741 = vmatprep.subr.bf16.mxu0 0
          %6742 = vmatpush1.bf16.msra.mxu0 0
          %6743 = vmatprep.subr.bf16.mxu0 0
          %6744 = vmatpush1.bf16.msra.mxu0 0
          %6745 = vmatprep.subr.bf16.mxu0 0
          %6746 = vmatpush1.bf16.msra.mxu0 0
          %6747 = vmatprep.subr.bf16.mxu0 0
          %6748 = vmatpush1.bf16.msra.mxu0 0
          %6749 = vmatprep.subr.bf16.mxu0 0
          %6750 = vmatpush1.bf16.msra.mxu0 0
          %6751 = vmatprep.mubr.bf16.mxu0 0
          %6752 = vmatmul.mubr.bf16.gmra.mrb[0].mxu0 %v6640
          %v6753 = vpop.f32.mrb[0].mxu0
          %v6754 = vadd.f32 %v6669, %v6753
          %v6755 = vpop.f32.mrb[0].mxu0
          %v6756 = vpop.f32.mrb[0].mxu0
          %v6757 = vadd.f32 %v6669, %v6756
          %v6758 = vpop.f32.mrb[0].mxu0
          %6759 = vmatprep.mubr.bf16.mxu0 0
          %6760 = vmatmul.mubr.bf16.gmra.mrb[0].mxu0 %v6641
          %v6761 = vpop.f32.mrb[0].mxu0
          %v6762 = vadd.f32 %v6669, %v6761
          %v6763 = vpop.f32.mrb[0].mxu0
          %v6764 = vpop.f32.mrb[0].mxu0
          %v6765 = vadd.f32 %v6669, %v6764
          %v6766 = vpop.f32.mrb[0].mxu0
          %6767 = vmatprep.mubr.bf16.mxu0 0
          %6768 = vmatmul.mubr.bf16.gmra.mrb[0].mxu0 %v6642
          %v6769 = vpop.f32.mrb[0].mxu0
          %v6770 = vadd.f32 %v6669, %v6769
          %v6771 = vpop.f32.mrb[0].mxu0
          %v6772 = vpop.f32.mrb[0].mxu0
          %v6773 = vadd.f32 %v6669, %v6772
          %v6774 = vpop.f32.mrb[0].mxu0
          %6775 = vmatprep.mubr.bf16.mxu0 0
          %6776 = vmatmul.mubr.bf16.gmra.mrb[0].mxu0 %v6643
          %v6777 = vpop.f32.mrb[0].mxu0
          %v6778 = vadd.f32 %v6669, %v6777
          %v6779 = vpop.f32.mrb[0].mxu0
          %v6780 = vpop.f32.mrb[0].mxu0
          %v6781 = vadd.f32 %v6669, %v6780
          %v6782 = vpop.f32.mrb[0].mxu0
          %6783 = vmatprep.mubr.bf16.mxu0 0
          %6784 = vmatmul.mubr.bf16.gmra.mrb[0].mxu0 %v6644
          %v6785 = vpop.f32.mrb[0].mxu0
          %v6786 = vadd.f32 %v6669, %v6785
          %v6787 = vpop.f32.mrb[0].mxu0
          %v6788 = vpop.f32.mrb[0].mxu0
          %v6789 = vadd.f32 %v6669, %v6788
          %v6790 = vpop.f32.mrb[0].mxu0
          %6791 = vmatprep.mubr.bf16.mxu0 0
          %6792 = vmatmul.mubr.bf16.gmra.mrb[0].mxu0 %v6645
          %v6793 = vpop.f32.mrb[0].mxu0
          %v6794 = vadd.f32 %v6669, %v6793
          %v6795 = vpop.f32.mrb[0].mxu0
          %v6796 = vpop.f32.mrb[0].mxu0
          %v6797 = vadd.f32 %v6669, %v6796
          %v6798 = vpop.f32.mrb[0].mxu0
          %6799 = vmatprep.mubr.bf16.mxu0 0
          %6800 = vmatmul.mubr.bf16.gmra.mrb[0].mxu0 %v6646
          %v6801 = vpop.f32.mrb[0].mxu0
          %v6802 = vadd.f32 %v6669, %v6801
          %v6803 = vpop.f32.mrb[0].mxu0
          %v6804 = vpop.f32.mrb[0].mxu0
          %v6805 = vadd.f32 %v6669, %v6804
          %v6806 = vpop.f32.mrb[0].mxu0
          %6807 = vmatprep.mubr.bf16.mxu0 0
          %6808 = vmatmul.mubr.bf16.gmra.mrb[0].mxu0 %v6647
          %v6809 = vpop.f32.mrb[0].mxu0
          %v6810 = vadd.f32 %v6669, %v6809
          %v6811 = vpop.f32.mrb[0].mxu0
          %v6812 = vpop.f32.mrb[0].mxu0
          %v6813 = vadd.f32 %v6669, %v6812
          %v6814 = vpop.f32.mrb[0].mxu0
          %6815 = vdwg.mxu0
          %6816 = vst [vmem:[%s1034] sm:$0xff] %v6754
          %6817 = vst [vmem:[%s1034 + $0x8] sm:$0xff] %v6757
          %6818 = vst [vmem:[%s1034 + $0x10] sm:$0xff] %v6762
          %6819 = vst [vmem:[%s1034 + $0x18] sm:$0xff] %v6765
          %6820 = vst [vmem:[%s1034 + $0x20] sm:$0xff] %v6770
          %6821 = vst [vmem:[%s1034 + $0x28] sm:$0xff] %v6773
          %6822 = vst [vmem:[%s1034 + $0x30] sm:$0xff] %v6778
          %6823 = vst [vmem:[%s1034 + $0x38] sm:$0xff] %v6781
          %6824 = vst [vmem:[%s1034 + $0x40] sm:$0xff] %v6786
          %6825 = vst [vmem:[%s1034 + $0x48] sm:$0xff] %v6789
          %6826 = vst [vmem:[%s1034 + $0x50] sm:$0xff] %v6794
          %6827 = vst [vmem:[%s1034 + $0x58] sm:$0xff] %v6797
          %6828 = vst [vmem:[%s1034 + $0x60] sm:$0xff] %v6802
          %6829 = vst [vmem:[%s1034 + $0x68] sm:$0xff] %v6805
          %6830 = vst [vmem:[%s1034 + $0x70] sm:$0xff] %v6810
          %6831 = vst [vmem:[%s1034 + $0x78] sm:$0xff] %v6813
        $region156: #{image_generator_forward.1} parent=95 // pred_fallthru
          _
        %s6832 = smul.u32 2, %s49
        %p6833 = scmp.lt.s32.totalorder %s6832, 1
        %s6834 = scalar_select %p6833, %s6832, 1
        %s6835 = smul.addr %s6834, 8
        %s6836 = smul.addr %s6835, 8
        %s6837 = scalar_lea.vmem %s19, %s6836
        // Predicated region
        $region157: #{image_generator_forward.1} parent=95 // pred_check
          %p6838 = pneg %p539
        $region158: #{image_generator_forward.1} parent=95 // pred_check_branch
          %6840 = sbr.rel (%p6838) target = $region160
        $region159: #{image_generator_forward.1} parent=95 // pred_region
          %s6841 = smul.u32 2, %s49
        $region160: #{image_generator_forward.1} parent=95 // pred_fallthru
          _
        // Predicated region
        $region161: #{image_generator_forward.1} parent=95 // pred_check
          %p6842 = pneg %p539
        $region162: #{image_generator_forward.1} parent=95 // pred_check_branch
          %6844 = sbr.rel (%p6842) target = $region164
        $region163: #{image_generator_forward.1} parent=95 // pred_region
          %s6845 = smul.u32 2, %s49
          %p6846 = scmp.lt.s32.totalorder %s6845, 1
          %s6847 = scalar_select %p6846, %s6845, 1
          %s6848 = smul.addr %s6847, 8
          %s6849 = smul.addr %s6848, 8
          %s6850 = scalar_lea.vmem %s19, %s6849
        $region164: #{image_generator_forward.1} parent=95 // pred_fallthru
          _
      $region96: #{image_generator_forward.1} parent=5 // pred_fallthru
        _
      %p6851 = scmp.le.s32.totalorder 2, %s40
      // Predicated region
      $region165: #{image_generator_forward.1} parent=5 // pred_check
        %p6852 = pneg %p6851
      $region166: #{image_generator_forward.1} parent=5 // pred_check_branch
        %6854 = sbr.rel (%p6852) target = $region168
      $region167: #{image_generator_forward.1} parent=5 // pred_region
        %s6855 = ssub.s32 %s40, 2
      $region168: #{image_generator_forward.1} parent=5 // pred_fallthru
        _
    $region6: #{image_generator_forward.1} parent=1 // loop_footer
      %s44 = sadd.s32 1, %s40
    $region7: #{image_generator_forward.1} parent=1 // loop_footer_branch
      %39 = sbr.rel target = $region3
    $region8: #{image_generator_forward.1} parent=1 // loop_exit
      _
    %6856 = vsyncpa [#allocation4], 1
    %s6857 = scalar_lea.sflag [#allocation4], 1
    %6858 = vsyncpa %s6857, 1
    %6859 = vsyncpa [#allocation6], 1
    %s6860 = scalar_lea.sflag [#allocation6], 1
    %6861 = vsyncpa %s6860, 1
    %6862 = vsyncpa [#allocation9], 1
    %s6863 = scalar_lea.sflag [#allocation9], 1
    %6864 = vsyncpa %s6863, 1
    %6865 = vsyncpa [#allocation12], 1
    %s6866 = scalar_lea.sflag [#allocation12], 1
    %6867 = vsyncpa %s6866, 1
    %6868 = vsyncpa [#allocation15], 1
    %s6869 = scalar_lea.sflag [#allocation15], 1
    %6870 = vsyncpa %s6869, 1
    %6871 = vsyncpa [#allocation18], 1
    %6872 = vsyncpa [#allocation21], 1

</llo_original>
